<compile_context>
chip_gen: v7x
topology: tpu7x:2x2x1
jax: 0.10.0
libtpu: 0.0.40
codegen_flags: <defaults>
</compile_context>

<pallas_src>
import functools

import jax
import jax.numpy as jnp
from jax import lax
from jax.experimental import pallas as pl
from jax.experimental.pallas import tpu as pltpu

NEG_INF = -1e30  # matches masked_softmax in the reference implementation

# dot_general dimension numbers: contract last dim of lhs with last dim of rhs
# (i.e. x @ w.T for PyTorch-style (out, in) weights) -- no transposes needed.
_CL = (((1,), (1,)), ((), ()))


def _row_tile(n, target=512):
    """Largest tile <= target that divides n (multiple of 8 when tiling)."""
    if n <= target:
        return n
    for t in range(target, 7, -1):
        if n % t == 0 and t % 8 == 0:
            return t
    return n


# ------------------------------------------------------------------
# Row-tiled linear:  y = x @ w.T + b   (w is (out, in), like nn.Linear)
# ------------------------------------------------------------------

def _linear_kernel(x_ref, w_ref, b_ref, o_ref):
    o_ref[...] = (
        lax.dot_general(x_ref[...], w_ref[...], _CL,
                        preferred_element_type=jnp.float32)
        + b_ref[...]
    )


def linear_rows(x2d, w, b):
    n, din = x2d.shape
    dout = w.shape[0]
    tile = _row_tile(n)
    return pl.pallas_call(
        _linear_kernel,
        out_shape=jax.ShapeDtypeStruct((n, dout), jnp.float32),
        grid=(n // tile,),
        in_specs=[
            pl.BlockSpec((tile, din), lambda i: (i, 0)),
            pl.BlockSpec((dout, din), lambda i: (0, 0)),
            pl.BlockSpec((1, dout), lambda i: (0, 0)),
        ],
        out_specs=pl.BlockSpec((tile, dout), lambda i: (i, 0)),
        compiler_params=pltpu.CompilerParams(
            dimension_semantics=("parallel",)),
    )(x2d, w, b.reshape(1, dout))


# ------------------------------------------------------------------
# Fused embedding projection + 2 highway layers (row-tiled)
# ------------------------------------------------------------------

def _emb_hwy_kernel(x_ref, pw_ref,
                    wt0_ref, bt0_ref, wg0_ref, bg0_ref,
                    wt1_ref, bt1_ref, wg1_ref, bg1_ref, o_ref):
    x = lax.dot_general(x_ref[...], pw_ref[...], _CL,
                        preferred_element_type=jnp.float32)        # (tile, h)
    for wt, bt, wg, bg in ((wt0_ref, bt0_ref, wg0_ref, bg0_ref),
                           (wt1_ref, bt1_ref, wg1_ref, bg1_ref)):
        t = jnp.maximum(
            lax.dot_general(x, wt[...], _CL,
                            preferred_element_type=jnp.float32) + bt[...], 0.0)
        g = jax.nn.sigmoid(
            lax.dot_general(x, wg[...], _CL,
                            preferred_element_type=jnp.float32) + bg[...])
        x = g * t + (1.0 - g) * x
    o_ref[...] = x


def embedding(emb_p, idxs):
    B, T = idxs.shape
    # TODO(synk): embedding gather stays in plain JAX (no clean Pallas gather).
    vecs = jnp.take(emb_p["word_vectors"], idxs, axis=0)           # (B, T, E)
    E = vecs.shape[-1]
    h = emb_p["proj_w"].shape[0]
    n = B * T
    tile = _row_tile(n)
    (wt0, bt0, wg0, bg0), (wt1, bt1, wg1, bg1) = emb_p["hwy"]
    out = pl.pallas_call(
        _emb_hwy_kernel,
        out_shape=jax.ShapeDtypeStruct((n, h), jnp.float32),
        grid=(n // tile,),
        in_specs=[
            pl.BlockSpec((tile, E), lambda i: (i, 0)),
            pl.BlockSpec((h, E), lambda i: (0, 0)),
            pl.BlockSpec((h, h), lambda i: (0, 0)),
            pl.BlockSpec((1, h), lambda i: (0, 0)),
            pl.BlockSpec((h, h), lambda i: (0, 0)),
            pl.BlockSpec((1, h), lambda i: (0, 0)),
            pl.BlockSpec((h, h), lambda i: (0, 0)),
            pl.BlockSpec((1, h), lambda i: (0, 0)),
            pl.BlockSpec((h, h), lambda i: (0, 0)),
            pl.BlockSpec((1, h), lambda i: (0, 0)),
        ],
        out_specs=pl.BlockSpec((tile, h), lambda i: (i, 0)),
        compiler_params=pltpu.CompilerParams(
            dimension_semantics=("parallel",)),
    )(vecs.reshape(n, E), emb_p["proj_w"],
      wt0, bt0.reshape(1, h), wg0, bg0.reshape(1, h),
      wt1, bt1.reshape(1, h), wg1, bg1.reshape(1, h))
    return out.reshape(B, T, h)


# ------------------------------------------------------------------
# Fused bidirectional LSTM recurrence
#   xproj: (T, B, 8H)  (fwd gates in [:, :, :4H], bwd gates in [:, :, 4H:])
#   vmask: (T, B, 1)   1.0 at valid timesteps, 0.0 at padding
# Packed-sequence semantics are obtained by freezing state / zeroing outputs
# at padded positions (equivalent to the reference's flip-and-mask scheme).
# ------------------------------------------------------------------

def _bilstm_rec_kernel(xp_ref, vm_ref, whf_ref, whb_ref, of_ref, ob_ref):
    T, B, _ = xp_ref.shape
    H = whf_ref.shape[1]
    whf = whf_ref[...]
    whb = whb_ref[...]

    def lstm_step(xgate, h, c, whh):
        gates = xgate + lax.dot_general(h, whh, _CL,
                                        preferred_element_type=jnp.float32)
        # PyTorch LSTM gate order: i, f, g, o
        # TODO(synk): at production sizes pad H to a multiple of 128 (or store
        # gates as (4, B, H)) so these lane sub-slices are full-tile aligned.
        i = jax.nn.sigmoid(gates[:, 0 * H:1 * H])
        f = jax.nn.sigmoid(gates[:, 1 * H:2 * H])
        g = jnp.tanh(gates[:, 2 * H:3 * H])
        o = jax.nn.sigmoid(gates[:, 3 * H:4 * H])
        c_new = f * c + i * g
        h_new = o * jnp.tanh(c_new)
        return h_new, c_new

    def one_step(s, carry):
        hf, cf, hb, cb = carry
        # forward direction at timestep s
        xf = xp_ref[s]                                    # (B, 8H)
        vf = vm_ref[s]                                    # (B, 1)
        hf_new, cf_new = lstm_step(xf[:, :4 * H], hf, cf, whf)
        hf = vf * hf_new + (1.0 - vf) * hf
        cf = vf * cf_new + (1.0 - vf) * cf
        of_ref[s] = vf * hf_new
        # backward direction at timestep T-1-s
        tb = T - 1 - s
        xb = xp_ref[tb]
        vb = vm_ref[tb]
        hb_new, cb_new = lstm_step(xb[:, 4 * H:], hb, cb, whb)
        hb = vb * hb_new + (1.0 - vb) * hb
        cb = vb * cb_new + (1.0 - vb) * cb
        ob_ref[tb] = vb * hb_new
        return (hf, cf, hb, cb)

    z = jnp.zeros((B, H), jnp.float32)
    carry = (z, z, z, z)

    # Manual unroll-by-2 so the scheduler can overlap VPU/EUP gate math of one
    # step with the MXU push of the next.
    def two_steps(j, carry):
        carry = one_step(2 * j, carry)
        return one_step(2 * j + 1, carry)

    carry = lax.fori_loop(0, T // 2, two_steps, carry)
    if T % 2:
        carry = one_step(T - 1, carry)


def bilstm_layer(lp, x, lengths):
    """Single bidirectional LSTM layer. x: (B, T, D) -> (B, T, 2H)."""
    B, T, D = x.shape
    H = lp["fwd"][2].shape[1]

    # Fused input projection for both directions (one big MXU-friendly matmul).
    w8 = jnp.concatenate([lp["fwd"][0], lp["bwd"][0]], axis=0)          # (8H, D)
    b8 = jnp.concatenate([lp["fwd"][1] + lp["fwd"][3],
                          lp["bwd"][1] + lp["bwd"][3]], axis=0)         # (8H,)
    xproj = linear_rows(x.reshape(B * T, D), w8, b8).reshape(B, T, 8 * H)
    xproj = jnp.transpose(xproj, (1, 0, 2))                             # (T, B, 8H)

    vmask = (jnp.arange(T)[:, None] < lengths[None, :]).astype(jnp.float32)
    vmask = vmask[:, :, None]                                           # (T, B, 1)

    # TODO(synk): at production T/B/H this xproj block should be kept in HBM
    # (memory_space=pl.ANY) and streamed into VMEM in double-buffered
    # time-chunks with pltpu.make_async_copy; at these test shapes the whole
    # tensor fits VMEM so a plain whole-array BlockSpec is used.
    o_f, o_b = pl.pallas_call(
        _bilstm_rec_kernel,
        out_shape=(jax.ShapeDtypeStruct((T, B, H), jnp.float32),
                   jax.ShapeDtypeStruct((T, B, H), jnp.float32)),
        grid=(1,),
        in_specs=[
            pl.BlockSpec((T, B, 8 * H), lambda i: (0, 0, 0)),
            pl.BlockSpec((T, B, 1), lambda i: (0, 0, 0)),
            pl.BlockSpec((4 * H, H), lambda i: (0, 0)),
            pl.BlockSpec((4 * H, H), lambda i: (0, 0)),
        ],
        out_specs=(pl.BlockSpec((T, B, H), lambda i: (0, 0, 0)),
                   pl.BlockSpec((T, B, H), lambda i: (0, 0, 0))),
        compiler_params=pltpu.CompilerParams(
            dimension_semantics=("arbitrary",)),
    )(xproj, vmask, lp["fwd"][2], lp["bwd"][2])

    out = jnp.concatenate([o_f, o_b], axis=-1)                          # (T, B, 2H)
    return jnp.transpose(out, (1, 0, 2))                                # (B, T, 2H)


def rnn_encoder(layers_p, x, lengths):
    out = x
    for lp in layers_p:
        out = bilstm_layer(lp, out, lengths)
    return out  # (B, T, 2*hidden), zero at padded positions


# ------------------------------------------------------------------
# BiDAF attention
# ------------------------------------------------------------------

def _softmax(x, axis):
    m = jnp.max(x, axis=axis, keepdims=True)
    e = jnp.exp(x - m)
    return e * pl.reciprocal(jnp.sum(e, axis=axis, keepdims=True), approx=True)


def _bidaf_att_kernel(c_ref, q_ref, cm_ref, qm_ref,
                      cw_ref, qwr_ref, cqw_ref, bias_ref, o_ref):
    c = c_ref[0]          # (Lc, 2h)
    q = q_ref[0]          # (Lq, 2h)
    cm = cm_ref[0]        # (Lc, 1)
    qm = qm_ref[0]        # (1, Lq)

    # similarity matrix s: (Lc, Lq) -- no in-kernel transposes
    s0 = jnp.dot(c, cw_ref[...], preferred_element_type=jnp.float32)          # (Lc,1)
    s1 = lax.dot_general(qwr_ref[...], q, _CL,
                         preferred_element_type=jnp.float32)                   # (1,Lq)
    s2 = lax.dot_general(c * cqw_ref[...], q, _CL,
                         preferred_element_type=jnp.float32)                   # (Lc,Lq)
    s = s0 + s1 + s2 + bias_ref[...]

    s1p = _softmax(qm * s + (1.0 - qm) * NEG_INF, axis=1)   # softmax over q dim
    s2p = _softmax(cm * s + (1.0 - cm) * NEG_INF, axis=0)   # softmax over c dim

    a = jnp.dot(s1p, q, preferred_element_type=jnp.float32)                    # (Lc,2h)
    ss = lax.dot_general(s1p, s2p, _CL,
                         preferred_element_type=jnp.float32)                   # (Lc,Lc)
    b = jnp.dot(ss, c, preferred_element_type=jnp.float32)                     # (Lc,2h)
    o_ref[0] = jnp.concatenate([c, a, c * a, c * b], axis=-1)                  # (Lc,8h)


def bidaf_attention(att_p, c, q, c_mask, q_mask):
    B, Lc, D2 = c.shape
    Lq = q.shape[1]
    cmf = c_mask.astype(jnp.float32).reshape(B, Lc, 1)
    qmf = q_mask.astype(jnp.float32).reshape(B, 1, Lq)
    q_w_row = att_p["q_w"].reshape(1, D2)   # (1, 2h) so s1 is produced as (1,Lq)
    # TODO(synk): at production Lc (~400) add an Lc-tile grid axis with a
    # two-pass column softmax; a single per-batch block is fine at test sizes.
    return pl.pallas_call(
        _bidaf_att_kernel,
        out_shape=jax.ShapeDtypeStruct((B, Lc, 4 * D2), jnp.float32),
        grid=(B,),
        in_specs=[
            pl.BlockSpec((1, Lc, D2), lambda b: (b, 0, 0)),
            pl.BlockSpec((1, Lq, D2), lambda b: (b, 0, 0)),
            pl.BlockSpec((1, Lc, 1), lambda b: (b, 0, 0)),
            pl.BlockSpec((1, 1, Lq), lambda b: (b, 0, 0)),
            pl.BlockSpec((D2, 1), lambda b: (0, 0)),
            pl.BlockSpec((1, D2), lambda b: (0, 0)),
            pl.BlockSpec((1, D2), lambda b: (0, 0)),
            pl.BlockSpec((1, 1), lambda b: (0, 0)),
        ],
        out_specs=pl.BlockSpec((1, Lc, 4 * D2), lambda b: (b, 0, 0)),
        compiler_params=pltpu.CompilerParams(
            dimension_semantics=("parallel",)),
    )(c, q, cmf, qmf, att_p["c_w"], q_w_row, att_p["cq_w"], att_p["bias"])


# ------------------------------------------------------------------
# Fused output layer: 4 dout=1 linears + 2 masked log-softmaxes,
# logits produced lane-dense as (1, Lc).
# ------------------------------------------------------------------

def _output_kernel(att_ref, mod_ref, mod2_ref, m_ref,
                   wa1_ref, wm1_ref, wa2_ref, wm2_ref, b1_ref, b2_ref,
                   p1_ref, p2_ref):
    att = att_ref[0]      # (Lc, 8h)
    mod = mod_ref[0]      # (Lc, 2h)
    mod2 = mod2_ref[0]    # (Lc, 2h)
    m = m_ref[0]          # (1, Lc)

    l1 = (lax.dot_general(wa1_ref[...], att, _CL, preferred_element_type=jnp.float32)
          + lax.dot_general(wm1_ref[...], mod, _CL, preferred_element_type=jnp.float32)
          + b1_ref[...])                                                     # (1, Lc)
    l2 = (lax.dot_general(wa2_ref[...], att, _CL, preferred_element_type=jnp.float32)
          + lax.dot_general(wm2_ref[...], mod2, _CL, preferred_element_type=jnp.float32)
          + b2_ref[...])                                                     # (1, Lc)

    for out_ref, logits in ((p1_ref, l1), (p2_ref, l2)):
        z = m * logits + (1.0 - m) * NEG_INF
        zmax = jnp.max(z, axis=-1, keepdims=True)
        lse = jnp.log(jnp.sum(jnp.exp(z - zmax), axis=-1, keepdims=True)) + zmax
        out_ref[0] = z - lse


def bidaf_output(op, att, mod, c_mask, c_len):
    B, Lc, D8 = att.shape
    D2 = mod.shape[-1]
    mod2 = bilstm_layer(op["rnn"], mod, c_len)                  # (B, Lc, 2h)
    mf = c_mask.astype(jnp.float32).reshape(B, 1, Lc)
    b1 = (op["att_b1"] + op["mod_b1"]).reshape(1, 1)
    b2 = (op["att_b2"] + op["mod_b2"]).reshape(1, 1)
    log_p1, log_p2 = pl.pallas_call(
        _output_kernel,
        out_shape=(jax.ShapeDtypeStruct((B, 1, Lc), jnp.float32),
                   jax.ShapeDtypeStruct((B, 1, Lc), jnp.float32)),
        grid=(B,),
        in_specs=[
            pl.BlockSpec((1, Lc, D8), lambda b: (b, 0, 0)),
            pl.BlockSpec((1, Lc, D2), lambda b: (b, 0, 0)),
            pl.BlockSpec((1, Lc, D2), lambda b: (b, 0, 0)),
            pl.BlockSpec((1, 1, Lc), lambda b: (b, 0, 0)),
            pl.BlockSpec((1, D8), lambda b: (0, 0)),
            pl.BlockSpec((1, D2), lambda b: (0, 0)),
            pl.BlockSpec((1, D8), lambda b: (0, 0)),
            pl.BlockSpec((1, D2), lambda b: (0, 0)),
            pl.BlockSpec((1, 1), lambda b: (0, 0)),
            pl.BlockSpec((1, 1), lambda b: (0, 0)),
        ],
        out_specs=(pl.BlockSpec((1, 1, Lc), lambda b: (b, 0, 0)),
                   pl.BlockSpec((1, 1, Lc), lambda b: (b, 0, 0))),
        compiler_params=pltpu.CompilerParams(
            dimension_semantics=("parallel",)),
    )(att, mod, mod2, mf,
      op["att_w1"], op["mod_w1"], op["att_w2"], op["mod_w2"], b1, b2)
    return log_p1[:, 0, :], log_p2[:, 0, :]


# ------------------------------------------------------------------
# Full forward pass
# ------------------------------------------------------------------

def bidaf_forward(params, cw_idxs, qw_idxs):
    c_mask = cw_idxs != 0
    q_mask = qw_idxs != 0
    c_len = c_mask.sum(-1)
    q_len = q_mask.sum(-1)

    c_emb = embedding(params["emb"], cw_idxs)                       # (B, Lc, h)
    q_emb = embedding(params["emb"], qw_idxs)                       # (B, Lq, h)

    c_enc = rnn_encoder(params["enc"], c_emb, c_len)                # (B, Lc, 2h)
    q_enc = rnn_encoder(params["enc"], q_emb, q_len)                # (B, Lq, 2h)

    att = bidaf_attention(params["att"], c_enc, q_enc, c_mask, q_mask)  # (B, Lc, 8h)
    mod = rnn_encoder(params["mod"], att, c_len)                    # (B, Lc, 2h)

    return bidaf_output(params["out"], att, mod, c_mask, c_len)


# ------------------------------------------------------------------
# Deterministic parameter initialization (shapes follow the torch module)
# ------------------------------------------------------------------

def init_params(key, vocab, emb_dim, h):
    keys = iter(jax.random.split(key, 128))

    def w(shape, scale=0.1):
        return (scale * jax.random.normal(next(keys), shape)).astype(jnp.float32)

    def lstm_dir(din):
        return (w((4 * h, din)), w((4 * h,)), w((4 * h, h)), w((4 * h,)))

    def bilstm(din):
        return {"fwd": lstm_dir(din), "bwd": lstm_dir(din)}

    return {
        "emb": {
            "word_vectors": w((vocab, emb_dim), 1.0).at[0].set(0.0),
            "proj_w": w((h, emb_dim)),
            "hwy": [(w((h, h)), w((h,)), w((h, h)), w((h,))) for _ in range(2)],
        },
        "enc": [bilstm(h)],                                   # 1-layer BiLSTM encoder
        "att": {
            "c_w": w((2 * h, 1)),
            "q_w": w((2 * h, 1)),
            "cq_w": w((1, 2 * h)),
            "bias": jnp.zeros((1, 1), jnp.float32),
        },
        "mod": [bilstm(8 * h), bilstm(2 * h)],                # 2-layer BiLSTM model enc
        "out": {
            "att_w1": w((1, 8 * h)), "att_b1": w((1,)),
            "mod_w1": w((1, 2 * h)), "mod_b1": w((1,)),
            "rnn": bilstm(2 * h),
            "att_w2": w((1, 8 * h)), "att_b2": w((1,)),
            "mod_w2": w((1, 2 * h)), "mod_b2": w((1,)),
        },
    }


if __name__ == "__main__":
    key = jax.random.PRNGKey(0)
    pkey, ckey, qkey = jax.random.split(key, 3)

    vocab, emb_dim, hidden = 40, 24, 16
    B, Lc, Lq = 2, 12, 8

    params = init_params(pkey, vocab, emb_dim, hidden)

    cw_idxs = jax.random.randint(ckey, (B, Lc), 1, vocab, dtype=jnp.int32)
    qw_idxs = jax.random.randint(qkey, (B, Lq), 1, vocab, dtype=jnp.int32)
    # trailing padding (index 0), like real SQuAD batches
    cw_idxs = cw_idxs.at[0, 10:].set(0)
    qw_idxs = qw_idxs.at[1, 6:].set(0)

    fwd = jax.jit(functools.partial(bidaf_forward, params))
    log_p1, log_p2 = fwd(cw_idxs, qw_idxs)
    jax.block_until_ready((log_p1, log_p2))

    assert log_p1.shape == (B, Lc) and log_p2.shape == (B, Lc)
    assert bool(jnp.all(jnp.isfinite(log_p1))) and bool(jnp.all(jnp.isfinite(log_p2)))
    print("KERNEL_OK")
</pallas_src>

<mosaic_0001>
module attributes {stable_mosaic.version = 11 : i64} {
  func.func @_emb_hwy_kernel(%arg0: i32, %arg1: memref<16x24xf32, #tpu.memory_space<vmem>>, %arg2: memref<16x24xf32, #tpu.memory_space<vmem>>, %arg3: memref<16x16xf32, #tpu.memory_space<vmem>>, %arg4: memref<1x16xf32, #tpu.memory_space<vmem>>, %arg5: memref<16x16xf32, #tpu.memory_space<vmem>>, %arg6: memref<1x16xf32, #tpu.memory_space<vmem>>, %arg7: memref<16x16xf32, #tpu.memory_space<vmem>>, %arg8: memref<1x16xf32, #tpu.memory_space<vmem>>, %arg9: memref<16x16xf32, #tpu.memory_space<vmem>>, %arg10: memref<1x16xf32, #tpu.memory_space<vmem>>, %arg11: memref<16x16xf32, #tpu.memory_space<vmem>>) attributes {dimension_semantics = [#tpu.dimension_semantics<parallel>], iteration_bounds = array<i64: 1>, scalar_prefetch = 0 : i64, scratch_operands = 0 : i64, tpu.core_type = #tpu.core_type<tc>, window_params = [{transform_indices = @transform_0, window_bounds = array<i64: 16, 24>}, {pipeline_mode = #tpu.pipeline_mode<synchronous>, transform_indices = @transform_1, window_bounds = array<i64: 16, 24>}, {pipeline_mode = #tpu.pipeline_mode<synchronous>, transform_indices = @transform_2, window_bounds = array<i64: 16, 16>}, {pipeline_mode = #tpu.pipeline_mode<synchronous>, transform_indices = @transform_3, window_bounds = array<i64: 1, 16>}, {pipeline_mode = #tpu.pipeline_mode<synchronous>, transform_indices = @transform_4, window_bounds = array<i64: 16, 16>}, {pipeline_mode = #tpu.pipeline_mode<synchronous>, transform_indices = @transform_5, window_bounds = array<i64: 1, 16>}, {pipeline_mode = #tpu.pipeline_mode<synchronous>, transform_indices = @transform_6, window_bounds = array<i64: 16, 16>}, {pipeline_mode = #tpu.pipeline_mode<synchronous>, transform_indices = @transform_7, window_bounds = array<i64: 1, 16>}, {pipeline_mode = #tpu.pipeline_mode<synchronous>, transform_indices = @transform_8, window_bounds = array<i64: 16, 16>}, {pipeline_mode = #tpu.pipeline_mode<synchronous>, transform_indices = @transform_9, window_bounds = array<i64: 1, 16>}, {transform_indices = @transform_10, window_bounds = array<i64: 16, 16>}]} {
    %c0 = arith.constant 0 : index
    %c0_0 = arith.constant 0 : index
    %0 = vector.load %arg1[%c0, %c0_0] : memref<16x24xf32, #tpu.memory_space<vmem>>, vector<16x24xf32>
    %c0_1 = arith.constant 0 : index
    %c0_2 = arith.constant 0 : index
    %1 = vector.load %arg2[%c0_1, %c0_2] : memref<16x24xf32, #tpu.memory_space<vmem>>, vector<16x24xf32>
    %cst = arith.constant dense<0.000000e+00> : vector<16x16xf32>
    %2 = tpu.matmul %0, %1, %cst {dimension_numbers = #tpu.dot_dimension_numbers<[1], [1], [0], [0], [0, 0, 1, 0], [], []>} : vector<16x24xf32>, vector<16x24xf32>, vector<16x16xf32> -> vector<16x16xf32>
    %c0_3 = arith.constant 0 : index
    %c0_4 = arith.constant 0 : index
    %3 = vector.load %arg3[%c0_3, %c0_4] : memref<16x16xf32, #tpu.memory_space<vmem>>, vector<16x16xf32>
    %cst_5 = arith.constant dense<0.000000e+00> : vector<16x16xf32>
    %4 = tpu.matmul %2, %3, %cst_5 {dimension_numbers = #tpu.dot_dimension_numbers<[1], [1], [0], [0], [0, 0, 1, 0], [], []>} : vector<16x16xf32>, vector<16x16xf32>, vector<16x16xf32> -> vector<16x16xf32>
    %c0_6 = arith.constant 0 : index
    %c0_7 = arith.constant 0 : index
    %5 = vector.load %arg4[%c0_6, %c0_7] : memref<1x16xf32, #tpu.memory_space<vmem>>, vector<1x16xf32>
    %6 = vector.broadcast %5 : vector<1x16xf32> to vector<16x16xf32>
    %7 = arith.addf %4, %6 : vector<16x16xf32>
    %cst_8 = arith.constant 0.000000e+00 : f32
    %8 = vector.broadcast %cst_8 : f32 to vector<16x16xf32>
    %9 = arith.maximumf %7, %8 : vector<16x16xf32>
    %c0_9 = arith.constant 0 : index
    %c0_10 = arith.constant 0 : index
    %10 = vector.load %arg5[%c0_9, %c0_10] : memref<16x16xf32, #tpu.memory_space<vmem>>, vector<16x16xf32>
    %cst_11 = arith.constant dense<0.000000e+00> : vector<16x16xf32>
    %11 = tpu.matmul %2, %10, %cst_11 {dimension_numbers = #tpu.dot_dimension_numbers<[1], [1], [0], [0], [0, 0, 1, 0], [], []>} : vector<16x16xf32>, vector<16x16xf32>, vector<16x16xf32> -> vector<16x16xf32>
    %c0_12 = arith.constant 0 : index
    %c0_13 = arith.constant 0 : index
    %12 = vector.load %arg6[%c0_12, %c0_13] : memref<1x16xf32, #tpu.memory_space<vmem>>, vector<1x16xf32>
    %13 = vector.broadcast %12 : vector<1x16xf32> to vector<16x16xf32>
    %14 = arith.addf %11, %13 : vector<16x16xf32>
    %15 = arith.negf %14 : vector<16x16xf32>
    %16 = math.exp %15 : vector<16x16xf32>
    %cst_14 = arith.constant 1.000000e+00 : f32
    %17 = vector.broadcast %cst_14 : f32 to vector<16x16xf32>
    %18 = arith.addf %17, %16 : vector<16x16xf32>
    %19 = arith.divf %17, %18 : vector<16x16xf32>
    %20 = arith.mulf %19, %9 : vector<16x16xf32>
    %cst_15 = arith.constant 1.000000e+00 : f32
    %21 = vector.broadcast %cst_15 : f32 to vector<16x16xf32>
    %22 = arith.subf %21, %19 : vector<16x16xf32>
    %23 = arith.mulf %22, %2 : vector<16x16xf32>
    %24 = arith.addf %20, %23 : vector<16x16xf32>
    %c0_16 = arith.constant 0 : index
    %c0_17 = arith.constant 0 : index
    %25 = vector.load %arg7[%c0_16, %c0_17] : memref<16x16xf32, #tpu.memory_space<vmem>>, vector<16x16xf32>
    %cst_18 = arith.constant dense<0.000000e+00> : vector<16x16xf32>
    %26 = tpu.matmul %24, %25, %cst_18 {dimension_numbers = #tpu.dot_dimension_numbers<[1], [1], [0], [0], [0, 0, 1, 0], [], []>} : vector<16x16xf32>, vector<16x16xf32>, vector<16x16xf32> -> vector<16x16xf32>
    %c0_19 = arith.constant 0 : index
    %c0_20 = arith.constant 0 : index
    %27 = vector.load %arg8[%c0_19, %c0_20] : memref<1x16xf32, #tpu.memory_space<vmem>>, vector<1x16xf32>
    %28 = vector.broadcast %27 : vector<1x16xf32> to vector<16x16xf32>
    %29 = arith.addf %26, %28 : vector<16x16xf32>
    %cst_21 = arith.constant 0.000000e+00 : f32
    %30 = vector.broadcast %cst_21 : f32 to vector<16x16xf32>
    %31 = arith.maximumf %29, %30 : vector<16x16xf32>
    %c0_22 = arith.constant 0 : index
    %c0_23 = arith.constant 0 : index
    %32 = vector.load %arg9[%c0_22, %c0_23] : memref<16x16xf32, #tpu.memory_space<vmem>>, vector<16x16xf32>
    %cst_24 = arith.constant dense<0.000000e+00> : vector<16x16xf32>
    %33 = tpu.matmul %24, %32, %cst_24 {dimension_numbers = #tpu.dot_dimension_numbers<[1], [1], [0], [0], [0, 0, 1, 0], [], []>} : vector<16x16xf32>, vector<16x16xf32>, vector<16x16xf32> -> vector<16x16xf32>
    %c0_25 = arith.constant 0 : index
    %c0_26 = arith.constant 0 : index
    %34 = vector.load %arg10[%c0_25, %c0_26] : memref<1x16xf32, #tpu.memory_space<vmem>>, vector<1x16xf32>
    %35 = vector.broadcast %34 : vector<1x16xf32> to vector<16x16xf32>
    %36 = arith.addf %33, %35 : vector<16x16xf32>
    %37 = arith.negf %36 : vector<16x16xf32>
    %38 = math.exp %37 : vector<16x16xf32>
    %cst_27 = arith.constant 1.000000e+00 : f32
    %39 = vector.broadcast %cst_27 : f32 to vector<16x16xf32>
    %40 = arith.addf %39, %38 : vector<16x16xf32>
    %41 = arith.divf %39, %40 : vector<16x16xf32>
    %42 = arith.mulf %41, %31 : vector<16x16xf32>
    %cst_28 = arith.constant 1.000000e+00 : f32
    %43 = vector.broadcast %cst_28 : f32 to vector<16x16xf32>
    %44 = arith.subf %43, %41 : vector<16x16xf32>
    %45 = arith.mulf %44, %24 : vector<16x16xf32>
    %46 = arith.addf %42, %45 : vector<16x16xf32>
    %c0_29 = arith.constant 0 : index
    %c0_30 = arith.constant 0 : index
    %47 = vector.load %arg11[%c0_29, %c0_30] : memref<16x16xf32, #tpu.memory_space<vmem>>, vector<16x16xf32>
    tpu.vector_store %arg11[%c0_29, %c0_30], %46 {strides = array<i32>} : memref<16x16xf32, #tpu.memory_space<vmem>>, vector<16x16xf32>,
    return
  }
  func.func @transform_0(%arg0: i32) -> (i32, i32) {
    %c0_i32 = arith.constant 0 : i32
    %c0_i32_0 = arith.constant 0 : i32
    return %arg0, %c0_i32 : i32, i32
  }
  func.func @transform_1(%arg0: i32) -> (i32, i32) {
    %c0_i32 = arith.constant 0 : i32
    %c0_i32_0 = arith.constant 0 : i32
    %c0_i32_1 = arith.constant 0 : i32
    return %c0_i32, %c0_i32_0 : i32, i32
  }
  func.func @transform_2(%arg0: i32) -> (i32, i32) {
    %c0_i32 = arith.constant 0 : i32
    %c0_i32_0 = arith.constant 0 : i32
    %c0_i32_1 = arith.constant 0 : i32
    return %c0_i32, %c0_i32_0 : i32, i32
  }
  func.func @transform_3(%arg0: i32) -> (i32, i32) {
    %c0_i32 = arith.constant 0 : i32
    %c0_i32_0 = arith.constant 0 : i32
    %c0_i32_1 = arith.constant 0 : i32
    return %c0_i32, %c0_i32_0 : i32, i32
  }
  func.func @transform_4(%arg0: i32) -> (i32, i32) {
    %c0_i32 = arith.constant 0 : i32
    %c0_i32_0 = arith.constant 0 : i32
    %c0_i32_1 = arith.constant 0 : i32
    return %c0_i32, %c0_i32_0 : i32, i32
  }
  func.func @transform_5(%arg0: i32) -> (i32, i32) {
    %c0_i32 = arith.constant 0 : i32
    %c0_i32_0 = arith.constant 0 : i32
    %c0_i32_1 = arith.constant 0 : i32
    return %c0_i32, %c0_i32_0 : i32, i32
  }
  func.func @transform_6(%arg0: i32) -> (i32, i32) {
    %c0_i32 = arith.constant 0 : i32
    %c0_i32_0 = arith.constant 0 : i32
    %c0_i32_1 = arith.constant 0 : i32
    return %c0_i32, %c0_i32_0 : i32, i32
  }
  func.func @transform_7(%arg0: i32) -> (i32, i32) {
    %c0_i32 = arith.constant 0 : i32
    %c0_i32_0 = arith.constant 0 : i32
    %c0_i32_1 = arith.constant 0 : i32
    return %c0_i32, %c0_i32_0 : i32, i32
  }
  func.func @transform_8(%arg0: i32) -> (i32, i32) {
    %c0_i32 = arith.constant 0 : i32
    %c0_i32_0 = arith.constant 0 : i32
    %c0_i32_1 = arith.constant 0 : i32
    return %c0_i32, %c0_i32_0 : i32, i32
  }
  func.func @transform_9(%arg0: i32) -> (i32, i32) {
    %c0_i32 = arith.constant 0 : i32
    %c0_i32_0 = arith.constant 0 : i32
    %c0_i32_1 = arith.constant 0 : i32
    return %c0_i32, %c0_i32_0 : i32, i32
  }
  func.func @transform_10(%arg0: i32) -> (i32, i32) {
    %c0_i32 = arith.constant 0 : i32
    %c0_i32_0 = arith.constant 0 : i32
    return %arg0, %c0_i32 : i32, i32
  }
}

module attributes {stable_mosaic.version = 11 : i64} {
  func.func @_linear_kernel(%arg0: i32, %arg1: memref<16x16xf32, #tpu.memory_space<vmem>>, %arg2: memref<128x16xf32, #tpu.memory_space<vmem>>, %arg3: memref<1x128xf32, #tpu.memory_space<vmem>>, %arg4: memref<16x128xf32, #tpu.memory_space<vmem>>) attributes {dimension_semantics = [#tpu.dimension_semantics<parallel>], iteration_bounds = array<i64: 1>, scalar_prefetch = 0 : i64, scratch_operands = 0 : i64, tpu.core_type = #tpu.core_type<tc>, window_params = [{transform_indices = @transform_0, window_bounds = array<i64: 16, 16>}, {pipeline_mode = #tpu.pipeline_mode<synchronous>, transform_indices = @transform_1, window_bounds = array<i64: 128, 16>}, {pipeline_mode = #tpu.pipeline_mode<synchronous>, transform_indices = @transform_2, window_bounds = array<i64: 1, 128>}, {transform_indices = @transform_3, window_bounds = array<i64: 16, 128>}]} {
    %c0 = arith.constant 0 : index
    %c0_0 = arith.constant 0 : index
    %0 = vector.load %arg1[%c0, %c0_0] : memref<16x16xf32, #tpu.memory_space<vmem>>, vector<16x16xf32>
    %c0_1 = arith.constant 0 : index
    %c0_2 = arith.constant 0 : index
    %1 = vector.load %arg2[%c0_1, %c0_2] : memref<128x16xf32, #tpu.memory_space<vmem>>, vector<128x16xf32>
    %cst = arith.constant dense<0.000000e+00> : vector<16x128xf32>
    %2 = tpu.matmul %0, %1, %cst {dimension_numbers = #tpu.dot_dimension_numbers<[1], [1], [0], [0], [0, 0, 1, 0], [], []>} : vector<16x16xf32>, vector<128x16xf32>, vector<16x128xf32> -> vector<16x128xf32>
    %c0_3 = arith.constant 0 : index
    %c0_4 = arith.constant 0 : index
    %3 = vector.load %arg3[%c0_3, %c0_4] : memref<1x128xf32, #tpu.memory_space<vmem>>, vector<1x128xf32>
    %4 = vector.broadcast %3 : vector<1x128xf32> to vector<16x128xf32>
    %5 = arith.addf %2, %4 : vector<16x128xf32>
    %c0_5 = arith.constant 0 : index
    %c0_6 = arith.constant 0 : index
    %6 = vector.load %arg4[%c0_5, %c0_6] : memref<16x128xf32, #tpu.memory_space<vmem>>, vector<16x128xf32>
    tpu.vector_store %arg4[%c0_5, %c0_6], %5 {strides = array<i32>} : memref<16x128xf32, #tpu.memory_space<vmem>>, vector<16x128xf32>,
    return
  }
  func.func @transform_0(%arg0: i32) -> (i32, i32) {
    %c0_i32 = arith.constant 0 : i32
    %c0_i32_0 = arith.constant 0 : i32
    return %arg0, %c0_i32 : i32, i32
  }
  func.func @transform_1(%arg0: i32) -> (i32, i32) {
    %c0_i32 = arith.constant 0 : i32
    %c0_i32_0 = arith.constant 0 : i32
    %c0_i32_1 = arith.constant 0 : i32
    return %c0_i32, %c0_i32_0 : i32, i32
  }
  func.func @transform_2(%arg0: i32) -> (i32, i32) {
    %c0_i32 = arith.constant 0 : i32
    %c0_i32_0 = arith.constant 0 : i32
    %c0_i32_1 = arith.constant 0 : i32
    return %c0_i32, %c0_i32_0 : i32, i32
  }
  func.func @transform_3(%arg0: i32) -> (i32, i32) {
    %c0_i32 = arith.constant 0 : i32
    %c0_i32_0 = arith.constant 0 : i32
    return %arg0, %c0_i32 : i32, i32
  }
}

module attributes {stable_mosaic.version = 11 : i64} {
  func.func @_bilstm_rec_kernel(%arg0: i32, %arg1: memref<8x2x128xf32, #tpu.memory_space<vmem>>, %arg2: memref<8x2x1xf32, #tpu.memory_space<vmem>>, %arg3: memref<64x16xf32, #tpu.memory_space<vmem>>, %arg4: memref<64x16xf32, #tpu.memory_space<vmem>>, %arg5: memref<8x2x16xf32, #tpu.memory_space<vmem>>, %arg6: memref<8x2x16xf32, #tpu.memory_space<vmem>>) attributes {dimension_semantics = [#tpu.dimension_semantics<arbitrary>], iteration_bounds = array<i64: 1>, scalar_prefetch = 0 : i64, scratch_operands = 0 : i64, tpu.core_type = #tpu.core_type<tc>, window_params = [{pipeline_mode = #tpu.pipeline_mode<synchronous>, transform_indices = @transform_0, window_bounds = array<i64: 8, 2, 128>}, {pipeline_mode = #tpu.pipeline_mode<synchronous>, transform_indices = @transform_1, window_bounds = array<i64: 8, 2, 1>}, {pipeline_mode = #tpu.pipeline_mode<synchronous>, transform_indices = @transform_2, window_bounds = array<i64: 64, 16>}, {pipeline_mode = #tpu.pipeline_mode<synchronous>, transform_indices = @transform_3, window_bounds = array<i64: 64, 16>}, {pipeline_mode = #tpu.pipeline_mode<synchronous>, transform_indices = @transform_4, window_bounds = array<i64: 8, 2, 16>}, {pipeline_mode = #tpu.pipeline_mode<synchronous>, transform_indices = @transform_5, window_bounds = array<i64: 8, 2, 16>}]} {
    %c0 = arith.constant 0 : index
    %c0_0 = arith.constant 0 : index
    %0 = vector.load %arg3[%c0, %c0_0] : memref<64x16xf32, #tpu.memory_space<vmem>>, vector<64x16xf32>
    %c0_1 = arith.constant 0 : index
    %c0_2 = arith.constant 0 : index
    %1 = vector.load %arg4[%c0_1, %c0_2] : memref<64x16xf32, #tpu.memory_space<vmem>>, vector<64x16xf32>
    %cst = arith.constant 0.000000e+00 : f32
    %2 = vector.broadcast %cst : f32 to vector<2x16xf32>
    %c0_i32 = arith.constant 0 : i32
    %c4_i32 = arith.constant 4 : i32
    %3 = arith.addi %c0_i32, %c4_i32 : i32
    %c1_i32 = arith.constant 1 : i32
    %4:4 = scf.for %arg7 = %c0_i32 to %3 step %c1_i32 iter_args(%arg8 = %2, %arg9 = %2, %arg10 = %2, %arg11 = %2) -> (vector<2x16xf32>, vector<2x16xf32>, vector<2x16xf32>, vector<2x16xf32>)  : i32 {
      %c2_i32 = arith.constant 2 : i32
      %5 = arith.muli %c2_i32, %arg7 : i32
      %6 = arith.index_cast %5 : i32 to index
      %c0_4 = arith.constant 0 : index
      %c0_5 = arith.constant 0 : index
      %7 = vector.load %arg1[%6, %c0_4, %c0_5] : memref<8x2x128xf32, #tpu.memory_space<vmem>>, vector<1x2x128xf32>
      %8 = vector.shape_cast %7 : vector<1x2x128xf32> to vector<2x128xf32>
      %9 = arith.index_cast %5 : i32 to index
      %c0_6 = arith.constant 0 : index
      %c0_7 = arith.constant 0 : index
      %10 = vector.load %arg2[%9, %c0_6, %c0_7] : memref<8x2x1xf32, #tpu.memory_space<vmem>>, vector<1x2x1xf32>
      %11 = vector.shape_cast %10 : vector<1x2x1xf32> to vector<2x1xf32>
      %12 = vector.extract_strided_slice %8 {offsets = [0, 0], sizes = [2, 64], strides = [1, 1]} : vector<2x128xf32> to vector<2x64xf32>
      %cst_8 = arith.constant dense<0.000000e+00> : vector<2x64xf32>
      %13 = tpu.matmul %arg8, %0, %cst_8 {dimension_numbers = #tpu.dot_dimension_numbers<[1], [1], [0], [0], [0, 0, 1, 0], [], []>} : vector<2x16xf32>, vector<64x16xf32>, vector<2x64xf32> -> vector<2x64xf32>
      %14 = arith.addf %12, %13 : vector<2x64xf32>
      %15 = vector.extract_strided_slice %14 {offsets = [0, 0], sizes = [2, 16], strides = [1, 1]} : vector<2x64xf32> to vector<2x16xf32>
      %16 = arith.negf %15 : vector<2x16xf32>
      %17 = math.exp %16 : vector<2x16xf32>
      %cst_9 = arith.constant 1.000000e+00 : f32
      %18 = vector.broadcast %cst_9 : f32 to vector<2x16xf32>
      %19 = arith.addf %18, %17 : vector<2x16xf32>
      %20 = arith.divf %18, %19 : vector<2x16xf32>
      %21 = vector.extract_strided_slice %14 {offsets = [0, 16], sizes = [2, 16], strides = [1, 1]} : vector<2x64xf32> to vector<2x16xf32>
      %22 = arith.negf %21 : vector<2x16xf32>
      %23 = math.exp %22 : vector<2x16xf32>
      %cst_10 = arith.constant 1.000000e+00 : f32
      %24 = vector.broadcast %cst_10 : f32 to vector<2x16xf32>
      %25 = arith.addf %24, %23 : vector<2x16xf32>
      %26 = arith.divf %24, %25 : vector<2x16xf32>
      %27 = vector.extract_strided_slice %14 {offsets = [0, 32], sizes = [2, 16], strides = [1, 1]} : vector<2x64xf32> to vector<2x16xf32>
      %28 = math.tanh %27 : vector<2x16xf32>
      %29 = vector.extract_strided_slice %14 {offsets = [0, 48], sizes = [2, 16], strides = [1, 1]} : vector<2x64xf32> to vector<2x16xf32>
      %30 = arith.negf %29 : vector<2x16xf32>
      %31 = math.exp %30 : vector<2x16xf32>
      %cst_11 = arith.constant 1.000000e+00 : f32
      %32 = vector.broadcast %cst_11 : f32 to vector<2x16xf32>
      %33 = arith.addf %32, %31 : vector<2x16xf32>
      %34 = arith.divf %32, %33 : vector<2x16xf32>
      %35 = arith.mulf %26, %arg9 : vector<2x16xf32>
      %36 = arith.mulf %20, %28 : vector<2x16xf32>
      %37 = arith.addf %35, %36 : vector<2x16xf32>
      %38 = math.tanh %37 : vector<2x16xf32>
      %39 = arith.mulf %34, %38 : vector<2x16xf32>
      %40 = vector.broadcast %11 : vector<2x1xf32> to vector<2x16xf32>
      %41 = arith.mulf %40, %39 : vector<2x16xf32>
      %cst_12 = arith.constant 1.000000e+00 : f32
      %42 = vector.broadcast %cst_12 : f32 to vector<2x1xf32>
      %43 = arith.subf %42, %11 : vector<2x1xf32>
      %44 = vector.broadcast %43 : vector<2x1xf32> to vector<2x16xf32>
      %45 = arith.mulf %44, %arg8 : vector<2x16xf32>
      %46 = arith.addf %41, %45 : vector<2x16xf32>
      %47 = vector.broadcast %11 : vector<2x1xf32> to vector<2x16xf32>
      %48 = arith.mulf %47, %37 : vector<2x16xf32>
      %cst_13 = arith.constant 1.000000e+00 : f32
      %49 = vector.broadcast %cst_13 : f32 to vector<2x1xf32>
      %50 = arith.subf %49, %11 : vector<2x1xf32>
      %51 = vector.broadcast %50 : vector<2x1xf32> to vector<2x16xf32>
      %52 = arith.mulf %51, %arg9 : vector<2x16xf32>
      %53 = arith.addf %48, %52 : vector<2x16xf32>
      %54 = vector.broadcast %11 : vector<2x1xf32> to vector<2x16xf32>
      %55 = arith.mulf %54, %39 : vector<2x16xf32>
      %56 = arith.index_cast %5 : i32 to index
      %c0_14 = arith.constant 0 : index
      %c0_15 = arith.constant 0 : index
      %57 = vector.load %arg5[%56, %c0_14, %c0_15] : memref<8x2x16xf32, #tpu.memory_space<vmem>>, vector<1x2x16xf32>
      %58 = vector.shape_cast %57 : vector<1x2x16xf32> to vector<2x16xf32>
      %59 = vector.shape_cast %55 : vector<2x16xf32> to vector<1x2x16xf32>
      tpu.vector_store %arg5[%56, %c0_14, %c0_15], %59 {strides = array<i32>} : memref<8x2x16xf32, #tpu.memory_space<vmem>>, vector<1x2x16xf32>,
      %c7_i32 = arith.constant 7 : i32
      %60 = arith.subi %c7_i32, %5 : i32
      %61 = arith.index_cast %60 : i32 to index
      %c0_16 = arith.constant 0 : index
      %c0_17 = arith.constant 0 : index
      %62 = vector.load %arg1[%61, %c0_16, %c0_17] : memref<8x2x128xf32, #tpu.memory_space<vmem>>, vector<1x2x128xf32>
      %63 = vector.shape_cast %62 : vector<1x2x128xf32> to vector<2x128xf32>
      %64 = arith.index_cast %60 : i32 to index
      %c0_18 = arith.constant 0 : index
      %c0_19 = arith.constant 0 : index
      %65 = vector.load %arg2[%64, %c0_18, %c0_19] : memref<8x2x1xf32, #tpu.memory_space<vmem>>, vector<1x2x1xf32>
      %66 = vector.shape_cast %65 : vector<1x2x1xf32> to vector<2x1xf32>
      %67 = vector.extract_strided_slice %63 {offsets = [0, 64], sizes = [2, 64], strides = [1, 1]} : vector<2x128xf32> to vector<2x64xf32>
      %cst_20 = arith.constant dense<0.000000e+00> : vector<2x64xf32>
      %68 = tpu.matmul %arg10, %1, %cst_20 {dimension_numbers = #tpu.dot_dimension_numbers<[1], [1], [0], [0], [0, 0, 1, 0], [], []>} : vector<2x16xf32>, vector<64x16xf32>, vector<2x64xf32> -> vector<2x64xf32>
      %69 = arith.addf %67, %68 : vector<2x64xf32>
      %70 = vector.extract_strided_slice %69 {offsets = [0, 0], sizes = [2, 16], strides = [1, 1]} : vector<2x64xf32> to vector<2x16xf32>
      %71 = arith.negf %70 : vector<2x16xf32>
      %72 = math.exp %71 : vector<2x16xf32>
      %cst_21 = arith.constant 1.000000e+00 : f32
      %73 = vector.broadcast %cst_21 : f32 to vector<2x16xf32>
      %74 = arith.addf %73, %72 : vector<2x16xf32>
      %75 = arith.divf %73, %74 : vector<2x16xf32>
      %76 = vector.extract_strided_slice %69 {offsets = [0, 16], sizes = [2, 16], strides = [1, 1]} : vector<2x64xf32> to vector<2x16xf32>
      %77 = arith.negf %76 : vector<2x16xf32>
      %78 = math.exp %77 : vector<2x16xf32>
      %cst_22 = arith.constant 1.000000e+00 : f32
      %79 = vector.broadcast %cst_22 : f32 to vector<2x16xf32>
      %80 = arith.addf %79, %78 : vector<2x16xf32>
      %81 = arith.divf %79, %80 : vector<2x16xf32>
      %82 = vector.extract_strided_slice %69 {offsets = [0, 32], sizes = [2, 16], strides = [1, 1]} : vector<2x64xf32> to vector<2x16xf32>
      %83 = math.tanh %82 : vector<2x16xf32>
      %84 = vector.extract_strided_slice %69 {offsets = [0, 48], sizes = [2, 16], strides = [1, 1]} : vector<2x64xf32> to vector<2x16xf32>
      %85 = arith.negf %84 : vector<2x16xf32>
      %86 = math.exp %85 : vector<2x16xf32>
      %cst_23 = arith.constant 1.000000e+00 : f32
      %87 = vector.broadcast %cst_23 : f32 to vector<2x16xf32>
      %88 = arith.addf %87, %86 : vector<2x16xf32>
      %89 = arith.divf %87, %88 : vector<2x16xf32>
      %90 = arith.mulf %81, %arg11 : vector<2x16xf32>
      %91 = arith.mulf %75, %83 : vector<2x16xf32>
      %92 = arith.addf %90, %91 : vector<2x16xf32>
      %93 = math.tanh %92 : vector<2x16xf32>
      %94 = arith.mulf %89, %93 : vector<2x16xf32>
      %95 = vector.broadcast %66 : vector<2x1xf32> to vector<2x16xf32>
      %96 = arith.mulf %95, %94 : vector<2x16xf32>
      %cst_24 = arith.constant 1.000000e+00 : f32
      %97 = vector.broadcast %cst_24 : f32 to vector<2x1xf32>
      %98 = arith.subf %97, %66 : vector<2x1xf32>
      %99 = vector.broadcast %98 : vector<2x1xf32> to vector<2x16xf32>
      %100 = arith.mulf %99, %arg10 : vector<2x16xf32>
      %101 = arith.addf %96, %100 : vector<2x16xf32>
      %102 = vector.broadcast %66 : vector<2x1xf32> to vector<2x16xf32>
      %103 = arith.mulf %102, %92 : vector<2x16xf32>
      %cst_25 = arith.constant 1.000000e+00 : f32
      %104 = vector.broadcast %cst_25 : f32 to vector<2x1xf32>
      %105 = arith.subf %104, %66 : vector<2x1xf32>
      %106 = vector.broadcast %105 : vector<2x1xf32> to vector<2x16xf32>
      %107 = arith.mulf %106, %arg11 : vector<2x16xf32>
      %108 = arith.addf %103, %107 : vector<2x16xf32>
      %109 = vector.broadcast %66 : vector<2x1xf32> to vector<2x16xf32>
      %110 = arith.mulf %109, %94 : vector<2x16xf32>
      %111 = arith.index_cast %60 : i32 to index
      %c0_26 = arith.constant 0 : index
      %c0_27 = arith.constant 0 : index
      %112 = vector.load %arg6[%111, %c0_26, %c0_27] : memref<8x2x16xf32, #tpu.memory_space<vmem>>, vector<1x2x16xf32>
      %113 = vector.shape_cast %112 : vector<1x2x16xf32> to vector<2x16xf32>
      %114 = vector.shape_cast %110 : vector<2x16xf32> to vector<1x2x16xf32>
      tpu.vector_store %arg6[%111, %c0_26, %c0_27], %114 {strides = array<i32>} : memref<8x2x16xf32, #tpu.memory_space<vmem>>, vector<1x2x16xf32>,
      %c2_i32_28 = arith.constant 2 : i32
      %115 = arith.muli %c2_i32_28, %arg7 : i32
      %c1_i32_29 = arith.constant 1 : i32
      %116 = arith.addi %115, %c1_i32_29 : i32
      %117 = arith.index_cast %116 : i32 to index
      %c0_30 = arith.constant 0 : index
      %c0_31 = arith.constant 0 : index
      %118 = vector.load %arg1[%117, %c0_30, %c0_31] : memref<8x2x128xf32, #tpu.memory_space<vmem>>, vector<1x2x128xf32>
      %119 = vector.shape_cast %118 : vector<1x2x128xf32> to vector<2x128xf32>
      %120 = arith.index_cast %116 : i32 to index
      %c0_32 = arith.constant 0 : index
      %c0_33 = arith.constant 0 : index
      %121 = vector.load %arg2[%120, %c0_32, %c0_33] : memref<8x2x1xf32, #tpu.memory_space<vmem>>, vector<1x2x1xf32>
      %122 = vector.shape_cast %121 : vector<1x2x1xf32> to vector<2x1xf32>
      %123 = vector.extract_strided_slice %119 {offsets = [0, 0], sizes = [2, 64], strides = [1, 1]} : vector<2x128xf32> to vector<2x64xf32>
      %cst_34 = arith.constant dense<0.000000e+00> : vector<2x64xf32>
      %124 = tpu.matmul %46, %0, %cst_34 {dimension_numbers = #tpu.dot_dimension_numbers<[1], [1], [0], [0], [0, 0, 1, 0], [], []>} : vector<2x16xf32>, vector<64x16xf32>, vector<2x64xf32> -> vector<2x64xf32>
      %125 = arith.addf %123, %124 : vector<2x64xf32>
      %126 = vector.extract_strided_slice %125 {offsets = [0, 0], sizes = [2, 16], strides = [1, 1]} : vector<2x64xf32> to vector<2x16xf32>
      %127 = arith.negf %126 : vector<2x16xf32>
      %128 = math.exp %127 : vector<2x16xf32>
      %cst_35 = arith.constant 1.000000e+00 : f32
      %129 = vector.broadcast %cst_35 : f32 to vector<2x16xf32>
      %130 = arith.addf %129, %128 : vector<2x16xf32>
      %131 = arith.divf %129, %130 : vector<2x16xf32>
      %132 = vector.extract_strided_slice %125 {offsets = [0, 16], sizes = [2, 16], strides = [1, 1]} : vector<2x64xf32> to vector<2x16xf32>
      %133 = arith.negf %132 : vector<2x16xf32>
      %134 = math.exp %133 : vector<2x16xf32>
      %cst_36 = arith.constant 1.000000e+00 : f32
      %135 = vector.broadcast %cst_36 : f32 to vector<2x16xf32>
      %136 = arith.addf %135, %134 : vector<2x16xf32>
      %137 = arith.divf %135, %136 : vector<2x16xf32>
      %138 = vector.extract_strided_slice %125 {offsets = [0, 32], sizes = [2, 16], strides = [1, 1]} : vector<2x64xf32> to vector<2x16xf32>
      %139 = math.tanh %138 : vector<2x16xf32>
      %140 = vector.extract_strided_slice %125 {offsets = [0, 48], sizes = [2, 16], strides = [1, 1]} : vector<2x64xf32> to vector<2x16xf32>
      %141 = arith.negf %140 : vector<2x16xf32>
      %142 = math.exp %141 : vector<2x16xf32>
      %cst_37 = arith.constant 1.000000e+00 : f32
      %143 = vector.broadcast %cst_37 : f32 to vector<2x16xf32>
      %144 = arith.addf %143, %142 : vector<2x16xf32>
      %145 = arith.divf %143, %144 : vector<2x16xf32>
      %146 = arith.mulf %137, %53 : vector<2x16xf32>
      %147 = arith.mulf %131, %139 : vector<2x16xf32>
      %148 = arith.addf %146, %147 : vector<2x16xf32>
      %149 = math.tanh %148 : vector<2x16xf32>
      %150 = arith.mulf %145, %149 : vector<2x16xf32>
      %151 = vector.broadcast %122 : vector<2x1xf32> to vector<2x16xf32>
      %152 = arith.mulf %151, %150 : vector<2x16xf32>
      %cst_38 = arith.constant 1.000000e+00 : f32
      %153 = vector.broadcast %cst_38 : f32 to vector<2x1xf32>
      %154 = arith.subf %153, %122 : vector<2x1xf32>
      %155 = vector.broadcast %154 : vector<2x1xf32> to vector<2x16xf32>
      %156 = arith.mulf %155, %46 : vector<2x16xf32>
      %157 = arith.addf %152, %156 : vector<2x16xf32>
      %158 = vector.broadcast %122 : vector<2x1xf32> to vector<2x16xf32>
      %159 = arith.mulf %158, %148 : vector<2x16xf32>
      %cst_39 = arith.constant 1.000000e+00 : f32
      %160 = vector.broadcast %cst_39 : f32 to vector<2x1xf32>
      %161 = arith.subf %160, %122 : vector<2x1xf32>
      %162 = vector.broadcast %161 : vector<2x1xf32> to vector<2x16xf32>
      %163 = arith.mulf %162, %53 : vector<2x16xf32>
      %164 = arith.addf %159, %163 : vector<2x16xf32>
      %165 = vector.broadcast %122 : vector<2x1xf32> to vector<2x16xf32>
      %166 = arith.mulf %165, %150 : vector<2x16xf32>
      %167 = arith.index_cast %116 : i32 to index
      %c0_40 = arith.constant 0 : index
      %c0_41 = arith.constant 0 : index
      %168 = vector.load %arg5[%167, %c0_40, %c0_41] : memref<8x2x16xf32, #tpu.memory_space<vmem>>, vector<1x2x16xf32>
      %169 = vector.shape_cast %168 : vector<1x2x16xf32> to vector<2x16xf32>
      %170 = vector.shape_cast %166 : vector<2x16xf32> to vector<1x2x16xf32>
      tpu.vector_store %arg5[%167, %c0_40, %c0_41], %170 {strides = array<i32>} : memref<8x2x16xf32, #tpu.memory_space<vmem>>, vector<1x2x16xf32>,
      %c7_i32_42 = arith.constant 7 : i32
      %171 = arith.subi %c7_i32_42, %116 : i32
      %172 = arith.index_cast %171 : i32 to index
      %c0_43 = arith.constant 0 : index
      %c0_44 = arith.constant 0 : index
      %173 = vector.load %arg1[%172, %c0_43, %c0_44] : memref<8x2x128xf32, #tpu.memory_space<vmem>>, vector<1x2x128xf32>
      %174 = vector.shape_cast %173 : vector<1x2x128xf32> to vector<2x128xf32>
      %175 = arith.index_cast %171 : i32 to index
      %c0_45 = arith.constant 0 : index
      %c0_46 = arith.constant 0 : index
      %176 = vector.load %arg2[%175, %c0_45, %c0_46] : memref<8x2x1xf32, #tpu.memory_space<vmem>>, vector<1x2x1xf32>
      %177 = vector.shape_cast %176 : vector<1x2x1xf32> to vector<2x1xf32>
      %178 = vector.extract_strided_slice %174 {offsets = [0, 64], sizes = [2, 64], strides = [1, 1]} : vector<2x128xf32> to vector<2x64xf32>
      %cst_47 = arith.constant dense<0.000000e+00> : vector<2x64xf32>
      %179 = tpu.matmul %101, %1, %cst_47 {dimension_numbers = #tpu.dot_dimension_numbers<[1], [1], [0], [0], [0, 0, 1, 0], [], []>} : vector<2x16xf32>, vector<64x16xf32>, vector<2x64xf32> -> vector<2x64xf32>
      %180 = arith.addf %178, %179 : vector<2x64xf32>
      %181 = vector.extract_strided_slice %180 {offsets = [0, 0], sizes = [2, 16], strides = [1, 1]} : vector<2x64xf32> to vector<2x16xf32>
      %182 = arith.negf %181 : vector<2x16xf32>
      %183 = math.exp %182 : vector<2x16xf32>
      %cst_48 = arith.constant 1.000000e+00 : f32
      %184 = vector.broadcast %cst_48 : f32 to vector<2x16xf32>
      %185 = arith.addf %184, %183 : vector<2x16xf32>
      %186 = arith.divf %184, %185 : vector<2x16xf32>
      %187 = vector.extract_strided_slice %180 {offsets = [0, 16], sizes = [2, 16], strides = [1, 1]} : vector<2x64xf32> to vector<2x16xf32>
      %188 = arith.negf %187 : vector<2x16xf32>
      %189 = math.exp %188 : vector<2x16xf32>
      %cst_49 = arith.constant 1.000000e+00 : f32
      %190 = vector.broadcast %cst_49 : f32 to vector<2x16xf32>
      %191 = arith.addf %190, %189 : vector<2x16xf32>
      %192 = arith.divf %190, %191 : vector<2x16xf32>
      %193 = vector.extract_strided_slice %180 {offsets = [0, 32], sizes = [2, 16], strides = [1, 1]} : vector<2x64xf32> to vector<2x16xf32>
      %194 = math.tanh %193 : vector<2x16xf32>
      %195 = vector.extract_strided_slice %180 {offsets = [0, 48], sizes = [2, 16], strides = [1, 1]} : vector<2x64xf32> to vector<2x16xf32>
      %196 = arith.negf %195 : vector<2x16xf32>
      %197 = math.exp %196 : vector<2x16xf32>
      %cst_50 = arith.constant 1.000000e+00 : f32
      %198 = vector.broadcast %cst_50 : f32 to vector<2x16xf32>
      %199 = arith.addf %198, %197 : vector<2x16xf32>
      %200 = arith.divf %198, %199 : vector<2x16xf32>
      %201 = arith.mulf %192, %108 : vector<2x16xf32>
      %202 = arith.mulf %186, %194 : vector<2x16xf32>
      %203 = arith.addf %201, %202 : vector<2x16xf32>
      %204 = math.tanh %203 : vector<2x16xf32>
      %205 = arith.mulf %200, %204 : vector<2x16xf32>
      %206 = vector.broadcast %177 : vector<2x1xf32> to vector<2x16xf32>
      %207 = arith.mulf %206, %205 : vector<2x16xf32>
      %cst_51 = arith.constant 1.000000e+00 : f32
      %208 = vector.broadcast %cst_51 : f32 to vector<2x1xf32>
      %209 = arith.subf %208, %177 : vector<2x1xf32>
      %210 = vector.broadcast %209 : vector<2x1xf32> to vector<2x16xf32>
      %211 = arith.mulf %210, %101 : vector<2x16xf32>
      %212 = arith.addf %207, %211 : vector<2x16xf32>
      %213 = vector.broadcast %177 : vector<2x1xf32> to vector<2x16xf32>
      %214 = arith.mulf %213, %203 : vector<2x16xf32>
      %cst_52 = arith.constant 1.000000e+00 : f32
      %215 = vector.broadcast %cst_52 : f32 to vector<2x1xf32>
      %216 = arith.subf %215, %177 : vector<2x1xf32>
      %217 = vector.broadcast %216 : vector<2x1xf32> to vector<2x16xf32>
      %218 = arith.mulf %217, %108 : vector<2x16xf32>
      %219 = arith.addf %214, %218 : vector<2x16xf32>
      %220 = vector.broadcast %177 : vector<2x1xf32> to vector<2x16xf32>
      %221 = arith.mulf %220, %205 : vector<2x16xf32>
      %222 = arith.index_cast %171 : i32 to index
      %c0_53 = arith.constant 0 : index
      %c0_54 = arith.constant 0 : index
      %223 = vector.load %arg6[%222, %c0_53, %c0_54] : memref<8x2x16xf32, #tpu.memory_space<vmem>>, vector<1x2x16xf32>
      %224 = vector.shape_cast %223 : vector<1x2x16xf32> to vector<2x16xf32>
      %225 = vector.shape_cast %221 : vector<2x16xf32> to vector<1x2x16xf32>
      tpu.vector_store %arg6[%222, %c0_53, %c0_54], %225 {strides = array<i32>} : memref<8x2x16xf32, #tpu.memory_space<vmem>>, vector<1x2x16xf32>,
      scf.yield %157, %164, %212, %219 : vector<2x16xf32>, vector<2x16xf32>, vector<2x16xf32>, vector<2x16xf32>
    }
    %c4_i32_3 = arith.constant 4 : i32
    return
  }
  func.func @transform_0(%arg0: i32) -> (i32, i32, i32) {
    %c0_i32 = arith.constant 0 : i32
    %c0_i32_0 = arith.constant 0 : i32
    %c0_i32_1 = arith.constant 0 : i32
    %c0_i32_2 = arith.constant 0 : i32
    return %c0_i32, %c0_i32_0, %c0_i32_1 : i32, i32, i32
  }
  func.func @transform_1(%arg0: i32) -> (i32, i32, i32) {
    %c0_i32 = arith.constant 0 : i32
    %c0_i32_0 = arith.constant 0 : i32
    %c0_i32_1 = arith.constant 0 : i32
    %c0_i32_2 = arith.constant 0 : i32
    return %c0_i32, %c0_i32_0, %c0_i32_1 : i32, i32, i32
  }
  func.func @transform_2(%arg0: i32) -> (i32, i32) {
    %c0_i32 = arith.constant 0 : i32
    %c0_i32_0 = arith.constant 0 : i32
    %c0_i32_1 = arith.constant 0 : i32
    return %c0_i32, %c0_i32_0 : i32, i32
  }
  func.func @transform_3(%arg0: i32) -> (i32, i32) {
    %c0_i32 = arith.constant 0 : i32
    %c0_i32_0 = arith.constant 0 : i32
    %c0_i32_1 = arith.constant 0 : i32
    return %c0_i32, %c0_i32_0 : i32, i32
  }
  func.func @transform_4(%arg0: i32) -> (i32, i32, i32) {
    %c0_i32 = arith.constant 0 : i32
    %c0_i32_0 = arith.constant 0 : i32
    %c0_i32_1 = arith.constant 0 : i32
    %c0_i32_2 = arith.constant 0 : i32
    return %c0_i32, %c0_i32_0, %c0_i32_1 : i32, i32, i32
  }
  func.func @transform_5(%arg0: i32) -> (i32, i32, i32) {
    %c0_i32 = arith.constant 0 : i32
    %c0_i32_0 = arith.constant 0 : i32
    %c0_i32_1 = arith.constant 0 : i32
    %c0_i32_2 = arith.constant 0 : i32
    return %c0_i32, %c0_i32_0, %c0_i32_1 : i32, i32, i32
  }
}

module attributes {stable_mosaic.version = 11 : i64} {
  func.func @_emb_hwy_kernel(%arg0: i32, %arg1: memref<24x24xf32, #tpu.memory_space<vmem>>, %arg2: memref<16x24xf32, #tpu.memory_space<vmem>>, %arg3: memref<16x16xf32, #tpu.memory_space<vmem>>, %arg4: memref<1x16xf32, #tpu.memory_space<vmem>>, %arg5: memref<16x16xf32, #tpu.memory_space<vmem>>, %arg6: memref<1x16xf32, #tpu.memory_space<vmem>>, %arg7: memref<16x16xf32, #tpu.memory_space<vmem>>, %arg8: memref<1x16xf32, #tpu.memory_space<vmem>>, %arg9: memref<16x16xf32, #tpu.memory_space<vmem>>, %arg10: memref<1x16xf32, #tpu.memory_space<vmem>>, %arg11: memref<24x16xf32, #tpu.memory_space<vmem>>) attributes {dimension_semantics = [#tpu.dimension_semantics<parallel>], iteration_bounds = array<i64: 1>, scalar_prefetch = 0 : i64, scratch_operands = 0 : i64, tpu.core_type = #tpu.core_type<tc>, window_params = [{transform_indices = @transform_0, window_bounds = array<i64: 24, 24>}, {pipeline_mode = #tpu.pipeline_mode<synchronous>, transform_indices = @transform_1, window_bounds = array<i64: 16, 24>}, {pipeline_mode = #tpu.pipeline_mode<synchronous>, transform_indices = @transform_2, window_bounds = array<i64: 16, 16>}, {pipeline_mode = #tpu.pipeline_mode<synchronous>, transform_indices = @transform_3, window_bounds = array<i64: 1, 16>}, {pipeline_mode = #tpu.pipeline_mode<synchronous>, transform_indices = @transform_4, window_bounds = array<i64: 16, 16>}, {pipeline_mode = #tpu.pipeline_mode<synchronous>, transform_indices = @transform_5, window_bounds = array<i64: 1, 16>}, {pipeline_mode = #tpu.pipeline_mode<synchronous>, transform_indices = @transform_6, window_bounds = array<i64: 16, 16>}, {pipeline_mode = #tpu.pipeline_mode<synchronous>, transform_indices = @transform_7, window_bounds = array<i64: 1, 16>}, {pipeline_mode = #tpu.pipeline_mode<synchronous>, transform_indices = @transform_8, window_bounds = array<i64: 16, 16>}, {pipeline_mode = #tpu.pipeline_mode<synchronous>, transform_indices = @transform_9, window_bounds = array<i64: 1, 16>}, {transform_indices = @transform_10, window_bounds = array<i64: 24, 16>}]} {
    %c0 = arith.constant 0 : index
    %c0_0 = arith.constant 0 : index
    %0 = vector.load %arg1[%c0, %c0_0] : memref<24x24xf32, #tpu.memory_space<vmem>>, vector<24x24xf32>
    %c0_1 = arith.constant 0 : index
    %c0_2 = arith.constant 0 : index
    %1 = vector.load %arg2[%c0_1, %c0_2] : memref<16x24xf32, #tpu.memory_space<vmem>>, vector<16x24xf32>
    %cst = arith.constant dense<0.000000e+00> : vector<24x16xf32>
    %2 = tpu.matmul %0, %1, %cst {dimension_numbers = #tpu.dot_dimension_numbers<[1], [1], [0], [0], [0, 0, 1, 0], [], []>} : vector<24x24xf32>, vector<16x24xf32>, vector<24x16xf32> -> vector<24x16xf32>
    %c0_3 = arith.constant 0 : index
    %c0_4 = arith.constant 0 : index
    %3 = vector.load %arg3[%c0_3, %c0_4] : memref<16x16xf32, #tpu.memory_space<vmem>>, vector<16x16xf32>
    %cst_5 = arith.constant dense<0.000000e+00> : vector<24x16xf32>
    %4 = tpu.matmul %2, %3, %cst_5 {dimension_numbers = #tpu.dot_dimension_numbers<[1], [1], [0], [0], [0, 0, 1, 0], [], []>} : vector<24x16xf32>, vector<16x16xf32>, vector<24x16xf32> -> vector<24x16xf32>
    %c0_6 = arith.constant 0 : index
    %c0_7 = arith.constant 0 : index
    %5 = vector.load %arg4[%c0_6, %c0_7] : memref<1x16xf32, #tpu.memory_space<vmem>>, vector<1x16xf32>
    %6 = vector.broadcast %5 : vector<1x16xf32> to vector<24x16xf32>
    %7 = arith.addf %4, %6 : vector<24x16xf32>
    %cst_8 = arith.constant 0.000000e+00 : f32
    %8 = vector.broadcast %cst_8 : f32 to vector<24x16xf32>
    %9 = arith.maximumf %7, %8 : vector<24x16xf32>
    %c0_9 = arith.constant 0 : index
    %c0_10 = arith.constant 0 : index
    %10 = vector.load %arg5[%c0_9, %c0_10] : memref<16x16xf32, #tpu.memory_space<vmem>>, vector<16x16xf32>
    %cst_11 = arith.constant dense<0.000000e+00> : vector<24x16xf32>
    %11 = tpu.matmul %2, %10, %cst_11 {dimension_numbers = #tpu.dot_dimension_numbers<[1], [1], [0], [0], [0, 0, 1, 0], [], []>} : vector<24x16xf32>, vector<16x16xf32>, vector<24x16xf32> -> vector<24x16xf32>
    %c0_12 = arith.constant 0 : index
    %c0_13 = arith.constant 0 : index
    %12 = vector.load %arg6[%c0_12, %c0_13] : memref<1x16xf32, #tpu.memory_space<vmem>>, vector<1x16xf32>
    %13 = vector.broadcast %12 : vector<1x16xf32> to vector<24x16xf32>
    %14 = arith.addf %11, %13 : vector<24x16xf32>
    %15 = arith.negf %14 : vector<24x16xf32>
    %16 = math.exp %15 : vector<24x16xf32>
    %cst_14 = arith.constant 1.000000e+00 : f32
    %17 = vector.broadcast %cst_14 : f32 to vector<24x16xf32>
    %18 = arith.addf %17, %16 : vector<24x16xf32>
    %19 = arith.divf %17, %18 : vector<24x16xf32>
    %20 = arith.mulf %19, %9 : vector<24x16xf32>
    %cst_15 = arith.constant 1.000000e+00 : f32
    %21 = vector.broadcast %cst_15 : f32 to vector<24x16xf32>
    %22 = arith.subf %21, %19 : vector<24x16xf32>
    %23 = arith.mulf %22, %2 : vector<24x16xf32>
    %24 = arith.addf %20, %23 : vector<24x16xf32>
    %c0_16 = arith.constant 0 : index
    %c0_17 = arith.constant 0 : index
    %25 = vector.load %arg7[%c0_16, %c0_17] : memref<16x16xf32, #tpu.memory_space<vmem>>, vector<16x16xf32>
    %cst_18 = arith.constant dense<0.000000e+00> : vector<24x16xf32>
    %26 = tpu.matmul %24, %25, %cst_18 {dimension_numbers = #tpu.dot_dimension_numbers<[1], [1], [0], [0], [0, 0, 1, 0], [], []>} : vector<24x16xf32>, vector<16x16xf32>, vector<24x16xf32> -> vector<24x16xf32>
    %c0_19 = arith.constant 0 : index
    %c0_20 = arith.constant 0 : index
    %27 = vector.load %arg8[%c0_19, %c0_20] : memref<1x16xf32, #tpu.memory_space<vmem>>, vector<1x16xf32>
    %28 = vector.broadcast %27 : vector<1x16xf32> to vector<24x16xf32>
    %29 = arith.addf %26, %28 : vector<24x16xf32>
    %cst_21 = arith.constant 0.000000e+00 : f32
    %30 = vector.broadcast %cst_21 : f32 to vector<24x16xf32>
    %31 = arith.maximumf %29, %30 : vector<24x16xf32>
    %c0_22 = arith.constant 0 : index
    %c0_23 = arith.constant 0 : index
    %32 = vector.load %arg9[%c0_22, %c0_23] : memref<16x16xf32, #tpu.memory_space<vmem>>, vector<16x16xf32>
    %cst_24 = arith.constant dense<0.000000e+00> : vector<24x16xf32>
    %33 = tpu.matmul %24, %32, %cst_24 {dimension_numbers = #tpu.dot_dimension_numbers<[1], [1], [0], [0], [0, 0, 1, 0], [], []>} : vector<24x16xf32>, vector<16x16xf32>, vector<24x16xf32> -> vector<24x16xf32>
    %c0_25 = arith.constant 0 : index
    %c0_26 = arith.constant 0 : index
    %34 = vector.load %arg10[%c0_25, %c0_26] : memref<1x16xf32, #tpu.memory_space<vmem>>, vector<1x16xf32>
    %35 = vector.broadcast %34 : vector<1x16xf32> to vector<24x16xf32>
    %36 = arith.addf %33, %35 : vector<24x16xf32>
    %37 = arith.negf %36 : vector<24x16xf32>
    %38 = math.exp %37 : vector<24x16xf32>
    %cst_27 = arith.constant 1.000000e+00 : f32
    %39 = vector.broadcast %cst_27 : f32 to vector<24x16xf32>
    %40 = arith.addf %39, %38 : vector<24x16xf32>
    %41 = arith.divf %39, %40 : vector<24x16xf32>
    %42 = arith.mulf %41, %31 : vector<24x16xf32>
    %cst_28 = arith.constant 1.000000e+00 : f32
    %43 = vector.broadcast %cst_28 : f32 to vector<24x16xf32>
    %44 = arith.subf %43, %41 : vector<24x16xf32>
    %45 = arith.mulf %44, %24 : vector<24x16xf32>
    %46 = arith.addf %42, %45 : vector<24x16xf32>
    %c0_29 = arith.constant 0 : index
    %c0_30 = arith.constant 0 : index
    %47 = vector.load %arg11[%c0_29, %c0_30] : memref<24x16xf32, #tpu.memory_space<vmem>>, vector<24x16xf32>
    tpu.vector_store %arg11[%c0_29, %c0_30], %46 {strides = array<i32>} : memref<24x16xf32, #tpu.memory_space<vmem>>, vector<24x16xf32>,
    return
  }
  func.func @transform_0(%arg0: i32) -> (i32, i32) {
    %c0_i32 = arith.constant 0 : i32
    %c0_i32_0 = arith.constant 0 : i32
    return %arg0, %c0_i32 : i32, i32
  }
  func.func @transform_1(%arg0: i32) -> (i32, i32) {
    %c0_i32 = arith.constant 0 : i32
    %c0_i32_0 = arith.constant 0 : i32
    %c0_i32_1 = arith.constant 0 : i32
    return %c0_i32, %c0_i32_0 : i32, i32
  }
  func.func @transform_2(%arg0: i32) -> (i32, i32) {
    %c0_i32 = arith.constant 0 : i32
    %c0_i32_0 = arith.constant 0 : i32
    %c0_i32_1 = arith.constant 0 : i32
    return %c0_i32, %c0_i32_0 : i32, i32
  }
  func.func @transform_3(%arg0: i32) -> (i32, i32) {
    %c0_i32 = arith.constant 0 : i32
    %c0_i32_0 = arith.constant 0 : i32
    %c0_i32_1 = arith.constant 0 : i32
    return %c0_i32, %c0_i32_0 : i32, i32
  }
  func.func @transform_4(%arg0: i32) -> (i32, i32) {
    %c0_i32 = arith.constant 0 : i32
    %c0_i32_0 = arith.constant 0 : i32
    %c0_i32_1 = arith.constant 0 : i32
    return %c0_i32, %c0_i32_0 : i32, i32
  }
  func.func @transform_5(%arg0: i32) -> (i32, i32) {
    %c0_i32 = arith.constant 0 : i32
    %c0_i32_0 = arith.constant 0 : i32
    %c0_i32_1 = arith.constant 0 : i32
    return %c0_i32, %c0_i32_0 : i32, i32
  }
  func.func @transform_6(%arg0: i32) -> (i32, i32) {
    %c0_i32 = arith.constant 0 : i32
    %c0_i32_0 = arith.constant 0 : i32
    %c0_i32_1 = arith.constant 0 : i32
    return %c0_i32, %c0_i32_0 : i32, i32
  }
  func.func @transform_7(%arg0: i32) -> (i32, i32) {
    %c0_i32 = arith.constant 0 : i32
    %c0_i32_0 = arith.constant 0 : i32
    %c0_i32_1 = arith.constant 0 : i32
    return %c0_i32, %c0_i32_0 : i32, i32
  }
  func.func @transform_8(%arg0: i32) -> (i32, i32) {
    %c0_i32 = arith.constant 0 : i32
    %c0_i32_0 = arith.constant 0 : i32
    %c0_i32_1 = arith.constant 0 : i32
    return %c0_i32, %c0_i32_0 : i32, i32
  }
  func.func @transform_9(%arg0: i32) -> (i32, i32) {
    %c0_i32 = arith.constant 0 : i32
    %c0_i32_0 = arith.constant 0 : i32
    %c0_i32_1 = arith.constant 0 : i32
    return %c0_i32, %c0_i32_0 : i32, i32
  }
  func.func @transform_10(%arg0: i32) -> (i32, i32) {
    %c0_i32 = arith.constant 0 : i32
    %c0_i32_0 = arith.constant 0 : i32
    return %arg0, %c0_i32 : i32, i32
  }
}

module attributes {stable_mosaic.version = 11 : i64} {
  func.func @_linear_kernel(%arg0: i32, %arg1: memref<24x16xf32, #tpu.memory_space<vmem>>, %arg2: memref<128x16xf32, #tpu.memory_space<vmem>>, %arg3: memref<1x128xf32, #tpu.memory_space<vmem>>, %arg4: memref<24x128xf32, #tpu.memory_space<vmem>>) attributes {dimension_semantics = [#tpu.dimension_semantics<parallel>], iteration_bounds = array<i64: 1>, scalar_prefetch = 0 : i64, scratch_operands = 0 : i64, tpu.core_type = #tpu.core_type<tc>, window_params = [{transform_indices = @transform_0, window_bounds = array<i64: 24, 16>}, {pipeline_mode = #tpu.pipeline_mode<synchronous>, transform_indices = @transform_1, window_bounds = array<i64: 128, 16>}, {pipeline_mode = #tpu.pipeline_mode<synchronous>, transform_indices = @transform_2, window_bounds = array<i64: 1, 128>}, {transform_indices = @transform_3, window_bounds = array<i64: 24, 128>}]} {
    %c0 = arith.constant 0 : index
    %c0_0 = arith.constant 0 : index
    %0 = vector.load %arg1[%c0, %c0_0] : memref<24x16xf32, #tpu.memory_space<vmem>>, vector<24x16xf32>
    %c0_1 = arith.constant 0 : index
    %c0_2 = arith.constant 0 : index
    %1 = vector.load %arg2[%c0_1, %c0_2] : memref<128x16xf32, #tpu.memory_space<vmem>>, vector<128x16xf32>
    %cst = arith.constant dense<0.000000e+00> : vector<24x128xf32>
    %2 = tpu.matmul %0, %1, %cst {dimension_numbers = #tpu.dot_dimension_numbers<[1], [1], [0], [0], [0, 0, 1, 0], [], []>} : vector<24x16xf32>, vector<128x16xf32>, vector<24x128xf32> -> vector<24x128xf32>
    %c0_3 = arith.constant 0 : index
    %c0_4 = arith.constant 0 : index
    %3 = vector.load %arg3[%c0_3, %c0_4] : memref<1x128xf32, #tpu.memory_space<vmem>>, vector<1x128xf32>
    %4 = vector.broadcast %3 : vector<1x128xf32> to vector<24x128xf32>
    %5 = arith.addf %2, %4 : vector<24x128xf32>
    %c0_5 = arith.constant 0 : index
    %c0_6 = arith.constant 0 : index
    %6 = vector.load %arg4[%c0_5, %c0_6] : memref<24x128xf32, #tpu.memory_space<vmem>>, vector<24x128xf32>
    tpu.vector_store %arg4[%c0_5, %c0_6], %5 {strides = array<i32>} : memref<24x128xf32, #tpu.memory_space<vmem>>, vector<24x128xf32>,
    return
  }
  func.func @transform_0(%arg0: i32) -> (i32, i32) {
    %c0_i32 = arith.constant 0 : i32
    %c0_i32_0 = arith.constant 0 : i32
    return %arg0, %c0_i32 : i32, i32
  }
  func.func @transform_1(%arg0: i32) -> (i32, i32) {
    %c0_i32 = arith.constant 0 : i32
    %c0_i32_0 = arith.constant 0 : i32
    %c0_i32_1 = arith.constant 0 : i32
    return %c0_i32, %c0_i32_0 : i32, i32
  }
  func.func @transform_2(%arg0: i32) -> (i32, i32) {
    %c0_i32 = arith.constant 0 : i32
    %c0_i32_0 = arith.constant 0 : i32
    %c0_i32_1 = arith.constant 0 : i32
    return %c0_i32, %c0_i32_0 : i32, i32
  }
  func.func @transform_3(%arg0: i32) -> (i32, i32) {
    %c0_i32 = arith.constant 0 : i32
    %c0_i32_0 = arith.constant 0 : i32
    return %arg0, %c0_i32 : i32, i32
  }
}

module attributes {stable_mosaic.version = 11 : i64} {
  func.func @_bilstm_rec_kernel(%arg0: i32, %arg1: memref<12x2x128xf32, #tpu.memory_space<vmem>>, %arg2: memref<12x2x1xf32, #tpu.memory_space<vmem>>, %arg3: memref<64x16xf32, #tpu.memory_space<vmem>>, %arg4: memref<64x16xf32, #tpu.memory_space<vmem>>, %arg5: memref<12x2x16xf32, #tpu.memory_space<vmem>>, %arg6: memref<12x2x16xf32, #tpu.memory_space<vmem>>) attributes {dimension_semantics = [#tpu.dimension_semantics<arbitrary>], iteration_bounds = array<i64: 1>, scalar_prefetch = 0 : i64, scratch_operands = 0 : i64, tpu.core_type = #tpu.core_type<tc>, window_params = [{pipeline_mode = #tpu.pipeline_mode<synchronous>, transform_indices = @transform_0, window_bounds = array<i64: 12, 2, 128>}, {pipeline_mode = #tpu.pipeline_mode<synchronous>, transform_indices = @transform_1, window_bounds = array<i64: 12, 2, 1>}, {pipeline_mode = #tpu.pipeline_mode<synchronous>, transform_indices = @transform_2, window_bounds = array<i64: 64, 16>}, {pipeline_mode = #tpu.pipeline_mode<synchronous>, transform_indices = @transform_3, window_bounds = array<i64: 64, 16>}, {pipeline_mode = #tpu.pipeline_mode<synchronous>, transform_indices = @transform_4, window_bounds = array<i64: 12, 2, 16>}, {pipeline_mode = #tpu.pipeline_mode<synchronous>, transform_indices = @transform_5, window_bounds = array<i64: 12, 2, 16>}]} {
    %c0 = arith.constant 0 : index
    %c0_0 = arith.constant 0 : index
    %0 = vector.load %arg3[%c0, %c0_0] : memref<64x16xf32, #tpu.memory_space<vmem>>, vector<64x16xf32>
    %c0_1 = arith.constant 0 : index
    %c0_2 = arith.constant 0 : index
    %1 = vector.load %arg4[%c0_1, %c0_2] : memref<64x16xf32, #tpu.memory_space<vmem>>, vector<64x16xf32>
    %cst = arith.constant 0.000000e+00 : f32
    %2 = vector.broadcast %cst : f32 to vector<2x16xf32>
    %c0_i32 = arith.constant 0 : i32
    %c6_i32 = arith.constant 6 : i32
    %3 = arith.addi %c0_i32, %c6_i32 : i32
    %c1_i32 = arith.constant 1 : i32
    %4:4 = scf.for %arg7 = %c0_i32 to %3 step %c1_i32 iter_args(%arg8 = %2, %arg9 = %2, %arg10 = %2, %arg11 = %2) -> (vector<2x16xf32>, vector<2x16xf32>, vector<2x16xf32>, vector<2x16xf32>)  : i32 {
      %c2_i32 = arith.constant 2 : i32
      %5 = arith.muli %c2_i32, %arg7 : i32
      %6 = arith.index_cast %5 : i32 to index
      %c0_4 = arith.constant 0 : index
      %c0_5 = arith.constant 0 : index
      %7 = vector.load %arg1[%6, %c0_4, %c0_5] : memref<12x2x128xf32, #tpu.memory_space<vmem>>, vector<1x2x128xf32>
      %8 = vector.shape_cast %7 : vector<1x2x128xf32> to vector<2x128xf32>
      %9 = arith.index_cast %5 : i32 to index
      %c0_6 = arith.constant 0 : index
      %c0_7 = arith.constant 0 : index
      %10 = vector.load %arg2[%9, %c0_6, %c0_7] : memref<12x2x1xf32, #tpu.memory_space<vmem>>, vector<1x2x1xf32>
      %11 = vector.shape_cast %10 : vector<1x2x1xf32> to vector<2x1xf32>
      %12 = vector.extract_strided_slice %8 {offsets = [0, 0], sizes = [2, 64], strides = [1, 1]} : vector<2x128xf32> to vector<2x64xf32>
      %cst_8 = arith.constant dense<0.000000e+00> : vector<2x64xf32>
      %13 = tpu.matmul %arg8, %0, %cst_8 {dimension_numbers = #tpu.dot_dimension_numbers<[1], [1], [0], [0], [0, 0, 1, 0], [], []>} : vector<2x16xf32>, vector<64x16xf32>, vector<2x64xf32> -> vector<2x64xf32>
      %14 = arith.addf %12, %13 : vector<2x64xf32>
      %15 = vector.extract_strided_slice %14 {offsets = [0, 0], sizes = [2, 16], strides = [1, 1]} : vector<2x64xf32> to vector<2x16xf32>
      %16 = arith.negf %15 : vector<2x16xf32>
      %17 = math.exp %16 : vector<2x16xf32>
      %cst_9 = arith.constant 1.000000e+00 : f32
      %18 = vector.broadcast %cst_9 : f32 to vector<2x16xf32>
      %19 = arith.addf %18, %17 : vector<2x16xf32>
      %20 = arith.divf %18, %19 : vector<2x16xf32>
      %21 = vector.extract_strided_slice %14 {offsets = [0, 16], sizes = [2, 16], strides = [1, 1]} : vector<2x64xf32> to vector<2x16xf32>
      %22 = arith.negf %21 : vector<2x16xf32>
      %23 = math.exp %22 : vector<2x16xf32>
      %cst_10 = arith.constant 1.000000e+00 : f32
      %24 = vector.broadcast %cst_10 : f32 to vector<2x16xf32>
      %25 = arith.addf %24, %23 : vector<2x16xf32>
      %26 = arith.divf %24, %25 : vector<2x16xf32>
      %27 = vector.extract_strided_slice %14 {offsets = [0, 32], sizes = [2, 16], strides = [1, 1]} : vector<2x64xf32> to vector<2x16xf32>
      %28 = math.tanh %27 : vector<2x16xf32>
      %29 = vector.extract_strided_slice %14 {offsets = [0, 48], sizes = [2, 16], strides = [1, 1]} : vector<2x64xf32> to vector<2x16xf32>
      %30 = arith.negf %29 : vector<2x16xf32>
      %31 = math.exp %30 : vector<2x16xf32>
      %cst_11 = arith.constant 1.000000e+00 : f32
      %32 = vector.broadcast %cst_11 : f32 to vector<2x16xf32>
      %33 = arith.addf %32, %31 : vector<2x16xf32>
      %34 = arith.divf %32, %33 : vector<2x16xf32>
      %35 = arith.mulf %26, %arg9 : vector<2x16xf32>
      %36 = arith.mulf %20, %28 : vector<2x16xf32>
      %37 = arith.addf %35, %36 : vector<2x16xf32>
      %38 = math.tanh %37 : vector<2x16xf32>
      %39 = arith.mulf %34, %38 : vector<2x16xf32>
      %40 = vector.broadcast %11 : vector<2x1xf32> to vector<2x16xf32>
      %41 = arith.mulf %40, %39 : vector<2x16xf32>
      %cst_12 = arith.constant 1.000000e+00 : f32
      %42 = vector.broadcast %cst_12 : f32 to vector<2x1xf32>
      %43 = arith.subf %42, %11 : vector<2x1xf32>
      %44 = vector.broadcast %43 : vector<2x1xf32> to vector<2x16xf32>
      %45 = arith.mulf %44, %arg8 : vector<2x16xf32>
      %46 = arith.addf %41, %45 : vector<2x16xf32>
      %47 = vector.broadcast %11 : vector<2x1xf32> to vector<2x16xf32>
      %48 = arith.mulf %47, %37 : vector<2x16xf32>
      %cst_13 = arith.constant 1.000000e+00 : f32
      %49 = vector.broadcast %cst_13 : f32 to vector<2x1xf32>
      %50 = arith.subf %49, %11 : vector<2x1xf32>
      %51 = vector.broadcast %50 : vector<2x1xf32> to vector<2x16xf32>
      %52 = arith.mulf %51, %arg9 : vector<2x16xf32>
      %53 = arith.addf %48, %52 : vector<2x16xf32>
      %54 = vector.broadcast %11 : vector<2x1xf32> to vector<2x16xf32>
      %55 = arith.mulf %54, %39 : vector<2x16xf32>
      %56 = arith.index_cast %5 : i32 to index
      %c0_14 = arith.constant 0 : index
      %c0_15 = arith.constant 0 : index
      %57 = vector.load %arg5[%56, %c0_14, %c0_15] : memref<12x2x16xf32, #tpu.memory_space<vmem>>, vector<1x2x16xf32>
      %58 = vector.shape_cast %57 : vector<1x2x16xf32> to vector<2x16xf32>
      %59 = vector.shape_cast %55 : vector<2x16xf32> to vector<1x2x16xf32>
      tpu.vector_store %arg5[%56, %c0_14, %c0_15], %59 {strides = array<i32>} : memref<12x2x16xf32, #tpu.memory_space<vmem>>, vector<1x2x16xf32>,
      %c11_i32 = arith.constant 11 : i32
      %60 = arith.subi %c11_i32, %5 : i32
      %61 = arith.index_cast %60 : i32 to index
      %c0_16 = arith.constant 0 : index
      %c0_17 = arith.constant 0 : index
      %62 = vector.load %arg1[%61, %c0_16, %c0_17] : memref<12x2x128xf32, #tpu.memory_space<vmem>>, vector<1x2x128xf32>
      %63 = vector.shape_cast %62 : vector<1x2x128xf32> to vector<2x128xf32>
      %64 = arith.index_cast %60 : i32 to index
      %c0_18 = arith.constant 0 : index
      %c0_19 = arith.constant 0 : index
      %65 = vector.load %arg2[%64, %c0_18, %c0_19] : memref<12x2x1xf32, #tpu.memory_space<vmem>>, vector<1x2x1xf32>
      %66 = vector.shape_cast %65 : vector<1x2x1xf32> to vector<2x1xf32>
      %67 = vector.extract_strided_slice %63 {offsets = [0, 64], sizes = [2, 64], strides = [1, 1]} : vector<2x128xf32> to vector<2x64xf32>
      %cst_20 = arith.constant dense<0.000000e+00> : vector<2x64xf32>
      %68 = tpu.matmul %arg10, %1, %cst_20 {dimension_numbers = #tpu.dot_dimension_numbers<[1], [1], [0], [0], [0, 0, 1, 0], [], []>} : vector<2x16xf32>, vector<64x16xf32>, vector<2x64xf32> -> vector<2x64xf32>
      %69 = arith.addf %67, %68 : vector<2x64xf32>
      %70 = vector.extract_strided_slice %69 {offsets = [0, 0], sizes = [2, 16], strides = [1, 1]} : vector<2x64xf32> to vector<2x16xf32>
      %71 = arith.negf %70 : vector<2x16xf32>
      %72 = math.exp %71 : vector<2x16xf32>
      %cst_21 = arith.constant 1.000000e+00 : f32
      %73 = vector.broadcast %cst_21 : f32 to vector<2x16xf32>
      %74 = arith.addf %73, %72 : vector<2x16xf32>
      %75 = arith.divf %73, %74 : vector<2x16xf32>
      %76 = vector.extract_strided_slice %69 {offsets = [0, 16], sizes = [2, 16], strides = [1, 1]} : vector<2x64xf32> to vector<2x16xf32>
      %77 = arith.negf %76 : vector<2x16xf32>
      %78 = math.exp %77 : vector<2x16xf32>
      %cst_22 = arith.constant 1.000000e+00 : f32
      %79 = vector.broadcast %cst_22 : f32 to vector<2x16xf32>
      %80 = arith.addf %79, %78 : vector<2x16xf32>
      %81 = arith.divf %79, %80 : vector<2x16xf32>
      %82 = vector.extract_strided_slice %69 {offsets = [0, 32], sizes = [2, 16], strides = [1, 1]} : vector<2x64xf32> to vector<2x16xf32>
      %83 = math.tanh %82 : vector<2x16xf32>
      %84 = vector.extract_strided_slice %69 {offsets = [0, 48], sizes = [2, 16], strides = [1, 1]} : vector<2x64xf32> to vector<2x16xf32>
      %85 = arith.negf %84 : vector<2x16xf32>
      %86 = math.exp %85 : vector<2x16xf32>
      %cst_23 = arith.constant 1.000000e+00 : f32
      %87 = vector.broadcast %cst_23 : f32 to vector<2x16xf32>
      %88 = arith.addf %87, %86 : vector<2x16xf32>
      %89 = arith.divf %87, %88 : vector<2x16xf32>
      %90 = arith.mulf %81, %arg11 : vector<2x16xf32>
      %91 = arith.mulf %75, %83 : vector<2x16xf32>
      %92 = arith.addf %90, %91 : vector<2x16xf32>
      %93 = math.tanh %92 : vector<2x16xf32>
      %94 = arith.mulf %89, %93 : vector<2x16xf32>
      %95 = vector.broadcast %66 : vector<2x1xf32> to vector<2x16xf32>
      %96 = arith.mulf %95, %94 : vector<2x16xf32>
      %cst_24 = arith.constant 1.000000e+00 : f32
      %97 = vector.broadcast %cst_24 : f32 to vector<2x1xf32>
      %98 = arith.subf %97, %66 : vector<2x1xf32>
      %99 = vector.broadcast %98 : vector<2x1xf32> to vector<2x16xf32>
      %100 = arith.mulf %99, %arg10 : vector<2x16xf32>
      %101 = arith.addf %96, %100 : vector<2x16xf32>
      %102 = vector.broadcast %66 : vector<2x1xf32> to vector<2x16xf32>
      %103 = arith.mulf %102, %92 : vector<2x16xf32>
      %cst_25 = arith.constant 1.000000e+00 : f32
      %104 = vector.broadcast %cst_25 : f32 to vector<2x1xf32>
      %105 = arith.subf %104, %66 : vector<2x1xf32>
      %106 = vector.broadcast %105 : vector<2x1xf32> to vector<2x16xf32>
      %107 = arith.mulf %106, %arg11 : vector<2x16xf32>
      %108 = arith.addf %103, %107 : vector<2x16xf32>
      %109 = vector.broadcast %66 : vector<2x1xf32> to vector<2x16xf32>
      %110 = arith.mulf %109, %94 : vector<2x16xf32>
      %111 = arith.index_cast %60 : i32 to index
      %c0_26 = arith.constant 0 : index
      %c0_27 = arith.constant 0 : index
      %112 = vector.load %arg6[%111, %c0_26, %c0_27] : memref<12x2x16xf32, #tpu.memory_space<vmem>>, vector<1x2x16xf32>
      %113 = vector.shape_cast %112 : vector<1x2x16xf32> to vector<2x16xf32>
      %114 = vector.shape_cast %110 : vector<2x16xf32> to vector<1x2x16xf32>
      tpu.vector_store %arg6[%111, %c0_26, %c0_27], %114 {strides = array<i32>} : memref<12x2x16xf32, #tpu.memory_space<vmem>>, vector<1x2x16xf32>,
      %c2_i32_28 = arith.constant 2 : i32
      %115 = arith.muli %c2_i32_28, %arg7 : i32
      %c1_i32_29 = arith.constant 1 : i32
      %116 = arith.addi %115, %c1_i32_29 : i32
      %117 = arith.index_cast %116 : i32 to index
      %c0_30 = arith.constant 0 : index
      %c0_31 = arith.constant 0 : index
      %118 = vector.load %arg1[%117, %c0_30, %c0_31] : memref<12x2x128xf32, #tpu.memory_space<vmem>>, vector<1x2x128xf32>
      %119 = vector.shape_cast %118 : vector<1x2x128xf32> to vector<2x128xf32>
      %120 = arith.index_cast %116 : i32 to index
      %c0_32 = arith.constant 0 : index
      %c0_33 = arith.constant 0 : index
      %121 = vector.load %arg2[%120, %c0_32, %c0_33] : memref<12x2x1xf32, #tpu.memory_space<vmem>>, vector<1x2x1xf32>
      %122 = vector.shape_cast %121 : vector<1x2x1xf32> to vector<2x1xf32>
      %123 = vector.extract_strided_slice %119 {offsets = [0, 0], sizes = [2, 64], strides = [1, 1]} : vector<2x128xf32> to vector<2x64xf32>
      %cst_34 = arith.constant dense<0.000000e+00> : vector<2x64xf32>
      %124 = tpu.matmul %46, %0, %cst_34 {dimension_numbers = #tpu.dot_dimension_numbers<[1], [1], [0], [0], [0, 0, 1, 0], [], []>} : vector<2x16xf32>, vector<64x16xf32>, vector<2x64xf32> -> vector<2x64xf32>
      %125 = arith.addf %123, %124 : vector<2x64xf32>
      %126 = vector.extract_strided_slice %125 {offsets = [0, 0], sizes = [2, 16], strides = [1, 1]} : vector<2x64xf32> to vector<2x16xf32>
      %127 = arith.negf %126 : vector<2x16xf32>
      %128 = math.exp %127 : vector<2x16xf32>
      %cst_35 = arith.constant 1.000000e+00 : f32
      %129 = vector.broadcast %cst_35 : f32 to vector<2x16xf32>
      %130 = arith.addf %129, %128 : vector<2x16xf32>
      %131 = arith.divf %129, %130 : vector<2x16xf32>
      %132 = vector.extract_strided_slice %125 {offsets = [0, 16], sizes = [2, 16], strides = [1, 1]} : vector<2x64xf32> to vector<2x16xf32>
      %133 = arith.negf %132 : vector<2x16xf32>
      %134 = math.exp %133 : vector<2x16xf32>
      %cst_36 = arith.constant 1.000000e+00 : f32
      %135 = vector.broadcast %cst_36 : f32 to vector<2x16xf32>
      %136 = arith.addf %135, %134 : vector<2x16xf32>
      %137 = arith.divf %135, %136 : vector<2x16xf32>
      %138 = vector.extract_strided_slice %125 {offsets = [0, 32], sizes = [2, 16], strides = [1, 1]} : vector<2x64xf32> to vector<2x16xf32>
      %139 = math.tanh %138 : vector<2x16xf32>
      %140 = vector.extract_strided_slice %125 {offsets = [0, 48], sizes = [2, 16], strides = [1, 1]} : vector<2x64xf32> to vector<2x16xf32>
      %141 = arith.negf %140 : vector<2x16xf32>
      %142 = math.exp %141 : vector<2x16xf32>
      %cst_37 = arith.constant 1.000000e+00 : f32
      %143 = vector.broadcast %cst_37 : f32 to vector<2x16xf32>
      %144 = arith.addf %143, %142 : vector<2x16xf32>
      %145 = arith.divf %143, %144 : vector<2x16xf32>
      %146 = arith.mulf %137, %53 : vector<2x16xf32>
      %147 = arith.mulf %131, %139 : vector<2x16xf32>
      %148 = arith.addf %146, %147 : vector<2x16xf32>
      %149 = math.tanh %148 : vector<2x16xf32>
      %150 = arith.mulf %145, %149 : vector<2x16xf32>
      %151 = vector.broadcast %122 : vector<2x1xf32> to vector<2x16xf32>
      %152 = arith.mulf %151, %150 : vector<2x16xf32>
      %cst_38 = arith.constant 1.000000e+00 : f32
      %153 = vector.broadcast %cst_38 : f32 to vector<2x1xf32>
      %154 = arith.subf %153, %122 : vector<2x1xf32>
      %155 = vector.broadcast %154 : vector<2x1xf32> to vector<2x16xf32>
      %156 = arith.mulf %155, %46 : vector<2x16xf32>
      %157 = arith.addf %152, %156 : vector<2x16xf32>
      %158 = vector.broadcast %122 : vector<2x1xf32> to vector<2x16xf32>
      %159 = arith.mulf %158, %148 : vector<2x16xf32>
      %cst_39 = arith.constant 1.000000e+00 : f32
      %160 = vector.broadcast %cst_39 : f32 to vector<2x1xf32>
      %161 = arith.subf %160, %122 : vector<2x1xf32>
      %162 = vector.broadcast %161 : vector<2x1xf32> to vector<2x16xf32>
      %163 = arith.mulf %162, %53 : vector<2x16xf32>
      %164 = arith.addf %159, %163 : vector<2x16xf32>
      %165 = vector.broadcast %122 : vector<2x1xf32> to vector<2x16xf32>
      %166 = arith.mulf %165, %150 : vector<2x16xf32>
      %167 = arith.index_cast %116 : i32 to index
      %c0_40 = arith.constant 0 : index
      %c0_41 = arith.constant 0 : index
      %168 = vector.load %arg5[%167, %c0_40, %c0_41] : memref<12x2x16xf32, #tpu.memory_space<vmem>>, vector<1x2x16xf32>
      %169 = vector.shape_cast %168 : vector<1x2x16xf32> to vector<2x16xf32>
      %170 = vector.shape_cast %166 : vector<2x16xf32> to vector<1x2x16xf32>
      tpu.vector_store %arg5[%167, %c0_40, %c0_41], %170 {strides = array<i32>} : memref<12x2x16xf32, #tpu.memory_space<vmem>>, vector<1x2x16xf32>,
      %c11_i32_42 = arith.constant 11 : i32
      %171 = arith.subi %c11_i32_42, %116 : i32
      %172 = arith.index_cast %171 : i32 to index
      %c0_43 = arith.constant 0 : index
      %c0_44 = arith.constant 0 : index
      %173 = vector.load %arg1[%172, %c0_43, %c0_44] : memref<12x2x128xf32, #tpu.memory_space<vmem>>, vector<1x2x128xf32>
      %174 = vector.shape_cast %173 : vector<1x2x128xf32> to vector<2x128xf32>
      %175 = arith.index_cast %171 : i32 to index
      %c0_45 = arith.constant 0 : index
      %c0_46 = arith.constant 0 : index
      %176 = vector.load %arg2[%175, %c0_45, %c0_46] : memref<12x2x1xf32, #tpu.memory_space<vmem>>, vector<1x2x1xf32>
      %177 = vector.shape_cast %176 : vector<1x2x1xf32> to vector<2x1xf32>
      %178 = vector.extract_strided_slice %174 {offsets = [0, 64], sizes = [2, 64], strides = [1, 1]} : vector<2x128xf32> to vector<2x64xf32>
      %cst_47 = arith.constant dense<0.000000e+00> : vector<2x64xf32>
      %179 = tpu.matmul %101, %1, %cst_47 {dimension_numbers = #tpu.dot_dimension_numbers<[1], [1], [0], [0], [0, 0, 1, 0], [], []>} : vector<2x16xf32>, vector<64x16xf32>, vector<2x64xf32> -> vector<2x64xf32>
      %180 = arith.addf %178, %179 : vector<2x64xf32>
      %181 = vector.extract_strided_slice %180 {offsets = [0, 0], sizes = [2, 16], strides = [1, 1]} : vector<2x64xf32> to vector<2x16xf32>
      %182 = arith.negf %181 : vector<2x16xf32>
      %183 = math.exp %182 : vector<2x16xf32>
      %cst_48 = arith.constant 1.000000e+00 : f32
      %184 = vector.broadcast %cst_48 : f32 to vector<2x16xf32>
      %185 = arith.addf %184, %183 : vector<2x16xf32>
      %186 = arith.divf %184, %185 : vector<2x16xf32>
      %187 = vector.extract_strided_slice %180 {offsets = [0, 16], sizes = [2, 16], strides = [1, 1]} : vector<2x64xf32> to vector<2x16xf32>
      %188 = arith.negf %187 : vector<2x16xf32>
      %189 = math.exp %188 : vector<2x16xf32>
      %cst_49 = arith.constant 1.000000e+00 : f32
      %190 = vector.broadcast %cst_49 : f32 to vector<2x16xf32>
      %191 = arith.addf %190, %189 : vector<2x16xf32>
      %192 = arith.divf %190, %191 : vector<2x16xf32>
      %193 = vector.extract_strided_slice %180 {offsets = [0, 32], sizes = [2, 16], strides = [1, 1]} : vector<2x64xf32> to vector<2x16xf32>
      %194 = math.tanh %193 : vector<2x16xf32>
      %195 = vector.extract_strided_slice %180 {offsets = [0, 48], sizes = [2, 16], strides = [1, 1]} : vector<2x64xf32> to vector<2x16xf32>
      %196 = arith.negf %195 : vector<2x16xf32>
      %197 = math.exp %196 : vector<2x16xf32>
      %cst_50 = arith.constant 1.000000e+00 : f32
      %198 = vector.broadcast %cst_50 : f32 to vector<2x16xf32>
      %199 = arith.addf %198, %197 : vector<2x16xf32>
      %200 = arith.divf %198, %199 : vector<2x16xf32>
      %201 = arith.mulf %192, %108 : vector<2x16xf32>
      %202 = arith.mulf %186, %194 : vector<2x16xf32>
      %203 = arith.addf %201, %202 : vector<2x16xf32>
      %204 = math.tanh %203 : vector<2x16xf32>
      %205 = arith.mulf %200, %204 : vector<2x16xf32>
      %206 = vector.broadcast %177 : vector<2x1xf32> to vector<2x16xf32>
      %207 = arith.mulf %206, %205 : vector<2x16xf32>
      %cst_51 = arith.constant 1.000000e+00 : f32
      %208 = vector.broadcast %cst_51 : f32 to vector<2x1xf32>
      %209 = arith.subf %208, %177 : vector<2x1xf32>
      %210 = vector.broadcast %209 : vector<2x1xf32> to vector<2x16xf32>
      %211 = arith.mulf %210, %101 : vector<2x16xf32>
      %212 = arith.addf %207, %211 : vector<2x16xf32>
      %213 = vector.broadcast %177 : vector<2x1xf32> to vector<2x16xf32>
      %214 = arith.mulf %213, %203 : vector<2x16xf32>
      %cst_52 = arith.constant 1.000000e+00 : f32
      %215 = vector.broadcast %cst_52 : f32 to vector<2x1xf32>
      %216 = arith.subf %215, %177 : vector<2x1xf32>
      %217 = vector.broadcast %216 : vector<2x1xf32> to vector<2x16xf32>
      %218 = arith.mulf %217, %108 : vector<2x16xf32>
      %219 = arith.addf %214, %218 : vector<2x16xf32>
      %220 = vector.broadcast %177 : vector<2x1xf32> to vector<2x16xf32>
      %221 = arith.mulf %220, %205 : vector<2x16xf32>
      %222 = arith.index_cast %171 : i32 to index
      %c0_53 = arith.constant 0 : index
      %c0_54 = arith.constant 0 : index
      %223 = vector.load %arg6[%222, %c0_53, %c0_54] : memref<12x2x16xf32, #tpu.memory_space<vmem>>, vector<1x2x16xf32>
      %224 = vector.shape_cast %223 : vector<1x2x16xf32> to vector<2x16xf32>
      %225 = vector.shape_cast %221 : vector<2x16xf32> to vector<1x2x16xf32>
      tpu.vector_store %arg6[%222, %c0_53, %c0_54], %225 {strides = array<i32>} : memref<12x2x16xf32, #tpu.memory_space<vmem>>, vector<1x2x16xf32>,
      scf.yield %157, %164, %212, %219 : vector<2x16xf32>, vector<2x16xf32>, vector<2x16xf32>, vector<2x16xf32>
    }
    %c6_i32_3 = arith.constant 6 : i32
    return
  }
  func.func @transform_0(%arg0: i32) -> (i32, i32, i32) {
    %c0_i32 = arith.constant 0 : i32
    %c0_i32_0 = arith.constant 0 : i32
    %c0_i32_1 = arith.constant 0 : i32
    %c0_i32_2 = arith.constant 0 : i32
    return %c0_i32, %c0_i32_0, %c0_i32_1 : i32, i32, i32
  }
  func.func @transform_1(%arg0: i32) -> (i32, i32, i32) {
    %c0_i32 = arith.constant 0 : i32
    %c0_i32_0 = arith.constant 0 : i32
    %c0_i32_1 = arith.constant 0 : i32
    %c0_i32_2 = arith.constant 0 : i32
    return %c0_i32, %c0_i32_0, %c0_i32_1 : i32, i32, i32
  }
  func.func @transform_2(%arg0: i32) -> (i32, i32) {
    %c0_i32 = arith.constant 0 : i32
    %c0_i32_0 = arith.constant 0 : i32
    %c0_i32_1 = arith.constant 0 : i32
    return %c0_i32, %c0_i32_0 : i32, i32
  }
  func.func @transform_3(%arg0: i32) -> (i32, i32) {
    %c0_i32 = arith.constant 0 : i32
    %c0_i32_0 = arith.constant 0 : i32
    %c0_i32_1 = arith.constant 0 : i32
    return %c0_i32, %c0_i32_0 : i32, i32
  }
  func.func @transform_4(%arg0: i32) -> (i32, i32, i32) {
    %c0_i32 = arith.constant 0 : i32
    %c0_i32_0 = arith.constant 0 : i32
    %c0_i32_1 = arith.constant 0 : i32
    %c0_i32_2 = arith.constant 0 : i32
    return %c0_i32, %c0_i32_0, %c0_i32_1 : i32, i32, i32
  }
  func.func @transform_5(%arg0: i32) -> (i32, i32, i32) {
    %c0_i32 = arith.constant 0 : i32
    %c0_i32_0 = arith.constant 0 : i32
    %c0_i32_1 = arith.constant 0 : i32
    %c0_i32_2 = arith.constant 0 : i32
    return %c0_i32, %c0_i32_0, %c0_i32_1 : i32, i32, i32
  }
}

module attributes {stable_mosaic.version = 11 : i64} {
  func.func @_bidaf_att_kernel(%arg0: i32, %arg1: memref<1x12x32xf32, #tpu.memory_space<vmem>>, %arg2: memref<1x8x32xf32, #tpu.memory_space<vmem>>, %arg3: memref<1x12x1xf32, #tpu.memory_space<vmem>>, %arg4: memref<1x1x8xf32, #tpu.memory_space<vmem>>, %arg5: memref<32x1xf32, #tpu.memory_space<vmem>>, %arg6: memref<1x32xf32, #tpu.memory_space<vmem>>, %arg7: memref<1x32xf32, #tpu.memory_space<vmem>>, %arg8: memref<1x1xf32, #tpu.memory_space<vmem>>, %arg9: memref<1x12x128xf32, #tpu.memory_space<vmem>>) attributes {dimension_semantics = [#tpu.dimension_semantics<parallel>], iteration_bounds = array<i64: 2>, scalar_prefetch = 0 : i64, scratch_operands = 0 : i64, tpu.core_type = #tpu.core_type<tc>, window_params = [{transform_indices = @transform_0, window_bounds = array<i64: 1, 12, 32>}, {transform_indices = @transform_1, window_bounds = array<i64: 1, 8, 32>}, {transform_indices = @transform_2, window_bounds = array<i64: 1, 12, 1>}, {transform_indices = @transform_3, window_bounds = array<i64: 1, 1, 8>}, {pipeline_mode = #tpu.pipeline_mode<synchronous>, transform_indices = @transform_4, window_bounds = array<i64: 32, 1>}, {pipeline_mode = #tpu.pipeline_mode<synchronous>, transform_indices = @transform_5, window_bounds = array<i64: 1, 32>}, {pipeline_mode = #tpu.pipeline_mode<synchronous>, transform_indices = @transform_6, window_bounds = array<i64: 1, 32>}, {pipeline_mode = #tpu.pipeline_mode<synchronous>, transform_indices = @transform_7, window_bounds = array<i64: 1, 1>}, {transform_indices = @transform_8, window_bounds = array<i64: 1, 12, 128>}]} {
    %c0 = arith.constant 0 : index
    %c0_0 = arith.constant 0 : index
    %c0_1 = arith.constant 0 : index
    %0 = vector.load %arg1[%c0, %c0_0, %c0_1] : memref<1x12x32xf32, #tpu.memory_space<vmem>>, vector<1x12x32xf32>
    %1 = vector.shape_cast %0 : vector<1x12x32xf32> to vector<12x32xf32>
    %c0_2 = arith.constant 0 : index
    %c0_3 = arith.constant 0 : index
    %c0_4 = arith.constant 0 : index
    %2 = vector.load %arg2[%c0_2, %c0_3, %c0_4] : memref<1x8x32xf32, #tpu.memory_space<vmem>>, vector<1x8x32xf32>
    %3 = vector.shape_cast %2 : vector<1x8x32xf32> to vector<8x32xf32>
    %c0_5 = arith.constant 0 : index
    %c0_6 = arith.constant 0 : index
    %c0_7 = arith.constant 0 : index
    %4 = vector.load %arg3[%c0_5, %c0_6, %c0_7] : memref<1x12x1xf32, #tpu.memory_space<vmem>>, vector<1x12x1xf32>
    %5 = vector.shape_cast %4 : vector<1x12x1xf32> to vector<12x1xf32>
    %c0_8 = arith.constant 0 : index
    %c0_9 = arith.constant 0 : index
    %c0_10 = arith.constant 0 : index
    %6 = vector.load %arg4[%c0_8, %c0_9, %c0_10] : memref<1x1x8xf32, #tpu.memory_space<vmem>>, vector<1x1x8xf32>
    %7 = vector.shape_cast %6 : vector<1x1x8xf32> to vector<1x8xf32>
    %c0_11 = arith.constant 0 : index
    %c0_12 = arith.constant 0 : index
    %8 = vector.load %arg5[%c0_11, %c0_12] : memref<32x1xf32, #tpu.memory_space<vmem>>, vector<32x1xf32>
    %cst = arith.constant dense<0.000000e+00> : vector<12x1xf32>
    %9 = tpu.matmul %1, %8, %cst {dimension_numbers = #tpu.dot_dimension_numbers<[1], [0], [0], [1], [0, 0, 1, 1], [], []>} : vector<12x32xf32>, vector<32x1xf32>, vector<12x1xf32> -> vector<12x1xf32>
    %c0_13 = arith.constant 0 : index
    %c0_14 = arith.constant 0 : index
    %10 = vector.load %arg6[%c0_13, %c0_14] : memref<1x32xf32, #tpu.memory_space<vmem>>, vector<1x32xf32>
    %cst_15 = arith.constant dense<0.000000e+00> : vector<1x8xf32>
    %11 = tpu.matmul %10, %3, %cst_15 {dimension_numbers = #tpu.dot_dimension_numbers<[1], [1], [0], [0], [0, 0, 1, 0], [], []>} : vector<1x32xf32>, vector<8x32xf32>, vector<1x8xf32> -> vector<1x8xf32>
    %c0_16 = arith.constant 0 : index
    %c0_17 = arith.constant 0 : index
    %12 = vector.load %arg7[%c0_16, %c0_17] : memref<1x32xf32, #tpu.memory_space<vmem>>, vector<1x32xf32>
    %13 = vector.broadcast %12 : vector<1x32xf32> to vector<12x32xf32>
    %14 = arith.mulf %1, %13 : vector<12x32xf32>
    %cst_18 = arith.constant dense<0.000000e+00> : vector<12x8xf32>
    %15 = tpu.matmul %14, %3, %cst_18 {dimension_numbers = #tpu.dot_dimension_numbers<[1], [1], [0], [0], [0, 0, 1, 0], [], []>} : vector<12x32xf32>, vector<8x32xf32>, vector<12x8xf32> -> vector<12x8xf32>
    %16 = vector.broadcast %9 : vector<12x1xf32> to vector<12x8xf32>
    %17 = vector.broadcast %11 : vector<1x8xf32> to vector<12x8xf32>
    %18 = arith.addf %16, %17 : vector<12x8xf32>
    %19 = arith.addf %18, %15 : vector<12x8xf32>
    %c0_19 = arith.constant 0 : index
    %c0_20 = arith.constant 0 : index
    %20 = vector.load %arg8[%c0_19, %c0_20] : memref<1x1xf32, #tpu.memory_space<vmem>>, vector<1x1xf32>
    %21 = vector.broadcast %20 : vector<1x1xf32> to vector<12x8xf32>
    %22 = arith.addf %19, %21 : vector<12x8xf32>
    %23 = vector.broadcast %7 : vector<1x8xf32> to vector<12x8xf32>
    %24 = arith.mulf %23, %22 : vector<12x8xf32>
    %cst_21 = arith.constant 1.000000e+00 : f32
    %25 = vector.broadcast %cst_21 : f32 to vector<1x8xf32>
    %26 = arith.subf %25, %7 : vector<1x8xf32>
    %cst_22 = arith.constant -1.000000e+30 : f32
    %27 = vector.broadcast %cst_22 : f32 to vector<1x8xf32>
    %28 = arith.mulf %26, %27 : vector<1x8xf32>
    %29 = vector.broadcast %28 : vector<1x8xf32> to vector<12x8xf32>
    %30 = arith.addf %24, %29 : vector<12x8xf32>
    %cst_23 = arith.constant dense<0xFF800000> : vector<12xf32>
    %31 = vector.multi_reduction <maximumf>, %30, %cst_23 [1] : vector<12x8xf32> to vector<12xf32>
    %32 = vector.shape_cast %31 : vector<12xf32> to vector<12x1xf32>
    %33 = vector.broadcast %32 : vector<12x1xf32> to vector<12x8xf32>
    %34 = arith.subf %30, %33 : vector<12x8xf32>
    %35 = math.exp %34 : vector<12x8xf32>
    %cst_24 = arith.constant dense<0.000000e+00> : vector<12xf32>
    %36 = vector.multi_reduction <add>, %35, %cst_24 [1] : vector<12x8xf32> to vector<12xf32>
    %37 = vector.shape_cast %36 : vector<12xf32> to vector<12x1xf32>
    %38 = tpu.reciprocal %37 {approx = true} : vector<12x1xf32> -> vector<12x1xf32>
    %39 = vector.broadcast %38 : vector<12x1xf32> to vector<12x8xf32>
    %40 = arith.mulf %35, %39 : vector<12x8xf32>
    %41 = vector.broadcast %5 : vector<12x1xf32> to vector<12x8xf32>
    %42 = arith.mulf %41, %22 : vector<12x8xf32>
    %cst_25 = arith.constant 1.000000e+00 : f32
    %43 = vector.broadcast %cst_25 : f32 to vector<12x1xf32>
    %44 = arith.subf %43, %5 : vector<12x1xf32>
    %cst_26 = arith.constant -1.000000e+30 : f32
    %45 = vector.broadcast %cst_26 : f32 to vector<12x1xf32>
    %46 = arith.mulf %44, %45 : vector<12x1xf32>
    %47 = vector.broadcast %46 : vector<12x1xf32> to vector<12x8xf32>
    %48 = arith.addf %42, %47 : vector<12x8xf32>
    %cst_27 = arith.constant dense<0xFF800000> : vector<8xf32>
    %49 = vector.multi_reduction <maximumf>, %48, %cst_27 [0] : vector<12x8xf32> to vector<8xf32>
    %50 = vector.shape_cast %49 : vector<8xf32> to vector<1x8xf32>
    %51 = vector.broadcast %50 : vector<1x8xf32> to vector<12x8xf32>
    %52 = arith.subf %48, %51 : vector<12x8xf32>
    %53 = math.exp %52 : vector<12x8xf32>
    %cst_28 = arith.constant dense<0.000000e+00> : vector<8xf32>
    %54 = vector.multi_reduction <add>, %53, %cst_28 [0] : vector<12x8xf32> to vector<8xf32>
    %55 = vector.shape_cast %54 : vector<8xf32> to vector<1x8xf32>
    %56 = tpu.reciprocal %55 {approx = true} : vector<1x8xf32> -> vector<1x8xf32>
    %57 = vector.broadcast %56 : vector<1x8xf32> to vector<12x8xf32>
    %58 = arith.mulf %53, %57 : vector<12x8xf32>
    %cst_29 = arith.constant dense<0.000000e+00> : vector<12x32xf32>
    %59 = tpu.matmul %40, %3, %cst_29 {dimension_numbers = #tpu.dot_dimension_numbers<[1], [0], [0], [1], [0, 0, 1, 1], [], []>} : vector<12x8xf32>, vector<8x32xf32>, vector<12x32xf32> -> vector<12x32xf32>
    %cst_30 = arith.constant dense<0.000000e+00> : vector<12x12xf32>
    %60 = tpu.matmul %40, %58, %cst_30 {dimension_numbers = #tpu.dot_dimension_numbers<[1], [1], [0], [0], [0, 0, 1, 0], [], []>} : vector<12x8xf32>, vector<12x8xf32>, vector<12x12xf32> -> vector<12x12xf32>
    %cst_31 = arith.constant dense<0.000000e+00> : vector<12x32xf32>
    %61 = tpu.matmul %60, %1, %cst_31 {dimension_numbers = #tpu.dot_dimension_numbers<[1], [0], [0], [1], [0, 0, 1, 1], [], []>} : vector<12x12xf32>, vector<12x32xf32>, vector<12x32xf32> -> vector<12x32xf32>
    %62 = arith.mulf %1, %59 : vector<12x32xf32>
    %63 = arith.mulf %1, %61 : vector<12x32xf32>
    %64 = tpu.concatenate %1, %59, %62, %63 in 1 : vector<12x32xf32>, vector<12x32xf32>, vector<12x32xf32>, vector<12x32xf32> -> vector<12x128xf32>
    %c0_32 = arith.constant 0 : index
    %c0_33 = arith.constant 0 : index
    %c0_34 = arith.constant 0 : index
    %65 = vector.load %arg9[%c0_32, %c0_33, %c0_34] : memref<1x12x128xf32, #tpu.memory_space<vmem>>, vector<1x12x128xf32>
    %66 = vector.shape_cast %65 : vector<1x12x128xf32> to vector<12x128xf32>
    %67 = vector.shape_cast %64 : vector<12x128xf32> to vector<1x12x128xf32>
    tpu.vector_store %arg9[%c0_32, %c0_33, %c0_34], %67 {strides = array<i32>} : memref<1x12x128xf32, #tpu.memory_space<vmem>>, vector<1x12x128xf32>,
    return
  }
  func.func @transform_0(%arg0: i32) -> (i32, i32, i32) {
    %c0_i32 = arith.constant 0 : i32
    %c0_i32_0 = arith.constant 0 : i32
    %c0_i32_1 = arith.constant 0 : i32
    return %arg0, %c0_i32, %c0_i32_0 : i32, i32, i32
  }
  func.func @transform_1(%arg0: i32) -> (i32, i32, i32) {
    %c0_i32 = arith.constant 0 : i32
    %c0_i32_0 = arith.constant 0 : i32
    %c0_i32_1 = arith.constant 0 : i32
    return %arg0, %c0_i32, %c0_i32_0 : i32, i32, i32
  }
  func.func @transform_2(%arg0: i32) -> (i32, i32, i32) {
    %c0_i32 = arith.constant 0 : i32
    %c0_i32_0 = arith.constant 0 : i32
    %c0_i32_1 = arith.constant 0 : i32
    return %arg0, %c0_i32, %c0_i32_0 : i32, i32, i32
  }
  func.func @transform_3(%arg0: i32) -> (i32, i32, i32) {
    %c0_i32 = arith.constant 0 : i32
    %c0_i32_0 = arith.constant 0 : i32
    %c0_i32_1 = arith.constant 0 : i32
    return %arg0, %c0_i32, %c0_i32_0 : i32, i32, i32
  }
  func.func @transform_4(%arg0: i32) -> (i32, i32) {
    %c0_i32 = arith.constant 0 : i32
    %c0_i32_0 = arith.constant 0 : i32
    %c0_i32_1 = arith.constant 0 : i32
    return %c0_i32, %c0_i32_0 : i32, i32
  }
  func.func @transform_5(%arg0: i32) -> (i32, i32) {
    %c0_i32 = arith.constant 0 : i32
    %c0_i32_0 = arith.constant 0 : i32
    %c0_i32_1 = arith.constant 0 : i32
    return %c0_i32, %c0_i32_0 : i32, i32
  }
  func.func @transform_6(%arg0: i32) -> (i32, i32) {
    %c0_i32 = arith.constant 0 : i32
    %c0_i32_0 = arith.constant 0 : i32
    %c0_i32_1 = arith.constant 0 : i32
    return %c0_i32, %c0_i32_0 : i32, i32
  }
  func.func @transform_7(%arg0: i32) -> (i32, i32) {
    %c0_i32 = arith.constant 0 : i32
    %c0_i32_0 = arith.constant 0 : i32
    %c0_i32_1 = arith.constant 0 : i32
    return %c0_i32, %c0_i32_0 : i32, i32
  }
  func.func @transform_8(%arg0: i32) -> (i32, i32, i32) {
    %c0_i32 = arith.constant 0 : i32
    %c0_i32_0 = arith.constant 0 : i32
    %c0_i32_1 = arith.constant 0 : i32
    return %arg0, %c0_i32, %c0_i32_0 : i32, i32, i32
  }
}

module attributes {stable_mosaic.version = 11 : i64} {
  func.func @_linear_kernel(%arg0: i32, %arg1: memref<24x128xf32, #tpu.memory_space<vmem>>, %arg2: memref<128x128xf32, #tpu.memory_space<vmem>>, %arg3: memref<1x128xf32, #tpu.memory_space<vmem>>, %arg4: memref<24x128xf32, #tpu.memory_space<vmem>>) attributes {dimension_semantics = [#tpu.dimension_semantics<parallel>], iteration_bounds = array<i64: 1>, scalar_prefetch = 0 : i64, scratch_operands = 0 : i64, tpu.core_type = #tpu.core_type<tc>, window_params = [{transform_indices = @transform_0, window_bounds = array<i64: 24, 128>}, {pipeline_mode = #tpu.pipeline_mode<synchronous>, transform_indices = @transform_1, window_bounds = array<i64: 128, 128>}, {pipeline_mode = #tpu.pipeline_mode<synchronous>, transform_indices = @transform_2, window_bounds = array<i64: 1, 128>}, {transform_indices = @transform_3, window_bounds = array<i64: 24, 128>}]} {
    %c0 = arith.constant 0 : index
    %c0_0 = arith.constant 0 : index
    %0 = vector.load %arg1[%c0, %c0_0] : memref<24x128xf32, #tpu.memory_space<vmem>>, vector<24x128xf32>
    %c0_1 = arith.constant 0 : index
    %c0_2 = arith.constant 0 : index
    %1 = vector.load %arg2[%c0_1, %c0_2] : memref<128x128xf32, #tpu.memory_space<vmem>>, vector<128x128xf32>
    %cst = arith.constant dense<0.000000e+00> : vector<24x128xf32>
    %2 = tpu.matmul %0, %1, %cst {dimension_numbers = #tpu.dot_dimension_numbers<[1], [1], [0], [0], [0, 0, 1, 0], [], []>} : vector<24x128xf32>, vector<128x128xf32>, vector<24x128xf32> -> vector<24x128xf32>
    %c0_3 = arith.constant 0 : index
    %c0_4 = arith.constant 0 : index
    %3 = vector.load %arg3[%c0_3, %c0_4] : memref<1x128xf32, #tpu.memory_space<vmem>>, vector<1x128xf32>
    %4 = vector.broadcast %3 : vector<1x128xf32> to vector<24x128xf32>
    %5 = arith.addf %2, %4 : vector<24x128xf32>
    %c0_5 = arith.constant 0 : index
    %c0_6 = arith.constant 0 : index
    %6 = vector.load %arg4[%c0_5, %c0_6] : memref<24x128xf32, #tpu.memory_space<vmem>>, vector<24x128xf32>
    tpu.vector_store %arg4[%c0_5, %c0_6], %5 {strides = array<i32>} : memref<24x128xf32, #tpu.memory_space<vmem>>, vector<24x128xf32>,
    return
  }
  func.func @transform_0(%arg0: i32) -> (i32, i32) {
    %c0_i32 = arith.constant 0 : i32
    %c0_i32_0 = arith.constant 0 : i32
    return %arg0, %c0_i32 : i32, i32
  }
  func.func @transform_1(%arg0: i32) -> (i32, i32) {
    %c0_i32 = arith.constant 0 : i32
    %c0_i32_0 = arith.constant 0 : i32
    %c0_i32_1 = arith.constant 0 : i32
    return %c0_i32, %c0_i32_0 : i32, i32
  }
  func.func @transform_2(%arg0: i32) -> (i32, i32) {
    %c0_i32 = arith.constant 0 : i32
    %c0_i32_0 = arith.constant 0 : i32
    %c0_i32_1 = arith.constant 0 : i32
    return %c0_i32, %c0_i32_0 : i32, i32
  }
  func.func @transform_3(%arg0: i32) -> (i32, i32) {
    %c0_i32 = arith.constant 0 : i32
    %c0_i32_0 = arith.constant 0 : i32
    return %arg0, %c0_i32 : i32, i32
  }
}

module attributes {stable_mosaic.version = 11 : i64} {
  func.func @_linear_kernel(%arg0: i32, %arg1: memref<24x32xf32, #tpu.memory_space<vmem>>, %arg2: memref<128x32xf32, #tpu.memory_space<vmem>>, %arg3: memref<1x128xf32, #tpu.memory_space<vmem>>, %arg4: memref<24x128xf32, #tpu.memory_space<vmem>>) attributes {dimension_semantics = [#tpu.dimension_semantics<parallel>], iteration_bounds = array<i64: 1>, scalar_prefetch = 0 : i64, scratch_operands = 0 : i64, tpu.core_type = #tpu.core_type<tc>, window_params = [{transform_indices = @transform_0, window_bounds = array<i64: 24, 32>}, {pipeline_mode = #tpu.pipeline_mode<synchronous>, transform_indices = @transform_1, window_bounds = array<i64: 128, 32>}, {pipeline_mode = #tpu.pipeline_mode<synchronous>, transform_indices = @transform_2, window_bounds = array<i64: 1, 128>}, {transform_indices = @transform_3, window_bounds = array<i64: 24, 128>}]} {
    %c0 = arith.constant 0 : index
    %c0_0 = arith.constant 0 : index
    %0 = vector.load %arg1[%c0, %c0_0] : memref<24x32xf32, #tpu.memory_space<vmem>>, vector<24x32xf32>
    %c0_1 = arith.constant 0 : index
    %c0_2 = arith.constant 0 : index
    %1 = vector.load %arg2[%c0_1, %c0_2] : memref<128x32xf32, #tpu.memory_space<vmem>>, vector<128x32xf32>
    %cst = arith.constant dense<0.000000e+00> : vector<24x128xf32>
    %2 = tpu.matmul %0, %1, %cst {dimension_numbers = #tpu.dot_dimension_numbers<[1], [1], [0], [0], [0, 0, 1, 0], [], []>} : vector<24x32xf32>, vector<128x32xf32>, vector<24x128xf32> -> vector<24x128xf32>
    %c0_3 = arith.constant 0 : index
    %c0_4 = arith.constant 0 : index
    %3 = vector.load %arg3[%c0_3, %c0_4] : memref<1x128xf32, #tpu.memory_space<vmem>>, vector<1x128xf32>
    %4 = vector.broadcast %3 : vector<1x128xf32> to vector<24x128xf32>
    %5 = arith.addf %2, %4 : vector<24x128xf32>
    %c0_5 = arith.constant 0 : index
    %c0_6 = arith.constant 0 : index
    %6 = vector.load %arg4[%c0_5, %c0_6] : memref<24x128xf32, #tpu.memory_space<vmem>>, vector<24x128xf32>
    tpu.vector_store %arg4[%c0_5, %c0_6], %5 {strides = array<i32>} : memref<24x128xf32, #tpu.memory_space<vmem>>, vector<24x128xf32>,
    return
  }
  func.func @transform_0(%arg0: i32) -> (i32, i32) {
    %c0_i32 = arith.constant 0 : i32
    %c0_i32_0 = arith.constant 0 : i32
    return %arg0, %c0_i32 : i32, i32
  }
  func.func @transform_1(%arg0: i32) -> (i32, i32) {
    %c0_i32 = arith.constant 0 : i32
    %c0_i32_0 = arith.constant 0 : i32
    %c0_i32_1 = arith.constant 0 : i32
    return %c0_i32, %c0_i32_0 : i32, i32
  }
  func.func @transform_2(%arg0: i32) -> (i32, i32) {
    %c0_i32 = arith.constant 0 : i32
    %c0_i32_0 = arith.constant 0 : i32
    %c0_i32_1 = arith.constant 0 : i32
    return %c0_i32, %c0_i32_0 : i32, i32
  }
  func.func @transform_3(%arg0: i32) -> (i32, i32) {
    %c0_i32 = arith.constant 0 : i32
    %c0_i32_0 = arith.constant 0 : i32
    return %arg0, %c0_i32 : i32, i32
  }
}

module attributes {stable_mosaic.version = 11 : i64} {
  func.func @_output_kernel(%arg0: i32, %arg1: memref<1x12x128xf32, #tpu.memory_space<vmem>>, %arg2: memref<1x12x32xf32, #tpu.memory_space<vmem>>, %arg3: memref<1x12x32xf32, #tpu.memory_space<vmem>>, %arg4: memref<1x1x12xf32, #tpu.memory_space<vmem>>, %arg5: memref<1x128xf32, #tpu.memory_space<vmem>>, %arg6: memref<1x32xf32, #tpu.memory_space<vmem>>, %arg7: memref<1x128xf32, #tpu.memory_space<vmem>>, %arg8: memref<1x32xf32, #tpu.memory_space<vmem>>, %arg9: memref<1x1xf32, #tpu.memory_space<vmem>>, %arg10: memref<1x1xf32, #tpu.memory_space<vmem>>, %arg11: memref<1x1x12xf32, #tpu.memory_space<vmem>>, %arg12: memref<1x1x12xf32, #tpu.memory_space<vmem>>) attributes {dimension_semantics = [#tpu.dimension_semantics<parallel>], iteration_bounds = array<i64: 2>, scalar_prefetch = 0 : i64, scratch_operands = 0 : i64, tpu.core_type = #tpu.core_type<tc>, window_params = [{transform_indices = @transform_0, window_bounds = array<i64: 1, 12, 128>}, {transform_indices = @transform_1, window_bounds = array<i64: 1, 12, 32>}, {transform_indices = @transform_2, window_bounds = array<i64: 1, 12, 32>}, {transform_indices = @transform_3, window_bounds = array<i64: 1, 1, 12>}, {pipeline_mode = #tpu.pipeline_mode<synchronous>, transform_indices = @transform_4, window_bounds = array<i64: 1, 128>}, {pipeline_mode = #tpu.pipeline_mode<synchronous>, transform_indices = @transform_5, window_bounds = array<i64: 1, 32>}, {pipeline_mode = #tpu.pipeline_mode<synchronous>, transform_indices = @transform_6, window_bounds = array<i64: 1, 128>}, {pipeline_mode = #tpu.pipeline_mode<synchronous>, transform_indices = @transform_7, window_bounds = array<i64: 1, 32>}, {pipeline_mode = #tpu.pipeline_mode<synchronous>, transform_indices = @transform_8, window_bounds = array<i64: 1, 1>}, {pipeline_mode = #tpu.pipeline_mode<synchronous>, transform_indices = @transform_9, window_bounds = array<i64: 1, 1>}, {transform_indices = @transform_10, window_bounds = array<i64: 1, 1, 12>}, {transform_indices = @transform_11, window_bounds = array<i64: 1, 1, 12>}]} {
    %c0 = arith.constant 0 : index
    %c0_0 = arith.constant 0 : index
    %c0_1 = arith.constant 0 : index
    %0 = vector.load %arg1[%c0, %c0_0, %c0_1] : memref<1x12x128xf32, #tpu.memory_space<vmem>>, vector<1x12x128xf32>
    %1 = vector.shape_cast %0 : vector<1x12x128xf32> to vector<12x128xf32>
    %c0_2 = arith.constant 0 : index
    %c0_3 = arith.constant 0 : index
    %c0_4 = arith.constant 0 : index
    %2 = vector.load %arg2[%c0_2, %c0_3, %c0_4] : memref<1x12x32xf32, #tpu.memory_space<vmem>>, vector<1x12x32xf32>
    %3 = vector.shape_cast %2 : vector<1x12x32xf32> to vector<12x32xf32>
    %c0_5 = arith.constant 0 : index
    %c0_6 = arith.constant 0 : index
    %c0_7 = arith.constant 0 : index
    %4 = vector.load %arg3[%c0_5, %c0_6, %c0_7] : memref<1x12x32xf32, #tpu.memory_space<vmem>>, vector<1x12x32xf32>
    %5 = vector.shape_cast %4 : vector<1x12x32xf32> to vector<12x32xf32>
    %c0_8 = arith.constant 0 : index
    %c0_9 = arith.constant 0 : index
    %c0_10 = arith.constant 0 : index
    %6 = vector.load %arg4[%c0_8, %c0_9, %c0_10] : memref<1x1x12xf32, #tpu.memory_space<vmem>>, vector<1x1x12xf32>
    %7 = vector.shape_cast %6 : vector<1x1x12xf32> to vector<1x12xf32>
    %c0_11 = arith.constant 0 : index
    %c0_12 = arith.constant 0 : index
    %8 = vector.load %arg5[%c0_11, %c0_12] : memref<1x128xf32, #tpu.memory_space<vmem>>, vector<1x128xf32>
    %cst = arith.constant dense<0.000000e+00> : vector<1x12xf32>
    %9 = tpu.matmul %8, %1, %cst {dimension_numbers = #tpu.dot_dimension_numbers<[1], [1], [0], [0], [0, 0, 1, 0], [], []>} : vector<1x128xf32>, vector<12x128xf32>, vector<1x12xf32> -> vector<1x12xf32>
    %c0_13 = arith.constant 0 : index
    %c0_14 = arith.constant 0 : index
    %10 = vector.load %arg6[%c0_13, %c0_14] : memref<1x32xf32, #tpu.memory_space<vmem>>, vector<1x32xf32>
    %cst_15 = arith.constant dense<0.000000e+00> : vector<1x12xf32>
    %11 = tpu.matmul %10, %3, %cst_15 {dimension_numbers = #tpu.dot_dimension_numbers<[1], [1], [0], [0], [0, 0, 1, 0], [], []>} : vector<1x32xf32>, vector<12x32xf32>, vector<1x12xf32> -> vector<1x12xf32>
    %12 = arith.addf %9, %11 : vector<1x12xf32>
    %c0_16 = arith.constant 0 : index
    %c0_17 = arith.constant 0 : index
    %13 = vector.load %arg9[%c0_16, %c0_17] : memref<1x1xf32, #tpu.memory_space<vmem>>, vector<1x1xf32>
    %14 = vector.broadcast %13 : vector<1x1xf32> to vector<1x12xf32>
    %15 = arith.addf %12, %14 : vector<1x12xf32>
    %c0_18 = arith.constant 0 : index
    %c0_19 = arith.constant 0 : index
    %16 = vector.load %arg7[%c0_18, %c0_19] : memref<1x128xf32, #tpu.memory_space<vmem>>, vector<1x128xf32>
    %cst_20 = arith.constant dense<0.000000e+00> : vector<1x12xf32>
    %17 = tpu.matmul %16, %1, %cst_20 {dimension_numbers = #tpu.dot_dimension_numbers<[1], [1], [0], [0], [0, 0, 1, 0], [], []>} : vector<1x128xf32>, vector<12x128xf32>, vector<1x12xf32> -> vector<1x12xf32>
    %c0_21 = arith.constant 0 : index
    %c0_22 = arith.constant 0 : index
    %18 = vector.load %arg8[%c0_21, %c0_22] : memref<1x32xf32, #tpu.memory_space<vmem>>, vector<1x32xf32>
    %cst_23 = arith.constant dense<0.000000e+00> : vector<1x12xf32>
    %19 = tpu.matmul %18, %5, %cst_23 {dimension_numbers = #tpu.dot_dimension_numbers<[1], [1], [0], [0], [0, 0, 1, 0], [], []>} : vector<1x32xf32>, vector<12x32xf32>, vector<1x12xf32> -> vector<1x12xf32>
    %20 = arith.addf %17, %19 : vector<1x12xf32>
    %c0_24 = arith.constant 0 : index
    %c0_25 = arith.constant 0 : index
    %21 = vector.load %arg10[%c0_24, %c0_25] : memref<1x1xf32, #tpu.memory_space<vmem>>, vector<1x1xf32>
    %22 = vector.broadcast %21 : vector<1x1xf32> to vector<1x12xf32>
    %23 = arith.addf %20, %22 : vector<1x12xf32>
    %24 = arith.mulf %7, %15 : vector<1x12xf32>
    %cst_26 = arith.constant 1.000000e+00 : f32
    %25 = vector.broadcast %cst_26 : f32 to vector<1x12xf32>
    %26 = arith.subf %25, %7 : vector<1x12xf32>
    %cst_27 = arith.constant -1.000000e+30 : f32
    %27 = vector.broadcast %cst_27 : f32 to vector<1x12xf32>
    %28 = arith.mulf %26, %27 : vector<1x12xf32>
    %29 = arith.addf %24, %28 : vector<1x12xf32>
    %cst_28 = arith.constant dense<0xFF800000> : vector<1xf32>
    %30 = vector.multi_reduction <maximumf>, %29, %cst_28 [1] : vector<1x12xf32> to vector<1xf32>
    %31 = vector.shape_cast %30 : vector<1xf32> to vector<1x1xf32>
    %32 = vector.broadcast %31 : vector<1x1xf32> to vector<1x12xf32>
    %33 = arith.subf %29, %32 : vector<1x12xf32>
    %34 = math.exp %33 : vector<1x12xf32>
    %cst_29 = arith.constant dense<0.000000e+00> : vector<1xf32>
    %35 = vector.multi_reduction <add>, %34, %cst_29 [1] : vector<1x12xf32> to vector<1xf32>
    %36 = vector.shape_cast %35 : vector<1xf32> to vector<1x1xf32>
    %37 = math.log %36 : vector<1x1xf32>
    %38 = arith.addf %37, %31 : vector<1x1xf32>
    %39 = vector.broadcast %38 : vector<1x1xf32> to vector<1x12xf32>
    %40 = arith.subf %29, %39 : vector<1x12xf32>
    %c0_30 = arith.constant 0 : index
    %c0_31 = arith.constant 0 : index
    %c0_32 = arith.constant 0 : index
    %41 = vector.load %arg11[%c0_30, %c0_31, %c0_32] : memref<1x1x12xf32, #tpu.memory_space<vmem>>, vector<1x1x12xf32>
    %42 = vector.shape_cast %41 : vector<1x1x12xf32> to vector<1x12xf32>
    %43 = vector.shape_cast %40 : vector<1x12xf32> to vector<1x1x12xf32>
    tpu.vector_store %arg11[%c0_30, %c0_31, %c0_32], %43 {strides = array<i32>} : memref<1x1x12xf32, #tpu.memory_space<vmem>>, vector<1x1x12xf32>,
    %44 = arith.mulf %7, %23 : vector<1x12xf32>
    %cst_33 = arith.constant 1.000000e+00 : f32
    %45 = vector.broadcast %cst_33 : f32 to vector<1x12xf32>
    %46 = arith.subf %45, %7 : vector<1x12xf32>
    %cst_34 = arith.constant -1.000000e+30 : f32
    %47 = vector.broadcast %cst_34 : f32 to vector<1x12xf32>
    %48 = arith.mulf %46, %47 : vector<1x12xf32>
    %49 = arith.addf %44, %48 : vector<1x12xf32>
    %cst_35 = arith.constant dense<0xFF800000> : vector<1xf32>
    %50 = vector.multi_reduction <maximumf>, %49, %cst_35 [1] : vector<1x12xf32> to vector<1xf32>
    %51 = vector.shape_cast %50 : vector<1xf32> to vector<1x1xf32>
    %52 = vector.broadcast %51 : vector<1x1xf32> to vector<1x12xf32>
    %53 = arith.subf %49, %52 : vector<1x12xf32>
    %54 = math.exp %53 : vector<1x12xf32>
    %cst_36 = arith.constant dense<0.000000e+00> : vector<1xf32>
    %55 = vector.multi_reduction <add>, %54, %cst_36 [1] : vector<1x12xf32> to vector<1xf32>
    %56 = vector.shape_cast %55 : vector<1xf32> to vector<1x1xf32>
    %57 = math.log %56 : vector<1x1xf32>
    %58 = arith.addf %57, %51 : vector<1x1xf32>
    %59 = vector.broadcast %58 : vector<1x1xf32> to vector<1x12xf32>
    %60 = arith.subf %49, %59 : vector<1x12xf32>
    %c0_37 = arith.constant 0 : index
    %c0_38 = arith.constant 0 : index
    %c0_39 = arith.constant 0 : index
    %61 = vector.load %arg12[%c0_37, %c0_38, %c0_39] : memref<1x1x12xf32, #tpu.memory_space<vmem>>, vector<1x1x12xf32>
    %62 = vector.shape_cast %61 : vector<1x1x12xf32> to vector<1x12xf32>
    %63 = vector.shape_cast %60 : vector<1x12xf32> to vector<1x1x12xf32>
    tpu.vector_store %arg12[%c0_37, %c0_38, %c0_39], %63 {strides = array<i32>} : memref<1x1x12xf32, #tpu.memory_space<vmem>>, vector<1x1x12xf32>,
    return
  }
  func.func @transform_0(%arg0: i32) -> (i32, i32, i32) {
    %c0_i32 = arith.constant 0 : i32
    %c0_i32_0 = arith.constant 0 : i32
    %c0_i32_1 = arith.constant 0 : i32
    return %arg0, %c0_i32, %c0_i32_0 : i32, i32, i32
  }
  func.func @transform_1(%arg0: i32) -> (i32, i32, i32) {
    %c0_i32 = arith.constant 0 : i32
    %c0_i32_0 = arith.constant 0 : i32
    %c0_i32_1 = arith.constant 0 : i32
    return %arg0, %c0_i32, %c0_i32_0 : i32, i32, i32
  }
  func.func @transform_2(%arg0: i32) -> (i32, i32, i32) {
    %c0_i32 = arith.constant 0 : i32
    %c0_i32_0 = arith.constant 0 : i32
    %c0_i32_1 = arith.constant 0 : i32
    return %arg0, %c0_i32, %c0_i32_0 : i32, i32, i32
  }
  func.func @transform_3(%arg0: i32) -> (i32, i32, i32) {
    %c0_i32 = arith.constant 0 : i32
    %c0_i32_0 = arith.constant 0 : i32
    %c0_i32_1 = arith.constant 0 : i32
    return %arg0, %c0_i32, %c0_i32_0 : i32, i32, i32
  }
  func.func @transform_4(%arg0: i32) -> (i32, i32) {
    %c0_i32 = arith.constant 0 : i32
    %c0_i32_0 = arith.constant 0 : i32
    %c0_i32_1 = arith.constant 0 : i32
    return %c0_i32, %c0_i32_0 : i32, i32
  }
  func.func @transform_5(%arg0: i32) -> (i32, i32) {
    %c0_i32 = arith.constant 0 : i32
    %c0_i32_0 = arith.constant 0 : i32
    %c0_i32_1 = arith.constant 0 : i32
    return %c0_i32, %c0_i32_0 : i32, i32
  }
  func.func @transform_6(%arg0: i32) -> (i32, i32) {
    %c0_i32 = arith.constant 0 : i32
    %c0_i32_0 = arith.constant 0 : i32
    %c0_i32_1 = arith.constant 0 : i32
    return %c0_i32, %c0_i32_0 : i32, i32
  }
  func.func @transform_7(%arg0: i32) -> (i32, i32) {
    %c0_i32 = arith.constant 0 : i32
    %c0_i32_0 = arith.constant 0 : i32
    %c0_i32_1 = arith.constant 0 : i32
    return %c0_i32, %c0_i32_0 : i32, i32
  }
  func.func @transform_8(%arg0: i32) -> (i32, i32) {
    %c0_i32 = arith.constant 0 : i32
    %c0_i32_0 = arith.constant 0 : i32
    %c0_i32_1 = arith.constant 0 : i32
    return %c0_i32, %c0_i32_0 : i32, i32
  }
  func.func @transform_9(%arg0: i32) -> (i32, i32) {
    %c0_i32 = arith.constant 0 : i32
    %c0_i32_0 = arith.constant 0 : i32
    %c0_i32_1 = arith.constant 0 : i32
    return %c0_i32, %c0_i32_0 : i32, i32
  }
  func.func @transform_10(%arg0: i32) -> (i32, i32, i32) {
    %c0_i32 = arith.constant 0 : i32
    %c0_i32_0 = arith.constant 0 : i32
    %c0_i32_1 = arith.constant 0 : i32
    return %arg0, %c0_i32, %c0_i32_0 : i32, i32, i32
  }
  func.func @transform_11(%arg0: i32) -> (i32, i32, i32) {
    %c0_i32 = arith.constant 0 : i32
    %c0_i32_0 = arith.constant 0 : i32
    %c0_i32_1 = arith.constant 0 : i32
    return %arg0, %c0_i32, %c0_i32_0 : i32, i32, i32
  }
}

</mosaic_0001>

<llo_original>
// kernel: bidaf_forward.18
$region0: #{bidaf_forward.18}
  #allocation0 [shape = 'u32[]', space=smem, size = 0x4, offset = 0x4, fixed_abs, tag = 'smem constant byte address 0x4 - core index']
  #allocation1 [shape = 'u32[144,128]{1,0:T(1,128)}', space=vmem, size = 0x12000, scoped, tag = 'internal scratch']
  %s0 = inlined_call_operand.vmem [shape: f32[16,16], index: 0, kind: input, shape index: {}]
  %s1 = inlined_call_operand.vmem [shape: f32[128,16], index: 1, kind: input, shape index: {}]
  %s2 = inlined_call_operand.vmem [shape: f32[1,128], index: 2, kind: input, shape index: {}]
  %s3 = inlined_call_operand.vmem [shape: f32[16,128], index: 3, kind: output, shape index: {}]
  %s4 = sld [smem:[#allocation0]]
  $region22: #{bidaf_forward.18} parent=0
    _
  %s6 = ssub.s32 1, %s4
  %s7 = scalar_select 0, %s6, %s4
  // Predicated region
  $region2: #{bidaf_forward.18} parent=0 // pred_check
    _
  $region3: #{bidaf_forward.18} parent=0 // pred_check_branch
    %9 = sbr.rel (0) target = $region5
  $region4: #{bidaf_forward.18} parent=0 // pred_region
    _
  $region5: #{bidaf_forward.18} parent=0 // pred_fallthru
    _
  // Predicated region
  $region6: #{bidaf_forward.18} parent=0 // pred_check
    _
  $region7: #{bidaf_forward.18} parent=0 // pred_check_branch
    %11 = sbr.rel (0) target = $region9
  $region8: #{bidaf_forward.18} parent=0 // pred_region
    _
  $region9: #{bidaf_forward.18} parent=0 // pred_fallthru
    _
  // Predicated region
  $region10: #{bidaf_forward.18} parent=0 // pred_check
    _
  $region11: #{bidaf_forward.18} parent=0 // pred_check_branch
    %13 = sbr.rel (0) target = $region13
  $region12: #{bidaf_forward.18} parent=0 // pred_region
    _
  $region13: #{bidaf_forward.18} parent=0 // pred_fallthru
    _
  %v14 = vld [vmem:[%s0] sm:$0xff]
  %v15 = vld [vmem:[%s0 + $0x8] sm:$0xff]
  %v16 = vld [vmem:[%s1] sm:$0xff]
  %v17 = vld [vmem:[%s1 + $0x8] sm:$0xff]
  %v18 = vld [vmem:[%s1 + $0x10] sm:$0xff]
  %v19 = vld [vmem:[%s1 + $0x18] sm:$0xff]
  %v20 = vld [vmem:[%s1 + $0x20] sm:$0xff]
  %v21 = vld [vmem:[%s1 + $0x28] sm:$0xff]
  %v22 = vld [vmem:[%s1 + $0x30] sm:$0xff]
  %v23 = vld [vmem:[%s1 + $0x38] sm:$0xff]
  %v24 = vld [vmem:[%s1 + $0x40] sm:$0xff]
  %v25 = vld [vmem:[%s1 + $0x48] sm:$0xff]
  %v26 = vld [vmem:[%s1 + $0x50] sm:$0xff]
  %v27 = vld [vmem:[%s1 + $0x58] sm:$0xff]
  %v28 = vld [vmem:[%s1 + $0x60] sm:$0xff]
  %v29 = vld [vmem:[%s1 + $0x68] sm:$0xff]
  %v30 = vld [vmem:[%s1 + $0x70] sm:$0xff]
  %v31 = vld [vmem:[%s1 + $0x78] sm:$0xff]
  %v32 = vld [vmem:[%s2] sm:$0x1]
  %v34 = vlaneseq
  %v35 = vshrl.u32 %v34, 7
  %v36 = vsub.s32 0, %v35
  %v37 = vrot.slane %v32, %v36
  %vm39 = vcmask 130048
  %v41 = vsel %vm39, %v14, 0
  %v44 = vsel %vm39, %v15, 0
  %v47 = vsel %vm39, %v16, 0
  %v50 = vsel %vm39, %v17, 0
  %v53 = vsel %vm39, %v18, 0
  %v56 = vsel %vm39, %v19, 0
  %v59 = vsel %vm39, %v20, 0
  %v62 = vsel %vm39, %v21, 0
  %v65 = vsel %vm39, %v22, 0
  %v68 = vsel %vm39, %v23, 0
  %v71 = vsel %vm39, %v24, 0
  %v74 = vsel %vm39, %v25, 0
  %v77 = vsel %vm39, %v26, 0
  %v80 = vsel %vm39, %v27, 0
  %v83 = vsel %vm39, %v28, 0
  %v86 = vsel %vm39, %v29, 0
  %v89 = vsel %vm39, %v30, 0
  %v92 = vsel %vm39, %v31, 0
  %94 = vmatprep.subr.mxu0 0.0
  %95 = vmatpush1.xpose.msra.mxu0 %v47
  %96 = vmatprep.subr.mxu0 0.0
  %97 = vmatpush1.xpose.msra.mxu0 %v50
  %98 = vmatprep.subr.mxu0 0.0
  %99 = vmatpush1.xpose.msra.mxu0 %v53
  %100 = vmatprep.subr.mxu0 0.0
  %101 = vmatpush1.xpose.msra.mxu0 %v56
  %102 = vmatprep.subr.mxu0 0.0
  %103 = vmatpush1.xpose.msra.mxu0 %v59
  %104 = vmatprep.subr.mxu0 0.0
  %105 = vmatpush1.xpose.msra.mxu0 %v62
  %106 = vmatprep.subr.mxu0 0.0
  %107 = vmatpush1.xpose.msra.mxu0 %v65
  %108 = vmatprep.subr.mxu0 0.0
  %109 = vmatpush1.xpose.msra.mxu0 %v68
  %110 = vmatprep.subr.mxu0 0.0
  %111 = vmatpush1.xpose.msra.mxu0 %v71
  %112 = vmatprep.subr.mxu0 0.0
  %113 = vmatpush1.xpose.msra.mxu0 %v74
  %114 = vmatprep.subr.mxu0 0.0
  %115 = vmatpush1.xpose.msra.mxu0 %v77
  %116 = vmatprep.subr.mxu0 0.0
  %117 = vmatpush1.xpose.msra.mxu0 %v80
  %118 = vmatprep.subr.mxu0 0.0
  %119 = vmatpush1.xpose.msra.mxu0 %v83
  %120 = vmatprep.subr.mxu0 0.0
  %121 = vmatpush1.xpose.msra.mxu0 %v86
  %122 = vmatprep.subr.mxu0 0.0
  %123 = vmatpush1.xpose.msra.mxu0 %v89
  %124 = vmatprep.subr.mxu0 0.0
  %125 = vmatpush1.xpose.msra.mxu0 %v92
  %126 = vmatprep.subr.mxu0 0.0
  %127 = vmatpush1.xpose.msra.mxu0 0.0
  %128 = vmatprep.subr.mxu0 0.0
  %129 = vmatpush1.xpose.msra.mxu0 0.0
  %130 = vmatprep.subr.mxu0 0.0
  %131 = vmatpush1.xpose.msra.mxu0 0.0
  %132 = vmatprep.subr.mxu0 0.0
  %133 = vmatpush1.xpose.msra.mxu0 0.0
  %134 = vmatprep.subr.mxu0 0.0
  %135 = vmatpush1.xpose.msra.mxu0 0.0
  %136 = vmatprep.subr.mxu0 0.0
  %137 = vmatpush1.xpose.msra.mxu0 0.0
  %138 = vmatprep.subr.mxu0 0.0
  %139 = vmatpush1.xpose.msra.mxu0 0.0
  %140 = vmatprep.subr.mxu0 0.0
  %141 = vmatpush1.xpose.msra.mxu0 0.0
  %142 = vmatprep.subr.mxu0 0.0
  %143 = vmatpush1.xpose.msra.mxu0 0.0
  %144 = vmatprep.subr.mxu0 0.0
  %145 = vmatpush1.xpose.msra.mxu0 0.0
  %146 = vmatprep.subr.mxu0 0.0
  %147 = vmatpush1.xpose.msra.mxu0 0.0
  %148 = vmatprep.subr.mxu0 0.0
  %149 = vmatpush1.xpose.msra.mxu0 0.0
  %150 = vmatprep.subr.mxu0 0.0
  %151 = vmatpush1.xpose.msra.mxu0 0.0
  %152 = vmatprep.subr.mxu0 0.0
  %153 = vmatpush1.xpose.msra.mxu0 0.0
  %154 = vmatprep.subr.mxu0 0.0
  %155 = vmatpush1.xpose.msra.mxu0 0.0
  %156 = vmatprep.subr.mxu0 0.0
  %157 = vmatpush1.xpose.msra.mxu0 0.0
  %158 = vmatprep.mubr.f32.mxu0 0.0
  %159 = vmatmul.mubr.f32.gmra.mrb[0].mxu0 %v41
  %v160 = vpop.f32.mrb[0].mxu0
  %v161 = vadd.f32 %v37, %v160
  %v162 = vpop.f32.mrb[0].mxu0
  %163 = vmatprep.mubr.f32.mxu0 0.0
  %164 = vmatmul.mubr.f32.gmra.mrb[0].mxu0 %v44
  %v165 = vpop.f32.mrb[0].mxu0
  %v166 = vadd.f32 %v37, %v165
  %v167 = vpop.f32.mrb[0].mxu0
  %168 = vdwg.mxu0
  %169 = vst [vmem:[%s3] sm:$0xff] %v161
  %170 = vst [vmem:[%s3 + $0x8] sm:$0xff] %v166
  // Predicated region
  $region14: #{bidaf_forward.18} parent=0 // pred_check
    _
  $region15: #{bidaf_forward.18} parent=0 // pred_check_branch
    %172 = sbr.rel (0) target = $region17
  $region16: #{bidaf_forward.18} parent=0 // pred_region
    _
  $region17: #{bidaf_forward.18} parent=0 // pred_fallthru
    _
  // Predicated region
  $region18: #{bidaf_forward.18} parent=0 // pred_check
    _
  $region19: #{bidaf_forward.18} parent=0 // pred_check_branch
    %174 = sbr.rel (0) target = $region21
  $region20: #{bidaf_forward.18} parent=0 // pred_region
    _
  $region21: #{bidaf_forward.18} parent=0 // pred_fallthru
    _

// kernel: bidaf_forward.15
$region0: #{bidaf_forward.15}
  #allocation0 [shape = 'u32[]', space=smem, size = 0x4, offset = 0x4, fixed_abs, tag = 'smem constant byte address 0x4 - core index']
  #allocation1 [shape = 'u32[144,128]{1,0:T(1,128)}', space=vmem, size = 0x12000, scoped, tag = 'internal scratch']
  %s0 = inlined_call_operand.vmem [shape: f32[16,24], index: 0, kind: input, shape index: {}]
  %s1 = inlined_call_operand.vmem [shape: f32[16,24], index: 1, kind: input, shape index: {}]
  %s2 = inlined_call_operand.vmem [shape: f32[16,16], index: 2, kind: input, shape index: {}]
  %s3 = inlined_call_operand.vmem [shape: f32[1,16], index: 3, kind: input, shape index: {}]
  %s4 = inlined_call_operand.vmem [shape: f32[16,16], index: 4, kind: input, shape index: {}]
  %s5 = inlined_call_operand.vmem [shape: f32[1,16], index: 5, kind: input, shape index: {}]
  %s6 = inlined_call_operand.vmem [shape: f32[16,16], index: 6, kind: input, shape index: {}]
  %s7 = inlined_call_operand.vmem [shape: f32[1,16], index: 7, kind: input, shape index: {}]
  %s8 = inlined_call_operand.vmem [shape: f32[16,16], index: 8, kind: input, shape index: {}]
  %s9 = inlined_call_operand.vmem [shape: f32[1,16], index: 9, kind: input, shape index: {}]
  %s10 = inlined_call_operand.vmem [shape: f32[16,16], index: 10, kind: output, shape index: {}]
  %s11 = sld [smem:[#allocation0]]
  $region50: #{bidaf_forward.15} parent=0
    _
  %s13 = ssub.s32 1, %s11
  %s14 = scalar_select 0, %s13, %s11
  // Predicated region
  $region2: #{bidaf_forward.15} parent=0 // pred_check
    _
  $region3: #{bidaf_forward.15} parent=0 // pred_check_branch
    %16 = sbr.rel (0) target = $region5
  $region4: #{bidaf_forward.15} parent=0 // pred_region
    _
  $region5: #{bidaf_forward.15} parent=0 // pred_fallthru
    _
  // Predicated region
  $region6: #{bidaf_forward.15} parent=0 // pred_check
    _
  $region7: #{bidaf_forward.15} parent=0 // pred_check_branch
    %18 = sbr.rel (0) target = $region9
  $region8: #{bidaf_forward.15} parent=0 // pred_region
    _
  $region9: #{bidaf_forward.15} parent=0 // pred_fallthru
    _
  // Predicated region
  $region10: #{bidaf_forward.15} parent=0 // pred_check
    _
  $region11: #{bidaf_forward.15} parent=0 // pred_check_branch
    %20 = sbr.rel (0) target = $region13
  $region12: #{bidaf_forward.15} parent=0 // pred_region
    _
  $region13: #{bidaf_forward.15} parent=0 // pred_fallthru
    _
  // Predicated region
  $region14: #{bidaf_forward.15} parent=0 // pred_check
    _
  $region15: #{bidaf_forward.15} parent=0 // pred_check_branch
    %22 = sbr.rel (0) target = $region17
  $region16: #{bidaf_forward.15} parent=0 // pred_region
    _
  $region17: #{bidaf_forward.15} parent=0 // pred_fallthru
    _
  // Predicated region
  $region18: #{bidaf_forward.15} parent=0 // pred_check
    _
  $region19: #{bidaf_forward.15} parent=0 // pred_check_branch
    %24 = sbr.rel (0) target = $region21
  $region20: #{bidaf_forward.15} parent=0 // pred_region
    _
  $region21: #{bidaf_forward.15} parent=0 // pred_fallthru
    _
  // Predicated region
  $region22: #{bidaf_forward.15} parent=0 // pred_check
    _
  $region23: #{bidaf_forward.15} parent=0 // pred_check_branch
    %26 = sbr.rel (0) target = $region25
  $region24: #{bidaf_forward.15} parent=0 // pred_region
    _
  $region25: #{bidaf_forward.15} parent=0 // pred_fallthru
    _
  // Predicated region
  $region26: #{bidaf_forward.15} parent=0 // pred_check
    _
  $region27: #{bidaf_forward.15} parent=0 // pred_check_branch
    %28 = sbr.rel (0) target = $region29
  $region28: #{bidaf_forward.15} parent=0 // pred_region
    _
  $region29: #{bidaf_forward.15} parent=0 // pred_fallthru
    _
  // Predicated region
  $region30: #{bidaf_forward.15} parent=0 // pred_check
    _
  $region31: #{bidaf_forward.15} parent=0 // pred_check_branch
    %30 = sbr.rel (0) target = $region33
  $region32: #{bidaf_forward.15} parent=0 // pred_region
    _
  $region33: #{bidaf_forward.15} parent=0 // pred_fallthru
    _
  // Predicated region
  $region34: #{bidaf_forward.15} parent=0 // pred_check
    _
  $region35: #{bidaf_forward.15} parent=0 // pred_check_branch
    %32 = sbr.rel (0) target = $region37
  $region36: #{bidaf_forward.15} parent=0 // pred_region
    _
  $region37: #{bidaf_forward.15} parent=0 // pred_fallthru
    _
  // Predicated region
  $region38: #{bidaf_forward.15} parent=0 // pred_check
    _
  $region39: #{bidaf_forward.15} parent=0 // pred_check_branch
    %34 = sbr.rel (0) target = $region41
  $region40: #{bidaf_forward.15} parent=0 // pred_region
    _
  $region41: #{bidaf_forward.15} parent=0 // pred_fallthru
    _
  %v35 = vld [vmem:[%s0] sm:$0xff]
  %v36 = vld [vmem:[%s0 + $0x8] sm:$0xff]
  %v37 = vld [vmem:[%s1] sm:$0xff]
  %v38 = vld [vmem:[%s1 + $0x8] sm:$0xff]
  %vm39 = vcmask 195584
  %v41 = vsel %vm39, %v35, 0
  %v44 = vsel %vm39, %v36, 0
  %v47 = vsel %vm39, %v37, 0
  %v50 = vsel %vm39, %v38, 0
  %52 = vmatprep.subr.mxu0 0.0
  %53 = vmatpush1.xpose.msra.mxu0 %v47
  %54 = vmatprep.subr.mxu0 0.0
  %55 = vmatpush1.xpose.msra.mxu0 %v50
  %56 = vmatprep.subr.mxu0 0.0
  %57 = vmatpush1.xpose.msra.mxu0 0.0
  %58 = vmatprep.subr.mxu0 0.0
  %59 = vmatpush1.xpose.msra.mxu0 0.0
  %60 = vmatprep.subr.mxu0 0.0
  %61 = vmatpush1.xpose.msra.mxu0 0.0
  %62 = vmatprep.subr.mxu0 0.0
  %63 = vmatpush1.xpose.msra.mxu0 0.0
  %64 = vmatprep.subr.mxu0 0.0
  %65 = vmatpush1.xpose.msra.mxu0 0.0
  %66 = vmatprep.subr.mxu0 0.0
  %67 = vmatpush1.xpose.msra.mxu0 0.0
  %68 = vmatprep.subr.mxu0 0.0
  %69 = vmatpush1.xpose.msra.mxu0 0.0
  %70 = vmatprep.subr.mxu0 0.0
  %71 = vmatpush1.xpose.msra.mxu0 0.0
  %72 = vmatprep.subr.mxu0 0.0
  %73 = vmatpush1.xpose.msra.mxu0 0.0
  %74 = vmatprep.subr.mxu0 0.0
  %75 = vmatpush1.xpose.msra.mxu0 0.0
  %76 = vmatprep.subr.mxu0 0.0
  %77 = vmatpush1.xpose.msra.mxu0 0.0
  %78 = vmatprep.subr.mxu0 0.0
  %79 = vmatpush1.xpose.msra.mxu0 0.0
  %80 = vmatprep.subr.mxu0 0.0
  %81 = vmatpush1.xpose.msra.mxu0 0.0
  %82 = vmatprep.subr.mxu0 0.0
  %83 = vmatpush1.xpose.msra.mxu0 0.0
  %84 = vmatprep.subr.mxu0 0.0
  %85 = vmatpush1.xpose.msra.mxu0 0.0
  %86 = vmatprep.subr.mxu0 0.0
  %87 = vmatpush1.xpose.msra.mxu0 0.0
  %88 = vmatprep.subr.mxu0 0.0
  %89 = vmatpush1.xpose.msra.mxu0 0.0
  %90 = vmatprep.subr.mxu0 0.0
  %91 = vmatpush1.xpose.msra.mxu0 0.0
  %92 = vmatprep.subr.mxu0 0.0
  %93 = vmatpush1.xpose.msra.mxu0 0.0
  %94 = vmatprep.subr.mxu0 0.0
  %95 = vmatpush1.xpose.msra.mxu0 0.0
  %96 = vmatprep.subr.mxu0 0.0
  %97 = vmatpush1.xpose.msra.mxu0 0.0
  %98 = vmatprep.subr.mxu0 0.0
  %99 = vmatpush1.xpose.msra.mxu0 0.0
  %100 = vmatprep.subr.mxu0 0.0
  %101 = vmatpush1.xpose.msra.mxu0 0.0
  %102 = vmatprep.subr.mxu0 0.0
  %103 = vmatpush1.xpose.msra.mxu0 0.0
  %104 = vmatprep.subr.mxu0 0.0
  %105 = vmatpush1.xpose.msra.mxu0 0.0
  %106 = vmatprep.subr.mxu0 0.0
  %107 = vmatpush1.xpose.msra.mxu0 0.0
  %108 = vmatprep.subr.mxu0 0.0
  %109 = vmatpush1.xpose.msra.mxu0 0.0
  %110 = vmatprep.subr.mxu0 0.0
  %111 = vmatpush1.xpose.msra.mxu0 0.0
  %112 = vmatprep.subr.mxu0 0.0
  %113 = vmatpush1.xpose.msra.mxu0 0.0
  %114 = vmatprep.subr.mxu0 0.0
  %115 = vmatpush1.xpose.msra.mxu0 0.0
  %116 = vmatprep.mubr.f32.mxu0 0.0
  %117 = vmatmul.mubr.f32.gmra.mrb[0].mxu0 %v41
  %v118 = vpop.f32.mrb[0].mxu0
  %v119 = vadd.f32 0.0, %v118
  %v120 = vpop.f32.mrb[0].mxu0
  %121 = vmatprep.mubr.f32.mxu0 0.0
  %122 = vmatmul.mubr.f32.gmra.mrb[0].mxu0 %v44
  %v123 = vpop.f32.mrb[0].mxu0
  %v124 = vadd.f32 0.0, %v123
  %v125 = vpop.f32.mrb[0].mxu0
  %126 = vdwg.mxu0
  %v127 = vld [vmem:[%s2] sm:$0xff]
  %v128 = vld [vmem:[%s2 + $0x8] sm:$0xff]
  %v129 = vld [vmem:[%s3] sm:$0x1]
  %v131 = vlaneseq
  %v132 = vshrl.u32 %v131, 7
  %v133 = vsub.s32 0, %v132
  %v134 = vrot.slane %v129, %v133
  %vm136 = vcmask 130048
  %v138 = vsel %vm136, %v119, 0
  %v141 = vsel %vm136, %v124, 0
  %v144 = vsel %vm136, %v127, 0
  %v147 = vsel %vm136, %v128, 0
  %149 = vmatprep.subr.mxu0 0.0
  %150 = vmatpush1.xpose.msra.mxu0 %v144
  %151 = vmatprep.subr.mxu0 0.0
  %152 = vmatpush1.xpose.msra.mxu0 %v147
  %153 = vmatprep.subr.mxu0 0.0
  %154 = vmatpush1.xpose.msra.mxu0 0.0
  %155 = vmatprep.subr.mxu0 0.0
  %156 = vmatpush1.xpose.msra.mxu0 0.0
  %157 = vmatprep.subr.mxu0 0.0
  %158 = vmatpush1.xpose.msra.mxu0 0.0
  %159 = vmatprep.subr.mxu0 0.0
  %160 = vmatpush1.xpose.msra.mxu0 0.0
  %161 = vmatprep.subr.mxu0 0.0
  %162 = vmatpush1.xpose.msra.mxu0 0.0
  %163 = vmatprep.subr.mxu0 0.0
  %164 = vmatpush1.xpose.msra.mxu0 0.0
  %165 = vmatprep.subr.mxu0 0.0
  %166 = vmatpush1.xpose.msra.mxu0 0.0
  %167 = vmatprep.subr.mxu0 0.0
  %168 = vmatpush1.xpose.msra.mxu0 0.0
  %169 = vmatprep.subr.mxu0 0.0
  %170 = vmatpush1.xpose.msra.mxu0 0.0
  %171 = vmatprep.subr.mxu0 0.0
  %172 = vmatpush1.xpose.msra.mxu0 0.0
  %173 = vmatprep.subr.mxu0 0.0
  %174 = vmatpush1.xpose.msra.mxu0 0.0
  %175 = vmatprep.subr.mxu0 0.0
  %176 = vmatpush1.xpose.msra.mxu0 0.0
  %177 = vmatprep.subr.mxu0 0.0
  %178 = vmatpush1.xpose.msra.mxu0 0.0
  %179 = vmatprep.subr.mxu0 0.0
  %180 = vmatpush1.xpose.msra.mxu0 0.0
  %181 = vmatprep.subr.mxu0 0.0
  %182 = vmatpush1.xpose.msra.mxu0 0.0
  %183 = vmatprep.subr.mxu0 0.0
  %184 = vmatpush1.xpose.msra.mxu0 0.0
  %185 = vmatprep.subr.mxu0 0.0
  %186 = vmatpush1.xpose.msra.mxu0 0.0
  %187 = vmatprep.subr.mxu0 0.0
  %188 = vmatpush1.xpose.msra.mxu0 0.0
  %189 = vmatprep.subr.mxu0 0.0
  %190 = vmatpush1.xpose.msra.mxu0 0.0
  %191 = vmatprep.subr.mxu0 0.0
  %192 = vmatpush1.xpose.msra.mxu0 0.0
  %193 = vmatprep.subr.mxu0 0.0
  %194 = vmatpush1.xpose.msra.mxu0 0.0
  %195 = vmatprep.subr.mxu0 0.0
  %196 = vmatpush1.xpose.msra.mxu0 0.0
  %197 = vmatprep.subr.mxu0 0.0
  %198 = vmatpush1.xpose.msra.mxu0 0.0
  %199 = vmatprep.subr.mxu0 0.0
  %200 = vmatpush1.xpose.msra.mxu0 0.0
  %201 = vmatprep.subr.mxu0 0.0
  %202 = vmatpush1.xpose.msra.mxu0 0.0
  %203 = vmatprep.subr.mxu0 0.0
  %204 = vmatpush1.xpose.msra.mxu0 0.0
  %205 = vmatprep.subr.mxu0 0.0
  %206 = vmatpush1.xpose.msra.mxu0 0.0
  %207 = vmatprep.subr.mxu0 0.0
  %208 = vmatpush1.xpose.msra.mxu0 0.0
  %209 = vmatprep.subr.mxu0 0.0
  %210 = vmatpush1.xpose.msra.mxu0 0.0
  %211 = vmatprep.subr.mxu0 0.0
  %212 = vmatpush1.xpose.msra.mxu0 0.0
  %213 = vmatprep.mubr.f32.mxu0 0.0
  %214 = vmatmul.mubr.f32.gmra.mrb[0].mxu0 %v138
  %v215 = vpop.f32.mrb[0].mxu0
  %v216 = vadd.f32 %v134, %v215
  %v217 = vpop.f32.mrb[0].mxu0
  %218 = vmatprep.mubr.f32.mxu0 0.0
  %219 = vmatmul.mubr.f32.gmra.mrb[0].mxu0 %v141
  %v220 = vpop.f32.mrb[0].mxu0
  %v221 = vadd.f32 %v134, %v220
  %v222 = vpop.f32.mrb[0].mxu0
  %223 = vdwg.mxu0
  %v224 = vmax.f32 %v216, 0.0
  %v225 = vmax.f32 %v221, 0.0
  %v226 = vld [vmem:[%s4] sm:$0xff]
  %v227 = vld [vmem:[%s4 + $0x8] sm:$0xff]
  %v228 = vld [vmem:[%s5] sm:$0x1]
  %v230 = vlaneseq
  %v231 = vshrl.u32 %v230, 7
  %v232 = vsub.s32 0, %v231
  %v233 = vrot.slane %v228, %v232
  %v236 = vsel %vm136, %v226, 0
  %v239 = vsel %vm136, %v227, 0
  %241 = vmatprep.subr.mxu0 0.0
  %242 = vmatpush1.xpose.msra.mxu0 %v236
  %243 = vmatprep.subr.mxu0 0.0
  %244 = vmatpush1.xpose.msra.mxu0 %v239
  %245 = vmatprep.subr.mxu0 0.0
  %246 = vmatpush1.xpose.msra.mxu0 0.0
  %247 = vmatprep.subr.mxu0 0.0
  %248 = vmatpush1.xpose.msra.mxu0 0.0
  %249 = vmatprep.subr.mxu0 0.0
  %250 = vmatpush1.xpose.msra.mxu0 0.0
  %251 = vmatprep.subr.mxu0 0.0
  %252 = vmatpush1.xpose.msra.mxu0 0.0
  %253 = vmatprep.subr.mxu0 0.0
  %254 = vmatpush1.xpose.msra.mxu0 0.0
  %255 = vmatprep.subr.mxu0 0.0
  %256 = vmatpush1.xpose.msra.mxu0 0.0
  %257 = vmatprep.subr.mxu0 0.0
  %258 = vmatpush1.xpose.msra.mxu0 0.0
  %259 = vmatprep.subr.mxu0 0.0
  %260 = vmatpush1.xpose.msra.mxu0 0.0
  %261 = vmatprep.subr.mxu0 0.0
  %262 = vmatpush1.xpose.msra.mxu0 0.0
  %263 = vmatprep.subr.mxu0 0.0
  %264 = vmatpush1.xpose.msra.mxu0 0.0
  %265 = vmatprep.subr.mxu0 0.0
  %266 = vmatpush1.xpose.msra.mxu0 0.0
  %267 = vmatprep.subr.mxu0 0.0
  %268 = vmatpush1.xpose.msra.mxu0 0.0
  %269 = vmatprep.subr.mxu0 0.0
  %270 = vmatpush1.xpose.msra.mxu0 0.0
  %271 = vmatprep.subr.mxu0 0.0
  %272 = vmatpush1.xpose.msra.mxu0 0.0
  %273 = vmatprep.subr.mxu0 0.0
  %274 = vmatpush1.xpose.msra.mxu0 0.0
  %275 = vmatprep.subr.mxu0 0.0
  %276 = vmatpush1.xpose.msra.mxu0 0.0
  %277 = vmatprep.subr.mxu0 0.0
  %278 = vmatpush1.xpose.msra.mxu0 0.0
  %279 = vmatprep.subr.mxu0 0.0
  %280 = vmatpush1.xpose.msra.mxu0 0.0
  %281 = vmatprep.subr.mxu0 0.0
  %282 = vmatpush1.xpose.msra.mxu0 0.0
  %283 = vmatprep.subr.mxu0 0.0
  %284 = vmatpush1.xpose.msra.mxu0 0.0
  %285 = vmatprep.subr.mxu0 0.0
  %286 = vmatpush1.xpose.msra.mxu0 0.0
  %287 = vmatprep.subr.mxu0 0.0
  %288 = vmatpush1.xpose.msra.mxu0 0.0
  %289 = vmatprep.subr.mxu0 0.0
  %290 = vmatpush1.xpose.msra.mxu0 0.0
  %291 = vmatprep.subr.mxu0 0.0
  %292 = vmatpush1.xpose.msra.mxu0 0.0
  %293 = vmatprep.subr.mxu0 0.0
  %294 = vmatpush1.xpose.msra.mxu0 0.0
  %295 = vmatprep.subr.mxu0 0.0
  %296 = vmatpush1.xpose.msra.mxu0 0.0
  %297 = vmatprep.subr.mxu0 0.0
  %298 = vmatpush1.xpose.msra.mxu0 0.0
  %299 = vmatprep.subr.mxu0 0.0
  %300 = vmatpush1.xpose.msra.mxu0 0.0
  %301 = vmatprep.subr.mxu0 0.0
  %302 = vmatpush1.xpose.msra.mxu0 0.0
  %303 = vmatprep.subr.mxu0 0.0
  %304 = vmatpush1.xpose.msra.mxu0 0.0
  %305 = vmatprep.mubr.f32.mxu0 0.0
  %306 = vmatmul.mubr.f32.gmra.mrb[0].mxu0 %v138
  %v307 = vpop.f32.mrb[0].mxu0
  %v308 = vadd.f32 %v233, %v307
  %v309 = vpop.f32.mrb[0].mxu0
  %310 = vmatprep.mubr.f32.mxu0 0.0
  %311 = vmatmul.mubr.f32.gmra.mrb[0].mxu0 %v141
  %v312 = vpop.f32.mrb[0].mxu0
  %v313 = vadd.f32 %v233, %v312
  %v314 = vpop.f32.mrb[0].mxu0
  %315 = vdwg.mxu0
  %v316 = vxor.u32 %v308, 2147483648
  %v317 = vxor.u32 %v313, 2147483648
  %v318 = vmul.f32 %v316, 1.442695
  %v319 = vpow.pop %v318
  %v320 = vmul.f32 %v317, 1.442695
  %v321 = vpow.pop %v320
  %v322 = vadd.f32 %v319, 1.0
  %v323 = vadd.f32 %v321, 1.0
  %v324 = vrcp.pop %v322
  %v325 = vmul.f32 1.0, %v324
  %v326 = vrcp.pop %v323
  %v327 = vmul.f32 1.0, %v326
  %v328 = vmul.f32 %v325, %v224
  %v329 = vmul.f32 %v327, %v225
  %v330 = vsub.f32 1.0, %v325
  %v331 = vsub.f32 1.0, %v327
  %v332 = vmul.f32 %v330, %v119
  %v333 = vmul.f32 %v331, %v124
  %v334 = vadd.f32 %v328, %v332
  %v335 = vadd.f32 %v329, %v333
  %v336 = vld [vmem:[%s6] sm:$0xff]
  %v337 = vld [vmem:[%s6 + $0x8] sm:$0xff]
  %v338 = vld [vmem:[%s7] sm:$0x1]
  %v340 = vlaneseq
  %v341 = vshrl.u32 %v340, 7
  %v342 = vsub.s32 0, %v341
  %v343 = vrot.slane %v338, %v342
  %v346 = vsel %vm136, %v334, 0
  %v349 = vsel %vm136, %v335, 0
  %v352 = vsel %vm136, %v336, 0
  %v355 = vsel %vm136, %v337, 0
  %357 = vmatprep.subr.mxu0 0.0
  %358 = vmatpush1.xpose.msra.mxu0 %v352
  %359 = vmatprep.subr.mxu0 0.0
  %360 = vmatpush1.xpose.msra.mxu0 %v355
  %361 = vmatprep.subr.mxu0 0.0
  %362 = vmatpush1.xpose.msra.mxu0 0.0
  %363 = vmatprep.subr.mxu0 0.0
  %364 = vmatpush1.xpose.msra.mxu0 0.0
  %365 = vmatprep.subr.mxu0 0.0
  %366 = vmatpush1.xpose.msra.mxu0 0.0
  %367 = vmatprep.subr.mxu0 0.0
  %368 = vmatpush1.xpose.msra.mxu0 0.0
  %369 = vmatprep.subr.mxu0 0.0
  %370 = vmatpush1.xpose.msra.mxu0 0.0
  %371 = vmatprep.subr.mxu0 0.0
  %372 = vmatpush1.xpose.msra.mxu0 0.0
  %373 = vmatprep.subr.mxu0 0.0
  %374 = vmatpush1.xpose.msra.mxu0 0.0
  %375 = vmatprep.subr.mxu0 0.0
  %376 = vmatpush1.xpose.msra.mxu0 0.0
  %377 = vmatprep.subr.mxu0 0.0
  %378 = vmatpush1.xpose.msra.mxu0 0.0
  %379 = vmatprep.subr.mxu0 0.0
  %380 = vmatpush1.xpose.msra.mxu0 0.0
  %381 = vmatprep.subr.mxu0 0.0
  %382 = vmatpush1.xpose.msra.mxu0 0.0
  %383 = vmatprep.subr.mxu0 0.0
  %384 = vmatpush1.xpose.msra.mxu0 0.0
  %385 = vmatprep.subr.mxu0 0.0
  %386 = vmatpush1.xpose.msra.mxu0 0.0
  %387 = vmatprep.subr.mxu0 0.0
  %388 = vmatpush1.xpose.msra.mxu0 0.0
  %389 = vmatprep.subr.mxu0 0.0
  %390 = vmatpush1.xpose.msra.mxu0 0.0
  %391 = vmatprep.subr.mxu0 0.0
  %392 = vmatpush1.xpose.msra.mxu0 0.0
  %393 = vmatprep.subr.mxu0 0.0
  %394 = vmatpush1.xpose.msra.mxu0 0.0
  %395 = vmatprep.subr.mxu0 0.0
  %396 = vmatpush1.xpose.msra.mxu0 0.0
  %397 = vmatprep.subr.mxu0 0.0
  %398 = vmatpush1.xpose.msra.mxu0 0.0
  %399 = vmatprep.subr.mxu0 0.0
  %400 = vmatpush1.xpose.msra.mxu0 0.0
  %401 = vmatprep.subr.mxu0 0.0
  %402 = vmatpush1.xpose.msra.mxu0 0.0
  %403 = vmatprep.subr.mxu0 0.0
  %404 = vmatpush1.xpose.msra.mxu0 0.0
  %405 = vmatprep.subr.mxu0 0.0
  %406 = vmatpush1.xpose.msra.mxu0 0.0
  %407 = vmatprep.subr.mxu0 0.0
  %408 = vmatpush1.xpose.msra.mxu0 0.0
  %409 = vmatprep.subr.mxu0 0.0
  %410 = vmatpush1.xpose.msra.mxu0 0.0
  %411 = vmatprep.subr.mxu0 0.0
  %412 = vmatpush1.xpose.msra.mxu0 0.0
  %413 = vmatprep.subr.mxu0 0.0
  %414 = vmatpush1.xpose.msra.mxu0 0.0
  %415 = vmatprep.subr.mxu0 0.0
  %416 = vmatpush1.xpose.msra.mxu0 0.0
  %417 = vmatprep.subr.mxu0 0.0
  %418 = vmatpush1.xpose.msra.mxu0 0.0
  %419 = vmatprep.subr.mxu0 0.0
  %420 = vmatpush1.xpose.msra.mxu0 0.0
  %421 = vmatprep.mubr.f32.mxu0 0.0
  %422 = vmatmul.mubr.f32.gmra.mrb[0].mxu0 %v346
  %v423 = vpop.f32.mrb[0].mxu0
  %v424 = vadd.f32 %v343, %v423
  %v425 = vpop.f32.mrb[0].mxu0
  %426 = vmatprep.mubr.f32.mxu0 0.0
  %427 = vmatmul.mubr.f32.gmra.mrb[0].mxu0 %v349
  %v428 = vpop.f32.mrb[0].mxu0
  %v429 = vadd.f32 %v343, %v428
  %v430 = vpop.f32.mrb[0].mxu0
  %431 = vdwg.mxu0
  %v432 = vmax.f32 %v424, 0.0
  %v433 = vmax.f32 %v429, 0.0
  %v434 = vld [vmem:[%s8] sm:$0xff]
  %v435 = vld [vmem:[%s8 + $0x8] sm:$0xff]
  %v436 = vld [vmem:[%s9] sm:$0x1]
  %v438 = vlaneseq
  %v439 = vshrl.u32 %v438, 7
  %v440 = vsub.s32 0, %v439
  %v441 = vrot.slane %v436, %v440
  %v444 = vsel %vm136, %v434, 0
  %v447 = vsel %vm136, %v435, 0
  %449 = vmatprep.subr.mxu0 0.0
  %450 = vmatpush1.xpose.msra.mxu0 %v444
  %451 = vmatprep.subr.mxu0 0.0
  %452 = vmatpush1.xpose.msra.mxu0 %v447
  %453 = vmatprep.subr.mxu0 0.0
  %454 = vmatpush1.xpose.msra.mxu0 0.0
  %455 = vmatprep.subr.mxu0 0.0
  %456 = vmatpush1.xpose.msra.mxu0 0.0
  %457 = vmatprep.subr.mxu0 0.0
  %458 = vmatpush1.xpose.msra.mxu0 0.0
  %459 = vmatprep.subr.mxu0 0.0
  %460 = vmatpush1.xpose.msra.mxu0 0.0
  %461 = vmatprep.subr.mxu0 0.0
  %462 = vmatpush1.xpose.msra.mxu0 0.0
  %463 = vmatprep.subr.mxu0 0.0
  %464 = vmatpush1.xpose.msra.mxu0 0.0
  %465 = vmatprep.subr.mxu0 0.0
  %466 = vmatpush1.xpose.msra.mxu0 0.0
  %467 = vmatprep.subr.mxu0 0.0
  %468 = vmatpush1.xpose.msra.mxu0 0.0
  %469 = vmatprep.subr.mxu0 0.0
  %470 = vmatpush1.xpose.msra.mxu0 0.0
  %471 = vmatprep.subr.mxu0 0.0
  %472 = vmatpush1.xpose.msra.mxu0 0.0
  %473 = vmatprep.subr.mxu0 0.0
  %474 = vmatpush1.xpose.msra.mxu0 0.0
  %475 = vmatprep.subr.mxu0 0.0
  %476 = vmatpush1.xpose.msra.mxu0 0.0
  %477 = vmatprep.subr.mxu0 0.0
  %478 = vmatpush1.xpose.msra.mxu0 0.0
  %479 = vmatprep.subr.mxu0 0.0
  %480 = vmatpush1.xpose.msra.mxu0 0.0
  %481 = vmatprep.subr.mxu0 0.0
  %482 = vmatpush1.xpose.msra.mxu0 0.0
  %483 = vmatprep.subr.mxu0 0.0
  %484 = vmatpush1.xpose.msra.mxu0 0.0
  %485 = vmatprep.subr.mxu0 0.0
  %486 = vmatpush1.xpose.msra.mxu0 0.0
  %487 = vmatprep.subr.mxu0 0.0
  %488 = vmatpush1.xpose.msra.mxu0 0.0
  %489 = vmatprep.subr.mxu0 0.0
  %490 = vmatpush1.xpose.msra.mxu0 0.0
  %491 = vmatprep.subr.mxu0 0.0
  %492 = vmatpush1.xpose.msra.mxu0 0.0
  %493 = vmatprep.subr.mxu0 0.0
  %494 = vmatpush1.xpose.msra.mxu0 0.0
  %495 = vmatprep.subr.mxu0 0.0
  %496 = vmatpush1.xpose.msra.mxu0 0.0
  %497 = vmatprep.subr.mxu0 0.0
  %498 = vmatpush1.xpose.msra.mxu0 0.0
  %499 = vmatprep.subr.mxu0 0.0
  %500 = vmatpush1.xpose.msra.mxu0 0.0
  %501 = vmatprep.subr.mxu0 0.0
  %502 = vmatpush1.xpose.msra.mxu0 0.0
  %503 = vmatprep.subr.mxu0 0.0
  %504 = vmatpush1.xpose.msra.mxu0 0.0
  %505 = vmatprep.subr.mxu0 0.0
  %506 = vmatpush1.xpose.msra.mxu0 0.0
  %507 = vmatprep.subr.mxu0 0.0
  %508 = vmatpush1.xpose.msra.mxu0 0.0
  %509 = vmatprep.subr.mxu0 0.0
  %510 = vmatpush1.xpose.msra.mxu0 0.0
  %511 = vmatprep.subr.mxu0 0.0
  %512 = vmatpush1.xpose.msra.mxu0 0.0
  %513 = vmatprep.mubr.f32.mxu0 0.0
  %514 = vmatmul.mubr.f32.gmra.mrb[0].mxu0 %v346
  %v515 = vpop.f32.mrb[0].mxu0
  %v516 = vadd.f32 %v441, %v515
  %v517 = vpop.f32.mrb[0].mxu0
  %518 = vmatprep.mubr.f32.mxu0 0.0
  %519 = vmatmul.mubr.f32.gmra.mrb[0].mxu0 %v349
  %v520 = vpop.f32.mrb[0].mxu0
  %v521 = vadd.f32 %v441, %v520
  %v522 = vpop.f32.mrb[0].mxu0
  %523 = vdwg.mxu0
  %v524 = vxor.u32 %v516, 2147483648
  %v525 = vxor.u32 %v521, 2147483648
  %v526 = vmul.f32 %v524, 1.442695
  %v527 = vpow.pop %v526
  %v528 = vmul.f32 %v525, 1.442695
  %v529 = vpow.pop %v528
  %v530 = vadd.f32 %v527, 1.0
  %v531 = vadd.f32 %v529, 1.0
  %v532 = vrcp.pop %v530
  %v533 = vmul.f32 1.0, %v532
  %v534 = vrcp.pop %v531
  %v535 = vmul.f32 1.0, %v534
  %v536 = vmul.f32 %v533, %v432
  %v537 = vmul.f32 %v535, %v433
  %v538 = vsub.f32 1.0, %v533
  %v539 = vsub.f32 1.0, %v535
  %v540 = vmul.f32 %v538, %v334
  %v541 = vmul.f32 %v539, %v335
  %v542 = vadd.f32 %v536, %v540
  %v543 = vadd.f32 %v537, %v541
  %544 = vst.msk [vmem:[%s10] sm:$0xff] %vm136, %v542
  %545 = vst.msk [vmem:[%s10 + $0x8] sm:$0xff] %vm136, %v543
  // Predicated region
  $region42: #{bidaf_forward.15} parent=0 // pred_check
    _
  $region43: #{bidaf_forward.15} parent=0 // pred_check_branch
    %547 = sbr.rel (0) target = $region45
  $region44: #{bidaf_forward.15} parent=0 // pred_region
    _
  $region45: #{bidaf_forward.15} parent=0 // pred_fallthru
    _
  // Predicated region
  $region46: #{bidaf_forward.15} parent=0 // pred_check
    _
  $region47: #{bidaf_forward.15} parent=0 // pred_check_branch
    %549 = sbr.rel (0) target = $region49
  $region48: #{bidaf_forward.15} parent=0 // pred_region
    _
  $region49: #{bidaf_forward.15} parent=0 // pred_fallthru
    _

// kernel: bidaf_forward.19
$region0: #{bidaf_forward.19}
  #allocation0 [shape = 'u32[]', space=smem, size = 0x4, offset = 0x4, fixed_abs, tag = 'smem constant byte address 0x4 - core index']
  #allocation1 [shape = 'u32[144,128]{1,0:T(1,128)}', space=vmem, size = 0x12000, scoped, tag = 'internal scratch']
  %s0 = inlined_call_operand.vmem [shape: f32[8,2,128], index: 0, kind: input, shape index: {}]
  %s1 = inlined_call_operand.vmem [shape: f32[8,2,1], index: 1, kind: input, shape index: {}]
  %s2 = inlined_call_operand.vmem [shape: f32[64,16], index: 2, kind: input, shape index: {}]
  %s3 = inlined_call_operand.vmem [shape: f32[64,16], index: 3, kind: input, shape index: {}]
  %s4 = inlined_call_operand.vmem [shape: f32[8,2,16], index: 4, kind: output, shape index: {0}]
  %s5 = inlined_call_operand.vmem [shape: f32[8,2,16], index: 5, kind: output, shape index: {1}]
  %6 = xla_tuple %s4, %s5
  %s7 = sld [smem:[#allocation0]]
  $region41: #{bidaf_forward.19} parent=0
    _
  %s9 = ssub.s32 1, %s7
  %s10 = scalar_select 0, %s9, %s7
  // Predicated region
  $region2: #{bidaf_forward.19} parent=0 // pred_check
    _
  $region3: #{bidaf_forward.19} parent=0 // pred_check_branch
    %12 = sbr.rel (0) target = $region5
  $region4: #{bidaf_forward.19} parent=0 // pred_region
    _
  $region5: #{bidaf_forward.19} parent=0 // pred_fallthru
    _
  // Predicated region
  $region6: #{bidaf_forward.19} parent=0 // pred_check
    _
  $region7: #{bidaf_forward.19} parent=0 // pred_check_branch
    %14 = sbr.rel (0) target = $region9
  $region8: #{bidaf_forward.19} parent=0 // pred_region
    _
  $region9: #{bidaf_forward.19} parent=0 // pred_fallthru
    _
  // Predicated region
  $region10: #{bidaf_forward.19} parent=0 // pred_check
    _
  $region11: #{bidaf_forward.19} parent=0 // pred_check_branch
    %16 = sbr.rel (0) target = $region13
  $region12: #{bidaf_forward.19} parent=0 // pred_region
    _
  $region13: #{bidaf_forward.19} parent=0 // pred_fallthru
    _
  // Predicated region
  $region14: #{bidaf_forward.19} parent=0 // pred_check
    _
  $region15: #{bidaf_forward.19} parent=0 // pred_check_branch
    %18 = sbr.rel (0) target = $region17
  $region16: #{bidaf_forward.19} parent=0 // pred_region
    _
  $region17: #{bidaf_forward.19} parent=0 // pred_fallthru
    _
  %v19 = vld [vmem:[%s2] sm:$0xff]
  %v20 = vld [vmem:[%s2 + $0x8] sm:$0xff]
  %v21 = vld [vmem:[%s2 + $0x10] sm:$0xff]
  %v22 = vld [vmem:[%s2 + $0x18] sm:$0xff]
  %v23 = vld [vmem:[%s2 + $0x20] sm:$0xff]
  %v24 = vld [vmem:[%s2 + $0x28] sm:$0xff]
  %v25 = vld [vmem:[%s2 + $0x30] sm:$0xff]
  %v26 = vld [vmem:[%s2 + $0x38] sm:$0xff]
  %v27 = vld [vmem:[%s3] sm:$0xff]
  %v28 = vld [vmem:[%s3 + $0x8] sm:$0xff]
  %v29 = vld [vmem:[%s3 + $0x10] sm:$0xff]
  %v30 = vld [vmem:[%s3 + $0x18] sm:$0xff]
  %v31 = vld [vmem:[%s3 + $0x20] sm:$0xff]
  %v32 = vld [vmem:[%s3 + $0x28] sm:$0xff]
  %v33 = vld [vmem:[%s3 + $0x30] sm:$0xff]
  %v34 = vld [vmem:[%s3 + $0x38] sm:$0xff]
  loop: start=0, step=1, limit=4
  $region18: #{bidaf_forward.19} parent=0 // loop_pre_header
    _
  $region19: #{bidaf_forward.19} parent=0 // loop_header
    %s36 = sphi 0, %s40
    %p37 = scmp.ge.s32.totalorder %s36, 4
    %v41 = vphi 0.0, %v476
    %v42 = vphi 0.0, %v479
    %v43 = vphi 0.0, %v609
    %v44 = vphi 0.0, %v612
  $region20: #{bidaf_forward.19} parent=0 // loop_header_branch
    %39 = sbr.rel (%p37) target = $region24
  $region21: #{bidaf_forward.19} parent=0 // loop_body
    %s45 = smul.u32 %s36, 2
    %s46 = smul.u32 %s45, 2
    %s47 = scalar_lea.vmem %s0, %s46
    %v48 = vld [vmem:[%s47] sm:$0x3]
    %s49 = scalar_lea.vmem %s1, %s46
    %v50 = vld [vmem:[%s49] sm:$0x3]
    %52 = vrot.lane.b32.xlu0 %v41, 80
    %v53 = vpop.permute.xlu0 %52
    %vm54 = vcmask 130048
    %v55 = vsel %vm54, %v53, 0
    %v58 = vsel %vm54, %v19, 0
    %v61 = vsel %vm54, %v20, 0
    %v64 = vsel %vm54, %v21, 0
    %v67 = vsel %vm54, %v22, 0
    %v70 = vsel %vm54, %v23, 0
    %v73 = vsel %vm54, %v24, 0
    %v76 = vsel %vm54, %v25, 0
    %v79 = vsel %vm54, %v26, 0
    %81 = vmatprep.subr.mxu0 0.0
    %82 = vmatpush1.xpose.msra.mxu0 %v58
    %83 = vmatprep.subr.mxu0 0.0
    %84 = vmatpush1.xpose.msra.mxu0 %v61
    %85 = vmatprep.subr.mxu0 0.0
    %86 = vmatpush1.xpose.msra.mxu0 %v64
    %87 = vmatprep.subr.mxu0 0.0
    %88 = vmatpush1.xpose.msra.mxu0 %v67
    %89 = vmatprep.subr.mxu0 0.0
    %90 = vmatpush1.xpose.msra.mxu0 %v70
    %91 = vmatprep.subr.mxu0 0.0
    %92 = vmatpush1.xpose.msra.mxu0 %v73
    %93 = vmatprep.subr.mxu0 0.0
    %94 = vmatpush1.xpose.msra.mxu0 %v76
    %95 = vmatprep.subr.mxu0 0.0
    %96 = vmatpush1.xpose.msra.mxu0 %v79
    %97 = vmatprep.subr.mxu0 0.0
    %98 = vmatpush1.xpose.msra.mxu0 0.0
    %99 = vmatprep.subr.mxu0 0.0
    %100 = vmatpush1.xpose.msra.mxu0 0.0
    %101 = vmatprep.subr.mxu0 0.0
    %102 = vmatpush1.xpose.msra.mxu0 0.0
    %103 = vmatprep.subr.mxu0 0.0
    %104 = vmatpush1.xpose.msra.mxu0 0.0
    %105 = vmatprep.subr.mxu0 0.0
    %106 = vmatpush1.xpose.msra.mxu0 0.0
    %107 = vmatprep.subr.mxu0 0.0
    %108 = vmatpush1.xpose.msra.mxu0 0.0
    %109 = vmatprep.subr.mxu0 0.0
    %110 = vmatpush1.xpose.msra.mxu0 0.0
    %111 = vmatprep.subr.mxu0 0.0
    %112 = vmatpush1.xpose.msra.mxu0 0.0
    %113 = vmatprep.subr.mxu0 0.0
    %114 = vmatpush1.xpose.msra.mxu0 0.0
    %115 = vmatprep.subr.mxu0 0.0
    %116 = vmatpush1.xpose.msra.mxu0 0.0
    %117 = vmatprep.subr.mxu0 0.0
    %118 = vmatpush1.xpose.msra.mxu0 0.0
    %119 = vmatprep.subr.mxu0 0.0
    %120 = vmatpush1.xpose.msra.mxu0 0.0
    %121 = vmatprep.subr.mxu0 0.0
    %122 = vmatpush1.xpose.msra.mxu0 0.0
    %123 = vmatprep.subr.mxu0 0.0
    %124 = vmatpush1.xpose.msra.mxu0 0.0
    %125 = vmatprep.subr.mxu0 0.0
    %126 = vmatpush1.xpose.msra.mxu0 0.0
    %127 = vmatprep.subr.mxu0 0.0
    %128 = vmatpush1.xpose.msra.mxu0 0.0
    %129 = vmatprep.subr.mxu0 0.0
    %130 = vmatpush1.xpose.msra.mxu0 0.0
    %131 = vmatprep.subr.mxu0 0.0
    %132 = vmatpush1.xpose.msra.mxu0 0.0
    %133 = vmatprep.subr.mxu0 0.0
    %134 = vmatpush1.xpose.msra.mxu0 0.0
    %135 = vmatprep.subr.mxu0 0.0
    %136 = vmatpush1.xpose.msra.mxu0 0.0
    %137 = vmatprep.subr.mxu0 0.0
    %138 = vmatpush1.xpose.msra.mxu0 0.0
    %139 = vmatprep.subr.mxu0 0.0
    %140 = vmatpush1.xpose.msra.mxu0 0.0
    %141 = vmatprep.subr.mxu0 0.0
    %142 = vmatpush1.xpose.msra.mxu0 0.0
    %143 = vmatprep.subr.mxu0 0.0
    %144 = vmatpush1.xpose.msra.mxu0 0.0
    %145 = vmatprep.mubr.f32.mxu0 0.0
    %146 = vmatmul.mubr.f32.gmra.mrb[0].mxu0 %v55
    %v147 = vpop.f32.mrb[0].mxu0
    %v148 = vadd.f32 0.0, %v147
    %v149 = vpop.f32.mrb[0].mxu0
    %150 = vdwg.mxu0
    %v151 = vadd.f32 %v48, %v148
    %v152 = vxor.u32 %v151, 2147483648
    %v153 = vmul.f32 %v152, 1.442695
    %v154 = vpow.pop %v153
    %v155 = vadd.f32 %v154, 1.0
    %v156 = vrcp.pop %v155
    %v157 = vmul.f32 1.0, %v156
    %v158 = vtanh.pop %v151
    %v159 = vmul.f32 %v157, %v42
    %161 = vrot.lane.b32.xlu0 %v158, 96
    %v162 = vpop.permute.xlu0 %161
    %v164 = vmul.f32 %v157, %v162
    %166 = vrot.lane.b32.xlu0 %v164, 16
    %v167 = vpop.permute.xlu0 %166
    %v169 = vadd.f32 %v159, %v167
    %v170 = vtanh.pop %v169
    %172 = vrot.lane.b32.xlu0 %v170, 32
    %v173 = vpop.permute.xlu0 %172
    %v175 = vmul.f32 %v157, %v173
    %177 = vset.pattern.permute.xlu0 0
    %178 = vperm.xlu0 %177, %v50
    %v179 = vpop.permute.xlu0 %178
    %v181 = vmul.f32 %v179, %v175
    %v182 = vsub.f32 1.0, %v50
    %184 = vset.pattern.permute.xlu0 0
    %185 = vperm.xlu0 %184, %v182
    %v186 = vpop.permute.xlu0 %185
    %v188 = vmul.f32 %v186, %v41
    %v189 = vadd.f32 %v181, %v188
    %v190 = vmul.f32 %v179, %v169
    %v191 = vmul.f32 %v186, %v42
    %v192 = vadd.f32 %v190, %v191
    %194 = vrot.lane.b32.xlu0 %v181, 80
    %v195 = vpop.permute.xlu0 %194
    %s197 = scalar_lea.vmem %s4, %s46
    %vm198 = vcmask 123904
    %199 = vst.msk [vmem:[%s197] sm:$0x3] %vm198, %v195
    %s200 = ssub.s32 7, %s45
    %s201 = smul.u32 %s200, 2
    %s202 = scalar_lea.vmem %s0, %s201
    %v203 = vld [vmem:[%s202] sm:$0x3]
    %s204 = scalar_lea.vmem %s1, %s201
    %v205 = vld [vmem:[%s204] sm:$0x3]
    %207 = vrot.lane.b32.xlu0 %v43, 16
    %v208 = vpop.permute.xlu0 %207
    %v209 = vsel %vm54, %v208, 0
    %v212 = vsel %vm54, %v27, 0
    %v215 = vsel %vm54, %v28, 0
    %v218 = vsel %vm54, %v29, 0
    %v221 = vsel %vm54, %v30, 0
    %v224 = vsel %vm54, %v31, 0
    %v227 = vsel %vm54, %v32, 0
    %v230 = vsel %vm54, %v33, 0
    %v233 = vsel %vm54, %v34, 0
    %235 = vmatprep.subr.mxu0 0.0
    %236 = vmatpush1.xpose.msra.mxu0 %v212
    %237 = vmatprep.subr.mxu0 0.0
    %238 = vmatpush1.xpose.msra.mxu0 %v215
    %239 = vmatprep.subr.mxu0 0.0
    %240 = vmatpush1.xpose.msra.mxu0 %v218
    %241 = vmatprep.subr.mxu0 0.0
    %242 = vmatpush1.xpose.msra.mxu0 %v221
    %243 = vmatprep.subr.mxu0 0.0
    %244 = vmatpush1.xpose.msra.mxu0 %v224
    %245 = vmatprep.subr.mxu0 0.0
    %246 = vmatpush1.xpose.msra.mxu0 %v227
    %247 = vmatprep.subr.mxu0 0.0
    %248 = vmatpush1.xpose.msra.mxu0 %v230
    %249 = vmatprep.subr.mxu0 0.0
    %250 = vmatpush1.xpose.msra.mxu0 %v233
    %251 = vmatprep.subr.mxu0 0.0
    %252 = vmatpush1.xpose.msra.mxu0 0.0
    %253 = vmatprep.subr.mxu0 0.0
    %254 = vmatpush1.xpose.msra.mxu0 0.0
    %255 = vmatprep.subr.mxu0 0.0
    %256 = vmatpush1.xpose.msra.mxu0 0.0
    %257 = vmatprep.subr.mxu0 0.0
    %258 = vmatpush1.xpose.msra.mxu0 0.0
    %259 = vmatprep.subr.mxu0 0.0
    %260 = vmatpush1.xpose.msra.mxu0 0.0
    %261 = vmatprep.subr.mxu0 0.0
    %262 = vmatpush1.xpose.msra.mxu0 0.0
    %263 = vmatprep.subr.mxu0 0.0
    %264 = vmatpush1.xpose.msra.mxu0 0.0
    %265 = vmatprep.subr.mxu0 0.0
    %266 = vmatpush1.xpose.msra.mxu0 0.0
    %267 = vmatprep.subr.mxu0 0.0
    %268 = vmatpush1.xpose.msra.mxu0 0.0
    %269 = vmatprep.subr.mxu0 0.0
    %270 = vmatpush1.xpose.msra.mxu0 0.0
    %271 = vmatprep.subr.mxu0 0.0
    %272 = vmatpush1.xpose.msra.mxu0 0.0
    %273 = vmatprep.subr.mxu0 0.0
    %274 = vmatpush1.xpose.msra.mxu0 0.0
    %275 = vmatprep.subr.mxu0 0.0
    %276 = vmatpush1.xpose.msra.mxu0 0.0
    %277 = vmatprep.subr.mxu0 0.0
    %278 = vmatpush1.xpose.msra.mxu0 0.0
    %279 = vmatprep.subr.mxu0 0.0
    %280 = vmatpush1.xpose.msra.mxu0 0.0
    %281 = vmatprep.subr.mxu0 0.0
    %282 = vmatpush1.xpose.msra.mxu0 0.0
    %283 = vmatprep.subr.mxu0 0.0
    %284 = vmatpush1.xpose.msra.mxu0 0.0
    %285 = vmatprep.subr.mxu0 0.0
    %286 = vmatpush1.xpose.msra.mxu0 0.0
    %287 = vmatprep.subr.mxu0 0.0
    %288 = vmatpush1.xpose.msra.mxu0 0.0
    %289 = vmatprep.subr.mxu0 0.0
    %290 = vmatpush1.xpose.msra.mxu0 0.0
    %291 = vmatprep.subr.mxu0 0.0
    %292 = vmatpush1.xpose.msra.mxu0 0.0
    %293 = vmatprep.subr.mxu0 0.0
    %294 = vmatpush1.xpose.msra.mxu0 0.0
    %295 = vmatprep.subr.mxu0 0.0
    %296 = vmatpush1.xpose.msra.mxu0 0.0
    %297 = vmatprep.subr.mxu0 0.0
    %298 = vmatpush1.xpose.msra.mxu0 0.0
    %299 = vmatprep.mubr.f32.mxu0 0.0
    %300 = vmatmul.mubr.f32.gmra.mrb[0].mxu0 %v209
    %v301 = vpop.f32.mrb[0].mxu0
    %v302 = vadd.f32 0.0, %v301
    %v303 = vpop.f32.mrb[0].mxu0
    %304 = vdwg.mxu0
    %306 = vrot.lane.b32.xlu0 %v302, 64
    %v307 = vpop.permute.xlu0 %306
    %v309 = vadd.f32 %v203, %v307
    %v310 = vxor.u32 %v309, 2147483648
    %v311 = vmul.f32 %v310, 1.442695
    %v312 = vpow.pop %v311
    %v313 = vadd.f32 %v312, 1.0
    %v314 = vrcp.pop %v313
    %v315 = vmul.f32 1.0, %v314
    %v316 = vtanh.pop %v309
    %v317 = vmul.f32 %v315, %v44
    %319 = vrot.lane.b32.xlu0 %v316, 96
    %v320 = vpop.permute.xlu0 %319
    %v322 = vmul.f32 %v315, %v320
    %324 = vrot.lane.b32.xlu0 %v322, 16
    %v325 = vpop.permute.xlu0 %324
    %v327 = vadd.f32 %v317, %v325
    %v328 = vtanh.pop %v327
    %330 = vrot.lane.b32.xlu0 %v328, 32
    %v331 = vpop.permute.xlu0 %330
    %v333 = vmul.f32 %v315, %v331
    %335 = vset.pattern.permute.xlu0 0
    %336 = vperm.xlu0 %335, %v205
    %v337 = vpop.permute.xlu0 %336
    %v339 = vmul.f32 %v337, %v333
    %v340 = vsub.f32 1.0, %v205
    %342 = vset.pattern.permute.xlu0 0
    %343 = vperm.xlu0 %342, %v340
    %v344 = vpop.permute.xlu0 %343
    %v346 = vmul.f32 %v344, %v43
    %v347 = vadd.f32 %v339, %v346
    %v348 = vmul.f32 %v337, %v327
    %v349 = vmul.f32 %v344, %v44
    %v350 = vadd.f32 %v348, %v349
    %352 = vrot.lane.b32.xlu0 %v339, 16
    %v353 = vpop.permute.xlu0 %352
    %s355 = scalar_lea.vmem %s5, %s201
    %356 = vst.msk [vmem:[%s355] sm:$0x3] %vm198, %v353
    %s357 = sadd.s32 %s45, 1
    %s358 = smul.u32 %s357, 2
    %s359 = scalar_lea.vmem %s0, %s358
    %v360 = vld [vmem:[%s359] sm:$0x3]
    %s361 = scalar_lea.vmem %s1, %s358
    %v362 = vld [vmem:[%s361] sm:$0x3]
    %364 = vrot.lane.b32.xlu0 %v189, 80
    %v365 = vpop.permute.xlu0 %364
    %v366 = vsel %vm54, %v365, 0
    %368 = vmatprep.subr.mxu0 0.0
    %369 = vmatpush1.xpose.msra.mxu0 %v58
    %370 = vmatprep.subr.mxu0 0.0
    %371 = vmatpush1.xpose.msra.mxu0 %v61
    %372 = vmatprep.subr.mxu0 0.0
    %373 = vmatpush1.xpose.msra.mxu0 %v64
    %374 = vmatprep.subr.mxu0 0.0
    %375 = vmatpush1.xpose.msra.mxu0 %v67
    %376 = vmatprep.subr.mxu0 0.0
    %377 = vmatpush1.xpose.msra.mxu0 %v70
    %378 = vmatprep.subr.mxu0 0.0
    %379 = vmatpush1.xpose.msra.mxu0 %v73
    %380 = vmatprep.subr.mxu0 0.0
    %381 = vmatpush1.xpose.msra.mxu0 %v76
    %382 = vmatprep.subr.mxu0 0.0
    %383 = vmatpush1.xpose.msra.mxu0 %v79
    %384 = vmatprep.subr.mxu0 0.0
    %385 = vmatpush1.xpose.msra.mxu0 0.0
    %386 = vmatprep.subr.mxu0 0.0
    %387 = vmatpush1.xpose.msra.mxu0 0.0
    %388 = vmatprep.subr.mxu0 0.0
    %389 = vmatpush1.xpose.msra.mxu0 0.0
    %390 = vmatprep.subr.mxu0 0.0
    %391 = vmatpush1.xpose.msra.mxu0 0.0
    %392 = vmatprep.subr.mxu0 0.0
    %393 = vmatpush1.xpose.msra.mxu0 0.0
    %394 = vmatprep.subr.mxu0 0.0
    %395 = vmatpush1.xpose.msra.mxu0 0.0
    %396 = vmatprep.subr.mxu0 0.0
    %397 = vmatpush1.xpose.msra.mxu0 0.0
    %398 = vmatprep.subr.mxu0 0.0
    %399 = vmatpush1.xpose.msra.mxu0 0.0
    %400 = vmatprep.subr.mxu0 0.0
    %401 = vmatpush1.xpose.msra.mxu0 0.0
    %402 = vmatprep.subr.mxu0 0.0
    %403 = vmatpush1.xpose.msra.mxu0 0.0
    %404 = vmatprep.subr.mxu0 0.0
    %405 = vmatpush1.xpose.msra.mxu0 0.0
    %406 = vmatprep.subr.mxu0 0.0
    %407 = vmatpush1.xpose.msra.mxu0 0.0
    %408 = vmatprep.subr.mxu0 0.0
    %409 = vmatpush1.xpose.msra.mxu0 0.0
    %410 = vmatprep.subr.mxu0 0.0
    %411 = vmatpush1.xpose.msra.mxu0 0.0
    %412 = vmatprep.subr.mxu0 0.0
    %413 = vmatpush1.xpose.msra.mxu0 0.0
    %414 = vmatprep.subr.mxu0 0.0
    %415 = vmatpush1.xpose.msra.mxu0 0.0
    %416 = vmatprep.subr.mxu0 0.0
    %417 = vmatpush1.xpose.msra.mxu0 0.0
    %418 = vmatprep.subr.mxu0 0.0
    %419 = vmatpush1.xpose.msra.mxu0 0.0
    %420 = vmatprep.subr.mxu0 0.0
    %421 = vmatpush1.xpose.msra.mxu0 0.0
    %422 = vmatprep.subr.mxu0 0.0
    %423 = vmatpush1.xpose.msra.mxu0 0.0
    %424 = vmatprep.subr.mxu0 0.0
    %425 = vmatpush1.xpose.msra.mxu0 0.0
    %426 = vmatprep.subr.mxu0 0.0
    %427 = vmatpush1.xpose.msra.mxu0 0.0
    %428 = vmatprep.subr.mxu0 0.0
    %429 = vmatpush1.xpose.msra.mxu0 0.0
    %430 = vmatprep.subr.mxu0 0.0
    %431 = vmatpush1.xpose.msra.mxu0 0.0
    %432 = vmatprep.mubr.f32.mxu0 0.0
    %433 = vmatmul.mubr.f32.gmra.mrb[0].mxu0 %v366
    %v434 = vpop.f32.mrb[0].mxu0
    %v435 = vadd.f32 0.0, %v434
    %v436 = vpop.f32.mrb[0].mxu0
    %437 = vdwg.mxu0
    %v438 = vadd.f32 %v360, %v435
    %v439 = vxor.u32 %v438, 2147483648
    %v440 = vmul.f32 %v439, 1.442695
    %v441 = vpow.pop %v440
    %v442 = vadd.f32 %v441, 1.0
    %v443 = vrcp.pop %v442
    %v444 = vmul.f32 1.0, %v443
    %v445 = vtanh.pop %v438
    %v446 = vmul.f32 %v444, %v192
    %448 = vrot.lane.b32.xlu0 %v445, 96
    %v449 = vpop.permute.xlu0 %448
    %v451 = vmul.f32 %v444, %v449
    %453 = vrot.lane.b32.xlu0 %v451, 16
    %v454 = vpop.permute.xlu0 %453
    %v456 = vadd.f32 %v446, %v454
    %v457 = vtanh.pop %v456
    %459 = vrot.lane.b32.xlu0 %v457, 32
    %v460 = vpop.permute.xlu0 %459
    %v462 = vmul.f32 %v444, %v460
    %464 = vset.pattern.permute.xlu0 0
    %465 = vperm.xlu0 %464, %v362
    %v466 = vpop.permute.xlu0 %465
    %v468 = vmul.f32 %v466, %v462
    %v469 = vsub.f32 1.0, %v362
    %471 = vset.pattern.permute.xlu0 0
    %472 = vperm.xlu0 %471, %v469
    %v473 = vpop.permute.xlu0 %472
    %v475 = vmul.f32 %v473, %v189
    %v476 = vadd.f32 %v468, %v475
    %v477 = vmul.f32 %v466, %v456
    %v478 = vmul.f32 %v473, %v192
    %v479 = vadd.f32 %v477, %v478
    %481 = vrot.lane.b32.xlu0 %v468, 80
    %v482 = vpop.permute.xlu0 %481
    %s484 = scalar_lea.vmem %s4, %s358
    %485 = vst.msk [vmem:[%s484] sm:$0x3] %vm198, %v482
    %s486 = ssub.s32 6, %s45
    %s487 = smul.u32 %s486, 2
    %s488 = scalar_lea.vmem %s0, %s487
    %v489 = vld [vmem:[%s488] sm:$0x3]
    %s490 = scalar_lea.vmem %s1, %s487
    %v491 = vld [vmem:[%s490] sm:$0x3]
    %493 = vrot.lane.b32.xlu0 %v347, 16
    %v494 = vpop.permute.xlu0 %493
    %v495 = vsel %vm54, %v494, 0
    %497 = vmatprep.subr.mxu0 0.0
    %498 = vmatpush1.xpose.msra.mxu0 %v212
    %499 = vmatprep.subr.mxu0 0.0
    %500 = vmatpush1.xpose.msra.mxu0 %v215
    %501 = vmatprep.subr.mxu0 0.0
    %502 = vmatpush1.xpose.msra.mxu0 %v218
    %503 = vmatprep.subr.mxu0 0.0
    %504 = vmatpush1.xpose.msra.mxu0 %v221
    %505 = vmatprep.subr.mxu0 0.0
    %506 = vmatpush1.xpose.msra.mxu0 %v224
    %507 = vmatprep.subr.mxu0 0.0
    %508 = vmatpush1.xpose.msra.mxu0 %v227
    %509 = vmatprep.subr.mxu0 0.0
    %510 = vmatpush1.xpose.msra.mxu0 %v230
    %511 = vmatprep.subr.mxu0 0.0
    %512 = vmatpush1.xpose.msra.mxu0 %v233
    %513 = vmatprep.subr.mxu0 0.0
    %514 = vmatpush1.xpose.msra.mxu0 0.0
    %515 = vmatprep.subr.mxu0 0.0
    %516 = vmatpush1.xpose.msra.mxu0 0.0
    %517 = vmatprep.subr.mxu0 0.0
    %518 = vmatpush1.xpose.msra.mxu0 0.0
    %519 = vmatprep.subr.mxu0 0.0
    %520 = vmatpush1.xpose.msra.mxu0 0.0
    %521 = vmatprep.subr.mxu0 0.0
    %522 = vmatpush1.xpose.msra.mxu0 0.0
    %523 = vmatprep.subr.mxu0 0.0
    %524 = vmatpush1.xpose.msra.mxu0 0.0
    %525 = vmatprep.subr.mxu0 0.0
    %526 = vmatpush1.xpose.msra.mxu0 0.0
    %527 = vmatprep.subr.mxu0 0.0
    %528 = vmatpush1.xpose.msra.mxu0 0.0
    %529 = vmatprep.subr.mxu0 0.0
    %530 = vmatpush1.xpose.msra.mxu0 0.0
    %531 = vmatprep.subr.mxu0 0.0
    %532 = vmatpush1.xpose.msra.mxu0 0.0
    %533 = vmatprep.subr.mxu0 0.0
    %534 = vmatpush1.xpose.msra.mxu0 0.0
    %535 = vmatprep.subr.mxu0 0.0
    %536 = vmatpush1.xpose.msra.mxu0 0.0
    %537 = vmatprep.subr.mxu0 0.0
    %538 = vmatpush1.xpose.msra.mxu0 0.0
    %539 = vmatprep.subr.mxu0 0.0
    %540 = vmatpush1.xpose.msra.mxu0 0.0
    %541 = vmatprep.subr.mxu0 0.0
    %542 = vmatpush1.xpose.msra.mxu0 0.0
    %543 = vmatprep.subr.mxu0 0.0
    %544 = vmatpush1.xpose.msra.mxu0 0.0
    %545 = vmatprep.subr.mxu0 0.0
    %546 = vmatpush1.xpose.msra.mxu0 0.0
    %547 = vmatprep.subr.mxu0 0.0
    %548 = vmatpush1.xpose.msra.mxu0 0.0
    %549 = vmatprep.subr.mxu0 0.0
    %550 = vmatpush1.xpose.msra.mxu0 0.0
    %551 = vmatprep.subr.mxu0 0.0
    %552 = vmatpush1.xpose.msra.mxu0 0.0
    %553 = vmatprep.subr.mxu0 0.0
    %554 = vmatpush1.xpose.msra.mxu0 0.0
    %555 = vmatprep.subr.mxu0 0.0
    %556 = vmatpush1.xpose.msra.mxu0 0.0
    %557 = vmatprep.subr.mxu0 0.0
    %558 = vmatpush1.xpose.msra.mxu0 0.0
    %559 = vmatprep.subr.mxu0 0.0
    %560 = vmatpush1.xpose.msra.mxu0 0.0
    %561 = vmatprep.mubr.f32.mxu0 0.0
    %562 = vmatmul.mubr.f32.gmra.mrb[0].mxu0 %v495
    %v563 = vpop.f32.mrb[0].mxu0
    %v564 = vadd.f32 0.0, %v563
    %v565 = vpop.f32.mrb[0].mxu0
    %566 = vdwg.mxu0
    %568 = vrot.lane.b32.xlu0 %v564, 64
    %v569 = vpop.permute.xlu0 %568
    %v571 = vadd.f32 %v489, %v569
    %v572 = vxor.u32 %v571, 2147483648
    %v573 = vmul.f32 %v572, 1.442695
    %v574 = vpow.pop %v573
    %v575 = vadd.f32 %v574, 1.0
    %v576 = vrcp.pop %v575
    %v577 = vmul.f32 1.0, %v576
    %v578 = vtanh.pop %v571
    %v579 = vmul.f32 %v577, %v350
    %581 = vrot.lane.b32.xlu0 %v578, 96
    %v582 = vpop.permute.xlu0 %581
    %v584 = vmul.f32 %v577, %v582
    %586 = vrot.lane.b32.xlu0 %v584, 16
    %v587 = vpop.permute.xlu0 %586
    %v589 = vadd.f32 %v579, %v587
    %v590 = vtanh.pop %v589
    %592 = vrot.lane.b32.xlu0 %v590, 32
    %v593 = vpop.permute.xlu0 %592
    %v595 = vmul.f32 %v577, %v593
    %597 = vset.pattern.permute.xlu0 0
    %598 = vperm.xlu0 %597, %v491
    %v599 = vpop.permute.xlu0 %598
    %v601 = vmul.f32 %v599, %v595
    %v602 = vsub.f32 1.0, %v491
    %604 = vset.pattern.permute.xlu0 0
    %605 = vperm.xlu0 %604, %v602
    %v606 = vpop.permute.xlu0 %605
    %v608 = vmul.f32 %v606, %v347
    %v609 = vadd.f32 %v601, %v608
    %v610 = vmul.f32 %v599, %v589
    %v611 = vmul.f32 %v606, %v350
    %v612 = vadd.f32 %v610, %v611
    %614 = vrot.lane.b32.xlu0 %v601, 16
    %v615 = vpop.permute.xlu0 %614
    %s617 = scalar_lea.vmem %s5, %s487
    %618 = vst.msk [vmem:[%s617] sm:$0x3] %vm198, %v615
  $region22: #{bidaf_forward.19} parent=0 // loop_footer
    %s40 = sadd.s32 1, %s36
  $region23: #{bidaf_forward.19} parent=0 // loop_footer_branch
    %35 = sbr.rel target = $region19
  $region24: #{bidaf_forward.19} parent=0 // loop_exit
    _
  // Predicated region
  $region25: #{bidaf_forward.19} parent=0 // pred_check
    _
  $region26: #{bidaf_forward.19} parent=0 // pred_check_branch
    %620 = sbr.rel (0) target = $region28
  $region27: #{bidaf_forward.19} parent=0 // pred_region
    _
  $region28: #{bidaf_forward.19} parent=0 // pred_fallthru
    _
  // Predicated region
  $region29: #{bidaf_forward.19} parent=0 // pred_check
    _
  $region30: #{bidaf_forward.19} parent=0 // pred_check_branch
    %622 = sbr.rel (0) target = $region32
  $region31: #{bidaf_forward.19} parent=0 // pred_region
    _
  $region32: #{bidaf_forward.19} parent=0 // pred_fallthru
    _
  // Predicated region
  $region33: #{bidaf_forward.19} parent=0 // pred_check
    _
  $region34: #{bidaf_forward.19} parent=0 // pred_check_branch
    %624 = sbr.rel (0) target = $region36
  $region35: #{bidaf_forward.19} parent=0 // pred_region
    _
  $region36: #{bidaf_forward.19} parent=0 // pred_fallthru
    _
  // Predicated region
  $region37: #{bidaf_forward.19} parent=0 // pred_check
    _
  $region38: #{bidaf_forward.19} parent=0 // pred_check_branch
    %626 = sbr.rel (0) target = $region40
  $region39: #{bidaf_forward.19} parent=0 // pred_region
    _
  $region40: #{bidaf_forward.19} parent=0 // pred_fallthru
    _

// kernel: bidaf_forward.14
$region0: #{bidaf_forward.14}
  #allocation0 [shape = 'u32[]', space=smem, size = 0x4, offset = 0x4, fixed_abs, tag = 'smem constant byte address 0x4 - core index']
  #allocation1 [shape = 'u32[144,128]{1,0:T(1,128)}', space=vmem, size = 0x12000, scoped, tag = 'internal scratch']
  %s0 = inlined_call_operand.vmem [shape: f32[24,24], index: 0, kind: input, shape index: {}]
  %s1 = inlined_call_operand.vmem [shape: f32[16,24], index: 1, kind: input, shape index: {}]
  %s2 = inlined_call_operand.vmem [shape: f32[16,16], index: 2, kind: input, shape index: {}]
  %s3 = inlined_call_operand.vmem [shape: f32[1,16], index: 3, kind: input, shape index: {}]
  %s4 = inlined_call_operand.vmem [shape: f32[16,16], index: 4, kind: input, shape index: {}]
  %s5 = inlined_call_operand.vmem [shape: f32[1,16], index: 5, kind: input, shape index: {}]
  %s6 = inlined_call_operand.vmem [shape: f32[16,16], index: 6, kind: input, shape index: {}]
  %s7 = inlined_call_operand.vmem [shape: f32[1,16], index: 7, kind: input, shape index: {}]
  %s8 = inlined_call_operand.vmem [shape: f32[16,16], index: 8, kind: input, shape index: {}]
  %s9 = inlined_call_operand.vmem [shape: f32[1,16], index: 9, kind: input, shape index: {}]
  %s10 = inlined_call_operand.vmem [shape: f32[24,16], index: 10, kind: output, shape index: {}]
  %s11 = sld [smem:[#allocation0]]
  $region50: #{bidaf_forward.14} parent=0
    _
  %s13 = ssub.s32 1, %s11
  %s14 = scalar_select 0, %s13, %s11
  // Predicated region
  $region2: #{bidaf_forward.14} parent=0 // pred_check
    _
  $region3: #{bidaf_forward.14} parent=0 // pred_check_branch
    %16 = sbr.rel (0) target = $region5
  $region4: #{bidaf_forward.14} parent=0 // pred_region
    _
  $region5: #{bidaf_forward.14} parent=0 // pred_fallthru
    _
  // Predicated region
  $region6: #{bidaf_forward.14} parent=0 // pred_check
    _
  $region7: #{bidaf_forward.14} parent=0 // pred_check_branch
    %18 = sbr.rel (0) target = $region9
  $region8: #{bidaf_forward.14} parent=0 // pred_region
    _
  $region9: #{bidaf_forward.14} parent=0 // pred_fallthru
    _
  // Predicated region
  $region10: #{bidaf_forward.14} parent=0 // pred_check
    _
  $region11: #{bidaf_forward.14} parent=0 // pred_check_branch
    %20 = sbr.rel (0) target = $region13
  $region12: #{bidaf_forward.14} parent=0 // pred_region
    _
  $region13: #{bidaf_forward.14} parent=0 // pred_fallthru
    _
  // Predicated region
  $region14: #{bidaf_forward.14} parent=0 // pred_check
    _
  $region15: #{bidaf_forward.14} parent=0 // pred_check_branch
    %22 = sbr.rel (0) target = $region17
  $region16: #{bidaf_forward.14} parent=0 // pred_region
    _
  $region17: #{bidaf_forward.14} parent=0 // pred_fallthru
    _
  // Predicated region
  $region18: #{bidaf_forward.14} parent=0 // pred_check
    _
  $region19: #{bidaf_forward.14} parent=0 // pred_check_branch
    %24 = sbr.rel (0) target = $region21
  $region20: #{bidaf_forward.14} parent=0 // pred_region
    _
  $region21: #{bidaf_forward.14} parent=0 // pred_fallthru
    _
  // Predicated region
  $region22: #{bidaf_forward.14} parent=0 // pred_check
    _
  $region23: #{bidaf_forward.14} parent=0 // pred_check_branch
    %26 = sbr.rel (0) target = $region25
  $region24: #{bidaf_forward.14} parent=0 // pred_region
    _
  $region25: #{bidaf_forward.14} parent=0 // pred_fallthru
    _
  // Predicated region
  $region26: #{bidaf_forward.14} parent=0 // pred_check
    _
  $region27: #{bidaf_forward.14} parent=0 // pred_check_branch
    %28 = sbr.rel (0) target = $region29
  $region28: #{bidaf_forward.14} parent=0 // pred_region
    _
  $region29: #{bidaf_forward.14} parent=0 // pred_fallthru
    _
  // Predicated region
  $region30: #{bidaf_forward.14} parent=0 // pred_check
    _
  $region31: #{bidaf_forward.14} parent=0 // pred_check_branch
    %30 = sbr.rel (0) target = $region33
  $region32: #{bidaf_forward.14} parent=0 // pred_region
    _
  $region33: #{bidaf_forward.14} parent=0 // pred_fallthru
    _
  // Predicated region
  $region34: #{bidaf_forward.14} parent=0 // pred_check
    _
  $region35: #{bidaf_forward.14} parent=0 // pred_check_branch
    %32 = sbr.rel (0) target = $region37
  $region36: #{bidaf_forward.14} parent=0 // pred_region
    _
  $region37: #{bidaf_forward.14} parent=0 // pred_fallthru
    _
  // Predicated region
  $region38: #{bidaf_forward.14} parent=0 // pred_check
    _
  $region39: #{bidaf_forward.14} parent=0 // pred_check_branch
    %34 = sbr.rel (0) target = $region41
  $region40: #{bidaf_forward.14} parent=0 // pred_region
    _
  $region41: #{bidaf_forward.14} parent=0 // pred_fallthru
    _
  %v35 = vld [vmem:[%s0] sm:$0xff]
  %v36 = vld [vmem:[%s0 + $0x8] sm:$0xff]
  %v37 = vld [vmem:[%s0 + $0x10] sm:$0xff]
  %v38 = vld [vmem:[%s1] sm:$0xff]
  %v39 = vld [vmem:[%s1 + $0x8] sm:$0xff]
  %vm40 = vcmask 195584
  %v42 = vsel %vm40, %v35, 0
  %v45 = vsel %vm40, %v36, 0
  %v48 = vsel %vm40, %v37, 0
  %v51 = vsel %vm40, %v38, 0
  %v54 = vsel %vm40, %v39, 0
  %56 = vmatprep.subr.mxu0 0.0
  %57 = vmatpush1.xpose.msra.mxu0 %v51
  %58 = vmatprep.subr.mxu0 0.0
  %59 = vmatpush1.xpose.msra.mxu0 %v54
  %60 = vmatprep.subr.mxu0 0.0
  %61 = vmatpush1.xpose.msra.mxu0 0.0
  %62 = vmatprep.subr.mxu0 0.0
  %63 = vmatpush1.xpose.msra.mxu0 0.0
  %64 = vmatprep.subr.mxu0 0.0
  %65 = vmatpush1.xpose.msra.mxu0 0.0
  %66 = vmatprep.subr.mxu0 0.0
  %67 = vmatpush1.xpose.msra.mxu0 0.0
  %68 = vmatprep.subr.mxu0 0.0
  %69 = vmatpush1.xpose.msra.mxu0 0.0
  %70 = vmatprep.subr.mxu0 0.0
  %71 = vmatpush1.xpose.msra.mxu0 0.0
  %72 = vmatprep.subr.mxu0 0.0
  %73 = vmatpush1.xpose.msra.mxu0 0.0
  %74 = vmatprep.subr.mxu0 0.0
  %75 = vmatpush1.xpose.msra.mxu0 0.0
  %76 = vmatprep.subr.mxu0 0.0
  %77 = vmatpush1.xpose.msra.mxu0 0.0
  %78 = vmatprep.subr.mxu0 0.0
  %79 = vmatpush1.xpose.msra.mxu0 0.0
  %80 = vmatprep.subr.mxu0 0.0
  %81 = vmatpush1.xpose.msra.mxu0 0.0
  %82 = vmatprep.subr.mxu0 0.0
  %83 = vmatpush1.xpose.msra.mxu0 0.0
  %84 = vmatprep.subr.mxu0 0.0
  %85 = vmatpush1.xpose.msra.mxu0 0.0
  %86 = vmatprep.subr.mxu0 0.0
  %87 = vmatpush1.xpose.msra.mxu0 0.0
  %88 = vmatprep.subr.mxu0 0.0
  %89 = vmatpush1.xpose.msra.mxu0 0.0
  %90 = vmatprep.subr.mxu0 0.0
  %91 = vmatpush1.xpose.msra.mxu0 0.0
  %92 = vmatprep.subr.mxu0 0.0
  %93 = vmatpush1.xpose.msra.mxu0 0.0
  %94 = vmatprep.subr.mxu0 0.0
  %95 = vmatpush1.xpose.msra.mxu0 0.0
  %96 = vmatprep.subr.mxu0 0.0
  %97 = vmatpush1.xpose.msra.mxu0 0.0
  %98 = vmatprep.subr.mxu0 0.0
  %99 = vmatpush1.xpose.msra.mxu0 0.0
  %100 = vmatprep.subr.mxu0 0.0
  %101 = vmatpush1.xpose.msra.mxu0 0.0
  %102 = vmatprep.subr.mxu0 0.0
  %103 = vmatpush1.xpose.msra.mxu0 0.0
  %104 = vmatprep.subr.mxu0 0.0
  %105 = vmatpush1.xpose.msra.mxu0 0.0
  %106 = vmatprep.subr.mxu0 0.0
  %107 = vmatpush1.xpose.msra.mxu0 0.0
  %108 = vmatprep.subr.mxu0 0.0
  %109 = vmatpush1.xpose.msra.mxu0 0.0
  %110 = vmatprep.subr.mxu0 0.0
  %111 = vmatpush1.xpose.msra.mxu0 0.0
  %112 = vmatprep.subr.mxu0 0.0
  %113 = vmatpush1.xpose.msra.mxu0 0.0
  %114 = vmatprep.subr.mxu0 0.0
  %115 = vmatpush1.xpose.msra.mxu0 0.0
  %116 = vmatprep.subr.mxu0 0.0
  %117 = vmatpush1.xpose.msra.mxu0 0.0
  %118 = vmatprep.subr.mxu0 0.0
  %119 = vmatpush1.xpose.msra.mxu0 0.0
  %120 = vmatprep.mubr.f32.mxu0 0.0
  %121 = vmatmul.mubr.f32.gmra.mrb[0].mxu0 %v42
  %v122 = vpop.f32.mrb[0].mxu0
  %v123 = vadd.f32 0.0, %v122
  %v124 = vpop.f32.mrb[0].mxu0
  %125 = vmatprep.mubr.f32.mxu0 0.0
  %126 = vmatmul.mubr.f32.gmra.mrb[0].mxu0 %v45
  %v127 = vpop.f32.mrb[0].mxu0
  %v128 = vadd.f32 0.0, %v127
  %v129 = vpop.f32.mrb[0].mxu0
  %130 = vmatprep.mubr.f32.mxu0 0.0
  %131 = vmatmul.mubr.f32.gmra.mrb[0].mxu0 %v48
  %v132 = vpop.f32.mrb[0].mxu0
  %v133 = vadd.f32 0.0, %v132
  %v134 = vpop.f32.mrb[0].mxu0
  %135 = vdwg.mxu0
  %v136 = vld [vmem:[%s2] sm:$0xff]
  %v137 = vld [vmem:[%s2 + $0x8] sm:$0xff]
  %v138 = vld [vmem:[%s3] sm:$0x1]
  %v140 = vlaneseq
  %v141 = vshrl.u32 %v140, 7
  %v142 = vsub.s32 0, %v141
  %v143 = vrot.slane %v138, %v142
  %vm145 = vcmask 130048
  %v147 = vsel %vm145, %v123, 0
  %v150 = vsel %vm145, %v128, 0
  %v153 = vsel %vm145, %v133, 0
  %v156 = vsel %vm145, %v136, 0
  %v159 = vsel %vm145, %v137, 0
  %161 = vmatprep.subr.mxu0 0.0
  %162 = vmatpush1.xpose.msra.mxu0 %v156
  %163 = vmatprep.subr.mxu0 0.0
  %164 = vmatpush1.xpose.msra.mxu0 %v159
  %165 = vmatprep.subr.mxu0 0.0
  %166 = vmatpush1.xpose.msra.mxu0 0.0
  %167 = vmatprep.subr.mxu0 0.0
  %168 = vmatpush1.xpose.msra.mxu0 0.0
  %169 = vmatprep.subr.mxu0 0.0
  %170 = vmatpush1.xpose.msra.mxu0 0.0
  %171 = vmatprep.subr.mxu0 0.0
  %172 = vmatpush1.xpose.msra.mxu0 0.0
  %173 = vmatprep.subr.mxu0 0.0
  %174 = vmatpush1.xpose.msra.mxu0 0.0
  %175 = vmatprep.subr.mxu0 0.0
  %176 = vmatpush1.xpose.msra.mxu0 0.0
  %177 = vmatprep.subr.mxu0 0.0
  %178 = vmatpush1.xpose.msra.mxu0 0.0
  %179 = vmatprep.subr.mxu0 0.0
  %180 = vmatpush1.xpose.msra.mxu0 0.0
  %181 = vmatprep.subr.mxu0 0.0
  %182 = vmatpush1.xpose.msra.mxu0 0.0
  %183 = vmatprep.subr.mxu0 0.0
  %184 = vmatpush1.xpose.msra.mxu0 0.0
  %185 = vmatprep.subr.mxu0 0.0
  %186 = vmatpush1.xpose.msra.mxu0 0.0
  %187 = vmatprep.subr.mxu0 0.0
  %188 = vmatpush1.xpose.msra.mxu0 0.0
  %189 = vmatprep.subr.mxu0 0.0
  %190 = vmatpush1.xpose.msra.mxu0 0.0
  %191 = vmatprep.subr.mxu0 0.0
  %192 = vmatpush1.xpose.msra.mxu0 0.0
  %193 = vmatprep.subr.mxu0 0.0
  %194 = vmatpush1.xpose.msra.mxu0 0.0
  %195 = vmatprep.subr.mxu0 0.0
  %196 = vmatpush1.xpose.msra.mxu0 0.0
  %197 = vmatprep.subr.mxu0 0.0
  %198 = vmatpush1.xpose.msra.mxu0 0.0
  %199 = vmatprep.subr.mxu0 0.0
  %200 = vmatpush1.xpose.msra.mxu0 0.0
  %201 = vmatprep.subr.mxu0 0.0
  %202 = vmatpush1.xpose.msra.mxu0 0.0
  %203 = vmatprep.subr.mxu0 0.0
  %204 = vmatpush1.xpose.msra.mxu0 0.0
  %205 = vmatprep.subr.mxu0 0.0
  %206 = vmatpush1.xpose.msra.mxu0 0.0
  %207 = vmatprep.subr.mxu0 0.0
  %208 = vmatpush1.xpose.msra.mxu0 0.0
  %209 = vmatprep.subr.mxu0 0.0
  %210 = vmatpush1.xpose.msra.mxu0 0.0
  %211 = vmatprep.subr.mxu0 0.0
  %212 = vmatpush1.xpose.msra.mxu0 0.0
  %213 = vmatprep.subr.mxu0 0.0
  %214 = vmatpush1.xpose.msra.mxu0 0.0
  %215 = vmatprep.subr.mxu0 0.0
  %216 = vmatpush1.xpose.msra.mxu0 0.0
  %217 = vmatprep.subr.mxu0 0.0
  %218 = vmatpush1.xpose.msra.mxu0 0.0
  %219 = vmatprep.subr.mxu0 0.0
  %220 = vmatpush1.xpose.msra.mxu0 0.0
  %221 = vmatprep.subr.mxu0 0.0
  %222 = vmatpush1.xpose.msra.mxu0 0.0
  %223 = vmatprep.subr.mxu0 0.0
  %224 = vmatpush1.xpose.msra.mxu0 0.0
  %225 = vmatprep.mubr.f32.mxu0 0.0
  %226 = vmatmul.mubr.f32.gmra.mrb[0].mxu0 %v147
  %v227 = vpop.f32.mrb[0].mxu0
  %v228 = vadd.f32 %v143, %v227
  %v229 = vpop.f32.mrb[0].mxu0
  %230 = vmatprep.mubr.f32.mxu0 0.0
  %231 = vmatmul.mubr.f32.gmra.mrb[0].mxu0 %v150
  %v232 = vpop.f32.mrb[0].mxu0
  %v233 = vadd.f32 %v143, %v232
  %v234 = vpop.f32.mrb[0].mxu0
  %235 = vmatprep.mubr.f32.mxu0 0.0
  %236 = vmatmul.mubr.f32.gmra.mrb[0].mxu0 %v153
  %v237 = vpop.f32.mrb[0].mxu0
  %v238 = vadd.f32 %v143, %v237
  %v239 = vpop.f32.mrb[0].mxu0
  %240 = vdwg.mxu0
  %v241 = vmax.f32 %v228, 0.0
  %v242 = vmax.f32 %v233, 0.0
  %v243 = vmax.f32 %v238, 0.0
  %v244 = vld [vmem:[%s4] sm:$0xff]
  %v245 = vld [vmem:[%s4 + $0x8] sm:$0xff]
  %v246 = vld [vmem:[%s5] sm:$0x1]
  %v248 = vlaneseq
  %v249 = vshrl.u32 %v248, 7
  %v250 = vsub.s32 0, %v249
  %v251 = vrot.slane %v246, %v250
  %v254 = vsel %vm145, %v244, 0
  %v257 = vsel %vm145, %v245, 0
  %259 = vmatprep.subr.mxu0 0.0
  %260 = vmatpush1.xpose.msra.mxu0 %v254
  %261 = vmatprep.subr.mxu0 0.0
  %262 = vmatpush1.xpose.msra.mxu0 %v257
  %263 = vmatprep.subr.mxu0 0.0
  %264 = vmatpush1.xpose.msra.mxu0 0.0
  %265 = vmatprep.subr.mxu0 0.0
  %266 = vmatpush1.xpose.msra.mxu0 0.0
  %267 = vmatprep.subr.mxu0 0.0
  %268 = vmatpush1.xpose.msra.mxu0 0.0
  %269 = vmatprep.subr.mxu0 0.0
  %270 = vmatpush1.xpose.msra.mxu0 0.0
  %271 = vmatprep.subr.mxu0 0.0
  %272 = vmatpush1.xpose.msra.mxu0 0.0
  %273 = vmatprep.subr.mxu0 0.0
  %274 = vmatpush1.xpose.msra.mxu0 0.0
  %275 = vmatprep.subr.mxu0 0.0
  %276 = vmatpush1.xpose.msra.mxu0 0.0
  %277 = vmatprep.subr.mxu0 0.0
  %278 = vmatpush1.xpose.msra.mxu0 0.0
  %279 = vmatprep.subr.mxu0 0.0
  %280 = vmatpush1.xpose.msra.mxu0 0.0
  %281 = vmatprep.subr.mxu0 0.0
  %282 = vmatpush1.xpose.msra.mxu0 0.0
  %283 = vmatprep.subr.mxu0 0.0
  %284 = vmatpush1.xpose.msra.mxu0 0.0
  %285 = vmatprep.subr.mxu0 0.0
  %286 = vmatpush1.xpose.msra.mxu0 0.0
  %287 = vmatprep.subr.mxu0 0.0
  %288 = vmatpush1.xpose.msra.mxu0 0.0
  %289 = vmatprep.subr.mxu0 0.0
  %290 = vmatpush1.xpose.msra.mxu0 0.0
  %291 = vmatprep.subr.mxu0 0.0
  %292 = vmatpush1.xpose.msra.mxu0 0.0
  %293 = vmatprep.subr.mxu0 0.0
  %294 = vmatpush1.xpose.msra.mxu0 0.0
  %295 = vmatprep.subr.mxu0 0.0
  %296 = vmatpush1.xpose.msra.mxu0 0.0
  %297 = vmatprep.subr.mxu0 0.0
  %298 = vmatpush1.xpose.msra.mxu0 0.0
  %299 = vmatprep.subr.mxu0 0.0
  %300 = vmatpush1.xpose.msra.mxu0 0.0
  %301 = vmatprep.subr.mxu0 0.0
  %302 = vmatpush1.xpose.msra.mxu0 0.0
  %303 = vmatprep.subr.mxu0 0.0
  %304 = vmatpush1.xpose.msra.mxu0 0.0
  %305 = vmatprep.subr.mxu0 0.0
  %306 = vmatpush1.xpose.msra.mxu0 0.0
  %307 = vmatprep.subr.mxu0 0.0
  %308 = vmatpush1.xpose.msra.mxu0 0.0
  %309 = vmatprep.subr.mxu0 0.0
  %310 = vmatpush1.xpose.msra.mxu0 0.0
  %311 = vmatprep.subr.mxu0 0.0
  %312 = vmatpush1.xpose.msra.mxu0 0.0
  %313 = vmatprep.subr.mxu0 0.0
  %314 = vmatpush1.xpose.msra.mxu0 0.0
  %315 = vmatprep.subr.mxu0 0.0
  %316 = vmatpush1.xpose.msra.mxu0 0.0
  %317 = vmatprep.subr.mxu0 0.0
  %318 = vmatpush1.xpose.msra.mxu0 0.0
  %319 = vmatprep.subr.mxu0 0.0
  %320 = vmatpush1.xpose.msra.mxu0 0.0
  %321 = vmatprep.subr.mxu0 0.0
  %322 = vmatpush1.xpose.msra.mxu0 0.0
  %323 = vmatprep.mubr.f32.mxu0 0.0
  %324 = vmatmul.mubr.f32.gmra.mrb[0].mxu0 %v147
  %v325 = vpop.f32.mrb[0].mxu0
  %v326 = vadd.f32 %v251, %v325
  %v327 = vpop.f32.mrb[0].mxu0
  %328 = vmatprep.mubr.f32.mxu0 0.0
  %329 = vmatmul.mubr.f32.gmra.mrb[0].mxu0 %v150
  %v330 = vpop.f32.mrb[0].mxu0
  %v331 = vadd.f32 %v251, %v330
  %v332 = vpop.f32.mrb[0].mxu0
  %333 = vmatprep.mubr.f32.mxu0 0.0
  %334 = vmatmul.mubr.f32.gmra.mrb[0].mxu0 %v153
  %v335 = vpop.f32.mrb[0].mxu0
  %v336 = vadd.f32 %v251, %v335
  %v337 = vpop.f32.mrb[0].mxu0
  %338 = vdwg.mxu0
  %v339 = vxor.u32 %v326, 2147483648
  %v340 = vxor.u32 %v331, 2147483648
  %v341 = vxor.u32 %v336, 2147483648
  %v342 = vmul.f32 %v339, 1.442695
  %v343 = vpow.pop %v342
  %v344 = vmul.f32 %v340, 1.442695
  %v345 = vpow.pop %v344
  %v346 = vmul.f32 %v341, 1.442695
  %v347 = vpow.pop %v346
  %v348 = vadd.f32 %v343, 1.0
  %v349 = vadd.f32 %v345, 1.0
  %v350 = vadd.f32 %v347, 1.0
  %v351 = vrcp.pop %v348
  %v352 = vmul.f32 1.0, %v351
  %v353 = vrcp.pop %v349
  %v354 = vmul.f32 1.0, %v353
  %v355 = vrcp.pop %v350
  %v356 = vmul.f32 1.0, %v355
  %v357 = vmul.f32 %v352, %v241
  %v358 = vmul.f32 %v354, %v242
  %v359 = vmul.f32 %v356, %v243
  %v360 = vsub.f32 1.0, %v352
  %v361 = vsub.f32 1.0, %v354
  %v362 = vsub.f32 1.0, %v356
  %v363 = vmul.f32 %v360, %v123
  %v364 = vmul.f32 %v361, %v128
  %v365 = vmul.f32 %v362, %v133
  %v366 = vadd.f32 %v357, %v363
  %v367 = vadd.f32 %v358, %v364
  %v368 = vadd.f32 %v359, %v365
  %v369 = vld [vmem:[%s6] sm:$0xff]
  %v370 = vld [vmem:[%s6 + $0x8] sm:$0xff]
  %v371 = vld [vmem:[%s7] sm:$0x1]
  %v373 = vlaneseq
  %v374 = vshrl.u32 %v373, 7
  %v375 = vsub.s32 0, %v374
  %v376 = vrot.slane %v371, %v375
  %v379 = vsel %vm145, %v366, 0
  %v382 = vsel %vm145, %v367, 0
  %v385 = vsel %vm145, %v368, 0
  %v388 = vsel %vm145, %v369, 0
  %v391 = vsel %vm145, %v370, 0
  %393 = vmatprep.subr.mxu0 0.0
  %394 = vmatpush1.xpose.msra.mxu0 %v388
  %395 = vmatprep.subr.mxu0 0.0
  %396 = vmatpush1.xpose.msra.mxu0 %v391
  %397 = vmatprep.subr.mxu0 0.0
  %398 = vmatpush1.xpose.msra.mxu0 0.0
  %399 = vmatprep.subr.mxu0 0.0
  %400 = vmatpush1.xpose.msra.mxu0 0.0
  %401 = vmatprep.subr.mxu0 0.0
  %402 = vmatpush1.xpose.msra.mxu0 0.0
  %403 = vmatprep.subr.mxu0 0.0
  %404 = vmatpush1.xpose.msra.mxu0 0.0
  %405 = vmatprep.subr.mxu0 0.0
  %406 = vmatpush1.xpose.msra.mxu0 0.0
  %407 = vmatprep.subr.mxu0 0.0
  %408 = vmatpush1.xpose.msra.mxu0 0.0
  %409 = vmatprep.subr.mxu0 0.0
  %410 = vmatpush1.xpose.msra.mxu0 0.0
  %411 = vmatprep.subr.mxu0 0.0
  %412 = vmatpush1.xpose.msra.mxu0 0.0
  %413 = vmatprep.subr.mxu0 0.0
  %414 = vmatpush1.xpose.msra.mxu0 0.0
  %415 = vmatprep.subr.mxu0 0.0
  %416 = vmatpush1.xpose.msra.mxu0 0.0
  %417 = vmatprep.subr.mxu0 0.0
  %418 = vmatpush1.xpose.msra.mxu0 0.0
  %419 = vmatprep.subr.mxu0 0.0
  %420 = vmatpush1.xpose.msra.mxu0 0.0
  %421 = vmatprep.subr.mxu0 0.0
  %422 = vmatpush1.xpose.msra.mxu0 0.0
  %423 = vmatprep.subr.mxu0 0.0
  %424 = vmatpush1.xpose.msra.mxu0 0.0
  %425 = vmatprep.subr.mxu0 0.0
  %426 = vmatpush1.xpose.msra.mxu0 0.0
  %427 = vmatprep.subr.mxu0 0.0
  %428 = vmatpush1.xpose.msra.mxu0 0.0
  %429 = vmatprep.subr.mxu0 0.0
  %430 = vmatpush1.xpose.msra.mxu0 0.0
  %431 = vmatprep.subr.mxu0 0.0
  %432 = vmatpush1.xpose.msra.mxu0 0.0
  %433 = vmatprep.subr.mxu0 0.0
  %434 = vmatpush1.xpose.msra.mxu0 0.0
  %435 = vmatprep.subr.mxu0 0.0
  %436 = vmatpush1.xpose.msra.mxu0 0.0
  %437 = vmatprep.subr.mxu0 0.0
  %438 = vmatpush1.xpose.msra.mxu0 0.0
  %439 = vmatprep.subr.mxu0 0.0
  %440 = vmatpush1.xpose.msra.mxu0 0.0
  %441 = vmatprep.subr.mxu0 0.0
  %442 = vmatpush1.xpose.msra.mxu0 0.0
  %443 = vmatprep.subr.mxu0 0.0
  %444 = vmatpush1.xpose.msra.mxu0 0.0
  %445 = vmatprep.subr.mxu0 0.0
  %446 = vmatpush1.xpose.msra.mxu0 0.0
  %447 = vmatprep.subr.mxu0 0.0
  %448 = vmatpush1.xpose.msra.mxu0 0.0
  %449 = vmatprep.subr.mxu0 0.0
  %450 = vmatpush1.xpose.msra.mxu0 0.0
  %451 = vmatprep.subr.mxu0 0.0
  %452 = vmatpush1.xpose.msra.mxu0 0.0
  %453 = vmatprep.subr.mxu0 0.0
  %454 = vmatpush1.xpose.msra.mxu0 0.0
  %455 = vmatprep.subr.mxu0 0.0
  %456 = vmatpush1.xpose.msra.mxu0 0.0
  %457 = vmatprep.mubr.f32.mxu0 0.0
  %458 = vmatmul.mubr.f32.gmra.mrb[0].mxu0 %v379
  %v459 = vpop.f32.mrb[0].mxu0
  %v460 = vadd.f32 %v376, %v459
  %v461 = vpop.f32.mrb[0].mxu0
  %462 = vmatprep.mubr.f32.mxu0 0.0
  %463 = vmatmul.mubr.f32.gmra.mrb[0].mxu0 %v382
  %v464 = vpop.f32.mrb[0].mxu0
  %v465 = vadd.f32 %v376, %v464
  %v466 = vpop.f32.mrb[0].mxu0
  %467 = vmatprep.mubr.f32.mxu0 0.0
  %468 = vmatmul.mubr.f32.gmra.mrb[0].mxu0 %v385
  %v469 = vpop.f32.mrb[0].mxu0
  %v470 = vadd.f32 %v376, %v469
  %v471 = vpop.f32.mrb[0].mxu0
  %472 = vdwg.mxu0
  %v473 = vmax.f32 %v460, 0.0
  %v474 = vmax.f32 %v465, 0.0
  %v475 = vmax.f32 %v470, 0.0
  %v476 = vld [vmem:[%s8] sm:$0xff]
  %v477 = vld [vmem:[%s8 + $0x8] sm:$0xff]
  %v478 = vld [vmem:[%s9] sm:$0x1]
  %v480 = vlaneseq
  %v481 = vshrl.u32 %v480, 7
  %v482 = vsub.s32 0, %v481
  %v483 = vrot.slane %v478, %v482
  %v486 = vsel %vm145, %v476, 0
  %v489 = vsel %vm145, %v477, 0
  %491 = vmatprep.subr.mxu0 0.0
  %492 = vmatpush1.xpose.msra.mxu0 %v486
  %493 = vmatprep.subr.mxu0 0.0
  %494 = vmatpush1.xpose.msra.mxu0 %v489
  %495 = vmatprep.subr.mxu0 0.0
  %496 = vmatpush1.xpose.msra.mxu0 0.0
  %497 = vmatprep.subr.mxu0 0.0
  %498 = vmatpush1.xpose.msra.mxu0 0.0
  %499 = vmatprep.subr.mxu0 0.0
  %500 = vmatpush1.xpose.msra.mxu0 0.0
  %501 = vmatprep.subr.mxu0 0.0
  %502 = vmatpush1.xpose.msra.mxu0 0.0
  %503 = vmatprep.subr.mxu0 0.0
  %504 = vmatpush1.xpose.msra.mxu0 0.0
  %505 = vmatprep.subr.mxu0 0.0
  %506 = vmatpush1.xpose.msra.mxu0 0.0
  %507 = vmatprep.subr.mxu0 0.0
  %508 = vmatpush1.xpose.msra.mxu0 0.0
  %509 = vmatprep.subr.mxu0 0.0
  %510 = vmatpush1.xpose.msra.mxu0 0.0
  %511 = vmatprep.subr.mxu0 0.0
  %512 = vmatpush1.xpose.msra.mxu0 0.0
  %513 = vmatprep.subr.mxu0 0.0
  %514 = vmatpush1.xpose.msra.mxu0 0.0
  %515 = vmatprep.subr.mxu0 0.0
  %516 = vmatpush1.xpose.msra.mxu0 0.0
  %517 = vmatprep.subr.mxu0 0.0
  %518 = vmatpush1.xpose.msra.mxu0 0.0
  %519 = vmatprep.subr.mxu0 0.0
  %520 = vmatpush1.xpose.msra.mxu0 0.0
  %521 = vmatprep.subr.mxu0 0.0
  %522 = vmatpush1.xpose.msra.mxu0 0.0
  %523 = vmatprep.subr.mxu0 0.0
  %524 = vmatpush1.xpose.msra.mxu0 0.0
  %525 = vmatprep.subr.mxu0 0.0
  %526 = vmatpush1.xpose.msra.mxu0 0.0
  %527 = vmatprep.subr.mxu0 0.0
  %528 = vmatpush1.xpose.msra.mxu0 0.0
  %529 = vmatprep.subr.mxu0 0.0
  %530 = vmatpush1.xpose.msra.mxu0 0.0
  %531 = vmatprep.subr.mxu0 0.0
  %532 = vmatpush1.xpose.msra.mxu0 0.0
  %533 = vmatprep.subr.mxu0 0.0
  %534 = vmatpush1.xpose.msra.mxu0 0.0
  %535 = vmatprep.subr.mxu0 0.0
  %536 = vmatpush1.xpose.msra.mxu0 0.0
  %537 = vmatprep.subr.mxu0 0.0
  %538 = vmatpush1.xpose.msra.mxu0 0.0
  %539 = vmatprep.subr.mxu0 0.0
  %540 = vmatpush1.xpose.msra.mxu0 0.0
  %541 = vmatprep.subr.mxu0 0.0
  %542 = vmatpush1.xpose.msra.mxu0 0.0
  %543 = vmatprep.subr.mxu0 0.0
  %544 = vmatpush1.xpose.msra.mxu0 0.0
  %545 = vmatprep.subr.mxu0 0.0
  %546 = vmatpush1.xpose.msra.mxu0 0.0
  %547 = vmatprep.subr.mxu0 0.0
  %548 = vmatpush1.xpose.msra.mxu0 0.0
  %549 = vmatprep.subr.mxu0 0.0
  %550 = vmatpush1.xpose.msra.mxu0 0.0
  %551 = vmatprep.subr.mxu0 0.0
  %552 = vmatpush1.xpose.msra.mxu0 0.0
  %553 = vmatprep.subr.mxu0 0.0
  %554 = vmatpush1.xpose.msra.mxu0 0.0
  %555 = vmatprep.mubr.f32.mxu0 0.0
  %556 = vmatmul.mubr.f32.gmra.mrb[0].mxu0 %v379
  %v557 = vpop.f32.mrb[0].mxu0
  %v558 = vadd.f32 %v483, %v557
  %v559 = vpop.f32.mrb[0].mxu0
  %560 = vmatprep.mubr.f32.mxu0 0.0
  %561 = vmatmul.mubr.f32.gmra.mrb[0].mxu0 %v382
  %v562 = vpop.f32.mrb[0].mxu0
  %v563 = vadd.f32 %v483, %v562
  %v564 = vpop.f32.mrb[0].mxu0
  %565 = vmatprep.mubr.f32.mxu0 0.0
  %566 = vmatmul.mubr.f32.gmra.mrb[0].mxu0 %v385
  %v567 = vpop.f32.mrb[0].mxu0
  %v568 = vadd.f32 %v483, %v567
  %v569 = vpop.f32.mrb[0].mxu0
  %570 = vdwg.mxu0
  %v571 = vxor.u32 %v558, 2147483648
  %v572 = vxor.u32 %v563, 2147483648
  %v573 = vxor.u32 %v568, 2147483648
  %v574 = vmul.f32 %v571, 1.442695
  %v575 = vpow.pop %v574
  %v576 = vmul.f32 %v572, 1.442695
  %v577 = vpow.pop %v576
  %v578 = vmul.f32 %v573, 1.442695
  %v579 = vpow.pop %v578
  %v580 = vadd.f32 %v575, 1.0
  %v581 = vadd.f32 %v577, 1.0
  %v582 = vadd.f32 %v579, 1.0
  %v583 = vrcp.pop %v580
  %v584 = vmul.f32 1.0, %v583
  %v585 = vrcp.pop %v581
  %v586 = vmul.f32 1.0, %v585
  %v587 = vrcp.pop %v582
  %v588 = vmul.f32 1.0, %v587
  %v589 = vmul.f32 %v584, %v473
  %v590 = vmul.f32 %v586, %v474
  %v591 = vmul.f32 %v588, %v475
  %v592 = vsub.f32 1.0, %v584
  %v593 = vsub.f32 1.0, %v586
  %v594 = vsub.f32 1.0, %v588
  %v595 = vmul.f32 %v592, %v366
  %v596 = vmul.f32 %v593, %v367
  %v597 = vmul.f32 %v594, %v368
  %v598 = vadd.f32 %v589, %v595
  %v599 = vadd.f32 %v590, %v596
  %v600 = vadd.f32 %v591, %v597
  %601 = vst.msk [vmem:[%s10] sm:$0xff] %vm145, %v598
  %602 = vst.msk [vmem:[%s10 + $0x8] sm:$0xff] %vm145, %v599
  %603 = vst.msk [vmem:[%s10 + $0x10] sm:$0xff] %vm145, %v600
  // Predicated region
  $region42: #{bidaf_forward.14} parent=0 // pred_check
    _
  $region43: #{bidaf_forward.14} parent=0 // pred_check_branch
    %605 = sbr.rel (0) target = $region45
  $region44: #{bidaf_forward.14} parent=0 // pred_region
    _
  $region45: #{bidaf_forward.14} parent=0 // pred_fallthru
    _
  // Predicated region
  $region46: #{bidaf_forward.14} parent=0 // pred_check
    _
  $region47: #{bidaf_forward.14} parent=0 // pred_check_branch
    %607 = sbr.rel (0) target = $region49
  $region48: #{bidaf_forward.14} parent=0 // pred_region
    _
  $region49: #{bidaf_forward.14} parent=0 // pred_fallthru
    _

// kernel: bidaf_forward.16
$region0: #{bidaf_forward.16}
  #allocation0 [shape = 'u32[]', space=smem, size = 0x4, offset = 0x4, fixed_abs, tag = 'smem constant byte address 0x4 - core index']
  #allocation1 [shape = 'u32[144,128]{1,0:T(1,128)}', space=vmem, size = 0x12000, scoped, tag = 'internal scratch']
  %s0 = inlined_call_operand.vmem [shape: f32[24,16], index: 0, kind: input, shape index: {}]
  %s1 = inlined_call_operand.vmem [shape: f32[128,16], index: 1, kind: input, shape index: {}]
  %s2 = inlined_call_operand.vmem [shape: f32[1,128], index: 2, kind: input, shape index: {}]
  %s3 = inlined_call_operand.vmem [shape: f32[24,128], index: 3, kind: output, shape index: {}]
  %s4 = sld [smem:[#allocation0]]
  $region22: #{bidaf_forward.16} parent=0
    _
  %s6 = ssub.s32 1, %s4
  %s7 = scalar_select 0, %s6, %s4
  // Predicated region
  $region2: #{bidaf_forward.16} parent=0 // pred_check
    _
  $region3: #{bidaf_forward.16} parent=0 // pred_check_branch
    %9 = sbr.rel (0) target = $region5
  $region4: #{bidaf_forward.16} parent=0 // pred_region
    _
  $region5: #{bidaf_forward.16} parent=0 // pred_fallthru
    _
  // Predicated region
  $region6: #{bidaf_forward.16} parent=0 // pred_check
    _
  $region7: #{bidaf_forward.16} parent=0 // pred_check_branch
    %11 = sbr.rel (0) target = $region9
  $region8: #{bidaf_forward.16} parent=0 // pred_region
    _
  $region9: #{bidaf_forward.16} parent=0 // pred_fallthru
    _
  // Predicated region
  $region10: #{bidaf_forward.16} parent=0 // pred_check
    _
  $region11: #{bidaf_forward.16} parent=0 // pred_check_branch
    %13 = sbr.rel (0) target = $region13
  $region12: #{bidaf_forward.16} parent=0 // pred_region
    _
  $region13: #{bidaf_forward.16} parent=0 // pred_fallthru
    _
  %v14 = vld [vmem:[%s0] sm:$0xff]
  %v15 = vld [vmem:[%s0 + $0x8] sm:$0xff]
  %v16 = vld [vmem:[%s0 + $0x10] sm:$0xff]
  %v17 = vld [vmem:[%s1] sm:$0xff]
  %v18 = vld [vmem:[%s1 + $0x8] sm:$0xff]
  %v19 = vld [vmem:[%s1 + $0x10] sm:$0xff]
  %v20 = vld [vmem:[%s1 + $0x18] sm:$0xff]
  %v21 = vld [vmem:[%s1 + $0x20] sm:$0xff]
  %v22 = vld [vmem:[%s1 + $0x28] sm:$0xff]
  %v23 = vld [vmem:[%s1 + $0x30] sm:$0xff]
  %v24 = vld [vmem:[%s1 + $0x38] sm:$0xff]
  %v25 = vld [vmem:[%s1 + $0x40] sm:$0xff]
  %v26 = vld [vmem:[%s1 + $0x48] sm:$0xff]
  %v27 = vld [vmem:[%s1 + $0x50] sm:$0xff]
  %v28 = vld [vmem:[%s1 + $0x58] sm:$0xff]
  %v29 = vld [vmem:[%s1 + $0x60] sm:$0xff]
  %v30 = vld [vmem:[%s1 + $0x68] sm:$0xff]
  %v31 = vld [vmem:[%s1 + $0x70] sm:$0xff]
  %v32 = vld [vmem:[%s1 + $0x78] sm:$0xff]
  %v33 = vld [vmem:[%s2] sm:$0x1]
  %v35 = vlaneseq
  %v36 = vshrl.u32 %v35, 7
  %v37 = vsub.s32 0, %v36
  %v38 = vrot.slane %v33, %v37
  %vm40 = vcmask 130048
  %v42 = vsel %vm40, %v14, 0
  %v45 = vsel %vm40, %v15, 0
  %v48 = vsel %vm40, %v16, 0
  %v51 = vsel %vm40, %v17, 0
  %v54 = vsel %vm40, %v18, 0
  %v57 = vsel %vm40, %v19, 0
  %v60 = vsel %vm40, %v20, 0
  %v63 = vsel %vm40, %v21, 0
  %v66 = vsel %vm40, %v22, 0
  %v69 = vsel %vm40, %v23, 0
  %v72 = vsel %vm40, %v24, 0
  %v75 = vsel %vm40, %v25, 0
  %v78 = vsel %vm40, %v26, 0
  %v81 = vsel %vm40, %v27, 0
  %v84 = vsel %vm40, %v28, 0
  %v87 = vsel %vm40, %v29, 0
  %v90 = vsel %vm40, %v30, 0
  %v93 = vsel %vm40, %v31, 0
  %v96 = vsel %vm40, %v32, 0
  %98 = vmatprep.subr.mxu0 0.0
  %99 = vmatpush1.xpose.msra.mxu0 %v51
  %100 = vmatprep.subr.mxu0 0.0
  %101 = vmatpush1.xpose.msra.mxu0 %v54
  %102 = vmatprep.subr.mxu0 0.0
  %103 = vmatpush1.xpose.msra.mxu0 %v57
  %104 = vmatprep.subr.mxu0 0.0
  %105 = vmatpush1.xpose.msra.mxu0 %v60
  %106 = vmatprep.subr.mxu0 0.0
  %107 = vmatpush1.xpose.msra.mxu0 %v63
  %108 = vmatprep.subr.mxu0 0.0
  %109 = vmatpush1.xpose.msra.mxu0 %v66
  %110 = vmatprep.subr.mxu0 0.0
  %111 = vmatpush1.xpose.msra.mxu0 %v69
  %112 = vmatprep.subr.mxu0 0.0
  %113 = vmatpush1.xpose.msra.mxu0 %v72
  %114 = vmatprep.subr.mxu0 0.0
  %115 = vmatpush1.xpose.msra.mxu0 %v75
  %116 = vmatprep.subr.mxu0 0.0
  %117 = vmatpush1.xpose.msra.mxu0 %v78
  %118 = vmatprep.subr.mxu0 0.0
  %119 = vmatpush1.xpose.msra.mxu0 %v81
  %120 = vmatprep.subr.mxu0 0.0
  %121 = vmatpush1.xpose.msra.mxu0 %v84
  %122 = vmatprep.subr.mxu0 0.0
  %123 = vmatpush1.xpose.msra.mxu0 %v87
  %124 = vmatprep.subr.mxu0 0.0
  %125 = vmatpush1.xpose.msra.mxu0 %v90
  %126 = vmatprep.subr.mxu0 0.0
  %127 = vmatpush1.xpose.msra.mxu0 %v93
  %128 = vmatprep.subr.mxu0 0.0
  %129 = vmatpush1.xpose.msra.mxu0 %v96
  %130 = vmatprep.subr.mxu0 0.0
  %131 = vmatpush1.xpose.msra.mxu0 0.0
  %132 = vmatprep.subr.mxu0 0.0
  %133 = vmatpush1.xpose.msra.mxu0 0.0
  %134 = vmatprep.subr.mxu0 0.0
  %135 = vmatpush1.xpose.msra.mxu0 0.0
  %136 = vmatprep.subr.mxu0 0.0
  %137 = vmatpush1.xpose.msra.mxu0 0.0
  %138 = vmatprep.subr.mxu0 0.0
  %139 = vmatpush1.xpose.msra.mxu0 0.0
  %140 = vmatprep.subr.mxu0 0.0
  %141 = vmatpush1.xpose.msra.mxu0 0.0
  %142 = vmatprep.subr.mxu0 0.0
  %143 = vmatpush1.xpose.msra.mxu0 0.0
  %144 = vmatprep.subr.mxu0 0.0
  %145 = vmatpush1.xpose.msra.mxu0 0.0
  %146 = vmatprep.subr.mxu0 0.0
  %147 = vmatpush1.xpose.msra.mxu0 0.0
  %148 = vmatprep.subr.mxu0 0.0
  %149 = vmatpush1.xpose.msra.mxu0 0.0
  %150 = vmatprep.subr.mxu0 0.0
  %151 = vmatpush1.xpose.msra.mxu0 0.0
  %152 = vmatprep.subr.mxu0 0.0
  %153 = vmatpush1.xpose.msra.mxu0 0.0
  %154 = vmatprep.subr.mxu0 0.0
  %155 = vmatpush1.xpose.msra.mxu0 0.0
  %156 = vmatprep.subr.mxu0 0.0
  %157 = vmatpush1.xpose.msra.mxu0 0.0
  %158 = vmatprep.subr.mxu0 0.0
  %159 = vmatpush1.xpose.msra.mxu0 0.0
  %160 = vmatprep.subr.mxu0 0.0
  %161 = vmatpush1.xpose.msra.mxu0 0.0
  %162 = vmatprep.mubr.f32.mxu0 0.0
  %163 = vmatmul.mubr.f32.gmra.mrb[0].mxu0 %v42
  %v164 = vpop.f32.mrb[0].mxu0
  %v165 = vadd.f32 %v38, %v164
  %v166 = vpop.f32.mrb[0].mxu0
  %167 = vmatprep.mubr.f32.mxu0 0.0
  %168 = vmatmul.mubr.f32.gmra.mrb[0].mxu0 %v45
  %v169 = vpop.f32.mrb[0].mxu0
  %v170 = vadd.f32 %v38, %v169
  %v171 = vpop.f32.mrb[0].mxu0
  %172 = vmatprep.mubr.f32.mxu0 0.0
  %173 = vmatmul.mubr.f32.gmra.mrb[0].mxu0 %v48
  %v174 = vpop.f32.mrb[0].mxu0
  %v175 = vadd.f32 %v38, %v174
  %v176 = vpop.f32.mrb[0].mxu0
  %177 = vdwg.mxu0
  %178 = vst [vmem:[%s3] sm:$0xff] %v165
  %179 = vst [vmem:[%s3 + $0x8] sm:$0xff] %v170
  %180 = vst [vmem:[%s3 + $0x10] sm:$0xff] %v175
  // Predicated region
  $region14: #{bidaf_forward.16} parent=0 // pred_check
    _
  $region15: #{bidaf_forward.16} parent=0 // pred_check_branch
    %182 = sbr.rel (0) target = $region17
  $region16: #{bidaf_forward.16} parent=0 // pred_region
    _
  $region17: #{bidaf_forward.16} parent=0 // pred_fallthru
    _
  // Predicated region
  $region18: #{bidaf_forward.16} parent=0 // pred_check
    _
  $region19: #{bidaf_forward.16} parent=0 // pred_check_branch
    %184 = sbr.rel (0) target = $region21
  $region20: #{bidaf_forward.16} parent=0 // pred_region
    _
  $region21: #{bidaf_forward.16} parent=0 // pred_fallthru
    _

// kernel: bidaf_forward.21
$region0: #{bidaf_forward.21}
  #allocation0 [shape = 'u32[]', space=smem, size = 0x4, offset = 0x4, fixed_abs, tag = 'smem constant byte address 0x4 - core index']
  #allocation1 [shape = 'u32[144,128]{1,0:T(1,128)}', space=vmem, size = 0x12000, scoped, tag = 'internal scratch']
  %s0 = inlined_call_operand.vmem [shape: f32[24,128], index: 0, kind: input, shape index: {}]
  %s1 = inlined_call_operand.vmem [shape: f32[128,128], index: 1, kind: input, shape index: {}]
  %s2 = inlined_call_operand.vmem [shape: f32[1,128], index: 2, kind: input, shape index: {}]
  %s3 = inlined_call_operand.vmem [shape: f32[24,128], index: 3, kind: output, shape index: {}]
  %s4 = sld [smem:[#allocation0]]
  $region22: #{bidaf_forward.21} parent=0
    _
  %s6 = ssub.s32 1, %s4
  %s7 = scalar_select 0, %s6, %s4
  // Predicated region
  $region2: #{bidaf_forward.21} parent=0 // pred_check
    _
  $region3: #{bidaf_forward.21} parent=0 // pred_check_branch
    %9 = sbr.rel (0) target = $region5
  $region4: #{bidaf_forward.21} parent=0 // pred_region
    _
  $region5: #{bidaf_forward.21} parent=0 // pred_fallthru
    _
  // Predicated region
  $region6: #{bidaf_forward.21} parent=0 // pred_check
    _
  $region7: #{bidaf_forward.21} parent=0 // pred_check_branch
    %11 = sbr.rel (0) target = $region9
  $region8: #{bidaf_forward.21} parent=0 // pred_region
    _
  $region9: #{bidaf_forward.21} parent=0 // pred_fallthru
    _
  // Predicated region
  $region10: #{bidaf_forward.21} parent=0 // pred_check
    _
  $region11: #{bidaf_forward.21} parent=0 // pred_check_branch
    %13 = sbr.rel (0) target = $region13
  $region12: #{bidaf_forward.21} parent=0 // pred_region
    _
  $region13: #{bidaf_forward.21} parent=0 // pred_fallthru
    _
  %v14 = vld [vmem:[%s0] sm:$0xff]
  %v15 = vld [vmem:[%s0 + $0x8] sm:$0xff]
  %v16 = vld [vmem:[%s0 + $0x10] sm:$0xff]
  %v17 = vld [vmem:[%s1] sm:$0xff]
  %v18 = vld [vmem:[%s1 + $0x8] sm:$0xff]
  %v19 = vld [vmem:[%s1 + $0x10] sm:$0xff]
  %v20 = vld [vmem:[%s1 + $0x18] sm:$0xff]
  %v21 = vld [vmem:[%s1 + $0x20] sm:$0xff]
  %v22 = vld [vmem:[%s1 + $0x28] sm:$0xff]
  %v23 = vld [vmem:[%s1 + $0x30] sm:$0xff]
  %v24 = vld [vmem:[%s1 + $0x38] sm:$0xff]
  %v25 = vld [vmem:[%s1 + $0x40] sm:$0xff]
  %v26 = vld [vmem:[%s1 + $0x48] sm:$0xff]
  %v27 = vld [vmem:[%s1 + $0x50] sm:$0xff]
  %v28 = vld [vmem:[%s1 + $0x58] sm:$0xff]
  %v29 = vld [vmem:[%s1 + $0x60] sm:$0xff]
  %v30 = vld [vmem:[%s1 + $0x68] sm:$0xff]
  %v31 = vld [vmem:[%s1 + $0x70] sm:$0xff]
  %v32 = vld [vmem:[%s1 + $0x78] sm:$0xff]
  %v33 = vld [vmem:[%s2] sm:$0x1]
  %v35 = vlaneseq
  %v36 = vshrl.u32 %v35, 7
  %v37 = vsub.s32 0, %v36
  %v38 = vrot.slane %v33, %v37
  %40 = vmatprep.subr.mxu0 0.0
  %41 = vmatpush1.xpose.msra.mxu0 %v17
  %42 = vmatprep.subr.mxu0 0.0
  %43 = vmatpush1.xpose.msra.mxu0 %v18
  %44 = vmatprep.subr.mxu0 0.0
  %45 = vmatpush1.xpose.msra.mxu0 %v19
  %46 = vmatprep.subr.mxu0 0.0
  %47 = vmatpush1.xpose.msra.mxu0 %v20
  %48 = vmatprep.subr.mxu0 0.0
  %49 = vmatpush1.xpose.msra.mxu0 %v21
  %50 = vmatprep.subr.mxu0 0.0
  %51 = vmatpush1.xpose.msra.mxu0 %v22
  %52 = vmatprep.subr.mxu0 0.0
  %53 = vmatpush1.xpose.msra.mxu0 %v23
  %54 = vmatprep.subr.mxu0 0.0
  %55 = vmatpush1.xpose.msra.mxu0 %v24
  %56 = vmatprep.subr.mxu0 0.0
  %57 = vmatpush1.xpose.msra.mxu0 %v25
  %58 = vmatprep.subr.mxu0 0.0
  %59 = vmatpush1.xpose.msra.mxu0 %v26
  %60 = vmatprep.subr.mxu0 0.0
  %61 = vmatpush1.xpose.msra.mxu0 %v27
  %62 = vmatprep.subr.mxu0 0.0
  %63 = vmatpush1.xpose.msra.mxu0 %v28
  %64 = vmatprep.subr.mxu0 0.0
  %65 = vmatpush1.xpose.msra.mxu0 %v29
  %66 = vmatprep.subr.mxu0 0.0
  %67 = vmatpush1.xpose.msra.mxu0 %v30
  %68 = vmatprep.subr.mxu0 0.0
  %69 = vmatpush1.xpose.msra.mxu0 %v31
  %70 = vmatprep.subr.mxu0 0.0
  %71 = vmatpush1.xpose.msra.mxu0 %v32
  %72 = vmatprep.subr.mxu0 0.0
  %73 = vmatpush1.xpose.msra.mxu0 0.0
  %74 = vmatprep.subr.mxu0 0.0
  %75 = vmatpush1.xpose.msra.mxu0 0.0
  %76 = vmatprep.subr.mxu0 0.0
  %77 = vmatpush1.xpose.msra.mxu0 0.0
  %78 = vmatprep.subr.mxu0 0.0
  %79 = vmatpush1.xpose.msra.mxu0 0.0
  %80 = vmatprep.subr.mxu0 0.0
  %81 = vmatpush1.xpose.msra.mxu0 0.0
  %82 = vmatprep.subr.mxu0 0.0
  %83 = vmatpush1.xpose.msra.mxu0 0.0
  %84 = vmatprep.subr.mxu0 0.0
  %85 = vmatpush1.xpose.msra.mxu0 0.0
  %86 = vmatprep.subr.mxu0 0.0
  %87 = vmatpush1.xpose.msra.mxu0 0.0
  %88 = vmatprep.subr.mxu0 0.0
  %89 = vmatpush1.xpose.msra.mxu0 0.0
  %90 = vmatprep.subr.mxu0 0.0
  %91 = vmatpush1.xpose.msra.mxu0 0.0
  %92 = vmatprep.subr.mxu0 0.0
  %93 = vmatpush1.xpose.msra.mxu0 0.0
  %94 = vmatprep.subr.mxu0 0.0
  %95 = vmatpush1.xpose.msra.mxu0 0.0
  %96 = vmatprep.subr.mxu0 0.0
  %97 = vmatpush1.xpose.msra.mxu0 0.0
  %98 = vmatprep.subr.mxu0 0.0
  %99 = vmatpush1.xpose.msra.mxu0 0.0
  %100 = vmatprep.subr.mxu0 0.0
  %101 = vmatpush1.xpose.msra.mxu0 0.0
  %102 = vmatprep.subr.mxu0 0.0
  %103 = vmatpush1.xpose.msra.mxu0 0.0
  %104 = vmatprep.mubr.f32.mxu0 0.0
  %105 = vmatmul.mubr.f32.gmra.mrb[0].mxu0 %v14
  %v106 = vpop.f32.mrb[0].mxu0
  %v107 = vadd.f32 %v38, %v106
  %v108 = vpop.f32.mrb[0].mxu0
  %109 = vmatprep.mubr.f32.mxu0 0.0
  %110 = vmatmul.mubr.f32.gmra.mrb[0].mxu0 %v15
  %v111 = vpop.f32.mrb[0].mxu0
  %v112 = vadd.f32 %v38, %v111
  %v113 = vpop.f32.mrb[0].mxu0
  %114 = vmatprep.mubr.f32.mxu0 0.0
  %115 = vmatmul.mubr.f32.gmra.mrb[0].mxu0 %v16
  %v116 = vpop.f32.mrb[0].mxu0
  %v117 = vadd.f32 %v38, %v116
  %v118 = vpop.f32.mrb[0].mxu0
  %119 = vdwg.mxu0
  %120 = vst [vmem:[%s3] sm:$0xff] %v107
  %121 = vst [vmem:[%s3 + $0x8] sm:$0xff] %v112
  %122 = vst [vmem:[%s3 + $0x10] sm:$0xff] %v117
  // Predicated region
  $region14: #{bidaf_forward.21} parent=0 // pred_check
    _
  $region15: #{bidaf_forward.21} parent=0 // pred_check_branch
    %124 = sbr.rel (0) target = $region17
  $region16: #{bidaf_forward.21} parent=0 // pred_region
    _
  $region17: #{bidaf_forward.21} parent=0 // pred_fallthru
    _
  // Predicated region
  $region18: #{bidaf_forward.21} parent=0 // pred_check
    _
  $region19: #{bidaf_forward.21} parent=0 // pred_check_branch
    %126 = sbr.rel (0) target = $region21
  $region20: #{bidaf_forward.21} parent=0 // pred_region
    _
  $region21: #{bidaf_forward.21} parent=0 // pred_fallthru
    _

// kernel: bidaf_forward.17
$region0: #{bidaf_forward.17}
  #allocation0 [shape = 'u32[]', space=smem, size = 0x4, offset = 0x4, fixed_abs, tag = 'smem constant byte address 0x4 - core index']
  #allocation1 [shape = 'u32[144,128]{1,0:T(1,128)}', space=vmem, size = 0x12000, scoped, tag = 'internal scratch']
  %s0 = inlined_call_operand.vmem [shape: f32[12,2,128], index: 0, kind: input, shape index: {}]
  %s1 = inlined_call_operand.vmem [shape: f32[12,2,1], index: 1, kind: input, shape index: {}]
  %s2 = inlined_call_operand.vmem [shape: f32[64,16], index: 2, kind: input, shape index: {}]
  %s3 = inlined_call_operand.vmem [shape: f32[64,16], index: 3, kind: input, shape index: {}]
  %s4 = inlined_call_operand.vmem [shape: f32[12,2,16], index: 4, kind: output, shape index: {0}]
  %s5 = inlined_call_operand.vmem [shape: f32[12,2,16], index: 5, kind: output, shape index: {1}]
  %6 = xla_tuple %s4, %s5
  %s7 = sld [smem:[#allocation0]]
  $region41: #{bidaf_forward.17} parent=0
    _
  %s9 = ssub.s32 1, %s7
  %s10 = scalar_select 0, %s9, %s7
  // Predicated region
  $region2: #{bidaf_forward.17} parent=0 // pred_check
    _
  $region3: #{bidaf_forward.17} parent=0 // pred_check_branch
    %12 = sbr.rel (0) target = $region5
  $region4: #{bidaf_forward.17} parent=0 // pred_region
    _
  $region5: #{bidaf_forward.17} parent=0 // pred_fallthru
    _
  // Predicated region
  $region6: #{bidaf_forward.17} parent=0 // pred_check
    _
  $region7: #{bidaf_forward.17} parent=0 // pred_check_branch
    %14 = sbr.rel (0) target = $region9
  $region8: #{bidaf_forward.17} parent=0 // pred_region
    _
  $region9: #{bidaf_forward.17} parent=0 // pred_fallthru
    _
  // Predicated region
  $region10: #{bidaf_forward.17} parent=0 // pred_check
    _
  $region11: #{bidaf_forward.17} parent=0 // pred_check_branch
    %16 = sbr.rel (0) target = $region13
  $region12: #{bidaf_forward.17} parent=0 // pred_region
    _
  $region13: #{bidaf_forward.17} parent=0 // pred_fallthru
    _
  // Predicated region
  $region14: #{bidaf_forward.17} parent=0 // pred_check
    _
  $region15: #{bidaf_forward.17} parent=0 // pred_check_branch
    %18 = sbr.rel (0) target = $region17
  $region16: #{bidaf_forward.17} parent=0 // pred_region
    _
  $region17: #{bidaf_forward.17} parent=0 // pred_fallthru
    _
  %v19 = vld [vmem:[%s2] sm:$0xff]
  %v20 = vld [vmem:[%s2 + $0x8] sm:$0xff]
  %v21 = vld [vmem:[%s2 + $0x10] sm:$0xff]
  %v22 = vld [vmem:[%s2 + $0x18] sm:$0xff]
  %v23 = vld [vmem:[%s2 + $0x20] sm:$0xff]
  %v24 = vld [vmem:[%s2 + $0x28] sm:$0xff]
  %v25 = vld [vmem:[%s2 + $0x30] sm:$0xff]
  %v26 = vld [vmem:[%s2 + $0x38] sm:$0xff]
  %v27 = vld [vmem:[%s3] sm:$0xff]
  %v28 = vld [vmem:[%s3 + $0x8] sm:$0xff]
  %v29 = vld [vmem:[%s3 + $0x10] sm:$0xff]
  %v30 = vld [vmem:[%s3 + $0x18] sm:$0xff]
  %v31 = vld [vmem:[%s3 + $0x20] sm:$0xff]
  %v32 = vld [vmem:[%s3 + $0x28] sm:$0xff]
  %v33 = vld [vmem:[%s3 + $0x30] sm:$0xff]
  %v34 = vld [vmem:[%s3 + $0x38] sm:$0xff]
  loop: start=0, step=1, limit=6
  $region18: #{bidaf_forward.17} parent=0 // loop_pre_header
    _
  $region19: #{bidaf_forward.17} parent=0 // loop_header
    %s36 = sphi 0, %s40
    %p37 = scmp.ge.s32.totalorder %s36, 6
    %v41 = vphi 0.0, %v476
    %v42 = vphi 0.0, %v479
    %v43 = vphi 0.0, %v609
    %v44 = vphi 0.0, %v612
  $region20: #{bidaf_forward.17} parent=0 // loop_header_branch
    %39 = sbr.rel (%p37) target = $region24
  $region21: #{bidaf_forward.17} parent=0 // loop_body
    %s45 = smul.u32 %s36, 2
    %s46 = smul.u32 %s45, 2
    %s47 = scalar_lea.vmem %s0, %s46
    %v48 = vld [vmem:[%s47] sm:$0x3]
    %s49 = scalar_lea.vmem %s1, %s46
    %v50 = vld [vmem:[%s49] sm:$0x3]
    %52 = vrot.lane.b32.xlu0 %v41, 80
    %v53 = vpop.permute.xlu0 %52
    %vm54 = vcmask 130048
    %v55 = vsel %vm54, %v53, 0
    %v58 = vsel %vm54, %v19, 0
    %v61 = vsel %vm54, %v20, 0
    %v64 = vsel %vm54, %v21, 0
    %v67 = vsel %vm54, %v22, 0
    %v70 = vsel %vm54, %v23, 0
    %v73 = vsel %vm54, %v24, 0
    %v76 = vsel %vm54, %v25, 0
    %v79 = vsel %vm54, %v26, 0
    %81 = vmatprep.subr.mxu0 0.0
    %82 = vmatpush1.xpose.msra.mxu0 %v58
    %83 = vmatprep.subr.mxu0 0.0
    %84 = vmatpush1.xpose.msra.mxu0 %v61
    %85 = vmatprep.subr.mxu0 0.0
    %86 = vmatpush1.xpose.msra.mxu0 %v64
    %87 = vmatprep.subr.mxu0 0.0
    %88 = vmatpush1.xpose.msra.mxu0 %v67
    %89 = vmatprep.subr.mxu0 0.0
    %90 = vmatpush1.xpose.msra.mxu0 %v70
    %91 = vmatprep.subr.mxu0 0.0
    %92 = vmatpush1.xpose.msra.mxu0 %v73
    %93 = vmatprep.subr.mxu0 0.0
    %94 = vmatpush1.xpose.msra.mxu0 %v76
    %95 = vmatprep.subr.mxu0 0.0
    %96 = vmatpush1.xpose.msra.mxu0 %v79
    %97 = vmatprep.subr.mxu0 0.0
    %98 = vmatpush1.xpose.msra.mxu0 0.0
    %99 = vmatprep.subr.mxu0 0.0
    %100 = vmatpush1.xpose.msra.mxu0 0.0
    %101 = vmatprep.subr.mxu0 0.0
    %102 = vmatpush1.xpose.msra.mxu0 0.0
    %103 = vmatprep.subr.mxu0 0.0
    %104 = vmatpush1.xpose.msra.mxu0 0.0
    %105 = vmatprep.subr.mxu0 0.0
    %106 = vmatpush1.xpose.msra.mxu0 0.0
    %107 = vmatprep.subr.mxu0 0.0
    %108 = vmatpush1.xpose.msra.mxu0 0.0
    %109 = vmatprep.subr.mxu0 0.0
    %110 = vmatpush1.xpose.msra.mxu0 0.0
    %111 = vmatprep.subr.mxu0 0.0
    %112 = vmatpush1.xpose.msra.mxu0 0.0
    %113 = vmatprep.subr.mxu0 0.0
    %114 = vmatpush1.xpose.msra.mxu0 0.0
    %115 = vmatprep.subr.mxu0 0.0
    %116 = vmatpush1.xpose.msra.mxu0 0.0
    %117 = vmatprep.subr.mxu0 0.0
    %118 = vmatpush1.xpose.msra.mxu0 0.0
    %119 = vmatprep.subr.mxu0 0.0
    %120 = vmatpush1.xpose.msra.mxu0 0.0
    %121 = vmatprep.subr.mxu0 0.0
    %122 = vmatpush1.xpose.msra.mxu0 0.0
    %123 = vmatprep.subr.mxu0 0.0
    %124 = vmatpush1.xpose.msra.mxu0 0.0
    %125 = vmatprep.subr.mxu0 0.0
    %126 = vmatpush1.xpose.msra.mxu0 0.0
    %127 = vmatprep.subr.mxu0 0.0
    %128 = vmatpush1.xpose.msra.mxu0 0.0
    %129 = vmatprep.subr.mxu0 0.0
    %130 = vmatpush1.xpose.msra.mxu0 0.0
    %131 = vmatprep.subr.mxu0 0.0
    %132 = vmatpush1.xpose.msra.mxu0 0.0
    %133 = vmatprep.subr.mxu0 0.0
    %134 = vmatpush1.xpose.msra.mxu0 0.0
    %135 = vmatprep.subr.mxu0 0.0
    %136 = vmatpush1.xpose.msra.mxu0 0.0
    %137 = vmatprep.subr.mxu0 0.0
    %138 = vmatpush1.xpose.msra.mxu0 0.0
    %139 = vmatprep.subr.mxu0 0.0
    %140 = vmatpush1.xpose.msra.mxu0 0.0
    %141 = vmatprep.subr.mxu0 0.0
    %142 = vmatpush1.xpose.msra.mxu0 0.0
    %143 = vmatprep.subr.mxu0 0.0
    %144 = vmatpush1.xpose.msra.mxu0 0.0
    %145 = vmatprep.mubr.f32.mxu0 0.0
    %146 = vmatmul.mubr.f32.gmra.mrb[0].mxu0 %v55
    %v147 = vpop.f32.mrb[0].mxu0
    %v148 = vadd.f32 0.0, %v147
    %v149 = vpop.f32.mrb[0].mxu0
    %150 = vdwg.mxu0
    %v151 = vadd.f32 %v48, %v148
    %v152 = vxor.u32 %v151, 2147483648
    %v153 = vmul.f32 %v152, 1.442695
    %v154 = vpow.pop %v153
    %v155 = vadd.f32 %v154, 1.0
    %v156 = vrcp.pop %v155
    %v157 = vmul.f32 1.0, %v156
    %v158 = vtanh.pop %v151
    %v159 = vmul.f32 %v157, %v42
    %161 = vrot.lane.b32.xlu0 %v158, 96
    %v162 = vpop.permute.xlu0 %161
    %v164 = vmul.f32 %v157, %v162
    %166 = vrot.lane.b32.xlu0 %v164, 16
    %v167 = vpop.permute.xlu0 %166
    %v169 = vadd.f32 %v159, %v167
    %v170 = vtanh.pop %v169
    %172 = vrot.lane.b32.xlu0 %v170, 32
    %v173 = vpop.permute.xlu0 %172
    %v175 = vmul.f32 %v157, %v173
    %177 = vset.pattern.permute.xlu0 0
    %178 = vperm.xlu0 %177, %v50
    %v179 = vpop.permute.xlu0 %178
    %v181 = vmul.f32 %v179, %v175
    %v182 = vsub.f32 1.0, %v50
    %184 = vset.pattern.permute.xlu0 0
    %185 = vperm.xlu0 %184, %v182
    %v186 = vpop.permute.xlu0 %185
    %v188 = vmul.f32 %v186, %v41
    %v189 = vadd.f32 %v181, %v188
    %v190 = vmul.f32 %v179, %v169
    %v191 = vmul.f32 %v186, %v42
    %v192 = vadd.f32 %v190, %v191
    %194 = vrot.lane.b32.xlu0 %v181, 80
    %v195 = vpop.permute.xlu0 %194
    %s197 = scalar_lea.vmem %s4, %s46
    %vm198 = vcmask 123904
    %199 = vst.msk [vmem:[%s197] sm:$0x3] %vm198, %v195
    %s200 = ssub.s32 11, %s45
    %s201 = smul.u32 %s200, 2
    %s202 = scalar_lea.vmem %s0, %s201
    %v203 = vld [vmem:[%s202] sm:$0x3]
    %s204 = scalar_lea.vmem %s1, %s201
    %v205 = vld [vmem:[%s204] sm:$0x3]
    %207 = vrot.lane.b32.xlu0 %v43, 16
    %v208 = vpop.permute.xlu0 %207
    %v209 = vsel %vm54, %v208, 0
    %v212 = vsel %vm54, %v27, 0
    %v215 = vsel %vm54, %v28, 0
    %v218 = vsel %vm54, %v29, 0
    %v221 = vsel %vm54, %v30, 0
    %v224 = vsel %vm54, %v31, 0
    %v227 = vsel %vm54, %v32, 0
    %v230 = vsel %vm54, %v33, 0
    %v233 = vsel %vm54, %v34, 0
    %235 = vmatprep.subr.mxu0 0.0
    %236 = vmatpush1.xpose.msra.mxu0 %v212
    %237 = vmatprep.subr.mxu0 0.0
    %238 = vmatpush1.xpose.msra.mxu0 %v215
    %239 = vmatprep.subr.mxu0 0.0
    %240 = vmatpush1.xpose.msra.mxu0 %v218
    %241 = vmatprep.subr.mxu0 0.0
    %242 = vmatpush1.xpose.msra.mxu0 %v221
    %243 = vmatprep.subr.mxu0 0.0
    %244 = vmatpush1.xpose.msra.mxu0 %v224
    %245 = vmatprep.subr.mxu0 0.0
    %246 = vmatpush1.xpose.msra.mxu0 %v227
    %247 = vmatprep.subr.mxu0 0.0
    %248 = vmatpush1.xpose.msra.mxu0 %v230
    %249 = vmatprep.subr.mxu0 0.0
    %250 = vmatpush1.xpose.msra.mxu0 %v233
    %251 = vmatprep.subr.mxu0 0.0
    %252 = vmatpush1.xpose.msra.mxu0 0.0
    %253 = vmatprep.subr.mxu0 0.0
    %254 = vmatpush1.xpose.msra.mxu0 0.0
    %255 = vmatprep.subr.mxu0 0.0
    %256 = vmatpush1.xpose.msra.mxu0 0.0
    %257 = vmatprep.subr.mxu0 0.0
    %258 = vmatpush1.xpose.msra.mxu0 0.0
    %259 = vmatprep.subr.mxu0 0.0
    %260 = vmatpush1.xpose.msra.mxu0 0.0
    %261 = vmatprep.subr.mxu0 0.0
    %262 = vmatpush1.xpose.msra.mxu0 0.0
    %263 = vmatprep.subr.mxu0 0.0
    %264 = vmatpush1.xpose.msra.mxu0 0.0
    %265 = vmatprep.subr.mxu0 0.0
    %266 = vmatpush1.xpose.msra.mxu0 0.0
    %267 = vmatprep.subr.mxu0 0.0
    %268 = vmatpush1.xpose.msra.mxu0 0.0
    %269 = vmatprep.subr.mxu0 0.0
    %270 = vmatpush1.xpose.msra.mxu0 0.0
    %271 = vmatprep.subr.mxu0 0.0
    %272 = vmatpush1.xpose.msra.mxu0 0.0
    %273 = vmatprep.subr.mxu0 0.0
    %274 = vmatpush1.xpose.msra.mxu0 0.0
    %275 = vmatprep.subr.mxu0 0.0
    %276 = vmatpush1.xpose.msra.mxu0 0.0
    %277 = vmatprep.subr.mxu0 0.0
    %278 = vmatpush1.xpose.msra.mxu0 0.0
    %279 = vmatprep.subr.mxu0 0.0
    %280 = vmatpush1.xpose.msra.mxu0 0.0
    %281 = vmatprep.subr.mxu0 0.0
    %282 = vmatpush1.xpose.msra.mxu0 0.0
    %283 = vmatprep.subr.mxu0 0.0
    %284 = vmatpush1.xpose.msra.mxu0 0.0
    %285 = vmatprep.subr.mxu0 0.0
    %286 = vmatpush1.xpose.msra.mxu0 0.0
    %287 = vmatprep.subr.mxu0 0.0
    %288 = vmatpush1.xpose.msra.mxu0 0.0
    %289 = vmatprep.subr.mxu0 0.0
    %290 = vmatpush1.xpose.msra.mxu0 0.0
    %291 = vmatprep.subr.mxu0 0.0
    %292 = vmatpush1.xpose.msra.mxu0 0.0
    %293 = vmatprep.subr.mxu0 0.0
    %294 = vmatpush1.xpose.msra.mxu0 0.0
    %295 = vmatprep.subr.mxu0 0.0
    %296 = vmatpush1.xpose.msra.mxu0 0.0
    %297 = vmatprep.subr.mxu0 0.0
    %298 = vmatpush1.xpose.msra.mxu0 0.0
    %299 = vmatprep.mubr.f32.mxu0 0.0
    %300 = vmatmul.mubr.f32.gmra.mrb[0].mxu0 %v209
    %v301 = vpop.f32.mrb[0].mxu0
    %v302 = vadd.f32 0.0, %v301
    %v303 = vpop.f32.mrb[0].mxu0
    %304 = vdwg.mxu0
    %306 = vrot.lane.b32.xlu0 %v302, 64
    %v307 = vpop.permute.xlu0 %306
    %v309 = vadd.f32 %v203, %v307
    %v310 = vxor.u32 %v309, 2147483648
    %v311 = vmul.f32 %v310, 1.442695
    %v312 = vpow.pop %v311
    %v313 = vadd.f32 %v312, 1.0
    %v314 = vrcp.pop %v313
    %v315 = vmul.f32 1.0, %v314
    %v316 = vtanh.pop %v309
    %v317 = vmul.f32 %v315, %v44
    %319 = vrot.lane.b32.xlu0 %v316, 96
    %v320 = vpop.permute.xlu0 %319
    %v322 = vmul.f32 %v315, %v320
    %324 = vrot.lane.b32.xlu0 %v322, 16
    %v325 = vpop.permute.xlu0 %324
    %v327 = vadd.f32 %v317, %v325
    %v328 = vtanh.pop %v327
    %330 = vrot.lane.b32.xlu0 %v328, 32
    %v331 = vpop.permute.xlu0 %330
    %v333 = vmul.f32 %v315, %v331
    %335 = vset.pattern.permute.xlu0 0
    %336 = vperm.xlu0 %335, %v205
    %v337 = vpop.permute.xlu0 %336
    %v339 = vmul.f32 %v337, %v333
    %v340 = vsub.f32 1.0, %v205
    %342 = vset.pattern.permute.xlu0 0
    %343 = vperm.xlu0 %342, %v340
    %v344 = vpop.permute.xlu0 %343
    %v346 = vmul.f32 %v344, %v43
    %v347 = vadd.f32 %v339, %v346
    %v348 = vmul.f32 %v337, %v327
    %v349 = vmul.f32 %v344, %v44
    %v350 = vadd.f32 %v348, %v349
    %352 = vrot.lane.b32.xlu0 %v339, 16
    %v353 = vpop.permute.xlu0 %352
    %s355 = scalar_lea.vmem %s5, %s201
    %356 = vst.msk [vmem:[%s355] sm:$0x3] %vm198, %v353
    %s357 = sadd.s32 %s45, 1
    %s358 = smul.u32 %s357, 2
    %s359 = scalar_lea.vmem %s0, %s358
    %v360 = vld [vmem:[%s359] sm:$0x3]
    %s361 = scalar_lea.vmem %s1, %s358
    %v362 = vld [vmem:[%s361] sm:$0x3]
    %364 = vrot.lane.b32.xlu0 %v189, 80
    %v365 = vpop.permute.xlu0 %364
    %v366 = vsel %vm54, %v365, 0
    %368 = vmatprep.subr.mxu0 0.0
    %369 = vmatpush1.xpose.msra.mxu0 %v58
    %370 = vmatprep.subr.mxu0 0.0
    %371 = vmatpush1.xpose.msra.mxu0 %v61
    %372 = vmatprep.subr.mxu0 0.0
    %373 = vmatpush1.xpose.msra.mxu0 %v64
    %374 = vmatprep.subr.mxu0 0.0
    %375 = vmatpush1.xpose.msra.mxu0 %v67
    %376 = vmatprep.subr.mxu0 0.0
    %377 = vmatpush1.xpose.msra.mxu0 %v70
    %378 = vmatprep.subr.mxu0 0.0
    %379 = vmatpush1.xpose.msra.mxu0 %v73
    %380 = vmatprep.subr.mxu0 0.0
    %381 = vmatpush1.xpose.msra.mxu0 %v76
    %382 = vmatprep.subr.mxu0 0.0
    %383 = vmatpush1.xpose.msra.mxu0 %v79
    %384 = vmatprep.subr.mxu0 0.0
    %385 = vmatpush1.xpose.msra.mxu0 0.0
    %386 = vmatprep.subr.mxu0 0.0
    %387 = vmatpush1.xpose.msra.mxu0 0.0
    %388 = vmatprep.subr.mxu0 0.0
    %389 = vmatpush1.xpose.msra.mxu0 0.0
    %390 = vmatprep.subr.mxu0 0.0
    %391 = vmatpush1.xpose.msra.mxu0 0.0
    %392 = vmatprep.subr.mxu0 0.0
    %393 = vmatpush1.xpose.msra.mxu0 0.0
    %394 = vmatprep.subr.mxu0 0.0
    %395 = vmatpush1.xpose.msra.mxu0 0.0
    %396 = vmatprep.subr.mxu0 0.0
    %397 = vmatpush1.xpose.msra.mxu0 0.0
    %398 = vmatprep.subr.mxu0 0.0
    %399 = vmatpush1.xpose.msra.mxu0 0.0
    %400 = vmatprep.subr.mxu0 0.0
    %401 = vmatpush1.xpose.msra.mxu0 0.0
    %402 = vmatprep.subr.mxu0 0.0
    %403 = vmatpush1.xpose.msra.mxu0 0.0
    %404 = vmatprep.subr.mxu0 0.0
    %405 = vmatpush1.xpose.msra.mxu0 0.0
    %406 = vmatprep.subr.mxu0 0.0
    %407 = vmatpush1.xpose.msra.mxu0 0.0
    %408 = vmatprep.subr.mxu0 0.0
    %409 = vmatpush1.xpose.msra.mxu0 0.0
    %410 = vmatprep.subr.mxu0 0.0
    %411 = vmatpush1.xpose.msra.mxu0 0.0
    %412 = vmatprep.subr.mxu0 0.0
    %413 = vmatpush1.xpose.msra.mxu0 0.0
    %414 = vmatprep.subr.mxu0 0.0
    %415 = vmatpush1.xpose.msra.mxu0 0.0
    %416 = vmatprep.subr.mxu0 0.0
    %417 = vmatpush1.xpose.msra.mxu0 0.0
    %418 = vmatprep.subr.mxu0 0.0
    %419 = vmatpush1.xpose.msra.mxu0 0.0
    %420 = vmatprep.subr.mxu0 0.0
    %421 = vmatpush1.xpose.msra.mxu0 0.0
    %422 = vmatprep.subr.mxu0 0.0
    %423 = vmatpush1.xpose.msra.mxu0 0.0
    %424 = vmatprep.subr.mxu0 0.0
    %425 = vmatpush1.xpose.msra.mxu0 0.0
    %426 = vmatprep.subr.mxu0 0.0
    %427 = vmatpush1.xpose.msra.mxu0 0.0
    %428 = vmatprep.subr.mxu0 0.0
    %429 = vmatpush1.xpose.msra.mxu0 0.0
    %430 = vmatprep.subr.mxu0 0.0
    %431 = vmatpush1.xpose.msra.mxu0 0.0
    %432 = vmatprep.mubr.f32.mxu0 0.0
    %433 = vmatmul.mubr.f32.gmra.mrb[0].mxu0 %v366
    %v434 = vpop.f32.mrb[0].mxu0
    %v435 = vadd.f32 0.0, %v434
    %v436 = vpop.f32.mrb[0].mxu0
    %437 = vdwg.mxu0
    %v438 = vadd.f32 %v360, %v435
    %v439 = vxor.u32 %v438, 2147483648
    %v440 = vmul.f32 %v439, 1.442695
    %v441 = vpow.pop %v440
    %v442 = vadd.f32 %v441, 1.0
    %v443 = vrcp.pop %v442
    %v444 = vmul.f32 1.0, %v443
    %v445 = vtanh.pop %v438
    %v446 = vmul.f32 %v444, %v192
    %448 = vrot.lane.b32.xlu0 %v445, 96
    %v449 = vpop.permute.xlu0 %448
    %v451 = vmul.f32 %v444, %v449
    %453 = vrot.lane.b32.xlu0 %v451, 16
    %v454 = vpop.permute.xlu0 %453
    %v456 = vadd.f32 %v446, %v454
    %v457 = vtanh.pop %v456
    %459 = vrot.lane.b32.xlu0 %v457, 32
    %v460 = vpop.permute.xlu0 %459
    %v462 = vmul.f32 %v444, %v460
    %464 = vset.pattern.permute.xlu0 0
    %465 = vperm.xlu0 %464, %v362
    %v466 = vpop.permute.xlu0 %465
    %v468 = vmul.f32 %v466, %v462
    %v469 = vsub.f32 1.0, %v362
    %471 = vset.pattern.permute.xlu0 0
    %472 = vperm.xlu0 %471, %v469
    %v473 = vpop.permute.xlu0 %472
    %v475 = vmul.f32 %v473, %v189
    %v476 = vadd.f32 %v468, %v475
    %v477 = vmul.f32 %v466, %v456
    %v478 = vmul.f32 %v473, %v192
    %v479 = vadd.f32 %v477, %v478
    %481 = vrot.lane.b32.xlu0 %v468, 80
    %v482 = vpop.permute.xlu0 %481
    %s484 = scalar_lea.vmem %s4, %s358
    %485 = vst.msk [vmem:[%s484] sm:$0x3] %vm198, %v482
    %s486 = ssub.s32 10, %s45
    %s487 = smul.u32 %s486, 2
    %s488 = scalar_lea.vmem %s0, %s487
    %v489 = vld [vmem:[%s488] sm:$0x3]
    %s490 = scalar_lea.vmem %s1, %s487
    %v491 = vld [vmem:[%s490] sm:$0x3]
    %493 = vrot.lane.b32.xlu0 %v347, 16
    %v494 = vpop.permute.xlu0 %493
    %v495 = vsel %vm54, %v494, 0
    %497 = vmatprep.subr.mxu0 0.0
    %498 = vmatpush1.xpose.msra.mxu0 %v212
    %499 = vmatprep.subr.mxu0 0.0
    %500 = vmatpush1.xpose.msra.mxu0 %v215
    %501 = vmatprep.subr.mxu0 0.0
    %502 = vmatpush1.xpose.msra.mxu0 %v218
    %503 = vmatprep.subr.mxu0 0.0
    %504 = vmatpush1.xpose.msra.mxu0 %v221
    %505 = vmatprep.subr.mxu0 0.0
    %506 = vmatpush1.xpose.msra.mxu0 %v224
    %507 = vmatprep.subr.mxu0 0.0
    %508 = vmatpush1.xpose.msra.mxu0 %v227
    %509 = vmatprep.subr.mxu0 0.0
    %510 = vmatpush1.xpose.msra.mxu0 %v230
    %511 = vmatprep.subr.mxu0 0.0
    %512 = vmatpush1.xpose.msra.mxu0 %v233
    %513 = vmatprep.subr.mxu0 0.0
    %514 = vmatpush1.xpose.msra.mxu0 0.0
    %515 = vmatprep.subr.mxu0 0.0
    %516 = vmatpush1.xpose.msra.mxu0 0.0
    %517 = vmatprep.subr.mxu0 0.0
    %518 = vmatpush1.xpose.msra.mxu0 0.0
    %519 = vmatprep.subr.mxu0 0.0
    %520 = vmatpush1.xpose.msra.mxu0 0.0
    %521 = vmatprep.subr.mxu0 0.0
    %522 = vmatpush1.xpose.msra.mxu0 0.0
    %523 = vmatprep.subr.mxu0 0.0
    %524 = vmatpush1.xpose.msra.mxu0 0.0
    %525 = vmatprep.subr.mxu0 0.0
    %526 = vmatpush1.xpose.msra.mxu0 0.0
    %527 = vmatprep.subr.mxu0 0.0
    %528 = vmatpush1.xpose.msra.mxu0 0.0
    %529 = vmatprep.subr.mxu0 0.0
    %530 = vmatpush1.xpose.msra.mxu0 0.0
    %531 = vmatprep.subr.mxu0 0.0
    %532 = vmatpush1.xpose.msra.mxu0 0.0
    %533 = vmatprep.subr.mxu0 0.0
    %534 = vmatpush1.xpose.msra.mxu0 0.0
    %535 = vmatprep.subr.mxu0 0.0
    %536 = vmatpush1.xpose.msra.mxu0 0.0
    %537 = vmatprep.subr.mxu0 0.0
    %538 = vmatpush1.xpose.msra.mxu0 0.0
    %539 = vmatprep.subr.mxu0 0.0
    %540 = vmatpush1.xpose.msra.mxu0 0.0
    %541 = vmatprep.subr.mxu0 0.0
    %542 = vmatpush1.xpose.msra.mxu0 0.0
    %543 = vmatprep.subr.mxu0 0.0
    %544 = vmatpush1.xpose.msra.mxu0 0.0
    %545 = vmatprep.subr.mxu0 0.0
    %546 = vmatpush1.xpose.msra.mxu0 0.0
    %547 = vmatprep.subr.mxu0 0.0
    %548 = vmatpush1.xpose.msra.mxu0 0.0
    %549 = vmatprep.subr.mxu0 0.0
    %550 = vmatpush1.xpose.msra.mxu0 0.0
    %551 = vmatprep.subr.mxu0 0.0
    %552 = vmatpush1.xpose.msra.mxu0 0.0
    %553 = vmatprep.subr.mxu0 0.0
    %554 = vmatpush1.xpose.msra.mxu0 0.0
    %555 = vmatprep.subr.mxu0 0.0
    %556 = vmatpush1.xpose.msra.mxu0 0.0
    %557 = vmatprep.subr.mxu0 0.0
    %558 = vmatpush1.xpose.msra.mxu0 0.0
    %559 = vmatprep.subr.mxu0 0.0
    %560 = vmatpush1.xpose.msra.mxu0 0.0
    %561 = vmatprep.mubr.f32.mxu0 0.0
    %562 = vmatmul.mubr.f32.gmra.mrb[0].mxu0 %v495
    %v563 = vpop.f32.mrb[0].mxu0
    %v564 = vadd.f32 0.0, %v563
    %v565 = vpop.f32.mrb[0].mxu0
    %566 = vdwg.mxu0
    %568 = vrot.lane.b32.xlu0 %v564, 64
    %v569 = vpop.permute.xlu0 %568
    %v571 = vadd.f32 %v489, %v569
    %v572 = vxor.u32 %v571, 2147483648
    %v573 = vmul.f32 %v572, 1.442695
    %v574 = vpow.pop %v573
    %v575 = vadd.f32 %v574, 1.0
    %v576 = vrcp.pop %v575
    %v577 = vmul.f32 1.0, %v576
    %v578 = vtanh.pop %v571
    %v579 = vmul.f32 %v577, %v350
    %581 = vrot.lane.b32.xlu0 %v578, 96
    %v582 = vpop.permute.xlu0 %581
    %v584 = vmul.f32 %v577, %v582
    %586 = vrot.lane.b32.xlu0 %v584, 16
    %v587 = vpop.permute.xlu0 %586
    %v589 = vadd.f32 %v579, %v587
    %v590 = vtanh.pop %v589
    %592 = vrot.lane.b32.xlu0 %v590, 32
    %v593 = vpop.permute.xlu0 %592
    %v595 = vmul.f32 %v577, %v593
    %597 = vset.pattern.permute.xlu0 0
    %598 = vperm.xlu0 %597, %v491
    %v599 = vpop.permute.xlu0 %598
    %v601 = vmul.f32 %v599, %v595
    %v602 = vsub.f32 1.0, %v491
    %604 = vset.pattern.permute.xlu0 0
    %605 = vperm.xlu0 %604, %v602
    %v606 = vpop.permute.xlu0 %605
    %v608 = vmul.f32 %v606, %v347
    %v609 = vadd.f32 %v601, %v608
    %v610 = vmul.f32 %v599, %v589
    %v611 = vmul.f32 %v606, %v350
    %v612 = vadd.f32 %v610, %v611
    %614 = vrot.lane.b32.xlu0 %v601, 16
    %v615 = vpop.permute.xlu0 %614
    %s617 = scalar_lea.vmem %s5, %s487
    %618 = vst.msk [vmem:[%s617] sm:$0x3] %vm198, %v615
  $region22: #{bidaf_forward.17} parent=0 // loop_footer
    %s40 = sadd.s32 1, %s36
  $region23: #{bidaf_forward.17} parent=0 // loop_footer_branch
    %35 = sbr.rel target = $region19
  $region24: #{bidaf_forward.17} parent=0 // loop_exit
    _
  // Predicated region
  $region25: #{bidaf_forward.17} parent=0 // pred_check
    _
  $region26: #{bidaf_forward.17} parent=0 // pred_check_branch
    %620 = sbr.rel (0) target = $region28
  $region27: #{bidaf_forward.17} parent=0 // pred_region
    _
  $region28: #{bidaf_forward.17} parent=0 // pred_fallthru
    _
  // Predicated region
  $region29: #{bidaf_forward.17} parent=0 // pred_check
    _
  $region30: #{bidaf_forward.17} parent=0 // pred_check_branch
    %622 = sbr.rel (0) target = $region32
  $region31: #{bidaf_forward.17} parent=0 // pred_region
    _
  $region32: #{bidaf_forward.17} parent=0 // pred_fallthru
    _
  // Predicated region
  $region33: #{bidaf_forward.17} parent=0 // pred_check
    _
  $region34: #{bidaf_forward.17} parent=0 // pred_check_branch
    %624 = sbr.rel (0) target = $region36
  $region35: #{bidaf_forward.17} parent=0 // pred_region
    _
  $region36: #{bidaf_forward.17} parent=0 // pred_fallthru
    _
  // Predicated region
  $region37: #{bidaf_forward.17} parent=0 // pred_check
    _
  $region38: #{bidaf_forward.17} parent=0 // pred_check_branch
    %626 = sbr.rel (0) target = $region40
  $region39: #{bidaf_forward.17} parent=0 // pred_region
    _
  $region40: #{bidaf_forward.17} parent=0 // pred_fallthru
    _

// kernel: bidaf_forward.20
$region0: #{bidaf_forward.20}
  #allocation0 [shape = 'u32[]', space=smem, size = 0x4, offset = 0x4, fixed_abs, tag = 'smem constant byte address 0x4 - core index']
  #allocation1 [shape = 'u32[144,128]{1,0:T(1,128)}', space=vmem, size = 0x12000, scoped, tag = 'internal scratch']
  #allocation2 [shape = 'f32[1,1]{1,0:T(1,128)S(1)}', space=vmem, size = 0x200, scoped, tag = 'scoped memory for bidaf_forward.20']
  %s0 = inlined_call_operand.vmem [shape: f32[2,12,32], index: 0, kind: input, shape index: {}]
  %s1 = inlined_call_operand.vmem [shape: f32[2,8,32], index: 1, kind: input, shape index: {}]
  %s2 = inlined_call_operand.vmem [shape: f32[2,12,1], index: 2, kind: input, shape index: {}]
  %s3 = inlined_call_operand.vmem [shape: f32[2,1,8], index: 3, kind: input, shape index: {}]
  %s4 = inlined_call_operand.vmem [shape: f32[32,1], index: 4, kind: input, shape index: {}]
  %s5 = inlined_call_operand.vmem [shape: f32[1,32], index: 5, kind: input, shape index: {}]
  %s6 = inlined_call_operand.vmem [shape: f32[1,32], index: 6, kind: input, shape index: {}]
  %s7 = inlined_call_operand.<no memory space> [shape: f32[1,1], index: 7, kind: input, shape index: {}]
  %s8 = inlined_call_operand.vmem [shape: f32[2,12,128], index: 8, kind: output, shape index: {}]
  %s9 = sld [smem:[#allocation0]]
  $region65: #{bidaf_forward.20} parent=0
    _
  %s11 = ssub.s32 1, %s9
  %s12 = scalar_select 0, %s11, %s9
  %v13 = vstv %s7
  %14 = vst [vmem:[#allocation2] sm:$0x1] %v13
  loop: start=0, step=1, limit=4
  $region2: #{bidaf_forward.20} parent=0 // loop_pre_header
    _
  $region3: #{bidaf_forward.20} parent=0 // loop_header
    %s16 = sphi 0, %s20
    %p17 = scmp.ge.s32.totalorder %s16, 4
    %s26 = sphi 0, %s28
    %s29 = sphi 0, %s26
    %s30 = sphi 0, %s29
    %s46 = sphi 0, %s30
    %s52 = sphi 0, %s54
    %s55 = sphi 0, %s52
    %s56 = sphi 0, %s55
    %s72 = sphi 0, %s56
    %s78 = sphi 0, %s80
    %s81 = sphi 0, %s78
    %s82 = sphi 0, %s81
    %s98 = sphi 0, %s82
    %s104 = sphi 0, %s106
    %s107 = sphi 0, %s104
    %s108 = sphi 0, %s107
    %s124 = sphi 0, %s108
    %s128 = sphi 0, %s128
    %s130 = sphi 0, %s128
    %s131 = sphi 0, %s130
    %s145 = sphi 0, %s131
    %s149 = sphi 0, %s149
    %s151 = sphi 0, %s149
    %s152 = sphi 0, %s151
    %s166 = sphi 0, %s152
    %s170 = sphi 0, %s170
    %s172 = sphi 0, %s170
    %s173 = sphi 0, %s172
    %s187 = sphi 0, %s173
    %s191 = sphi 0, %s191
    %s193 = sphi 0, %s191
    %s194 = sphi 0, %s193
    %s208 = sphi 0, %s194
    %s214 = sphi 0, %s216
    %s217 = sphi 0, %s214
    %s218 = sphi 0, %s217
    %s234 = sphi 0, %s218
  $region4: #{bidaf_forward.20} parent=0 // loop_header_branch
    %19 = sbr.rel (%p17) target = $region8
  $region5: #{bidaf_forward.20} parent=0 // loop_body
    %s21 = ssub.s32 %s16, 1
    %s22 = ssub.s32 %s16, 2
    %s23 = sadd.s32 %s16, 1
    %s24 = ssub.s32 %s16, %s23
    %p25 = scmp.eq.s32.totalorder %s24, 0
    %s27 = sadd.s32 %s26, 1
    %s28 = scalar_select %p25, %s26, %s27
    %p31 = pneg %p25
    %p32 = scmp.eq.s32.totalorder %s16, 1
    %p33 = por %p31, %p32
    %p34 = scmp.ne.s32.totalorder %s26, %s29
    %p35 = scmp.eq.s32.totalorder %s16, 0
    %p36 = por %p34, %p35
    %p37 = scmp.ne.s32.totalorder %s26, %s29
    %p38 = scmp.eq.s32.totalorder %s21, 1
    %p39 = por %p37, %p38
    %p40 = scmp.ne.s32.totalorder %s29, %s30
    %p41 = scmp.eq.s32.totalorder %s21, 0
    %p42 = por %p40, %p41
    %p43 = scmp.ne.s32.totalorder %s29, %s30
    %p44 = scmp.eq.s32.totalorder %s22, 1
    %p45 = por %p43, %p44
    %p47 = scmp.ne.s32.totalorder %s30, %s46
    %p48 = scmp.eq.s32.totalorder %s22, 0
    %p49 = por %p47, %p48
    %s50 = ssub.s32 %s16, %s23
    %p51 = scmp.eq.s32.totalorder %s50, 0
    %s53 = sadd.s32 %s52, 1
    %s54 = scalar_select %p51, %s52, %s53
    %p57 = pneg %p51
    %p58 = scmp.eq.s32.totalorder %s16, 1
    %p59 = por %p57, %p58
    %p60 = scmp.ne.s32.totalorder %s52, %s55
    %p61 = scmp.eq.s32.totalorder %s16, 0
    %p62 = por %p60, %p61
    %p63 = scmp.ne.s32.totalorder %s52, %s55
    %p64 = scmp.eq.s32.totalorder %s21, 1
    %p65 = por %p63, %p64
    %p66 = scmp.ne.s32.totalorder %s55, %s56
    %p67 = scmp.eq.s32.totalorder %s21, 0
    %p68 = por %p66, %p67
    %p69 = scmp.ne.s32.totalorder %s55, %s56
    %p70 = scmp.eq.s32.totalorder %s22, 1
    %p71 = por %p69, %p70
    %p73 = scmp.ne.s32.totalorder %s56, %s72
    %p74 = scmp.eq.s32.totalorder %s22, 0
    %p75 = por %p73, %p74
    %s76 = ssub.s32 %s16, %s23
    %p77 = scmp.eq.s32.totalorder %s76, 0
    %s79 = sadd.s32 %s78, 1
    %s80 = scalar_select %p77, %s78, %s79
    %p83 = pneg %p77
    %p84 = scmp.eq.s32.totalorder %s16, 1
    %p85 = por %p83, %p84
    %p86 = scmp.ne.s32.totalorder %s78, %s81
    %p87 = scmp.eq.s32.totalorder %s16, 0
    %p88 = por %p86, %p87
    %p89 = scmp.ne.s32.totalorder %s78, %s81
    %p90 = scmp.eq.s32.totalorder %s21, 1
    %p91 = por %p89, %p90
    %p92 = scmp.ne.s32.totalorder %s81, %s82
    %p93 = scmp.eq.s32.totalorder %s21, 0
    %p94 = por %p92, %p93
    %p95 = scmp.ne.s32.totalorder %s81, %s82
    %p96 = scmp.eq.s32.totalorder %s22, 1
    %p97 = por %p95, %p96
    %p99 = scmp.ne.s32.totalorder %s82, %s98
    %p100 = scmp.eq.s32.totalorder %s22, 0
    %p101 = por %p99, %p100
    %s102 = ssub.s32 %s16, %s23
    %p103 = scmp.eq.s32.totalorder %s102, 0
    %s105 = sadd.s32 %s104, 1
    %s106 = scalar_select %p103, %s104, %s105
    %p109 = pneg %p103
    %p110 = scmp.eq.s32.totalorder %s16, 1
    %p111 = por %p109, %p110
    %p112 = scmp.ne.s32.totalorder %s104, %s107
    %p113 = scmp.eq.s32.totalorder %s16, 0
    %p114 = por %p112, %p113
    %p115 = scmp.ne.s32.totalorder %s104, %s107
    %p116 = scmp.eq.s32.totalorder %s21, 1
    %p117 = por %p115, %p116
    %p118 = scmp.ne.s32.totalorder %s107, %s108
    %p119 = scmp.eq.s32.totalorder %s21, 0
    %p120 = por %p118, %p119
    %p121 = scmp.ne.s32.totalorder %s107, %s108
    %p122 = scmp.eq.s32.totalorder %s22, 1
    %p123 = por %p121, %p122
    %p125 = scmp.ne.s32.totalorder %s108, %s124
    %p126 = scmp.eq.s32.totalorder %s22, 0
    %p127 = por %p125, %p126
    %s129 = sadd.s32 %s128, 1
    %p132 = scmp.eq.s32.totalorder %s16, 1
    %p133 = scmp.ne.s32.totalorder %s128, %s130
    %p134 = scmp.eq.s32.totalorder %s16, 0
    %p135 = por %p133, %p134
    %p136 = scmp.ne.s32.totalorder %s128, %s130
    %p137 = scmp.eq.s32.totalorder %s21, 1
    %p138 = por %p136, %p137
    %p139 = scmp.ne.s32.totalorder %s130, %s131
    %p140 = scmp.eq.s32.totalorder %s21, 0
    %p141 = por %p139, %p140
    %p142 = scmp.ne.s32.totalorder %s130, %s131
    %p143 = scmp.eq.s32.totalorder %s22, 1
    %p144 = por %p142, %p143
    %p146 = scmp.ne.s32.totalorder %s131, %s145
    %p147 = scmp.eq.s32.totalorder %s22, 0
    %p148 = por %p146, %p147
    %s150 = sadd.s32 %s149, 1
    %p153 = scmp.eq.s32.totalorder %s16, 1
    %p154 = scmp.ne.s32.totalorder %s149, %s151
    %p155 = scmp.eq.s32.totalorder %s16, 0
    %p156 = por %p154, %p155
    %p157 = scmp.ne.s32.totalorder %s149, %s151
    %p158 = scmp.eq.s32.totalorder %s21, 1
    %p159 = por %p157, %p158
    %p160 = scmp.ne.s32.totalorder %s151, %s152
    %p161 = scmp.eq.s32.totalorder %s21, 0
    %p162 = por %p160, %p161
    %p163 = scmp.ne.s32.totalorder %s151, %s152
    %p164 = scmp.eq.s32.totalorder %s22, 1
    %p165 = por %p163, %p164
    %p167 = scmp.ne.s32.totalorder %s152, %s166
    %p168 = scmp.eq.s32.totalorder %s22, 0
    %p169 = por %p167, %p168
    %s171 = sadd.s32 %s170, 1
    %p174 = scmp.eq.s32.totalorder %s16, 1
    %p175 = scmp.ne.s32.totalorder %s170, %s172
    %p176 = scmp.eq.s32.totalorder %s16, 0
    %p177 = por %p175, %p176
    %p178 = scmp.ne.s32.totalorder %s170, %s172
    %p179 = scmp.eq.s32.totalorder %s21, 1
    %p180 = por %p178, %p179
    %p181 = scmp.ne.s32.totalorder %s172, %s173
    %p182 = scmp.eq.s32.totalorder %s21, 0
    %p183 = por %p181, %p182
    %p184 = scmp.ne.s32.totalorder %s172, %s173
    %p185 = scmp.eq.s32.totalorder %s22, 1
    %p186 = por %p184, %p185
    %p188 = scmp.ne.s32.totalorder %s173, %s187
    %p189 = scmp.eq.s32.totalorder %s22, 0
    %p190 = por %p188, %p189
    %s192 = sadd.s32 %s191, 1
    %p195 = scmp.eq.s32.totalorder %s16, 1
    %p196 = scmp.ne.s32.totalorder %s191, %s193
    %p197 = scmp.eq.s32.totalorder %s16, 0
    %p198 = por %p196, %p197
    %p199 = scmp.ne.s32.totalorder %s191, %s193
    %p200 = scmp.eq.s32.totalorder %s21, 1
    %p201 = por %p199, %p200
    %p202 = scmp.ne.s32.totalorder %s193, %s194
    %p203 = scmp.eq.s32.totalorder %s21, 0
    %p204 = por %p202, %p203
    %p205 = scmp.ne.s32.totalorder %s193, %s194
    %p206 = scmp.eq.s32.totalorder %s22, 1
    %p207 = por %p205, %p206
    %p209 = scmp.ne.s32.totalorder %s194, %s208
    %p210 = scmp.eq.s32.totalorder %s22, 0
    %p211 = por %p209, %p210
    %s212 = ssub.s32 %s16, %s23
    %p213 = scmp.eq.s32.totalorder %s212, 0
    %s215 = sadd.s32 %s214, 1
    %s216 = scalar_select %p213, %s214, %s215
    %p219 = pneg %p213
    %p220 = scmp.eq.s32.totalorder %s16, 1
    %p221 = por %p219, %p220
    %p222 = scmp.ne.s32.totalorder %s214, %s217
    %p223 = scmp.eq.s32.totalorder %s16, 0
    %p224 = por %p222, %p223
    %p225 = scmp.ne.s32.totalorder %s214, %s217
    %p226 = scmp.eq.s32.totalorder %s21, 1
    %p227 = por %p225, %p226
    %p228 = scmp.ne.s32.totalorder %s217, %s218
    %p229 = scmp.eq.s32.totalorder %s21, 0
    %p230 = por %p228, %p229
    %p231 = scmp.ne.s32.totalorder %s217, %s218
    %p232 = scmp.eq.s32.totalorder %s22, 1
    %p233 = por %p231, %p232
    %p235 = scmp.ne.s32.totalorder %s218, %s234
    %p236 = scmp.eq.s32.totalorder %s22, 0
    %p237 = por %p235, %p236
    %p238 = scmp.le.s32.totalorder 1, %s16
    %p239 = scmp.lt.s32.totalorder %s16, 3
    %p240 = pnand %p238, %p239
    %p241 = pneg %p240
    // Predicated region
    $region9: #{bidaf_forward.20} parent=5 // pred_check
      _
    $region10: #{bidaf_forward.20} parent=5 // pred_check_branch
      %243 = sbr.rel (%p240) target = $region12
    $region11: #{bidaf_forward.20} parent=5 // pred_region
      %s244 = ssub.s32 %s16, 1
      // Predicated region
      $region13: #{bidaf_forward.20} parent=11 // pred_check
        %p245 = pneg %p141
      $region14: #{bidaf_forward.20} parent=11 // pred_check_branch
        %247 = sbr.rel (%p245) target = $region16
      $region15: #{bidaf_forward.20} parent=11 // pred_region
        _
      $region16: #{bidaf_forward.20} parent=11 // pred_fallthru
        _
      // Predicated region
      $region17: #{bidaf_forward.20} parent=11 // pred_check
        %p248 = pneg %p162
      $region18: #{bidaf_forward.20} parent=11 // pred_check_branch
        %250 = sbr.rel (%p248) target = $region20
      $region19: #{bidaf_forward.20} parent=11 // pred_region
        _
      $region20: #{bidaf_forward.20} parent=11 // pred_fallthru
        _
      // Predicated region
      $region21: #{bidaf_forward.20} parent=11 // pred_check
        %p251 = pneg %p183
      $region22: #{bidaf_forward.20} parent=11 // pred_check_branch
        %253 = sbr.rel (%p251) target = $region24
      $region23: #{bidaf_forward.20} parent=11 // pred_region
        _
      $region24: #{bidaf_forward.20} parent=11 // pred_fallthru
        _
      // Predicated region
      $region25: #{bidaf_forward.20} parent=11 // pred_check
        %p254 = pneg %p204
      $region26: #{bidaf_forward.20} parent=11 // pred_check_branch
        %256 = sbr.rel (%p254) target = $region28
      $region27: #{bidaf_forward.20} parent=11 // pred_region
        _
      $region28: #{bidaf_forward.20} parent=11 // pred_fallthru
        _
    $region12: #{bidaf_forward.20} parent=5 // pred_fallthru
      _
    %p257 = scmp.lt.s32.totalorder %s16, 2
    // Predicated region
    $region29: #{bidaf_forward.20} parent=5 // pred_check
      %p258 = pneg %p257
    $region30: #{bidaf_forward.20} parent=5 // pred_check_branch
      %260 = sbr.rel (%p258) target = $region32
    $region31: #{bidaf_forward.20} parent=5 // pred_region
      // Predicated region
      $region33: #{bidaf_forward.20} parent=31 // pred_check
        %p261 = pneg %p36
      $region34: #{bidaf_forward.20} parent=31 // pred_check_branch
        %263 = sbr.rel (%p261) target = $region36
      $region35: #{bidaf_forward.20} parent=31 // pred_region
        %p264 = scmp.lt.s32.totalorder %s16, 1
        %s265 = scalar_select %p264, %s16, 1
        %s266 = smul.addr %s265, 2
        %s267 = smul.addr %s266, 8
        %s268 = scalar_lea.vmem %s0, %s267
      $region36: #{bidaf_forward.20} parent=31 // pred_fallthru
        _
      // Predicated region
      $region37: #{bidaf_forward.20} parent=31 // pred_check
        %p269 = pneg %p62
      $region38: #{bidaf_forward.20} parent=31 // pred_check_branch
        %271 = sbr.rel (%p269) target = $region40
      $region39: #{bidaf_forward.20} parent=31 // pred_region
        %p272 = scmp.lt.s32.totalorder %s16, 1
        %s273 = scalar_select %p272, %s16, 1
        %s274 = smul.addr %s273, 8
        %s275 = scalar_lea.vmem %s1, %s274
      $region40: #{bidaf_forward.20} parent=31 // pred_fallthru
        _
      // Predicated region
      $region41: #{bidaf_forward.20} parent=31 // pred_check
        %p276 = pneg %p88
      $region42: #{bidaf_forward.20} parent=31 // pred_check_branch
        %278 = sbr.rel (%p276) target = $region44
      $region43: #{bidaf_forward.20} parent=31 // pred_region
        %p279 = scmp.lt.s32.totalorder %s16, 1
        %s280 = scalar_select %p279, %s16, 1
        %s281 = smul.addr %s280, 2
        %s282 = smul.addr %s281, 8
        %s283 = scalar_lea.vmem %s2, %s282
      $region44: #{bidaf_forward.20} parent=31 // pred_fallthru
        _
      // Predicated region
      $region45: #{bidaf_forward.20} parent=31 // pred_check
        %p284 = pneg %p114
      $region46: #{bidaf_forward.20} parent=31 // pred_check_branch
        %286 = sbr.rel (%p284) target = $region48
      $region47: #{bidaf_forward.20} parent=31 // pred_region
        %p287 = scmp.lt.s32.totalorder %s16, 1
        %s288 = scalar_select %p287, %s16, 1
        %s289 = scalar_lea.vmem %s3, %s288
      $region48: #{bidaf_forward.20} parent=31 // pred_fallthru
        _
    $region32: #{bidaf_forward.20} parent=5 // pred_fallthru
      _
    %p290 = scmp.le.s32.totalorder 1, %s16
    %p291 = scmp.lt.s32.totalorder %s16, 3
    %p292 = pnand %p290, %p291
    %p293 = pneg %p292
    // Predicated region
    $region49: #{bidaf_forward.20} parent=5 // pred_check
      _
    $region50: #{bidaf_forward.20} parent=5 // pred_check_branch
      %295 = sbr.rel (%p292) target = $region52
    $region51: #{bidaf_forward.20} parent=5 // pred_region
      %s296 = ssub.s32 %s16, 1
      %p297 = scmp.lt.s32.totalorder %s21, 1
      %s298 = scalar_select %p297, %s21, 1
      %s299 = smul.addr %s298, 2
      %s300 = smul.addr %s299, 8
      %s301 = scalar_lea.vmem %s0, %s300
      %p302 = pneg %p42
      %p303 = pneg %p39
      %p304 = scmp.lt.s32.totalorder %s21, 1
      %s305 = scalar_select %p304, %s21, 1
      %s306 = smul.addr %s305, 8
      %s307 = scalar_lea.vmem %s1, %s306
      %p308 = pneg %p68
      %p309 = pneg %p65
      %p310 = scmp.lt.s32.totalorder %s21, 1
      %s311 = scalar_select %p310, %s21, 1
      %s312 = smul.addr %s311, 2
      %s313 = smul.addr %s312, 8
      %s314 = scalar_lea.vmem %s2, %s313
      %p315 = pneg %p94
      %p316 = pneg %p91
      %p317 = scmp.lt.s32.totalorder %s21, 1
      %s318 = scalar_select %p317, %s21, 1
      %s319 = scalar_lea.vmem %s3, %s318
      %p320 = pneg %p120
      %p321 = pneg %p117
      %p322 = pneg %p141
      %p323 = pneg %p138
      %p324 = pneg %p162
      %p325 = pneg %p159
      %p326 = pneg %p183
      %p327 = pneg %p180
      %p328 = pneg %p204
      %p329 = pneg %p201
      %p330 = pneg %p230
      %p331 = pneg %p227
      %p332 = scmp.lt.s32.totalorder %s21, 1
      %s333 = scalar_select %p332, %s21, 1
      %s334 = smul.addr %s333, 2
      %s335 = smul.addr %s334, 8
      %s336 = scalar_lea.vmem %s8, %s335
      %p337 = scmp.lt.s32.totalorder %s21, 1
      %s338 = scalar_select %p337, %s21, 1
      %s339 = smul.addr %s338, 2
      %s340 = smul.addr %s339, 8
      %s341 = scalar_lea.vmem %s0, %s340
      %p342 = scmp.lt.s32.totalorder %s21, 1
      %s343 = scalar_select %p342, %s21, 1
      %s344 = smul.addr %s343, 8
      %s345 = scalar_lea.vmem %s1, %s344
      %p346 = scmp.lt.s32.totalorder %s21, 1
      %s347 = scalar_select %p346, %s21, 1
      %s348 = smul.addr %s347, 2
      %s349 = smul.addr %s348, 8
      %s350 = scalar_lea.vmem %s2, %s349
      %p351 = scmp.lt.s32.totalorder %s21, 1
      %s352 = scalar_select %p351, %s21, 1
      %s353 = scalar_lea.vmem %s3, %s352
      %p354 = scmp.lt.s32.totalorder %s21, 1
      %s355 = scalar_select %p354, %s21, 1
      %s356 = smul.addr %s355, 2
      %s357 = smul.addr %s356, 8
      %s358 = scalar_lea.vmem %s8, %s357
      %v359 = vld [vmem:[%s341] sm:$0xff]
      %v360 = vld [vmem:[%s341 + $0x8] sm:$0xf]
      %v361 = vld [vmem:[%s345] sm:$0xff]
      %v362 = vld [vmem:[%s350] sm:$0xff]
      %v363 = vld [vmem:[%s350 + $0x8] sm:$0xf]
      %v364 = vld [vmem:[%s353] sm:$0x1]
      %v365 = vld [vmem:[%s4] sm:$0xff]
      %v366 = vld [vmem:[%s4 + $0x8] sm:$0xff]
      %v367 = vld [vmem:[%s4 + $0x10] sm:$0xff]
      %v368 = vld [vmem:[%s4 + $0x18] sm:$0xff]
      %vm369 = vcmask 261120
      %v371 = vsel %vm369, %v359, 0
      %v374 = vsel %vm369, %v360, 0
      %376 = vmatprep.subr.mxu0 0.0
      %377 = vmatpush1.msra.mxu0 %v365
      %378 = vmatprep.subr.mxu0 0.0
      %379 = vmatpush1.msra.mxu0 %v366
      %380 = vmatprep.subr.mxu0 0.0
      %381 = vmatpush1.msra.mxu0 %v367
      %382 = vmatprep.subr.mxu0 0.0
      %383 = vmatpush1.msra.mxu0 %v368
      %384 = vmatprep.subr.mxu0 0.0
      %385 = vmatpush1.msra.mxu0 0.0
      %386 = vmatprep.subr.mxu0 0.0
      %387 = vmatpush1.msra.mxu0 0.0
      %388 = vmatprep.subr.mxu0 0.0
      %389 = vmatpush1.msra.mxu0 0.0
      %390 = vmatprep.subr.mxu0 0.0
      %391 = vmatpush1.msra.mxu0 0.0
      %392 = vmatprep.subr.mxu0 0.0
      %393 = vmatpush1.msra.mxu0 0.0
      %394 = vmatprep.subr.mxu0 0.0
      %395 = vmatpush1.msra.mxu0 0.0
      %396 = vmatprep.subr.mxu0 0.0
      %397 = vmatpush1.msra.mxu0 0.0
      %398 = vmatprep.subr.mxu0 0.0
      %399 = vmatpush1.msra.mxu0 0.0
      %400 = vmatprep.subr.mxu0 0.0
      %401 = vmatpush1.msra.mxu0 0.0
      %402 = vmatprep.subr.mxu0 0.0
      %403 = vmatpush1.msra.mxu0 0.0
      %404 = vmatprep.subr.mxu0 0.0
      %405 = vmatpush1.msra.mxu0 0.0
      %406 = vmatprep.subr.mxu0 0.0
      %407 = vmatpush1.msra.mxu0 0.0
      %408 = vmatprep.subr.mxu0 0.0
      %409 = vmatpush1.msra.mxu0 0.0
      %410 = vmatprep.subr.mxu0 0.0
      %411 = vmatpush1.msra.mxu0 0.0
      %412 = vmatprep.subr.mxu0 0.0
      %413 = vmatpush1.msra.mxu0 0.0
      %414 = vmatprep.subr.mxu0 0.0
      %415 = vmatpush1.msra.mxu0 0.0
      %416 = vmatprep.subr.mxu0 0.0
      %417 = vmatpush1.msra.mxu0 0.0
      %418 = vmatprep.subr.mxu0 0.0
      %419 = vmatpush1.msra.mxu0 0.0
      %420 = vmatprep.subr.mxu0 0.0
      %421 = vmatpush1.msra.mxu0 0.0
      %422 = vmatprep.subr.mxu0 0.0
      %423 = vmatpush1.msra.mxu0 0.0
      %424 = vmatprep.subr.mxu0 0.0
      %425 = vmatpush1.msra.mxu0 0.0
      %426 = vmatprep.subr.mxu0 0.0
      %427 = vmatpush1.msra.mxu0 0.0
      %428 = vmatprep.subr.mxu0 0.0
      %429 = vmatpush1.msra.mxu0 0.0
      %430 = vmatprep.subr.mxu0 0.0
      %431 = vmatpush1.msra.mxu0 0.0
      %432 = vmatprep.subr.mxu0 0.0
      %433 = vmatpush1.msra.mxu0 0.0
      %434 = vmatprep.subr.mxu0 0.0
      %435 = vmatpush1.msra.mxu0 0.0
      %436 = vmatprep.subr.mxu0 0.0
      %437 = vmatpush1.msra.mxu0 0.0
      %438 = vmatprep.subr.mxu0 0.0
      %439 = vmatpush1.msra.mxu0 0.0
      %440 = vmatprep.mubr.f32.mxu0 0.0
      %441 = vmatmul.mubr.f32.gmra.mrb[0].mxu0 %v371
      %v442 = vpop.f32.mrb[0].mxu0
      %v443 = vadd.f32 0.0, %v442
      %v444 = vpop.f32.mrb[0].mxu0
      %445 = vmatprep.mubr.f32.mxu0 0.0
      %446 = vmatmul.mubr.f32.gmra.mrb[0].mxu0 %v374
      %v447 = vpop.f32.mrb[0].mxu0
      %v448 = vadd.f32 0.0, %v447
      %v449 = vpop.f32.mrb[0].mxu0
      %450 = vdwg.mxu0
      %v451 = vld [vmem:[%s5] sm:$0x1]
      %v453 = vsel %vm369, %v451, 0
      %v456 = vsel %vm369, %v361, 0
      %458 = vmatprep.subr.mxu0 0.0
      %459 = vmatpush1.xpose.msra.mxu0 %v456
      %460 = vmatprep.subr.mxu0 0.0
      %461 = vmatpush1.xpose.msra.mxu0 0.0
      %462 = vmatprep.subr.mxu0 0.0
      %463 = vmatpush1.xpose.msra.mxu0 0.0
      %464 = vmatprep.subr.mxu0 0.0
      %465 = vmatpush1.xpose.msra.mxu0 0.0
      %466 = vmatprep.subr.mxu0 0.0
      %467 = vmatpush1.xpose.msra.mxu0 0.0
      %468 = vmatprep.subr.mxu0 0.0
      %469 = vmatpush1.xpose.msra.mxu0 0.0
      %470 = vmatprep.subr.mxu0 0.0
      %471 = vmatpush1.xpose.msra.mxu0 0.0
      %472 = vmatprep.subr.mxu0 0.0
      %473 = vmatpush1.xpose.msra.mxu0 0.0
      %474 = vmatprep.subr.mxu0 0.0
      %475 = vmatpush1.xpose.msra.mxu0 0.0
      %476 = vmatprep.subr.mxu0 0.0
      %477 = vmatpush1.xpose.msra.mxu0 0.0
      %478 = vmatprep.subr.mxu0 0.0
      %479 = vmatpush1.xpose.msra.mxu0 0.0
      %480 = vmatprep.subr.mxu0 0.0
      %481 = vmatpush1.xpose.msra.mxu0 0.0
      %482 = vmatprep.subr.mxu0 0.0
      %483 = vmatpush1.xpose.msra.mxu0 0.0
      %484 = vmatprep.subr.mxu0 0.0
      %485 = vmatpush1.xpose.msra.mxu0 0.0
      %486 = vmatprep.subr.mxu0 0.0
      %487 = vmatpush1.xpose.msra.mxu0 0.0
      %488 = vmatprep.subr.mxu0 0.0
      %489 = vmatpush1.xpose.msra.mxu0 0.0
      %490 = vmatprep.subr.mxu0 0.0
      %491 = vmatpush1.xpose.msra.mxu0 0.0
      %492 = vmatprep.subr.mxu0 0.0
      %493 = vmatpush1.xpose.msra.mxu0 0.0
      %494 = vmatprep.subr.mxu0 0.0
      %495 = vmatpush1.xpose.msra.mxu0 0.0
      %496 = vmatprep.subr.mxu0 0.0
      %497 = vmatpush1.xpose.msra.mxu0 0.0
      %498 = vmatprep.subr.mxu0 0.0
      %499 = vmatpush1.xpose.msra.mxu0 0.0
      %500 = vmatprep.subr.mxu0 0.0
      %501 = vmatpush1.xpose.msra.mxu0 0.0
      %502 = vmatprep.subr.mxu0 0.0
      %503 = vmatpush1.xpose.msra.mxu0 0.0
      %504 = vmatprep.subr.mxu0 0.0
      %505 = vmatpush1.xpose.msra.mxu0 0.0
      %506 = vmatprep.subr.mxu0 0.0
      %507 = vmatpush1.xpose.msra.mxu0 0.0
      %508 = vmatprep.subr.mxu0 0.0
      %509 = vmatpush1.xpose.msra.mxu0 0.0
      %510 = vmatprep.subr.mxu0 0.0
      %511 = vmatpush1.xpose.msra.mxu0 0.0
      %512 = vmatprep.subr.mxu0 0.0
      %513 = vmatpush1.xpose.msra.mxu0 0.0
      %514 = vmatprep.subr.mxu0 0.0
      %515 = vmatpush1.xpose.msra.mxu0 0.0
      %516 = vmatprep.subr.mxu0 0.0
      %517 = vmatpush1.xpose.msra.mxu0 0.0
      %518 = vmatprep.subr.mxu0 0.0
      %519 = vmatpush1.xpose.msra.mxu0 0.0
      %520 = vmatprep.subr.mxu0 0.0
      %521 = vmatpush1.xpose.msra.mxu0 0.0
      %522 = vmatprep.mubr.f32.mxu0 0.0
      %523 = vmatmul.mubr.f32.gmra.mrb[0].mxu0 %v453
      %v524 = vpop.f32.mrb[0].mxu0
      %v525 = vadd.f32 0.0, %v524
      %v526 = vpop.f32.mrb[0].mxu0
      %527 = vdwg.mxu0
      %v528 = vld [vmem:[%s6] sm:$0x1]
      %v530 = vlaneseq
      %v531 = vshrl.u32 %v530, 7
      %v532 = vsub.s32 0, %v531
      %v533 = vrot.slane %v528, %v532
      %v535 = vmul.f32 %v359, %v533
      %v536 = vmul.f32 %v360, %v533
      %v538 = vsel %vm369, %v535, 0
      %v541 = vsel %vm369, %v536, 0
      %543 = vmatprep.subr.mxu0 0.0
      %544 = vmatpush1.xpose.msra.mxu0 %v456
      %545 = vmatprep.subr.mxu0 0.0
      %546 = vmatpush1.xpose.msra.mxu0 0.0
      %547 = vmatprep.subr.mxu0 0.0
      %548 = vmatpush1.xpose.msra.mxu0 0.0
      %549 = vmatprep.subr.mxu0 0.0
      %550 = vmatpush1.xpose.msra.mxu0 0.0
      %551 = vmatprep.subr.mxu0 0.0
      %552 = vmatpush1.xpose.msra.mxu0 0.0
      %553 = vmatprep.subr.mxu0 0.0
      %554 = vmatpush1.xpose.msra.mxu0 0.0
      %555 = vmatprep.subr.mxu0 0.0
      %556 = vmatpush1.xpose.msra.mxu0 0.0
      %557 = vmatprep.subr.mxu0 0.0
      %558 = vmatpush1.xpose.msra.mxu0 0.0
      %559 = vmatprep.subr.mxu0 0.0
      %560 = vmatpush1.xpose.msra.mxu0 0.0
      %561 = vmatprep.subr.mxu0 0.0
      %562 = vmatpush1.xpose.msra.mxu0 0.0
      %563 = vmatprep.subr.mxu0 0.0
      %564 = vmatpush1.xpose.msra.mxu0 0.0
      %565 = vmatprep.subr.mxu0 0.0
      %566 = vmatpush1.xpose.msra.mxu0 0.0
      %567 = vmatprep.subr.mxu0 0.0
      %568 = vmatpush1.xpose.msra.mxu0 0.0
      %569 = vmatprep.subr.mxu0 0.0
      %570 = vmatpush1.xpose.msra.mxu0 0.0
      %571 = vmatprep.subr.mxu0 0.0
      %572 = vmatpush1.xpose.msra.mxu0 0.0
      %573 = vmatprep.subr.mxu0 0.0
      %574 = vmatpush1.xpose.msra.mxu0 0.0
      %575 = vmatprep.subr.mxu0 0.0
      %576 = vmatpush1.xpose.msra.mxu0 0.0
      %577 = vmatprep.subr.mxu0 0.0
      %578 = vmatpush1.xpose.msra.mxu0 0.0
      %579 = vmatprep.subr.mxu0 0.0
      %580 = vmatpush1.xpose.msra.mxu0 0.0
      %581 = vmatprep.subr.mxu0 0.0
      %582 = vmatpush1.xpose.msra.mxu0 0.0
      %583 = vmatprep.subr.mxu0 0.0
      %584 = vmatpush1.xpose.msra.mxu0 0.0
      %585 = vmatprep.subr.mxu0 0.0
      %586 = vmatpush1.xpose.msra.mxu0 0.0
      %587 = vmatprep.subr.mxu0 0.0
      %588 = vmatpush1.xpose.msra.mxu0 0.0
      %589 = vmatprep.subr.mxu0 0.0
      %590 = vmatpush1.xpose.msra.mxu0 0.0
      %591 = vmatprep.subr.mxu0 0.0
      %592 = vmatpush1.xpose.msra.mxu0 0.0
      %593 = vmatprep.subr.mxu0 0.0
      %594 = vmatpush1.xpose.msra.mxu0 0.0
      %595 = vmatprep.subr.mxu0 0.0
      %596 = vmatpush1.xpose.msra.mxu0 0.0
      %597 = vmatprep.subr.mxu0 0.0
      %598 = vmatpush1.xpose.msra.mxu0 0.0
      %599 = vmatprep.subr.mxu0 0.0
      %600 = vmatpush1.xpose.msra.mxu0 0.0
      %601 = vmatprep.subr.mxu0 0.0
      %602 = vmatpush1.xpose.msra.mxu0 0.0
      %603 = vmatprep.subr.mxu0 0.0
      %604 = vmatpush1.xpose.msra.mxu0 0.0
      %605 = vmatprep.subr.mxu0 0.0
      %606 = vmatpush1.xpose.msra.mxu0 0.0
      %607 = vmatprep.mubr.f32.mxu0 0.0
      %608 = vmatmul.mubr.f32.gmra.mrb[0].mxu0 %v538
      %v609 = vpop.f32.mrb[0].mxu0
      %v610 = vadd.f32 0.0, %v609
      %v611 = vpop.f32.mrb[0].mxu0
      %612 = vmatprep.mubr.f32.mxu0 0.0
      %613 = vmatmul.mubr.f32.gmra.mrb[0].mxu0 %v541
      %v614 = vpop.f32.mrb[0].mxu0
      %v615 = vadd.f32 0.0, %v614
      %v616 = vpop.f32.mrb[0].mxu0
      %617 = vdwg.mxu0
      %619 = vset.pattern.permute.xlu0 0
      %620 = vperm.xlu0 %619, %v443
      %v621 = vpop.permute.xlu0 %620
      %624 = vset.pattern.permute.xlu0 0
      %625 = vperm.xlu0 %624, %v448
      %v626 = vpop.permute.xlu0 %625
      %v628 = vlaneseq
      %v629 = vshrl.u32 %v628, 7
      %v630 = vsub.s32 0, %v629
      %v631 = vrot.slane %v525, %v630
      %v632 = vadd.f32 %v621, %v631
      %v633 = vadd.f32 %v626, %v631
      %v634 = vadd.f32 %v632, %v610
      %v635 = vadd.f32 %v633, %v615
      %v636 = vld [vmem:[#allocation2] sm:$0x1]
      %v638 = vlaneseq
      %v639 = vshrl.u32 %v638, 7
      %v640 = vsub.s32 0, %v639
      %v641 = vrot.slane %v636, %v640
      %642 = vset.pattern.permute.xlu0 0
      %643 = vperm.xlu0 %642, %v641
      %v644 = vpop.permute.xlu0 %643
      %v646 = vadd.f32 %v634, %v644
      %v647 = vadd.f32 %v635, %v644
      %v649 = vlaneseq
      %v650 = vshrl.u32 %v649, 7
      %v651 = vsub.s32 0, %v650
      %v652 = vrot.slane %v364, %v651
      %v654 = vmul.f32 %v652, %v646
      %v655 = vmul.f32 %v652, %v647
      %v656 = vsub.f32 1.0, %v364
      %v657 = vmul.f32 %v656, -1e+30
      %v659 = vlaneseq
      %v660 = vshrl.u32 %v659, 7
      %v661 = vsub.s32 0, %v660
      %v662 = vrot.slane %v657, %v661
      %v664 = vadd.f32 %v654, %v662
      %v665 = vadd.f32 %v655, %v662
      %vm666 = vcmask 64512
      %v667 = vsel %vm666, %v664, -inf
      %668 = vmax.xlane.f32.xlu0 %v667
      %v669 = vpop.xlane.xlu0 %668
      %vm670 = vcmask 60416
      %v671 = vsel %vm670, %v665, -inf
      %672 = vmax.xlane.f32.xlu0 %v671
      %v673 = vpop.xlane.xlu0 %672
      %v674 = vsub.f32 %v664, %v669
      %v675 = vsub.f32 %v665, %v673
      %v676 = vmul.f32 %v674, 1.442695
      %v677 = vpow.pop %v676
      %v678 = vmul.f32 %v675, 1.442695
      %v679 = vpow.pop %v678
      %v680 = vsel %vm666, %v677, 0.0
      %681 = vadd.xlane.f32.xlu0 %v680
      %v682 = vpop.xlane.xlu0 %681
      %v683 = vsel %vm670, %v679, 0.0
      %684 = vadd.xlane.f32.xlu0 %v683
      %v685 = vpop.xlane.xlu0 %684
      %v686 = vrcp.pop %v682
      %v687 = vrcp.pop %v685
      %v688 = vmul.f32 %v677, %v686
      %v689 = vmul.f32 %v679, %v687
      %691 = vset.pattern.permute.xlu0 0
      %692 = vperm.xlu0 %691, %v362
      %v693 = vpop.permute.xlu0 %692
      %696 = vset.pattern.permute.xlu0 0
      %697 = vperm.xlu0 %696, %v363
      %v698 = vpop.permute.xlu0 %697
      %v700 = vmul.f32 %v693, %v646
      %v701 = vmul.f32 %v698, %v647
      %v702 = vsub.f32 1.0, %v362
      %v703 = vsub.f32 1.0, %v363
      %v704 = vmul.f32 %v702, -1e+30
      %v705 = vmul.f32 %v703, -1e+30
      %707 = vset.pattern.permute.xlu0 0
      %708 = vperm.xlu0 %707, %v704
      %v709 = vpop.permute.xlu0 %708
      %712 = vset.pattern.permute.xlu0 0
      %713 = vperm.xlu0 %712, %v705
      %v714 = vpop.permute.xlu0 %713
      %v716 = vadd.f32 %v700, %v709
      %v717 = vadd.f32 %v701, %v714
      %v718 = vsel %vm666, %v716, -inf
      %v719 = vsel %vm670, %v717, -inf
      %v720 = vmax.f32 %v718, %v719
      %v721 = vrot.slane %v720, 4
      %v722 = vmax.f32 %v720, %v721
      %v723 = vrot.slane %v722, 2
      %v724 = vmax.f32 %v722, %v723
      %v725 = vrot.slane %v724, 1
      %v726 = vmax.f32 %v724, %v725
      %v727 = vsub.f32 %v716, %v726
      %v728 = vsub.f32 %v717, %v726
      %v729 = vmul.f32 %v727, 1.442695
      %v730 = vpow.pop %v729
      %v731 = vmul.f32 %v728, 1.442695
      %v732 = vpow.pop %v731
      %v733 = vsel %vm666, %v730, 0.0
      %v734 = vsel %vm670, %v732, 0.0
      %v735 = vadd.f32 %v733, %v734
      %v736 = vrot.slane %v735, 4
      %v737 = vadd.f32 %v735, %v736
      %v738 = vrot.slane %v737, 2
      %v739 = vadd.f32 %v737, %v738
      %v740 = vrot.slane %v739, 1
      %v741 = vadd.f32 %v739, %v740
      %v742 = vrcp.pop %v741
      %v743 = vmul.f32 %v730, %v742
      %v744 = vmul.f32 %v732, %v742
      %v746 = vsel %vm666, %v688, 0
      %v749 = vsel %vm666, %v689, 0
      %751 = vmatprep.subr.mxu0 0.0
      %752 = vmatpush1.msra.mxu0 %v361
      %753 = vmatprep.subr.mxu0 0.0
      %754 = vmatpush1.msra.mxu0 0.0
      %755 = vmatprep.subr.mxu0 0.0
      %756 = vmatpush1.msra.mxu0 0.0
      %757 = vmatprep.subr.mxu0 0.0
      %758 = vmatpush1.msra.mxu0 0.0
      %759 = vmatprep.subr.mxu0 0.0
      %760 = vmatpush1.msra.mxu0 0.0
      %761 = vmatprep.subr.mxu0 0.0
      %762 = vmatpush1.msra.mxu0 0.0
      %763 = vmatprep.subr.mxu0 0.0
      %764 = vmatpush1.msra.mxu0 0.0
      %765 = vmatprep.subr.mxu0 0.0
      %766 = vmatpush1.msra.mxu0 0.0
      %767 = vmatprep.subr.mxu0 0.0
      %768 = vmatpush1.msra.mxu0 0.0
      %769 = vmatprep.subr.mxu0 0.0
      %770 = vmatpush1.msra.mxu0 0.0
      %771 = vmatprep.subr.mxu0 0.0
      %772 = vmatpush1.msra.mxu0 0.0
      %773 = vmatprep.subr.mxu0 0.0
      %774 = vmatpush1.msra.mxu0 0.0
      %775 = vmatprep.subr.mxu0 0.0
      %776 = vmatpush1.msra.mxu0 0.0
      %777 = vmatprep.subr.mxu0 0.0
      %778 = vmatpush1.msra.mxu0 0.0
      %779 = vmatprep.subr.mxu0 0.0
      %780 = vmatpush1.msra.mxu0 0.0
      %781 = vmatprep.subr.mxu0 0.0
      %782 = vmatpush1.msra.mxu0 0.0
      %783 = vmatprep.subr.mxu0 0.0
      %784 = vmatpush1.msra.mxu0 0.0
      %785 = vmatprep.subr.mxu0 0.0
      %786 = vmatpush1.msra.mxu0 0.0
      %787 = vmatprep.subr.mxu0 0.0
      %788 = vmatpush1.msra.mxu0 0.0
      %789 = vmatprep.subr.mxu0 0.0
      %790 = vmatpush1.msra.mxu0 0.0
      %791 = vmatprep.subr.mxu0 0.0
      %792 = vmatpush1.msra.mxu0 0.0
      %793 = vmatprep.subr.mxu0 0.0
      %794 = vmatpush1.msra.mxu0 0.0
      %795 = vmatprep.subr.mxu0 0.0
      %796 = vmatpush1.msra.mxu0 0.0
      %797 = vmatprep.subr.mxu0 0.0
      %798 = vmatpush1.msra.mxu0 0.0
      %799 = vmatprep.subr.mxu0 0.0
      %800 = vmatpush1.msra.mxu0 0.0
      %801 = vmatprep.subr.mxu0 0.0
      %802 = vmatpush1.msra.mxu0 0.0
      %803 = vmatprep.subr.mxu0 0.0
      %804 = vmatpush1.msra.mxu0 0.0
      %805 = vmatprep.subr.mxu0 0.0
      %806 = vmatpush1.msra.mxu0 0.0
      %807 = vmatprep.subr.mxu0 0.0
      %808 = vmatpush1.msra.mxu0 0.0
      %809 = vmatprep.subr.mxu0 0.0
      %810 = vmatpush1.msra.mxu0 0.0
      %811 = vmatprep.subr.mxu0 0.0
      %812 = vmatpush1.msra.mxu0 0.0
      %813 = vmatprep.subr.mxu0 0.0
      %814 = vmatpush1.msra.mxu0 0.0
      %815 = vmatprep.mubr.f32.mxu0 0.0
      %816 = vmatmul.mubr.f32.gmra.mrb[0].mxu0 %v746
      %v817 = vpop.f32.mrb[0].mxu0
      %v818 = vadd.f32 0.0, %v817
      %v819 = vpop.f32.mrb[0].mxu0
      %820 = vmatprep.mubr.f32.mxu0 0.0
      %821 = vmatmul.mubr.f32.gmra.mrb[0].mxu0 %v749
      %v822 = vpop.f32.mrb[0].mxu0
      %v823 = vadd.f32 0.0, %v822
      %v824 = vpop.f32.mrb[0].mxu0
      %825 = vdwg.mxu0
      %v827 = vsel %vm666, %v743, 0
      %v830 = vsel %vm666, %v744, 0
      %832 = vmatprep.subr.mxu0 0.0
      %833 = vmatpush1.xpose.msra.mxu0 %v827
      %834 = vmatprep.subr.mxu0 0.0
      %835 = vmatpush1.xpose.msra.mxu0 %v830
      %836 = vmatprep.subr.mxu0 0.0
      %837 = vmatpush1.xpose.msra.mxu0 0.0
      %838 = vmatprep.subr.mxu0 0.0
      %839 = vmatpush1.xpose.msra.mxu0 0.0
      %840 = vmatprep.subr.mxu0 0.0
      %841 = vmatpush1.xpose.msra.mxu0 0.0
      %842 = vmatprep.subr.mxu0 0.0
      %843 = vmatpush1.xpose.msra.mxu0 0.0
      %844 = vmatprep.subr.mxu0 0.0
      %845 = vmatpush1.xpose.msra.mxu0 0.0
      %846 = vmatprep.subr.mxu0 0.0
      %847 = vmatpush1.xpose.msra.mxu0 0.0
      %848 = vmatprep.subr.mxu0 0.0
      %849 = vmatpush1.xpose.msra.mxu0 0.0
      %850 = vmatprep.subr.mxu0 0.0
      %851 = vmatpush1.xpose.msra.mxu0 0.0
      %852 = vmatprep.subr.mxu0 0.0
      %853 = vmatpush1.xpose.msra.mxu0 0.0
      %854 = vmatprep.subr.mxu0 0.0
      %855 = vmatpush1.xpose.msra.mxu0 0.0
      %856 = vmatprep.subr.mxu0 0.0
      %857 = vmatpush1.xpose.msra.mxu0 0.0
      %858 = vmatprep.subr.mxu0 0.0
      %859 = vmatpush1.xpose.msra.mxu0 0.0
      %860 = vmatprep.subr.mxu0 0.0
      %861 = vmatpush1.xpose.msra.mxu0 0.0
      %862 = vmatprep.subr.mxu0 0.0
      %863 = vmatpush1.xpose.msra.mxu0 0.0
      %864 = vmatprep.subr.mxu0 0.0
      %865 = vmatpush1.xpose.msra.mxu0 0.0
      %866 = vmatprep.subr.mxu0 0.0
      %867 = vmatpush1.xpose.msra.mxu0 0.0
      %868 = vmatprep.subr.mxu0 0.0
      %869 = vmatpush1.xpose.msra.mxu0 0.0
      %870 = vmatprep.subr.mxu0 0.0
      %871 = vmatpush1.xpose.msra.mxu0 0.0
      %872 = vmatprep.subr.mxu0 0.0
      %873 = vmatpush1.xpose.msra.mxu0 0.0
      %874 = vmatprep.subr.mxu0 0.0
      %875 = vmatpush1.xpose.msra.mxu0 0.0
      %876 = vmatprep.subr.mxu0 0.0
      %877 = vmatpush1.xpose.msra.mxu0 0.0
      %878 = vmatprep.subr.mxu0 0.0
      %879 = vmatpush1.xpose.msra.mxu0 0.0
      %880 = vmatprep.subr.mxu0 0.0
      %881 = vmatpush1.xpose.msra.mxu0 0.0
      %882 = vmatprep.subr.mxu0 0.0
      %883 = vmatpush1.xpose.msra.mxu0 0.0
      %884 = vmatprep.subr.mxu0 0.0
      %885 = vmatpush1.xpose.msra.mxu0 0.0
      %886 = vmatprep.subr.mxu0 0.0
      %887 = vmatpush1.xpose.msra.mxu0 0.0
      %888 = vmatprep.subr.mxu0 0.0
      %889 = vmatpush1.xpose.msra.mxu0 0.0
      %890 = vmatprep.subr.mxu0 0.0
      %891 = vmatpush1.xpose.msra.mxu0 0.0
      %892 = vmatprep.subr.mxu0 0.0
      %893 = vmatpush1.xpose.msra.mxu0 0.0
      %894 = vmatprep.subr.mxu0 0.0
      %895 = vmatpush1.xpose.msra.mxu0 0.0
      %896 = vmatprep.mubr.f32.mxu0 0.0
      %897 = vmatmul.mubr.f32.gmra.mrb[0].mxu0 %v746
      %v898 = vpop.f32.mrb[0].mxu0
      %v899 = vadd.f32 0.0, %v898
      %v900 = vpop.f32.mrb[0].mxu0
      %901 = vmatprep.mubr.f32.mxu0 0.0
      %902 = vmatmul.mubr.f32.gmra.mrb[0].mxu0 %v749
      %v903 = vpop.f32.mrb[0].mxu0
      %v904 = vadd.f32 0.0, %v903
      %v905 = vpop.f32.mrb[0].mxu0
      %906 = vdwg.mxu0
      %vm907 = vcmask 97280
      %v909 = vsel %vm907, %v899, 0
      %v912 = vsel %vm907, %v904, 0
      %vm914 = vcmask 1043456
      %v915 = vsel %vm914, %v360, 0
      %917 = vmatprep.subr.mxu0 0.0
      %918 = vmatpush1.msra.mxu0 %v359
      %919 = vmatprep.subr.mxu0 0.0
      %920 = vmatpush1.msra.mxu0 %v915
      %921 = vmatprep.subr.mxu0 0.0
      %922 = vmatpush1.msra.mxu0 0.0
      %923 = vmatprep.subr.mxu0 0.0
      %924 = vmatpush1.msra.mxu0 0.0
      %925 = vmatprep.subr.mxu0 0.0
      %926 = vmatpush1.msra.mxu0 0.0
      %927 = vmatprep.subr.mxu0 0.0
      %928 = vmatpush1.msra.mxu0 0.0
      %929 = vmatprep.subr.mxu0 0.0
      %930 = vmatpush1.msra.mxu0 0.0
      %931 = vmatprep.subr.mxu0 0.0
      %932 = vmatpush1.msra.mxu0 0.0
      %933 = vmatprep.subr.mxu0 0.0
      %934 = vmatpush1.msra.mxu0 0.0
      %935 = vmatprep.subr.mxu0 0.0
      %936 = vmatpush1.msra.mxu0 0.0
      %937 = vmatprep.subr.mxu0 0.0
      %938 = vmatpush1.msra.mxu0 0.0
      %939 = vmatprep.subr.mxu0 0.0
      %940 = vmatpush1.msra.mxu0 0.0
      %941 = vmatprep.subr.mxu0 0.0
      %942 = vmatpush1.msra.mxu0 0.0
      %943 = vmatprep.subr.mxu0 0.0
      %944 = vmatpush1.msra.mxu0 0.0
      %945 = vmatprep.subr.mxu0 0.0
      %946 = vmatpush1.msra.mxu0 0.0
      %947 = vmatprep.subr.mxu0 0.0
      %948 = vmatpush1.msra.mxu0 0.0
      %949 = vmatprep.subr.mxu0 0.0
      %950 = vmatpush1.msra.mxu0 0.0
      %951 = vmatprep.subr.mxu0 0.0
      %952 = vmatpush1.msra.mxu0 0.0
      %953 = vmatprep.subr.mxu0 0.0
      %954 = vmatpush1.msra.mxu0 0.0
      %955 = vmatprep.subr.mxu0 0.0
      %956 = vmatpush1.msra.mxu0 0.0
      %957 = vmatprep.subr.mxu0 0.0
      %958 = vmatpush1.msra.mxu0 0.0
      %959 = vmatprep.subr.mxu0 0.0
      %960 = vmatpush1.msra.mxu0 0.0
      %961 = vmatprep.subr.mxu0 0.0
      %962 = vmatpush1.msra.mxu0 0.0
      %963 = vmatprep.subr.mxu0 0.0
      %964 = vmatpush1.msra.mxu0 0.0
      %965 = vmatprep.subr.mxu0 0.0
      %966 = vmatpush1.msra.mxu0 0.0
      %967 = vmatprep.subr.mxu0 0.0
      %968 = vmatpush1.msra.mxu0 0.0
      %969 = vmatprep.subr.mxu0 0.0
      %970 = vmatpush1.msra.mxu0 0.0
      %971 = vmatprep.subr.mxu0 0.0
      %972 = vmatpush1.msra.mxu0 0.0
      %973 = vmatprep.subr.mxu0 0.0
      %974 = vmatpush1.msra.mxu0 0.0
      %975 = vmatprep.subr.mxu0 0.0
      %976 = vmatpush1.msra.mxu0 0.0
      %977 = vmatprep.subr.mxu0 0.0
      %978 = vmatpush1.msra.mxu0 0.0
      %979 = vmatprep.subr.mxu0 0.0
      %980 = vmatpush1.msra.mxu0 0.0
      %981 = vmatprep.mubr.f32.mxu0 0.0
      %982 = vmatmul.mubr.f32.gmra.mrb[0].mxu0 %v909
      %v983 = vpop.f32.mrb[0].mxu0
      %v984 = vadd.f32 0.0, %v983
      %v985 = vpop.f32.mrb[0].mxu0
      %986 = vmatprep.mubr.f32.mxu0 0.0
      %987 = vmatmul.mubr.f32.gmra.mrb[0].mxu0 %v912
      %v988 = vpop.f32.mrb[0].mxu0
      %v989 = vadd.f32 0.0, %v988
      %v990 = vpop.f32.mrb[0].mxu0
      %991 = vdwg.mxu0
      %v992 = vmul.f32 %v359, %v818
      %v993 = vmul.f32 %v360, %v823
      %v994 = vmul.f32 %v359, %v984
      %v995 = vmul.f32 %v360, %v989
      %998 = vrot.lane.b32.xlu0 %v818, 32
      %v999 = vpop.permute.xlu0 %998
      %1000 = vrot.lane.b32.xlu0 %v823, 32
      %v1001 = vpop.permute.xlu0 %1000
      %1006 = vrot.lane.b32.xlu0 %v992, 64
      %v1007 = vpop.permute.xlu0 %1006
      %1008 = vrot.lane.b32.xlu0 %v993, 64
      %v1009 = vpop.permute.xlu0 %1008
      %1014 = vrot.lane.b32.xlu0 %v994, 96
      %v1015 = vpop.permute.xlu0 %1014
      %1016 = vrot.lane.b32.xlu0 %v995, 96
      %v1017 = vpop.permute.xlu0 %1016
      %v1020 = vsel %vm369, %v359, %v999
      %v1021 = vsel %vm369, %v360, %v1001
      %vm1022 = vcmask 523264
      %v1023 = vsel %vm1022, %v1020, %v1007
      %v1024 = vsel %vm1022, %v1021, %v1009
      %vm1025 = vcmask 785408
      %v1026 = vsel %vm1025, %v1023, %v1015
      %v1027 = vsel %vm1025, %v1024, %v1017
      %1028 = vst [vmem:[%s358] sm:$0xff] %v1026
      %1029 = vst [vmem:[%s358 + $0x8] sm:$0xf] %v1027
      %p1030 = scmp.lt.s32.totalorder %s21, 1
      %s1031 = scalar_select %p1030, %s21, 1
      %s1032 = smul.addr %s1031, 2
      %s1033 = smul.addr %s1032, 8
      %s1034 = scalar_lea.vmem %s8, %s1033
      // Predicated region
      $region53: #{bidaf_forward.20} parent=51 // pred_check
        %p1035 = pneg %p227
      $region54: #{bidaf_forward.20} parent=51 // pred_check_branch
        %1037 = sbr.rel (%p1035) target = $region56
      $region55: #{bidaf_forward.20} parent=51 // pred_region
        _
      $region56: #{bidaf_forward.20} parent=51 // pred_fallthru
        _
    $region52: #{bidaf_forward.20} parent=5 // pred_fallthru
      _
    %p1038 = scmp.le.s32.totalorder 2, %s16
    // Predicated region
    $region57: #{bidaf_forward.20} parent=5 // pred_check
      %p1039 = pneg %p1038
    $region58: #{bidaf_forward.20} parent=5 // pred_check_branch
      %1041 = sbr.rel (%p1039) target = $region60
    $region59: #{bidaf_forward.20} parent=5 // pred_region
      %s1042 = ssub.s32 %s16, 2
      // Predicated region
      $region61: #{bidaf_forward.20} parent=59 // pred_check
        %p1043 = pneg %p233
      $region62: #{bidaf_forward.20} parent=59 // pred_check_branch
        %1045 = sbr.rel (%p1043) target = $region64
      $region63: #{bidaf_forward.20} parent=59 // pred_region
        %p1046 = scmp.lt.s32.totalorder %s22, 1
        %s1047 = scalar_select %p1046, %s22, 1
        %s1048 = smul.addr %s1047, 2
        %s1049 = smul.addr %s1048, 8
        %s1050 = scalar_lea.vmem %s8, %s1049
      $region64: #{bidaf_forward.20} parent=59 // pred_fallthru
        _
    $region60: #{bidaf_forward.20} parent=5 // pred_fallthru
      _
  $region6: #{bidaf_forward.20} parent=0 // loop_footer
    %s20 = sadd.s32 1, %s16
  $region7: #{bidaf_forward.20} parent=0 // loop_footer_branch
    %15 = sbr.rel target = $region3
  $region8: #{bidaf_forward.20} parent=0 // loop_exit
    _

// kernel: bidaf_forward.23
$region0: #{bidaf_forward.23}
  #allocation0 [shape = 'u32[]', space=smem, size = 0x4, offset = 0x4, fixed_abs, tag = 'smem constant byte address 0x4 - core index']
  #allocation1 [shape = 'u32[144,128]{1,0:T(1,128)}', space=vmem, size = 0x12000, scoped, tag = 'internal scratch']
  %s0 = inlined_call_operand.vmem [shape: f32[24,32], index: 0, kind: input, shape index: {}]
  %s1 = inlined_call_operand.vmem [shape: f32[128,32], index: 1, kind: input, shape index: {}]
  %s2 = inlined_call_operand.vmem [shape: f32[1,128], index: 2, kind: input, shape index: {}]
  %s3 = inlined_call_operand.vmem [shape: f32[24,128], index: 3, kind: output, shape index: {}]
  %s4 = sld [smem:[#allocation0]]
  $region22: #{bidaf_forward.23} parent=0
    _
  %s6 = ssub.s32 1, %s4
  %s7 = scalar_select 0, %s6, %s4
  // Predicated region
  $region2: #{bidaf_forward.23} parent=0 // pred_check
    _
  $region3: #{bidaf_forward.23} parent=0 // pred_check_branch
    %9 = sbr.rel (0) target = $region5
  $region4: #{bidaf_forward.23} parent=0 // pred_region
    _
  $region5: #{bidaf_forward.23} parent=0 // pred_fallthru
    _
  // Predicated region
  $region6: #{bidaf_forward.23} parent=0 // pred_check
    _
  $region7: #{bidaf_forward.23} parent=0 // pred_check_branch
    %11 = sbr.rel (0) target = $region9
  $region8: #{bidaf_forward.23} parent=0 // pred_region
    _
  $region9: #{bidaf_forward.23} parent=0 // pred_fallthru
    _
  // Predicated region
  $region10: #{bidaf_forward.23} parent=0 // pred_check
    _
  $region11: #{bidaf_forward.23} parent=0 // pred_check_branch
    %13 = sbr.rel (0) target = $region13
  $region12: #{bidaf_forward.23} parent=0 // pred_region
    _
  $region13: #{bidaf_forward.23} parent=0 // pred_fallthru
    _
  %v14 = vld [vmem:[%s0] sm:$0xff]
  %v15 = vld [vmem:[%s0 + $0x8] sm:$0xff]
  %v16 = vld [vmem:[%s0 + $0x10] sm:$0xff]
  %v17 = vld [vmem:[%s1] sm:$0xff]
  %v18 = vld [vmem:[%s1 + $0x8] sm:$0xff]
  %v19 = vld [vmem:[%s1 + $0x10] sm:$0xff]
  %v20 = vld [vmem:[%s1 + $0x18] sm:$0xff]
  %v21 = vld [vmem:[%s1 + $0x20] sm:$0xff]
  %v22 = vld [vmem:[%s1 + $0x28] sm:$0xff]
  %v23 = vld [vmem:[%s1 + $0x30] sm:$0xff]
  %v24 = vld [vmem:[%s1 + $0x38] sm:$0xff]
  %v25 = vld [vmem:[%s1 + $0x40] sm:$0xff]
  %v26 = vld [vmem:[%s1 + $0x48] sm:$0xff]
  %v27 = vld [vmem:[%s1 + $0x50] sm:$0xff]
  %v28 = vld [vmem:[%s1 + $0x58] sm:$0xff]
  %v29 = vld [vmem:[%s1 + $0x60] sm:$0xff]
  %v30 = vld [vmem:[%s1 + $0x68] sm:$0xff]
  %v31 = vld [vmem:[%s1 + $0x70] sm:$0xff]
  %v32 = vld [vmem:[%s1 + $0x78] sm:$0xff]
  %v33 = vld [vmem:[%s2] sm:$0x1]
  %v35 = vlaneseq
  %v36 = vshrl.u32 %v35, 7
  %v37 = vsub.s32 0, %v36
  %v38 = vrot.slane %v33, %v37
  %vm40 = vcmask 261120
  %v42 = vsel %vm40, %v14, 0
  %v45 = vsel %vm40, %v15, 0
  %v48 = vsel %vm40, %v16, 0
  %v51 = vsel %vm40, %v17, 0
  %v54 = vsel %vm40, %v18, 0
  %v57 = vsel %vm40, %v19, 0
  %v60 = vsel %vm40, %v20, 0
  %v63 = vsel %vm40, %v21, 0
  %v66 = vsel %vm40, %v22, 0
  %v69 = vsel %vm40, %v23, 0
  %v72 = vsel %vm40, %v24, 0
  %v75 = vsel %vm40, %v25, 0
  %v78 = vsel %vm40, %v26, 0
  %v81 = vsel %vm40, %v27, 0
  %v84 = vsel %vm40, %v28, 0
  %v87 = vsel %vm40, %v29, 0
  %v90 = vsel %vm40, %v30, 0
  %v93 = vsel %vm40, %v31, 0
  %v96 = vsel %vm40, %v32, 0
  %98 = vmatprep.subr.mxu0 0.0
  %99 = vmatpush1.xpose.msra.mxu0 %v51
  %100 = vmatprep.subr.mxu0 0.0
  %101 = vmatpush1.xpose.msra.mxu0 %v54
  %102 = vmatprep.subr.mxu0 0.0
  %103 = vmatpush1.xpose.msra.mxu0 %v57
  %104 = vmatprep.subr.mxu0 0.0
  %105 = vmatpush1.xpose.msra.mxu0 %v60
  %106 = vmatprep.subr.mxu0 0.0
  %107 = vmatpush1.xpose.msra.mxu0 %v63
  %108 = vmatprep.subr.mxu0 0.0
  %109 = vmatpush1.xpose.msra.mxu0 %v66
  %110 = vmatprep.subr.mxu0 0.0
  %111 = vmatpush1.xpose.msra.mxu0 %v69
  %112 = vmatprep.subr.mxu0 0.0
  %113 = vmatpush1.xpose.msra.mxu0 %v72
  %114 = vmatprep.subr.mxu0 0.0
  %115 = vmatpush1.xpose.msra.mxu0 %v75
  %116 = vmatprep.subr.mxu0 0.0
  %117 = vmatpush1.xpose.msra.mxu0 %v78
  %118 = vmatprep.subr.mxu0 0.0
  %119 = vmatpush1.xpose.msra.mxu0 %v81
  %120 = vmatprep.subr.mxu0 0.0
  %121 = vmatpush1.xpose.msra.mxu0 %v84
  %122 = vmatprep.subr.mxu0 0.0
  %123 = vmatpush1.xpose.msra.mxu0 %v87
  %124 = vmatprep.subr.mxu0 0.0
  %125 = vmatpush1.xpose.msra.mxu0 %v90
  %126 = vmatprep.subr.mxu0 0.0
  %127 = vmatpush1.xpose.msra.mxu0 %v93
  %128 = vmatprep.subr.mxu0 0.0
  %129 = vmatpush1.xpose.msra.mxu0 %v96
  %130 = vmatprep.subr.mxu0 0.0
  %131 = vmatpush1.xpose.msra.mxu0 0.0
  %132 = vmatprep.subr.mxu0 0.0
  %133 = vmatpush1.xpose.msra.mxu0 0.0
  %134 = vmatprep.subr.mxu0 0.0
  %135 = vmatpush1.xpose.msra.mxu0 0.0
  %136 = vmatprep.subr.mxu0 0.0
  %137 = vmatpush1.xpose.msra.mxu0 0.0
  %138 = vmatprep.subr.mxu0 0.0
  %139 = vmatpush1.xpose.msra.mxu0 0.0
  %140 = vmatprep.subr.mxu0 0.0
  %141 = vmatpush1.xpose.msra.mxu0 0.0
  %142 = vmatprep.subr.mxu0 0.0
  %143 = vmatpush1.xpose.msra.mxu0 0.0
  %144 = vmatprep.subr.mxu0 0.0
  %145 = vmatpush1.xpose.msra.mxu0 0.0
  %146 = vmatprep.subr.mxu0 0.0
  %147 = vmatpush1.xpose.msra.mxu0 0.0
  %148 = vmatprep.subr.mxu0 0.0
  %149 = vmatpush1.xpose.msra.mxu0 0.0
  %150 = vmatprep.subr.mxu0 0.0
  %151 = vmatpush1.xpose.msra.mxu0 0.0
  %152 = vmatprep.subr.mxu0 0.0
  %153 = vmatpush1.xpose.msra.mxu0 0.0
  %154 = vmatprep.subr.mxu0 0.0
  %155 = vmatpush1.xpose.msra.mxu0 0.0
  %156 = vmatprep.subr.mxu0 0.0
  %157 = vmatpush1.xpose.msra.mxu0 0.0
  %158 = vmatprep.subr.mxu0 0.0
  %159 = vmatpush1.xpose.msra.mxu0 0.0
  %160 = vmatprep.subr.mxu0 0.0
  %161 = vmatpush1.xpose.msra.mxu0 0.0
  %162 = vmatprep.mubr.f32.mxu0 0.0
  %163 = vmatmul.mubr.f32.gmra.mrb[0].mxu0 %v42
  %v164 = vpop.f32.mrb[0].mxu0
  %v165 = vadd.f32 %v38, %v164
  %v166 = vpop.f32.mrb[0].mxu0
  %167 = vmatprep.mubr.f32.mxu0 0.0
  %168 = vmatmul.mubr.f32.gmra.mrb[0].mxu0 %v45
  %v169 = vpop.f32.mrb[0].mxu0
  %v170 = vadd.f32 %v38, %v169
  %v171 = vpop.f32.mrb[0].mxu0
  %172 = vmatprep.mubr.f32.mxu0 0.0
  %173 = vmatmul.mubr.f32.gmra.mrb[0].mxu0 %v48
  %v174 = vpop.f32.mrb[0].mxu0
  %v175 = vadd.f32 %v38, %v174
  %v176 = vpop.f32.mrb[0].mxu0
  %177 = vdwg.mxu0
  %178 = vst [vmem:[%s3] sm:$0xff] %v165
  %179 = vst [vmem:[%s3 + $0x8] sm:$0xff] %v170
  %180 = vst [vmem:[%s3 + $0x10] sm:$0xff] %v175
  // Predicated region
  $region14: #{bidaf_forward.23} parent=0 // pred_check
    _
  $region15: #{bidaf_forward.23} parent=0 // pred_check_branch
    %182 = sbr.rel (0) target = $region17
  $region16: #{bidaf_forward.23} parent=0 // pred_region
    _
  $region17: #{bidaf_forward.23} parent=0 // pred_fallthru
    _
  // Predicated region
  $region18: #{bidaf_forward.23} parent=0 // pred_check
    _
  $region19: #{bidaf_forward.23} parent=0 // pred_check_branch
    %184 = sbr.rel (0) target = $region21
  $region20: #{bidaf_forward.23} parent=0 // pred_region
    _
  $region21: #{bidaf_forward.23} parent=0 // pred_fallthru
    _

// kernel: bidaf_forward.27
$region0: #{bidaf_forward.27}
  #allocation0 [shape = 'u32[]', space=smem, size = 0x4, offset = 0x4, fixed_abs, tag = 'smem constant byte address 0x4 - core index']
  #allocation1 [shape = 'u32[144,128]{1,0:T(1,128)}', space=vmem, size = 0x12000, scoped, tag = 'internal scratch']
  #allocation2 [shape = 'f32[1,1]{1,0:T(1,128)S(1)}', space=vmem, size = 0x200, scoped, tag = 'scoped memory for bidaf_forward.27']
  #allocation3 [shape = 'f32[1,1]{1,0:T(1,128)S(1)}', space=vmem, size = 0x200, scoped, tag = 'scoped memory for bidaf_forward.27']
  %s0 = inlined_call_operand.vmem [shape: f32[2,12,128], index: 0, kind: input, shape index: {}]
  %s1 = inlined_call_operand.vmem [shape: f32[2,12,32], index: 1, kind: input, shape index: {}]
  %s2 = inlined_call_operand.vmem [shape: f32[2,12,32], index: 2, kind: input, shape index: {}]
  %s3 = inlined_call_operand.vmem [shape: f32[2,1,12], index: 3, kind: input, shape index: {}]
  %s4 = inlined_call_operand.vmem [shape: f32[1,128], index: 4, kind: input, shape index: {}]
  %s5 = inlined_call_operand.vmem [shape: f32[1,32], index: 5, kind: input, shape index: {}]
  %s6 = inlined_call_operand.vmem [shape: f32[1,128], index: 6, kind: input, shape index: {}]
  %s7 = inlined_call_operand.vmem [shape: f32[1,32], index: 7, kind: input, shape index: {}]
  %s8 = inlined_call_operand.<no memory space> [shape: f32[1,1], index: 8, kind: input, shape index: {}]
  %s9 = inlined_call_operand.<no memory space> [shape: f32[1,1], index: 9, kind: input, shape index: {}]
  %s10 = inlined_call_operand.hbm [shape: f32[2,1,12], index: 10, kind: output, shape index: {0}]
  %s11 = inlined_call_operand.hbm [shape: f32[2,1,12], index: 11, kind: output, shape index: {1}]
  %12 = xla_tuple %s10, %s11
  %s13 = sld [smem:[#allocation0]]
  $region81: #{bidaf_forward.27} parent=0
    _
  %s15 = ssub.s32 1, %s13
  %s16 = scalar_select 0, %s15, %s13
  %v17 = vstv %s8
  %18 = vst [vmem:[#allocation2] sm:$0x1] %v17
  %v19 = vstv %s9
  %20 = vst [vmem:[#allocation3] sm:$0x1] %v19
  $region1: #{bidaf_forward.27} parent=0
    #allocation4 [shape = 'u8[1024]{0}', space=vmem, size = 0x400, scoped, tag = 'output window, operand 0']
    #allocation5 [shape = 's32[2]{0}', space=sflag, size = 0x8, scoped, tag = 'scoped memory for bidaf_forward.27']
    #allocation6 [shape = 'u8[1024]{0}', space=vmem, size = 0x400, scoped, tag = 'output window, operand 1']
    #allocation7 [shape = 's32[2]{0}', space=sflag, size = 0x8, scoped, tag = 'scoped memory for bidaf_forward.27']
    %21 = vsyncpa [#allocation5], 0
    %s22 = scalar_lea.sflag [#allocation5], 1
    %23 = vsyncpa %s22, 0
    %24 = vsyncpa [#allocation7], 0
    %s25 = scalar_lea.sflag [#allocation7], 1
    %26 = vsyncpa %s25, 0
    loop: start=0, step=1, limit=4
    $region2: #{bidaf_forward.27} parent=1 // loop_pre_header
      _
    $region3: #{bidaf_forward.27} parent=1 // loop_header
      %s28 = sphi 0, %s32
      %p29 = scmp.ge.s32.totalorder %s28, 4
      %s38 = sphi 0, %s40
      %s41 = sphi 0, %s38
      %s42 = sphi 0, %s41
      %s58 = sphi 0, %s42
      %s64 = sphi 0, %s66
      %s67 = sphi 0, %s64
      %s68 = sphi 0, %s67
      %s84 = sphi 0, %s68
      %s90 = sphi 0, %s92
      %s93 = sphi 0, %s90
      %s94 = sphi 0, %s93
      %s110 = sphi 0, %s94
      %s116 = sphi 0, %s118
      %s119 = sphi 0, %s116
      %s120 = sphi 0, %s119
      %s136 = sphi 0, %s120
      %s140 = sphi 0, %s140
      %s142 = sphi 0, %s140
      %s143 = sphi 0, %s142
      %s157 = sphi 0, %s143
      %s161 = sphi 0, %s161
      %s163 = sphi 0, %s161
      %s164 = sphi 0, %s163
      %s178 = sphi 0, %s164
      %s182 = sphi 0, %s182
      %s184 = sphi 0, %s182
      %s185 = sphi 0, %s184
      %s199 = sphi 0, %s185
      %s203 = sphi 0, %s203
      %s205 = sphi 0, %s203
      %s206 = sphi 0, %s205
      %s220 = sphi 0, %s206
      %s224 = sphi 0, %s224
      %s226 = sphi 0, %s224
      %s227 = sphi 0, %s226
      %s241 = sphi 0, %s227
      %s245 = sphi 0, %s245
      %s247 = sphi 0, %s245
      %s248 = sphi 0, %s247
      %s262 = sphi 0, %s248
      %s268 = sphi 0, %s270
      %s271 = sphi 0, %s268
      %s272 = sphi 0, %s271
      %s288 = sphi 0, %s272
      %s294 = sphi 0, %s296
      %s297 = sphi 0, %s294
      %s298 = sphi 0, %s297
      %s314 = sphi 0, %s298
    $region4: #{bidaf_forward.27} parent=1 // loop_header_branch
      %31 = sbr.rel (%p29) target = $region8
    $region5: #{bidaf_forward.27} parent=1 // loop_body
      %s33 = ssub.s32 %s28, 1
      %s34 = ssub.s32 %s28, 2
      %s35 = sadd.s32 %s28, 1
      %s36 = ssub.s32 %s28, %s35
      %p37 = scmp.eq.s32.totalorder %s36, 0
      %s39 = sadd.s32 %s38, 1
      %s40 = scalar_select %p37, %s38, %s39
      %p43 = pneg %p37
      %p44 = scmp.eq.s32.totalorder %s28, 1
      %p45 = por %p43, %p44
      %p46 = scmp.ne.s32.totalorder %s38, %s41
      %p47 = scmp.eq.s32.totalorder %s28, 0
      %p48 = por %p46, %p47
      %p49 = scmp.ne.s32.totalorder %s38, %s41
      %p50 = scmp.eq.s32.totalorder %s33, 1
      %p51 = por %p49, %p50
      %p52 = scmp.ne.s32.totalorder %s41, %s42
      %p53 = scmp.eq.s32.totalorder %s33, 0
      %p54 = por %p52, %p53
      %p55 = scmp.ne.s32.totalorder %s41, %s42
      %p56 = scmp.eq.s32.totalorder %s34, 1
      %p57 = por %p55, %p56
      %p59 = scmp.ne.s32.totalorder %s42, %s58
      %p60 = scmp.eq.s32.totalorder %s34, 0
      %p61 = por %p59, %p60
      %s62 = ssub.s32 %s28, %s35
      %p63 = scmp.eq.s32.totalorder %s62, 0
      %s65 = sadd.s32 %s64, 1
      %s66 = scalar_select %p63, %s64, %s65
      %p69 = pneg %p63
      %p70 = scmp.eq.s32.totalorder %s28, 1
      %p71 = por %p69, %p70
      %p72 = scmp.ne.s32.totalorder %s64, %s67
      %p73 = scmp.eq.s32.totalorder %s28, 0
      %p74 = por %p72, %p73
      %p75 = scmp.ne.s32.totalorder %s64, %s67
      %p76 = scmp.eq.s32.totalorder %s33, 1
      %p77 = por %p75, %p76
      %p78 = scmp.ne.s32.totalorder %s67, %s68
      %p79 = scmp.eq.s32.totalorder %s33, 0
      %p80 = por %p78, %p79
      %p81 = scmp.ne.s32.totalorder %s67, %s68
      %p82 = scmp.eq.s32.totalorder %s34, 1
      %p83 = por %p81, %p82
      %p85 = scmp.ne.s32.totalorder %s68, %s84
      %p86 = scmp.eq.s32.totalorder %s34, 0
      %p87 = por %p85, %p86
      %s88 = ssub.s32 %s28, %s35
      %p89 = scmp.eq.s32.totalorder %s88, 0
      %s91 = sadd.s32 %s90, 1
      %s92 = scalar_select %p89, %s90, %s91
      %p95 = pneg %p89
      %p96 = scmp.eq.s32.totalorder %s28, 1
      %p97 = por %p95, %p96
      %p98 = scmp.ne.s32.totalorder %s90, %s93
      %p99 = scmp.eq.s32.totalorder %s28, 0
      %p100 = por %p98, %p99
      %p101 = scmp.ne.s32.totalorder %s90, %s93
      %p102 = scmp.eq.s32.totalorder %s33, 1
      %p103 = por %p101, %p102
      %p104 = scmp.ne.s32.totalorder %s93, %s94
      %p105 = scmp.eq.s32.totalorder %s33, 0
      %p106 = por %p104, %p105
      %p107 = scmp.ne.s32.totalorder %s93, %s94
      %p108 = scmp.eq.s32.totalorder %s34, 1
      %p109 = por %p107, %p108
      %p111 = scmp.ne.s32.totalorder %s94, %s110
      %p112 = scmp.eq.s32.totalorder %s34, 0
      %p113 = por %p111, %p112
      %s114 = ssub.s32 %s28, %s35
      %p115 = scmp.eq.s32.totalorder %s114, 0
      %s117 = sadd.s32 %s116, 1
      %s118 = scalar_select %p115, %s116, %s117
      %p121 = pneg %p115
      %p122 = scmp.eq.s32.totalorder %s28, 1
      %p123 = por %p121, %p122
      %p124 = scmp.ne.s32.totalorder %s116, %s119
      %p125 = scmp.eq.s32.totalorder %s28, 0
      %p126 = por %p124, %p125
      %p127 = scmp.ne.s32.totalorder %s116, %s119
      %p128 = scmp.eq.s32.totalorder %s33, 1
      %p129 = por %p127, %p128
      %p130 = scmp.ne.s32.totalorder %s119, %s120
      %p131 = scmp.eq.s32.totalorder %s33, 0
      %p132 = por %p130, %p131
      %p133 = scmp.ne.s32.totalorder %s119, %s120
      %p134 = scmp.eq.s32.totalorder %s34, 1
      %p135 = por %p133, %p134
      %p137 = scmp.ne.s32.totalorder %s120, %s136
      %p138 = scmp.eq.s32.totalorder %s34, 0
      %p139 = por %p137, %p138
      %s141 = sadd.s32 %s140, 1
      %p144 = scmp.eq.s32.totalorder %s28, 1
      %p145 = scmp.ne.s32.totalorder %s140, %s142
      %p146 = scmp.eq.s32.totalorder %s28, 0
      %p147 = por %p145, %p146
      %p148 = scmp.ne.s32.totalorder %s140, %s142
      %p149 = scmp.eq.s32.totalorder %s33, 1
      %p150 = por %p148, %p149
      %p151 = scmp.ne.s32.totalorder %s142, %s143
      %p152 = scmp.eq.s32.totalorder %s33, 0
      %p153 = por %p151, %p152
      %p154 = scmp.ne.s32.totalorder %s142, %s143
      %p155 = scmp.eq.s32.totalorder %s34, 1
      %p156 = por %p154, %p155
      %p158 = scmp.ne.s32.totalorder %s143, %s157
      %p159 = scmp.eq.s32.totalorder %s34, 0
      %p160 = por %p158, %p159
      %s162 = sadd.s32 %s161, 1
      %p165 = scmp.eq.s32.totalorder %s28, 1
      %p166 = scmp.ne.s32.totalorder %s161, %s163
      %p167 = scmp.eq.s32.totalorder %s28, 0
      %p168 = por %p166, %p167
      %p169 = scmp.ne.s32.totalorder %s161, %s163
      %p170 = scmp.eq.s32.totalorder %s33, 1
      %p171 = por %p169, %p170
      %p172 = scmp.ne.s32.totalorder %s163, %s164
      %p173 = scmp.eq.s32.totalorder %s33, 0
      %p174 = por %p172, %p173
      %p175 = scmp.ne.s32.totalorder %s163, %s164
      %p176 = scmp.eq.s32.totalorder %s34, 1
      %p177 = por %p175, %p176
      %p179 = scmp.ne.s32.totalorder %s164, %s178
      %p180 = scmp.eq.s32.totalorder %s34, 0
      %p181 = por %p179, %p180
      %s183 = sadd.s32 %s182, 1
      %p186 = scmp.eq.s32.totalorder %s28, 1
      %p187 = scmp.ne.s32.totalorder %s182, %s184
      %p188 = scmp.eq.s32.totalorder %s28, 0
      %p189 = por %p187, %p188
      %p190 = scmp.ne.s32.totalorder %s182, %s184
      %p191 = scmp.eq.s32.totalorder %s33, 1
      %p192 = por %p190, %p191
      %p193 = scmp.ne.s32.totalorder %s184, %s185
      %p194 = scmp.eq.s32.totalorder %s33, 0
      %p195 = por %p193, %p194
      %p196 = scmp.ne.s32.totalorder %s184, %s185
      %p197 = scmp.eq.s32.totalorder %s34, 1
      %p198 = por %p196, %p197
      %p200 = scmp.ne.s32.totalorder %s185, %s199
      %p201 = scmp.eq.s32.totalorder %s34, 0
      %p202 = por %p200, %p201
      %s204 = sadd.s32 %s203, 1
      %p207 = scmp.eq.s32.totalorder %s28, 1
      %p208 = scmp.ne.s32.totalorder %s203, %s205
      %p209 = scmp.eq.s32.totalorder %s28, 0
      %p210 = por %p208, %p209
      %p211 = scmp.ne.s32.totalorder %s203, %s205
      %p212 = scmp.eq.s32.totalorder %s33, 1
      %p213 = por %p211, %p212
      %p214 = scmp.ne.s32.totalorder %s205, %s206
      %p215 = scmp.eq.s32.totalorder %s33, 0
      %p216 = por %p214, %p215
      %p217 = scmp.ne.s32.totalorder %s205, %s206
      %p218 = scmp.eq.s32.totalorder %s34, 1
      %p219 = por %p217, %p218
      %p221 = scmp.ne.s32.totalorder %s206, %s220
      %p222 = scmp.eq.s32.totalorder %s34, 0
      %p223 = por %p221, %p222
      %s225 = sadd.s32 %s224, 1
      %p228 = scmp.eq.s32.totalorder %s28, 1
      %p229 = scmp.ne.s32.totalorder %s224, %s226
      %p230 = scmp.eq.s32.totalorder %s28, 0
      %p231 = por %p229, %p230
      %p232 = scmp.ne.s32.totalorder %s224, %s226
      %p233 = scmp.eq.s32.totalorder %s33, 1
      %p234 = por %p232, %p233
      %p235 = scmp.ne.s32.totalorder %s226, %s227
      %p236 = scmp.eq.s32.totalorder %s33, 0
      %p237 = por %p235, %p236
      %p238 = scmp.ne.s32.totalorder %s226, %s227
      %p239 = scmp.eq.s32.totalorder %s34, 1
      %p240 = por %p238, %p239
      %p242 = scmp.ne.s32.totalorder %s227, %s241
      %p243 = scmp.eq.s32.totalorder %s34, 0
      %p244 = por %p242, %p243
      %s246 = sadd.s32 %s245, 1
      %p249 = scmp.eq.s32.totalorder %s28, 1
      %p250 = scmp.ne.s32.totalorder %s245, %s247
      %p251 = scmp.eq.s32.totalorder %s28, 0
      %p252 = por %p250, %p251
      %p253 = scmp.ne.s32.totalorder %s245, %s247
      %p254 = scmp.eq.s32.totalorder %s33, 1
      %p255 = por %p253, %p254
      %p256 = scmp.ne.s32.totalorder %s247, %s248
      %p257 = scmp.eq.s32.totalorder %s33, 0
      %p258 = por %p256, %p257
      %p259 = scmp.ne.s32.totalorder %s247, %s248
      %p260 = scmp.eq.s32.totalorder %s34, 1
      %p261 = por %p259, %p260
      %p263 = scmp.ne.s32.totalorder %s248, %s262
      %p264 = scmp.eq.s32.totalorder %s34, 0
      %p265 = por %p263, %p264
      %s266 = ssub.s32 %s28, %s35
      %p267 = scmp.eq.s32.totalorder %s266, 0
      %s269 = sadd.s32 %s268, 1
      %s270 = scalar_select %p267, %s268, %s269
      %p273 = pneg %p267
      %p274 = scmp.eq.s32.totalorder %s28, 1
      %p275 = por %p273, %p274
      %p276 = scmp.ne.s32.totalorder %s268, %s271
      %p277 = scmp.eq.s32.totalorder %s28, 0
      %p278 = por %p276, %p277
      %p279 = scmp.ne.s32.totalorder %s268, %s271
      %p280 = scmp.eq.s32.totalorder %s33, 1
      %p281 = por %p279, %p280
      %p282 = scmp.ne.s32.totalorder %s271, %s272
      %p283 = scmp.eq.s32.totalorder %s33, 0
      %p284 = por %p282, %p283
      %p285 = scmp.ne.s32.totalorder %s271, %s272
      %p286 = scmp.eq.s32.totalorder %s34, 1
      %p287 = por %p285, %p286
      %p289 = scmp.ne.s32.totalorder %s272, %s288
      %p290 = scmp.eq.s32.totalorder %s34, 0
      %p291 = por %p289, %p290
      %s292 = ssub.s32 %s28, %s35
      %p293 = scmp.eq.s32.totalorder %s292, 0
      %s295 = sadd.s32 %s294, 1
      %s296 = scalar_select %p293, %s294, %s295
      %p299 = pneg %p293
      %p300 = scmp.eq.s32.totalorder %s28, 1
      %p301 = por %p299, %p300
      %p302 = scmp.ne.s32.totalorder %s294, %s297
      %p303 = scmp.eq.s32.totalorder %s28, 0
      %p304 = por %p302, %p303
      %p305 = scmp.ne.s32.totalorder %s294, %s297
      %p306 = scmp.eq.s32.totalorder %s33, 1
      %p307 = por %p305, %p306
      %p308 = scmp.ne.s32.totalorder %s297, %s298
      %p309 = scmp.eq.s32.totalorder %s33, 0
      %p310 = por %p308, %p309
      %p311 = scmp.ne.s32.totalorder %s297, %s298
      %p312 = scmp.eq.s32.totalorder %s34, 1
      %p313 = por %p311, %p312
      %p315 = scmp.ne.s32.totalorder %s298, %s314
      %p316 = scmp.eq.s32.totalorder %s34, 0
      %p317 = por %p315, %p316
      %p318 = scmp.le.s32.totalorder 1, %s28
      %p319 = scmp.lt.s32.totalorder %s28, 3
      %p320 = pnand %p318, %p319
      %p321 = pneg %p320
      // Predicated region
      $region9: #{bidaf_forward.27} parent=5 // pred_check
        _
      $region10: #{bidaf_forward.27} parent=5 // pred_check_branch
        %323 = sbr.rel (%p320) target = $region12
      $region11: #{bidaf_forward.27} parent=5 // pred_region
        %s324 = ssub.s32 %s28, 1
        // Predicated region
        $region13: #{bidaf_forward.27} parent=11 // pred_check
          %p325 = pneg %p153
        $region14: #{bidaf_forward.27} parent=11 // pred_check_branch
          %327 = sbr.rel (%p325) target = $region16
        $region15: #{bidaf_forward.27} parent=11 // pred_region
          _
        $region16: #{bidaf_forward.27} parent=11 // pred_fallthru
          _
        // Predicated region
        $region17: #{bidaf_forward.27} parent=11 // pred_check
          %p328 = pneg %p174
        $region18: #{bidaf_forward.27} parent=11 // pred_check_branch
          %330 = sbr.rel (%p328) target = $region20
        $region19: #{bidaf_forward.27} parent=11 // pred_region
          _
        $region20: #{bidaf_forward.27} parent=11 // pred_fallthru
          _
        // Predicated region
        $region21: #{bidaf_forward.27} parent=11 // pred_check
          %p331 = pneg %p195
        $region22: #{bidaf_forward.27} parent=11 // pred_check_branch
          %333 = sbr.rel (%p331) target = $region24
        $region23: #{bidaf_forward.27} parent=11 // pred_region
          _
        $region24: #{bidaf_forward.27} parent=11 // pred_fallthru
          _
        // Predicated region
        $region25: #{bidaf_forward.27} parent=11 // pred_check
          %p334 = pneg %p216
        $region26: #{bidaf_forward.27} parent=11 // pred_check_branch
          %336 = sbr.rel (%p334) target = $region28
        $region27: #{bidaf_forward.27} parent=11 // pred_region
          _
        $region28: #{bidaf_forward.27} parent=11 // pred_fallthru
          _
        // Predicated region
        $region29: #{bidaf_forward.27} parent=11 // pred_check
          %p337 = pneg %p237
        $region30: #{bidaf_forward.27} parent=11 // pred_check_branch
          %339 = sbr.rel (%p337) target = $region32
        $region31: #{bidaf_forward.27} parent=11 // pred_region
          _
        $region32: #{bidaf_forward.27} parent=11 // pred_fallthru
          _
        // Predicated region
        $region33: #{bidaf_forward.27} parent=11 // pred_check
          %p340 = pneg %p258
        $region34: #{bidaf_forward.27} parent=11 // pred_check_branch
          %342 = sbr.rel (%p340) target = $region36
        $region35: #{bidaf_forward.27} parent=11 // pred_region
          _
        $region36: #{bidaf_forward.27} parent=11 // pred_fallthru
          _
      $region12: #{bidaf_forward.27} parent=5 // pred_fallthru
        _
      %p343 = scmp.lt.s32.totalorder %s28, 2
      // Predicated region
      $region37: #{bidaf_forward.27} parent=5 // pred_check
        %p344 = pneg %p343
      $region38: #{bidaf_forward.27} parent=5 // pred_check_branch
        %346 = sbr.rel (%p344) target = $region40
      $region39: #{bidaf_forward.27} parent=5 // pred_region
        // Predicated region
        $region41: #{bidaf_forward.27} parent=39 // pred_check
          %p347 = pneg %p48
        $region42: #{bidaf_forward.27} parent=39 // pred_check_branch
          %349 = sbr.rel (%p347) target = $region44
        $region43: #{bidaf_forward.27} parent=39 // pred_region
          %p350 = scmp.lt.s32.totalorder %s28, 1
          %s351 = scalar_select %p350, %s28, 1
          %s352 = smul.addr %s351, 2
          %s353 = smul.addr %s352, 8
          %s354 = scalar_lea.vmem %s0, %s353
        $region44: #{bidaf_forward.27} parent=39 // pred_fallthru
          _
        // Predicated region
        $region45: #{bidaf_forward.27} parent=39 // pred_check
          %p355 = pneg %p74
        $region46: #{bidaf_forward.27} parent=39 // pred_check_branch
          %357 = sbr.rel (%p355) target = $region48
        $region47: #{bidaf_forward.27} parent=39 // pred_region
          %p358 = scmp.lt.s32.totalorder %s28, 1
          %s359 = scalar_select %p358, %s28, 1
          %s360 = smul.addr %s359, 2
          %s361 = smul.addr %s360, 8
          %s362 = scalar_lea.vmem %s1, %s361
        $region48: #{bidaf_forward.27} parent=39 // pred_fallthru
          _
        // Predicated region
        $region49: #{bidaf_forward.27} parent=39 // pred_check
          %p363 = pneg %p100
        $region50: #{bidaf_forward.27} parent=39 // pred_check_branch
          %365 = sbr.rel (%p363) target = $region52
        $region51: #{bidaf_forward.27} parent=39 // pred_region
          %p366 = scmp.lt.s32.totalorder %s28, 1
          %s367 = scalar_select %p366, %s28, 1
          %s368 = smul.addr %s367, 2
          %s369 = smul.addr %s368, 8
          %s370 = scalar_lea.vmem %s2, %s369
        $region52: #{bidaf_forward.27} parent=39 // pred_fallthru
          _
        // Predicated region
        $region53: #{bidaf_forward.27} parent=39 // pred_check
          %p371 = pneg %p126
        $region54: #{bidaf_forward.27} parent=39 // pred_check_branch
          %373 = sbr.rel (%p371) target = $region56
        $region55: #{bidaf_forward.27} parent=39 // pred_region
          %p374 = scmp.lt.s32.totalorder %s28, 1
          %s375 = scalar_select %p374, %s28, 1
          %s376 = scalar_lea.vmem %s3, %s375
        $region56: #{bidaf_forward.27} parent=39 // pred_fallthru
          _
      $region40: #{bidaf_forward.27} parent=5 // pred_fallthru
        _
      %p377 = scmp.le.s32.totalorder 1, %s28
      %p378 = scmp.lt.s32.totalorder %s28, 3
      %p379 = pnand %p377, %p378
      %p380 = pneg %p379
      // Predicated region
      $region57: #{bidaf_forward.27} parent=5 // pred_check
        _
      $region58: #{bidaf_forward.27} parent=5 // pred_check_branch
        %382 = sbr.rel (%p379) target = $region60
      $region59: #{bidaf_forward.27} parent=5 // pred_region
        %s383 = ssub.s32 %s28, 1
        %p384 = scmp.lt.s32.totalorder %s33, 1
        %s385 = scalar_select %p384, %s33, 1
        %s386 = smul.addr %s385, 2
        %s387 = smul.addr %s386, 8
        %s388 = scalar_lea.vmem %s0, %s387
        %p389 = pneg %p54
        %p390 = pneg %p51
        %p391 = scmp.lt.s32.totalorder %s33, 1
        %s392 = scalar_select %p391, %s33, 1
        %s393 = smul.addr %s392, 2
        %s394 = smul.addr %s393, 8
        %s395 = scalar_lea.vmem %s1, %s394
        %p396 = pneg %p80
        %p397 = pneg %p77
        %p398 = scmp.lt.s32.totalorder %s33, 1
        %s399 = scalar_select %p398, %s33, 1
        %s400 = smul.addr %s399, 2
        %s401 = smul.addr %s400, 8
        %s402 = scalar_lea.vmem %s2, %s401
        %p403 = pneg %p106
        %p404 = pneg %p103
        %p405 = scmp.lt.s32.totalorder %s33, 1
        %s406 = scalar_select %p405, %s33, 1
        %s407 = scalar_lea.vmem %s3, %s406
        %p408 = pneg %p132
        %p409 = pneg %p129
        %p410 = pneg %p153
        %p411 = pneg %p150
        %p412 = pneg %p174
        %p413 = pneg %p171
        %p414 = pneg %p195
        %p415 = pneg %p192
        %p416 = pneg %p216
        %p417 = pneg %p213
        %p418 = pneg %p237
        %p419 = pneg %p234
        %p420 = pneg %p258
        %p421 = pneg %p255
        %p422 = pneg %p284
        %p423 = pneg %p281
        %s424 = sand.u32 %s271, 1
        %s425 = scalar_lea.sflag [#allocation5], %s424
        %s426 = sand.u32 %s271, 1
        %s427 = scalar_lea.vmem [#allocation4], %s426
        %p428 = pneg %p310
        %p429 = pneg %p307
        %s430 = sand.u32 %s297, 1
        %s431 = scalar_lea.sflag [#allocation7], %s430
        %s432 = sand.u32 %s297, 1
        %s433 = scalar_lea.vmem [#allocation6], %s432
        %p434 = scmp.lt.s32.totalorder %s33, 1
        %s435 = scalar_select %p434, %s33, 1
        %s436 = smul.addr %s435, 2
        %s437 = smul.addr %s436, 8
        %s438 = scalar_lea.vmem %s0, %s437
        %p439 = scmp.lt.s32.totalorder %s33, 1
        %s440 = scalar_select %p439, %s33, 1
        %s441 = smul.addr %s440, 2
        %s442 = smul.addr %s441, 8
        %s443 = scalar_lea.vmem %s1, %s442
        %p444 = scmp.lt.s32.totalorder %s33, 1
        %s445 = scalar_select %p444, %s33, 1
        %s446 = smul.addr %s445, 2
        %s447 = smul.addr %s446, 8
        %s448 = scalar_lea.vmem %s2, %s447
        %p449 = scmp.lt.s32.totalorder %s33, 1
        %s450 = scalar_select %p449, %s33, 1
        %s451 = scalar_lea.vmem %s3, %s450
        %v452 = vld [vmem:[%s438] sm:$0xff]
        %v453 = vld [vmem:[%s438 + $0x8] sm:$0xf]
        %v454 = vld [vmem:[%s443] sm:$0xff]
        %v455 = vld [vmem:[%s443 + $0x8] sm:$0xf]
        %v456 = vld [vmem:[%s448] sm:$0xff]
        %v457 = vld [vmem:[%s448 + $0x8] sm:$0xf]
        %v458 = vld [vmem:[%s451] sm:$0x1]
        %v459 = vld [vmem:[%s4] sm:$0x1]
        %v460 = vld [vmem:[%s5] sm:$0x1]
        %vm461 = vcmask 261120
        %v463 = vsel %vm461, %v460, 0
        %v466 = vsel %vm461, %v454, 0
        %v469 = vsel %vm461, %v455, 0
        %471 = vmatprep.subr.mxu0 0.0
        %472 = vmatpush1.xpose.msra.mxu0 %v466
        %473 = vmatprep.subr.mxu0 0.0
        %474 = vmatpush1.xpose.msra.mxu0 %v469
        %475 = vmatprep.subr.mxu0 0.0
        %476 = vmatpush1.xpose.msra.mxu0 0.0
        %477 = vmatprep.subr.mxu0 0.0
        %478 = vmatpush1.xpose.msra.mxu0 0.0
        %479 = vmatprep.subr.mxu0 0.0
        %480 = vmatpush1.xpose.msra.mxu0 0.0
        %481 = vmatprep.subr.mxu0 0.0
        %482 = vmatpush1.xpose.msra.mxu0 0.0
        %483 = vmatprep.subr.mxu0 0.0
        %484 = vmatpush1.xpose.msra.mxu0 0.0
        %485 = vmatprep.subr.mxu0 0.0
        %486 = vmatpush1.xpose.msra.mxu0 0.0
        %487 = vmatprep.subr.mxu0 0.0
        %488 = vmatpush1.xpose.msra.mxu0 0.0
        %489 = vmatprep.subr.mxu0 0.0
        %490 = vmatpush1.xpose.msra.mxu0 0.0
        %491 = vmatprep.subr.mxu0 0.0
        %492 = vmatpush1.xpose.msra.mxu0 0.0
        %493 = vmatprep.subr.mxu0 0.0
        %494 = vmatpush1.xpose.msra.mxu0 0.0
        %495 = vmatprep.subr.mxu0 0.0
        %496 = vmatpush1.xpose.msra.mxu0 0.0
        %497 = vmatprep.subr.mxu0 0.0
        %498 = vmatpush1.xpose.msra.mxu0 0.0
        %499 = vmatprep.subr.mxu0 0.0
        %500 = vmatpush1.xpose.msra.mxu0 0.0
        %501 = vmatprep.subr.mxu0 0.0
        %502 = vmatpush1.xpose.msra.mxu0 0.0
        %503 = vmatprep.subr.mxu0 0.0
        %504 = vmatpush1.xpose.msra.mxu0 0.0
        %505 = vmatprep.subr.mxu0 0.0
        %506 = vmatpush1.xpose.msra.mxu0 0.0
        %507 = vmatprep.subr.mxu0 0.0
        %508 = vmatpush1.xpose.msra.mxu0 0.0
        %509 = vmatprep.subr.mxu0 0.0
        %510 = vmatpush1.xpose.msra.mxu0 0.0
        %511 = vmatprep.subr.mxu0 0.0
        %512 = vmatpush1.xpose.msra.mxu0 0.0
        %513 = vmatprep.subr.mxu0 0.0
        %514 = vmatpush1.xpose.msra.mxu0 0.0
        %515 = vmatprep.subr.mxu0 0.0
        %516 = vmatpush1.xpose.msra.mxu0 0.0
        %517 = vmatprep.subr.mxu0 0.0
        %518 = vmatpush1.xpose.msra.mxu0 0.0
        %519 = vmatprep.subr.mxu0 0.0
        %520 = vmatpush1.xpose.msra.mxu0 0.0
        %521 = vmatprep.subr.mxu0 0.0
        %522 = vmatpush1.xpose.msra.mxu0 0.0
        %523 = vmatprep.subr.mxu0 0.0
        %524 = vmatpush1.xpose.msra.mxu0 0.0
        %525 = vmatprep.subr.mxu0 0.0
        %526 = vmatpush1.xpose.msra.mxu0 0.0
        %527 = vmatprep.subr.mxu0 0.0
        %528 = vmatpush1.xpose.msra.mxu0 0.0
        %529 = vmatprep.subr.mxu0 0.0
        %530 = vmatpush1.xpose.msra.mxu0 0.0
        %531 = vmatprep.subr.mxu0 0.0
        %532 = vmatpush1.xpose.msra.mxu0 0.0
        %533 = vmatprep.subr.mxu0 0.0
        %534 = vmatpush1.xpose.msra.mxu0 0.0
        %535 = vmatprep.mubr.f32.mxu0 0.0
        %536 = vmatmul.mubr.f32.gmra.mrb[0].mxu0 %v463
        %v537 = vpop.f32.mrb[0].mxu0
        %v538 = vadd.f32 0.0, %v537
        %v539 = vpop.f32.mrb[0].mxu0
        %540 = vdwg.mxu0
        %541 = vmatprep.subr.mxu0 0.0
        %542 = vmatpush1.xpose.msra.mxu0 %v452
        %543 = vmatprep.subr.mxu0 0.0
        %544 = vmatpush1.xpose.msra.mxu0 %v453
        %545 = vmatprep.subr.mxu0 0.0
        %546 = vmatpush1.xpose.msra.mxu0 0.0
        %547 = vmatprep.subr.mxu0 0.0
        %548 = vmatpush1.xpose.msra.mxu0 0.0
        %549 = vmatprep.subr.mxu0 0.0
        %550 = vmatpush1.xpose.msra.mxu0 0.0
        %551 = vmatprep.subr.mxu0 0.0
        %552 = vmatpush1.xpose.msra.mxu0 0.0
        %553 = vmatprep.subr.mxu0 0.0
        %554 = vmatpush1.xpose.msra.mxu0 0.0
        %555 = vmatprep.subr.mxu0 0.0
        %556 = vmatpush1.xpose.msra.mxu0 0.0
        %557 = vmatprep.subr.mxu0 0.0
        %558 = vmatpush1.xpose.msra.mxu0 0.0
        %559 = vmatprep.subr.mxu0 0.0
        %560 = vmatpush1.xpose.msra.mxu0 0.0
        %561 = vmatprep.subr.mxu0 0.0
        %562 = vmatpush1.xpose.msra.mxu0 0.0
        %563 = vmatprep.subr.mxu0 0.0
        %564 = vmatpush1.xpose.msra.mxu0 0.0
        %565 = vmatprep.subr.mxu0 0.0
        %566 = vmatpush1.xpose.msra.mxu0 0.0
        %567 = vmatprep.subr.mxu0 0.0
        %568 = vmatpush1.xpose.msra.mxu0 0.0
        %569 = vmatprep.subr.mxu0 0.0
        %570 = vmatpush1.xpose.msra.mxu0 0.0
        %571 = vmatprep.subr.mxu0 0.0
        %572 = vmatpush1.xpose.msra.mxu0 0.0
        %573 = vmatprep.subr.mxu0 0.0
        %574 = vmatpush1.xpose.msra.mxu0 0.0
        %575 = vmatprep.subr.mxu0 0.0
        %576 = vmatpush1.xpose.msra.mxu0 0.0
        %577 = vmatprep.subr.mxu0 0.0
        %578 = vmatpush1.xpose.msra.mxu0 0.0
        %579 = vmatprep.subr.mxu0 0.0
        %580 = vmatpush1.xpose.msra.mxu0 0.0
        %581 = vmatprep.subr.mxu0 0.0
        %582 = vmatpush1.xpose.msra.mxu0 0.0
        %583 = vmatprep.subr.mxu0 0.0
        %584 = vmatpush1.xpose.msra.mxu0 0.0
        %585 = vmatprep.subr.mxu0 0.0
        %586 = vmatpush1.xpose.msra.mxu0 0.0
        %587 = vmatprep.subr.mxu0 0.0
        %588 = vmatpush1.xpose.msra.mxu0 0.0
        %589 = vmatprep.subr.mxu0 0.0
        %590 = vmatpush1.xpose.msra.mxu0 0.0
        %591 = vmatprep.subr.mxu0 0.0
        %592 = vmatpush1.xpose.msra.mxu0 0.0
        %593 = vmatprep.subr.mxu0 0.0
        %594 = vmatpush1.xpose.msra.mxu0 0.0
        %595 = vmatprep.subr.mxu0 0.0
        %596 = vmatpush1.xpose.msra.mxu0 0.0
        %597 = vmatprep.subr.mxu0 0.0
        %598 = vmatpush1.xpose.msra.mxu0 0.0
        %599 = vmatprep.subr.mxu0 0.0
        %600 = vmatpush1.xpose.msra.mxu0 0.0
        %601 = vmatprep.subr.mxu0 0.0
        %602 = vmatpush1.xpose.msra.mxu0 0.0
        %603 = vmatprep.subr.mxu0 0.0
        %604 = vmatpush1.xpose.msra.mxu0 0.0
        %605 = vmatprep.mubr.f32.mxu0 0.0
        %606 = vmatmul.mubr.f32.gmra.mrb[0].mxu0 %v459
        %v607 = vpop.f32.mrb[0].mxu0
        %v608 = vadd.f32 %v538, %v607
        %v609 = vpop.f32.mrb[0].mxu0
        %610 = vdwg.mxu0
        %v611 = vld [vmem:[#allocation2] sm:$0x1]
        %613 = vset.pattern.permute.xlu0 0
        %614 = vperm.xlu0 %613, %v611
        %v615 = vpop.permute.xlu0 %614
        %v617 = vlaneseq
        %v618 = vshrl.u32 %v617, 7
        %v619 = vsub.s32 0, %v618
        %v620 = vrot.slane %v615, %v619
        %v621 = vadd.f32 %v608, %v620
        %v622 = vld [vmem:[%s6] sm:$0x1]
        %v623 = vld [vmem:[%s7] sm:$0x1]
        %v625 = vsel %vm461, %v623, 0
        %v628 = vsel %vm461, %v456, 0
        %v631 = vsel %vm461, %v457, 0
        %633 = vmatprep.subr.mxu0 0.0
        %634 = vmatpush1.xpose.msra.mxu0 %v628
        %635 = vmatprep.subr.mxu0 0.0
        %636 = vmatpush1.xpose.msra.mxu0 %v631
        %637 = vmatprep.subr.mxu0 0.0
        %638 = vmatpush1.xpose.msra.mxu0 0.0
        %639 = vmatprep.subr.mxu0 0.0
        %640 = vmatpush1.xpose.msra.mxu0 0.0
        %641 = vmatprep.subr.mxu0 0.0
        %642 = vmatpush1.xpose.msra.mxu0 0.0
        %643 = vmatprep.subr.mxu0 0.0
        %644 = vmatpush1.xpose.msra.mxu0 0.0
        %645 = vmatprep.subr.mxu0 0.0
        %646 = vmatpush1.xpose.msra.mxu0 0.0
        %647 = vmatprep.subr.mxu0 0.0
        %648 = vmatpush1.xpose.msra.mxu0 0.0
        %649 = vmatprep.subr.mxu0 0.0
        %650 = vmatpush1.xpose.msra.mxu0 0.0
        %651 = vmatprep.subr.mxu0 0.0
        %652 = vmatpush1.xpose.msra.mxu0 0.0
        %653 = vmatprep.subr.mxu0 0.0
        %654 = vmatpush1.xpose.msra.mxu0 0.0
        %655 = vmatprep.subr.mxu0 0.0
        %656 = vmatpush1.xpose.msra.mxu0 0.0
        %657 = vmatprep.subr.mxu0 0.0
        %658 = vmatpush1.xpose.msra.mxu0 0.0
        %659 = vmatprep.subr.mxu0 0.0
        %660 = vmatpush1.xpose.msra.mxu0 0.0
        %661 = vmatprep.subr.mxu0 0.0
        %662 = vmatpush1.xpose.msra.mxu0 0.0
        %663 = vmatprep.subr.mxu0 0.0
        %664 = vmatpush1.xpose.msra.mxu0 0.0
        %665 = vmatprep.subr.mxu0 0.0
        %666 = vmatpush1.xpose.msra.mxu0 0.0
        %667 = vmatprep.subr.mxu0 0.0
        %668 = vmatpush1.xpose.msra.mxu0 0.0
        %669 = vmatprep.subr.mxu0 0.0
        %670 = vmatpush1.xpose.msra.mxu0 0.0
        %671 = vmatprep.subr.mxu0 0.0
        %672 = vmatpush1.xpose.msra.mxu0 0.0
        %673 = vmatprep.subr.mxu0 0.0
        %674 = vmatpush1.xpose.msra.mxu0 0.0
        %675 = vmatprep.subr.mxu0 0.0
        %676 = vmatpush1.xpose.msra.mxu0 0.0
        %677 = vmatprep.subr.mxu0 0.0
        %678 = vmatpush1.xpose.msra.mxu0 0.0
        %679 = vmatprep.subr.mxu0 0.0
        %680 = vmatpush1.xpose.msra.mxu0 0.0
        %681 = vmatprep.subr.mxu0 0.0
        %682 = vmatpush1.xpose.msra.mxu0 0.0
        %683 = vmatprep.subr.mxu0 0.0
        %684 = vmatpush1.xpose.msra.mxu0 0.0
        %685 = vmatprep.subr.mxu0 0.0
        %686 = vmatpush1.xpose.msra.mxu0 0.0
        %687 = vmatprep.subr.mxu0 0.0
        %688 = vmatpush1.xpose.msra.mxu0 0.0
        %689 = vmatprep.subr.mxu0 0.0
        %690 = vmatpush1.xpose.msra.mxu0 0.0
        %691 = vmatprep.subr.mxu0 0.0
        %692 = vmatpush1.xpose.msra.mxu0 0.0
        %693 = vmatprep.subr.mxu0 0.0
        %694 = vmatpush1.xpose.msra.mxu0 0.0
        %695 = vmatprep.subr.mxu0 0.0
        %696 = vmatpush1.xpose.msra.mxu0 0.0
        %697 = vmatprep.mubr.f32.mxu0 0.0
        %698 = vmatmul.mubr.f32.gmra.mrb[0].mxu0 %v625
        %v699 = vpop.f32.mrb[0].mxu0
        %v700 = vadd.f32 0.0, %v699
        %v701 = vpop.f32.mrb[0].mxu0
        %702 = vdwg.mxu0
        %703 = vmatprep.subr.mxu0 0.0
        %704 = vmatpush1.xpose.msra.mxu0 %v452
        %705 = vmatprep.subr.mxu0 0.0
        %706 = vmatpush1.xpose.msra.mxu0 %v453
        %707 = vmatprep.subr.mxu0 0.0
        %708 = vmatpush1.xpose.msra.mxu0 0.0
        %709 = vmatprep.subr.mxu0 0.0
        %710 = vmatpush1.xpose.msra.mxu0 0.0
        %711 = vmatprep.subr.mxu0 0.0
        %712 = vmatpush1.xpose.msra.mxu0 0.0
        %713 = vmatprep.subr.mxu0 0.0
        %714 = vmatpush1.xpose.msra.mxu0 0.0
        %715 = vmatprep.subr.mxu0 0.0
        %716 = vmatpush1.xpose.msra.mxu0 0.0
        %717 = vmatprep.subr.mxu0 0.0
        %718 = vmatpush1.xpose.msra.mxu0 0.0
        %719 = vmatprep.subr.mxu0 0.0
        %720 = vmatpush1.xpose.msra.mxu0 0.0
        %721 = vmatprep.subr.mxu0 0.0
        %722 = vmatpush1.xpose.msra.mxu0 0.0
        %723 = vmatprep.subr.mxu0 0.0
        %724 = vmatpush1.xpose.msra.mxu0 0.0
        %725 = vmatprep.subr.mxu0 0.0
        %726 = vmatpush1.xpose.msra.mxu0 0.0
        %727 = vmatprep.subr.mxu0 0.0
        %728 = vmatpush1.xpose.msra.mxu0 0.0
        %729 = vmatprep.subr.mxu0 0.0
        %730 = vmatpush1.xpose.msra.mxu0 0.0
        %731 = vmatprep.subr.mxu0 0.0
        %732 = vmatpush1.xpose.msra.mxu0 0.0
        %733 = vmatprep.subr.mxu0 0.0
        %734 = vmatpush1.xpose.msra.mxu0 0.0
        %735 = vmatprep.subr.mxu0 0.0
        %736 = vmatpush1.xpose.msra.mxu0 0.0
        %737 = vmatprep.subr.mxu0 0.0
        %738 = vmatpush1.xpose.msra.mxu0 0.0
        %739 = vmatprep.subr.mxu0 0.0
        %740 = vmatpush1.xpose.msra.mxu0 0.0
        %741 = vmatprep.subr.mxu0 0.0
        %742 = vmatpush1.xpose.msra.mxu0 0.0
        %743 = vmatprep.subr.mxu0 0.0
        %744 = vmatpush1.xpose.msra.mxu0 0.0
        %745 = vmatprep.subr.mxu0 0.0
        %746 = vmatpush1.xpose.msra.mxu0 0.0
        %747 = vmatprep.subr.mxu0 0.0
        %748 = vmatpush1.xpose.msra.mxu0 0.0
        %749 = vmatprep.subr.mxu0 0.0
        %750 = vmatpush1.xpose.msra.mxu0 0.0
        %751 = vmatprep.subr.mxu0 0.0
        %752 = vmatpush1.xpose.msra.mxu0 0.0
        %753 = vmatprep.subr.mxu0 0.0
        %754 = vmatpush1.xpose.msra.mxu0 0.0
        %755 = vmatprep.subr.mxu0 0.0
        %756 = vmatpush1.xpose.msra.mxu0 0.0
        %757 = vmatprep.subr.mxu0 0.0
        %758 = vmatpush1.xpose.msra.mxu0 0.0
        %759 = vmatprep.subr.mxu0 0.0
        %760 = vmatpush1.xpose.msra.mxu0 0.0
        %761 = vmatprep.subr.mxu0 0.0
        %762 = vmatpush1.xpose.msra.mxu0 0.0
        %763 = vmatprep.subr.mxu0 0.0
        %764 = vmatpush1.xpose.msra.mxu0 0.0
        %765 = vmatprep.subr.mxu0 0.0
        %766 = vmatpush1.xpose.msra.mxu0 0.0
        %767 = vmatprep.mubr.f32.mxu0 0.0
        %768 = vmatmul.mubr.f32.gmra.mrb[0].mxu0 %v622
        %v769 = vpop.f32.mrb[0].mxu0
        %v770 = vadd.f32 %v700, %v769
        %v771 = vpop.f32.mrb[0].mxu0
        %772 = vdwg.mxu0
        %v773 = vld [vmem:[#allocation3] sm:$0x1]
        %775 = vset.pattern.permute.xlu0 0
        %776 = vperm.xlu0 %775, %v773
        %v777 = vpop.permute.xlu0 %776
        %v779 = vlaneseq
        %v780 = vshrl.u32 %v779, 7
        %v781 = vsub.s32 0, %v780
        %v782 = vrot.slane %v777, %v781
        %v783 = vadd.f32 %v770, %v782
        %v784 = vmul.f32 %v458, %v621
        %v785 = vsub.f32 1.0, %v458
        %v786 = vmul.f32 %v785, -1e+30
        %v787 = vadd.f32 %v784, %v786
        %vm788 = vcmask 90112
        %v789 = vsel %vm788, %v787, -inf
        %790 = vmax.xlane.f32.xlu0 %v789
        %v791 = vpop.xlane.xlu0 %790
        %v792 = vsub.f32 %v787, %v791
        %v793 = vmul.f32 %v792, 1.442695
        %v794 = vpow.pop %v793
        %v795 = vsel %vm788, %v794, 0.0
        %796 = vadd.xlane.f32.xlu0 %v795
        %v797 = vpop.xlane.xlu0 %796
        %v798 = vlog2.pop %v797
        %v799 = vmul.f32 %v798, 0.6931472
        %v800 = vadd.f32 %v799, %v791
        %v801 = vsub.f32 %v787, %v800
        %802 = vst.msk [vmem:[%s427] sm:$0x1] %vm788, %v801
        %v803 = vmul.f32 %v458, %v783
        %v804 = vadd.f32 %v803, %v786
        %v805 = vsel %vm788, %v804, -inf
        %806 = vmax.xlane.f32.xlu0 %v805
        %v807 = vpop.xlane.xlu0 %806
        %v808 = vsub.f32 %v804, %v807
        %v809 = vmul.f32 %v808, 1.442695
        %v810 = vpow.pop %v809
        %v811 = vsel %vm788, %v810, 0.0
        %812 = vadd.xlane.f32.xlu0 %v811
        %v813 = vpop.xlane.xlu0 %812
        %v814 = vlog2.pop %v813
        %v815 = vmul.f32 %v814, 0.6931472
        %v816 = vadd.f32 %v815, %v807
        %v817 = vsub.f32 %v804, %v816
        %818 = vst.msk [vmem:[%s433] sm:$0x1] %vm788, %v817
        %s819 = sand.u32 %s271, 1
        %s820 = scalar_lea.sflag [#allocation5], %s819
        %s821 = sand.u32 %s271, 1
        %s822 = scalar_lea.vmem [#allocation4], %s821
        %s823 = sand.u32 %s297, 1
        %s824 = scalar_lea.sflag [#allocation7], %s823
        %s825 = sand.u32 %s297, 1
        %s826 = scalar_lea.vmem [#allocation6], %s825
        // Predicated region
        $region61: #{bidaf_forward.27} parent=59 // pred_check
          %p827 = pneg %p281
        $region62: #{bidaf_forward.27} parent=59 // pred_check_branch
          %829 = sbr.rel (%p827) target = $region64
        $region63: #{bidaf_forward.27} parent=59 // pred_region
          %s831 = ssub.s32 16, 16
          %832 = vsyncadd %s820, %s831
          %s833 = smul.addr %s33, 16
          %s834 = scalar_lea.hbm %s10, %s833
          %s836 = sshll.u32 %s822, 4
          %s837 = int_to_ptr.vmem [resolvable:$true] %s836
          %839 = dma.vmem_to_hbm [thread:$0]  %s837, 16, %s834, %s820
        $region64: #{bidaf_forward.27} parent=59 // pred_fallthru
          _
        // Predicated region
        $region65: #{bidaf_forward.27} parent=59 // pred_check
          %p840 = pneg %p307
        $region66: #{bidaf_forward.27} parent=59 // pred_check_branch
          %842 = sbr.rel (%p840) target = $region68
        $region67: #{bidaf_forward.27} parent=59 // pred_region
          %s844 = ssub.s32 16, 16
          %845 = vsyncadd %s824, %s844
          %s846 = smul.addr %s33, 16
          %s847 = scalar_lea.hbm %s11, %s846
          %s849 = sshll.u32 %s826, 4
          %s850 = int_to_ptr.vmem [resolvable:$true] %s849
          %852 = dma.vmem_to_hbm [thread:$0]  %s850, 16, %s847, %s824
        $region68: #{bidaf_forward.27} parent=59 // pred_fallthru
          _
      $region60: #{bidaf_forward.27} parent=5 // pred_fallthru
        _
      %p853 = scmp.le.s32.totalorder 2, %s28
      // Predicated region
      $region69: #{bidaf_forward.27} parent=5 // pred_check
        %p854 = pneg %p853
      $region70: #{bidaf_forward.27} parent=5 // pred_check_branch
        %856 = sbr.rel (%p854) target = $region72
      $region71: #{bidaf_forward.27} parent=5 // pred_region
        %s857 = ssub.s32 %s28, 2
        // Predicated region
        $region73: #{bidaf_forward.27} parent=71 // pred_check
          %p858 = pneg %p287
        $region74: #{bidaf_forward.27} parent=71 // pred_check_branch
          %860 = sbr.rel (%p858) target = $region76
        $region75: #{bidaf_forward.27} parent=71 // pred_region
          %s861 = sand.u32 %s272, 1
          %s862 = scalar_lea.sflag [#allocation5], %s861
          %s863 = sand.u32 %s272, 1
          %s864 = scalar_lea.vmem [#allocation4], %s863
          %865 = dma.done %s862, 16
        $region76: #{bidaf_forward.27} parent=71 // pred_fallthru
          _
        // Predicated region
        $region77: #{bidaf_forward.27} parent=71 // pred_check
          %p866 = pneg %p313
        $region78: #{bidaf_forward.27} parent=71 // pred_check_branch
          %868 = sbr.rel (%p866) target = $region80
        $region79: #{bidaf_forward.27} parent=71 // pred_region
          %s869 = sand.u32 %s298, 1
          %s870 = scalar_lea.sflag [#allocation7], %s869
          %s871 = sand.u32 %s298, 1
          %s872 = scalar_lea.vmem [#allocation6], %s871
          %873 = dma.done %s870, 16
        $region80: #{bidaf_forward.27} parent=71 // pred_fallthru
          _
      $region72: #{bidaf_forward.27} parent=5 // pred_fallthru
        _
    $region6: #{bidaf_forward.27} parent=1 // loop_footer
      %s32 = sadd.s32 1, %s28
    $region7: #{bidaf_forward.27} parent=1 // loop_footer_branch
      %27 = sbr.rel target = $region3
    $region8: #{bidaf_forward.27} parent=1 // loop_exit
      _
    %874 = vsyncpa [#allocation5], 1
    %s875 = scalar_lea.sflag [#allocation5], 1
    %876 = vsyncpa %s875, 1
    %877 = vsyncpa [#allocation7], 1
    %s878 = scalar_lea.sflag [#allocation7], 1
    %879 = vsyncpa %s878, 1

</llo_original>
